<compile_context>
chip_gen: v7x
topology: tpu7x:2x2x1
jax: 0.10.0
libtpu: 0.0.40
codegen_flags: <defaults>
</compile_context>

<pallas_src>
import functools
import math

import jax
import jax.numpy as jnp
from jax.experimental import pallas as pl
from jax.experimental.pallas import tpu as pltpu

_EPS = 1e-5


def _round_up(x, m):
    return ((x + m - 1) // m) * m


def _pick_tile(h, cap=32):
    """Largest divisor of h that is <= cap (row-tile height for the 3x3 convs)."""
    for t in range(min(h, cap), 0, -1):
        if h % t == 0:
            return t
    return h


# ----------------------------- Pallas kernels ------------------------------

def _mm_kernel(x_ref, w_ref, b_ref, o_ref, *, relu):
    acc = jnp.dot(x_ref[...], w_ref[...], preferred_element_type=jnp.float32)
    acc = acc + b_ref[...]
    if relu:
        acc = jnp.maximum(acc, 0.0)
    o_ref[...] = acc


def matmul_bias_act(x, w, b, relu=True, tm_max=512):
    """out = act(x @ w + b); x: [M, K] float, w: [K, N] bf16, b: [N] f32."""
    M, K = x.shape
    N = w.shape[1]
    x = x.astype(jnp.bfloat16)
    tm = min(tm_max, _round_up(M, 8))
    Mp = _round_up(M, tm)
    if Mp != M:  # pad only when the tile does not divide M (no-op on the hot path)
        x = jnp.pad(x, ((0, Mp - M), (0, 0)))
    out = pl.pallas_call(
        functools.partial(_mm_kernel, relu=relu),
        out_shape=jax.ShapeDtypeStruct((Mp, N), jnp.float32),
        grid=(Mp // tm,),
        in_specs=[
            pl.BlockSpec((tm, K), lambda i: (i, 0)),
            pl.BlockSpec((K, N), lambda i: (0, 0)),
            pl.BlockSpec((1, N), lambda i: (0, 0)),
        ],
        out_specs=pl.BlockSpec((tm, N), lambda i: (i, 0)),
        compiler_params=pltpu.CompilerParams(dimension_semantics=("parallel",)),
    )(x, w, b.reshape(1, N))
    return out if Mp == M else out[:M]


def _easpp_kernel(x_ref, crw_ref, crb_ref, wm_ref, bm_ref, w2_ref, misc_ref,
                  icw_ref, icb_ref, o_ref, xr_pad, *, H, W, pad, dilations):
    C = 64
    # --- Channel_Reduction: 1x1 conv 256 -> 64 (BN folded) + ReLU (MXU, bf16) ---
    x = x_ref[...].reshape(H * W, x_ref.shape[-1])
    cr = jnp.dot(x, crw_ref[...], preferred_element_type=jnp.float32) + crb_ref[...]
    cr = jnp.maximum(cr, 0.0)

    # zero-padded VMEM scratch feeds the dilated 3x3 taps via static slices
    # (no 27x HBM tap materialization)
    xr_pad[...] = jnp.zeros_like(xr_pad)
    xr_pad[pad:pad + H, pad:pad + W, :] = cr.reshape(H, W, C)

    # --- 64 per-channel MSFF blocks, fused across channels (VPU) ---
    z = jnp.zeros((H, W, C), jnp.float32)
    for di, d in enumerate(dilations):
        yd = jnp.zeros((H, W, C), jnp.float32)
        for ky in range(3):
            for kx in range(3):
                t = xr_pad[pad + (ky - 1) * d:pad + (ky - 1) * d + H,
                           pad + (kx - 1) * d:pad + (kx - 1) * d + W, :]
                idx = di * 9 + ky * 3 + kx
                yd = yd + t * wm_ref[idx:idx + 1, :].reshape(1, 1, C)
        yd = jnp.maximum(yd + bm_ref[di:di + 1, :].reshape(1, 1, C), 0.0)  # BN1 + ReLU
        z = z + yd * w2_ref[di:di + 1, :].reshape(1, 1, C)                 # 1x1 over dilations
    z = jnp.maximum(z + misc_ref[0:1, :].reshape(1, 1, C), 0.0)            # BN2 + ReLU
    msff = jnp.maximum(z * misc_ref[1:2, :].reshape(1, 1, C)
                       + misc_ref[2:3, :].reshape(1, 1, C), 0.0)           # MSFF_BN_ACt

    # --- Inter_channel_Feature_Fusion: 1x1 conv 64 -> 128 + ReLU (MXU, bf16) ---
    m2 = msff.reshape(H * W, C).astype(jnp.bfloat16)
    out = jnp.dot(m2, icw_ref[...], preferred_element_type=jnp.float32) + icb_ref[...]
    o_ref[...] = jnp.maximum(out, 0.0).reshape(1, H, W, icw_ref.shape[-1])


def easpp_fused(x32up, p):
    """Fused e_ASPP(256 -> 128, dilations [2,4,8]); grid over batch (whole 1/32
    spatial map per step — a few MB even at large resolutions)."""
    n, H, W, Cin = x32up.shape
    pad = 8  # = max dilation
    m = p["msff"]
    kernel = functools.partial(_easpp_kernel, H=H, W=W, pad=pad, dilations=(2, 4, 8))
    return pl.pallas_call(
        kernel,
        out_shape=jax.ShapeDtypeStruct((n, H, W, 128), jnp.float32),
        grid=(n,),
        in_specs=[
            pl.BlockSpec((1, H, W, Cin), lambda b: (b, 0, 0, 0)),
            pl.BlockSpec((Cin, 64), lambda b: (0, 0)),
            pl.BlockSpec((1, 64), lambda b: (0, 0)),
            pl.BlockSpec((27, 64), lambda b: (0, 0)),
            pl.BlockSpec((3, 64), lambda b: (0, 0)),
            pl.BlockSpec((3, 64), lambda b: (0, 0)),
            pl.BlockSpec((3, 64), lambda b: (0, 0)),
            pl.BlockSpec((64, 128), lambda b: (0, 0)),
            pl.BlockSpec((1, 128), lambda b: (0, 0)),
        ],
        out_specs=pl.BlockSpec((1, H, W, 128), lambda b: (b, 0, 0, 0)),
        scratch_shapes=[pltpu.VMEM((H + 2 * pad, W + 2 * pad, 64), jnp.float32)],
        compiler_params=pltpu.CompilerParams(dimension_semantics=("parallel",)),
    )(x32up.astype(jnp.bfloat16), p["cr_w"], p["cr_b"].reshape(1, 64),
      m["wm"], m["bm"], m["w2"], m["misc"],
      p["icff_w"], p["icff_b"].reshape(1, 128))


def _conv8_kernel(h8_ref, xu_ref, w_ref, b_ref, o_ref, *, th, W, C):
    # residual add (h8 + up(x32)) fused; zero halos on both inputs keep padding exact
    s = (h8_ref[...] + xu_ref[...]).reshape(th + 2, W + 2, C)
    w = w_ref[...]
    acc = jnp.zeros((th * W, 64), jnp.float32)
    for ky in range(3):
        for kx in range(3):
            t = s[ky:ky + th, kx:kx + W, :].reshape(th * W, C)
            acc = acc + jnp.dot(t, w[ky * 3 + kx], preferred_element_type=jnp.float32)
    out = jnp.maximum(acc + b_ref[...], 0.0)
    o_ref[...] = out.reshape(1, 1, th, W, 64)


def _conv4_cls_kernel(a_ref, h4_ref, wa_ref, wb_ref, b_ref, cw_ref, cb_ref,
                      o_ref, *, th, W, NC):
    a = a_ref[...].reshape(th + 2, W + 2, a_ref.shape[-1])     # up(c8) part (64 ch)
    h4 = h4_ref[...].reshape(th + 2, W + 2, h4_ref.shape[-1])  # head4 part (16 ch)
    wa = wa_ref[...]
    wb = wb_ref[...]
    acc = jnp.zeros((th * W, 64), jnp.float32)
    for ky in range(3):
        for kx in range(3):
            ta = a[ky:ky + th, kx:kx + W, :].reshape(th * W, a.shape[-1])
            tb = h4[ky:ky + th, kx:kx + W, :].reshape(th * W, h4.shape[-1])
            acc = acc + jnp.dot(ta, wa[ky * 3 + kx], preferred_element_type=jnp.float32)
            acc = acc + jnp.dot(tb, wb[ky * 3 + kx], preferred_element_type=jnp.float32)
    c4 = jnp.maximum(acc + b_ref[...], 0.0)
    # classifier fused in the epilogue: c4 (64-wide) never leaves VMEM
    out = jnp.dot(c4.astype(jnp.bfloat16), cw_ref[...],
                  preferred_element_type=jnp.float32) + cb_ref[...]
    o_ref[...] = out.reshape(1, 1, th, W, NC)


def _halo_row_tiles(x, th):
    """[n, H, W, C] -> zero-pad by 1 and split H into row tiles carrying a 1-row
    halo: [n, H//th, th+2, W+2, C].  Only 2 halo rows per tile are duplicated
    (vs the 9x blow-up of im2col)."""
    n, h, w, c = x.shape
    xp = jnp.pad(x, ((0, 0), (1, 1), (1, 1), (0, 0)))
    nt = h // th
    tiles = [xp[:, i * th:i * th + th + 2, :, :] for i in range(nt)]
    return jnp.stack(tiles, axis=1)


def conv8_fused(h8, x32u, w9, b, th):
    # TODO(synk): for very large widths also tile W (current tiles span full rows).
    n, H, W, C = h8.shape
    a = _halo_row_tiles(h8.astype(jnp.bfloat16), th)
    u = _halo_row_tiles(x32u.astype(jnp.bfloat16), th)
    nt = a.shape[1]
    out = pl.pallas_call(
        functools.partial(_conv8_kernel, th=th, W=W, C=C),
        out_shape=jax.ShapeDtypeStruct((n, nt, th, W, 64), jnp.float32),
        grid=(n, nt),
        in_specs=[
            pl.BlockSpec((1, 1, th + 2, W + 2, C), lambda bi, i: (bi, i, 0, 0, 0)),
            pl.BlockSpec((1, 1, th + 2, W + 2, C), lambda bi, i: (bi, i, 0, 0, 0)),
            pl.BlockSpec((9, C, 64), lambda bi, i: (0, 0, 0)),
            pl.BlockSpec((1, 64), lambda bi, i: (0, 0)),
        ],
        out_specs=pl.BlockSpec((1, 1, th, W, 64), lambda bi, i: (bi, i, 0, 0, 0)),
        compiler_params=pltpu.CompilerParams(
            dimension_semantics=("parallel", "parallel")),
    )(a, u, w9, b.reshape(1, 64))
    return out.reshape(n, nt * th, W, 64)


def conv4_cls_fused(c8u, h4, wa9, wb9, b4, cls_w, cls_b, th, num_classes):
    n, H, W, _ = c8u.shape
    a = _halo_row_tiles(c8u.astype(jnp.bfloat16), th)
    hh = _halo_row_tiles(h4.astype(jnp.bfloat16), th)
    nt = a.shape[1]
    out = pl.pallas_call(
        functools.partial(_conv4_cls_kernel, th=th, W=W, NC=num_classes),
        out_shape=jax.ShapeDtypeStruct((n, nt, th, W, num_classes), jnp.float32),
        grid=(n, nt),
        in_specs=[
            pl.BlockSpec((1, 1, th + 2, W + 2, 64), lambda bi, i: (bi, i, 0, 0, 0)),
            pl.BlockSpec((1, 1, th + 2, W + 2, 16), lambda bi, i: (bi, i, 0, 0, 0)),
            pl.BlockSpec((9, 64, 64), lambda bi, i: (0, 0, 0)),
            pl.BlockSpec((9, 16, 64), lambda bi, i: (0, 0, 0)),
            pl.BlockSpec((1, 64), lambda bi, i: (0, 0)),
            pl.BlockSpec((64, num_classes), lambda bi, i: (0, 0)),
            pl.BlockSpec((1, num_classes), lambda bi, i: (0, 0)),
        ],
        out_specs=pl.BlockSpec((1, 1, th, W, num_classes),
                               lambda bi, i: (bi, i, 0, 0, 0)),
        compiler_params=pltpu.CompilerParams(
            dimension_semantics=("parallel", "parallel")),
    )(a, hh, wa9, wb9, b4.reshape(1, 64), cls_w, cls_b.reshape(1, num_classes))
    return out.reshape(n, nt * th, W, num_classes)


# ------------------------------- JAX glue ----------------------------------

def _src_coords(out_size, in_size):
    xs = (jnp.arange(out_size, dtype=jnp.float32) + 0.5) * (in_size / out_size) - 0.5
    xs = jnp.maximum(xs, 0.0)  # PyTorch align_corners=False clamps src >= 0
    x0 = jnp.floor(xs).astype(jnp.int32)
    x1 = jnp.minimum(x0 + 1, in_size - 1)
    frac = xs - x0.astype(jnp.float32)
    return x0, x1, frac


def bilinear_resize(x, out_h, out_w):
    # TODO(synk): bilinear resize stays in plain JAX (gather-heavy, off the matmul hot path)
    y0, y1, fy = _src_coords(out_h, x.shape[1])
    x0, x1, fx = _src_coords(out_w, x.shape[2])
    r0 = jnp.take(x, y0, axis=1)
    r1 = jnp.take(x, y1, axis=1)
    v00 = jnp.take(r0, x0, axis=2)
    v01 = jnp.take(r0, x1, axis=2)
    v10 = jnp.take(r1, x0, axis=2)
    v11 = jnp.take(r1, x1, axis=2)
    fy = fy[None, :, None, None]
    fx = fx[None, None, :, None]
    top = v00 * (1.0 - fx) + v01 * fx
    bot = v10 * (1.0 - fx) + v11 * fx
    return top * (1.0 - fy) + bot * fy


# ------------------------------ parameters ---------------------------------

def _bn_fold(key, shape):
    k1, k2, k3, k4 = jax.random.split(key, 4)
    gamma = 1.0 + 0.1 * jax.random.normal(k1, shape, jnp.float32)
    beta = 0.1 * jax.random.normal(k2, shape, jnp.float32)
    mean = 0.1 * jax.random.normal(k3, shape, jnp.float32)
    var = 1.0 + 0.1 * jax.random.uniform(k4, shape, jnp.float32)
    s = gamma / jnp.sqrt(var + _EPS)
    return s, beta - mean * s


def _conv_bn(key, cin, cout, k):
    kw, kb = jax.random.split(key)
    w = jax.random.normal(kw, (k, k, cin, cout), jnp.float32) / math.sqrt(cin * k * k)
    s, o = _bn_fold(kb, (cout,))
    return w * s, o


def _msff_params(key, channels=64, ndil=3):
    keys = jax.random.split(key, 7)
    wm = jax.random.normal(keys[0], (channels, ndil, 3, 3), jnp.float32) / 3.0
    bm = 0.1 * jax.random.normal(keys[1], (channels, ndil), jnp.float32)
    s1, o1 = _bn_fold(keys[2], (channels, ndil))
    wm_eff = wm * s1[:, :, None, None]
    bm_eff = bm * s1 + o1
    w2 = jax.random.normal(keys[3], (channels, ndil), jnp.float32) / math.sqrt(ndil)
    b2 = 0.1 * jax.random.normal(keys[4], (channels,), jnp.float32)
    s2, o2 = _bn_fold(keys[5], (channels,))
    w2_eff = w2 * s2[:, None]
    b2_eff = b2 * s2 + o2
    s3, o3 = _bn_fold(keys[6], (channels,))
    return dict(
        wm=jnp.transpose(wm_eff, (1, 2, 3, 0)).reshape(ndil * 9, channels),  # rows (d,ky,kx)
        bm=bm_eff.T,
        w2=w2_eff.T,
        misc=jnp.stack([b2_eff, s3, o3], axis=0),
    )


def init_params(key, c4, c8, c32, num_classes):
    assert c32 == 256, "e_ASPP(256, 128, ...) expects channels['32'] == 256"
    ks = jax.random.split(key, 9)
    p = {}
    w, b = _conv_bn(ks[0], c8, 128, 1)
    p["head8_w"], p["head8_b"] = w.reshape(c8, 128).astype(jnp.bfloat16), b
    w, b = _conv_bn(ks[1], c4, 16, 1)
    p["head4_w"], p["head4_b"] = w.reshape(c4, 16).astype(jnp.bfloat16), b
    w, b = _conv_bn(ks[2], 128, 64, 3)
    p["conv8_w"], p["conv8_b"] = w.reshape(9, 128, 64).astype(jnp.bfloat16), b
    w, b = _conv_bn(ks[3], 64 + 16, 64, 3)
    p["conv4_wa"] = w[:, :, :64, :].reshape(9, 64, 64).astype(jnp.bfloat16)
    p["conv4_wb"] = w[:, :, 64:, :].reshape(9, 16, 64).astype(jnp.bfloat16)
    p["conv4_b"] = b
    kcw, kcb = jax.random.split(ks[4])
    p["cls_w"] = (jax.random.normal(kcw, (64, num_classes), jnp.float32) / 8.0
                  ).astype(jnp.bfloat16)
    p["cls_b"] = 0.1 * jax.random.normal(kcb, (num_classes,), jnp.float32)
    # e_ASPP(256 -> 128, dilations [2, 4, 8])
    w, b = _conv_bn(ks[5], 256, 64, 1)
    p["cr_w"], p["cr_b"] = w.reshape(256, 64).astype(jnp.bfloat16), b       # Channel_Reduction
    p["msff"] = _msff_params(ks[6], 64, 3)                                  # 64 fused MSFF modules
    w, b = _conv_bn(ks[7], 64, 128, 1)
    p["icff_w"], p["icff_b"] = w.reshape(64, 128).astype(jnp.bfloat16), b   # Inter_channel_FF
    return p


# -------------------------------- forward ----------------------------------

def easpp_decoder5_forward(params, x4, x8, x32, num_classes):
    # inputs are NCHW (PyTorch convention) -> NHWC internally
    x4 = jnp.transpose(x4, (0, 2, 3, 1)).astype(jnp.float32)
    x8 = jnp.transpose(x8, (0, 2, 3, 1)).astype(jnp.float32)
    x32 = jnp.transpose(x32, (0, 2, 3, 1)).astype(jnp.float32)

    n, h32, w32, _ = x32.shape
    x32u = bilinear_resize(x32, 2 * h32, 2 * w32)

    # ---- e_ASPP(256 -> 128), fully fused (cr -> dilated convs -> fuse -> BN -> icff) ----
    x32f = easpp_fused(x32u, params)                                   # [n, 2h, 2w, 128]

    # ---- heads (1x1 convs, bf16 MXU) ----
    n8, H8, W8, C8 = x8.shape
    h8 = matmul_bias_act(x8.reshape(-1, C8), params["head8_w"],
                         params["head8_b"]).reshape(n8, H8, W8, 128)
    n4, H4, W4, C4 = x4.shape
    h4 = matmul_bias_act(x4.reshape(-1, C4), params["head4_w"],
                         params["head4_b"]).reshape(n4, H4, W4, 16)

    # ---- fuse 1/32 into 1/8: (h8 + up(x32f)) -> 3x3 conv (add fused in-kernel) ----
    x32u8 = bilinear_resize(x32f, H8, W8)
    c8 = conv8_fused(h8, x32u8, params["conv8_w"], params["conv8_b"],
                     _pick_tile(H8))                                   # [n, H8, W8, 64]

    # ---- fuse 1/8 into 1/4: cat(up(c8), h4) -> 3x3 conv -> classifier (fused) ----
    c8u = bilinear_resize(c8, H4, W4)
    out = conv4_cls_fused(c8u, h4, params["conv4_wa"], params["conv4_wb"],
                          params["conv4_b"], params["cls_w"], params["cls_b"],
                          _pick_tile(H4), num_classes)                 # [n, H4, W4, NC]
    return jnp.transpose(out, (0, 3, 1, 2))                            # back to NCHW


if __name__ == "__main__":
    num_classes = 5
    channels = {"4": 32, "8": 64, "32": 256}
    key = jax.random.PRNGKey(0)
    kp, k4, k8, k32 = jax.random.split(key, 4)
    params = init_params(kp, channels["4"], channels["8"], channels["32"], num_classes)

    x4 = jax.random.normal(k4, (2, channels["4"], 16, 16), jnp.float32)
    x8 = jax.random.normal(k8, (2, channels["8"], 8, 8), jnp.float32)
    x32 = jax.random.normal(k32, (2, channels["32"], 2, 2), jnp.float32)

    fwd = jax.jit(easpp_decoder5_forward, static_argnums=(4,))
    out = jax.block_until_ready(fwd(params, x4, x8, x32, num_classes))
    assert out.shape == (2, num_classes, 16, 16), out.shape
    assert bool(jnp.all(jnp.isfinite(out)))
    print("KERNEL_OK")
</pallas_src>

<mosaic_0001>
module attributes {stable_mosaic.version = 11 : i64} {
  func.func @_easpp_kernel(%arg0: i32, %arg1: memref<1x4x4x256xbf16, #tpu.memory_space<vmem>>, %arg2: memref<256x64xbf16, #tpu.memory_space<vmem>>, %arg3: memref<1x64xf32, #tpu.memory_space<vmem>>, %arg4: memref<27x64xf32, #tpu.memory_space<vmem>>, %arg5: memref<3x64xf32, #tpu.memory_space<vmem>>, %arg6: memref<3x64xf32, #tpu.memory_space<vmem>>, %arg7: memref<3x64xf32, #tpu.memory_space<vmem>>, %arg8: memref<64x128xbf16, #tpu.memory_space<vmem>>, %arg9: memref<1x128xf32, #tpu.memory_space<vmem>>, %arg10: memref<1x4x4x128xf32, #tpu.memory_space<vmem>>, %arg11: memref<20x20x64xf32, #tpu.memory_space<vmem>>) attributes {dimension_semantics = [#tpu.dimension_semantics<parallel>], iteration_bounds = array<i64: 2>, scalar_prefetch = 0 : i64, scratch_operands = 1 : i64, tpu.core_type = #tpu.core_type<tc>, window_params = [{transform_indices = @transform_0, window_bounds = array<i64: 1, 4, 4, 256>}, {pipeline_mode = #tpu.pipeline_mode<synchronous>, transform_indices = @transform_1, window_bounds = array<i64: 256, 64>}, {pipeline_mode = #tpu.pipeline_mode<synchronous>, transform_indices = @transform_2, window_bounds = array<i64: 1, 64>}, {pipeline_mode = #tpu.pipeline_mode<synchronous>, transform_indices = @transform_3, window_bounds = array<i64: 27, 64>}, {pipeline_mode = #tpu.pipeline_mode<synchronous>, transform_indices = @transform_4, window_bounds = array<i64: 3, 64>}, {pipeline_mode = #tpu.pipeline_mode<synchronous>, transform_indices = @transform_5, window_bounds = array<i64: 3, 64>}, {pipeline_mode = #tpu.pipeline_mode<synchronous>, transform_indices = @transform_6, window_bounds = array<i64: 3, 64>}, {pipeline_mode = #tpu.pipeline_mode<synchronous>, transform_indices = @transform_7, window_bounds = array<i64: 64, 128>}, {pipeline_mode = #tpu.pipeline_mode<synchronous>, transform_indices = @transform_8, window_bounds = array<i64: 1, 128>}, {transform_indices = @transform_9, window_bounds = array<i64: 1, 4, 4, 128>}]} {
    %c0 = arith.constant 0 : index
    %c0_0 = arith.constant 0 : index
    %c0_1 = arith.constant 0 : index
    %c0_2 = arith.constant 0 : index
    %0 = vector.load %arg1[%c0, %c0_0, %c0_1, %c0_2] : memref<1x4x4x256xbf16, #tpu.memory_space<vmem>>, vector<1x4x4x256xbf16>
    %1 = vector.shape_cast %0 : vector<1x4x4x256xbf16> to vector<16x256xbf16>
    %c0_3 = arith.constant 0 : index
    %c0_4 = arith.constant 0 : index
    %2 = vector.load %arg2[%c0_3, %c0_4] : memref<256x64xbf16, #tpu.memory_space<vmem>>, vector<256x64xbf16>
    %cst = arith.constant dense<0.000000e+00> : vector<16x64xf32>
    %3 = tpu.matmul %1, %2, %cst {dimension_numbers = #tpu.dot_dimension_numbers<[1], [0], [0], [1], [0, 0, 1, 1], [], []>} : vector<16x256xbf16>, vector<256x64xbf16>, vector<16x64xf32> -> vector<16x64xf32>
    %c0_5 = arith.constant 0 : index
    %c0_6 = arith.constant 0 : index
    %4 = vector.load %arg3[%c0_5, %c0_6] : memref<1x64xf32, #tpu.memory_space<vmem>>, vector<1x64xf32>
    %5 = vector.broadcast %4 : vector<1x64xf32> to vector<16x64xf32>
    %6 = arith.addf %3, %5 : vector<16x64xf32>
    %cst_7 = arith.constant 0.000000e+00 : f32
    %7 = vector.broadcast %cst_7 : f32 to vector<16x64xf32>
    %8 = arith.maximumf %6, %7 : vector<16x64xf32>
    %cst_8 = arith.constant 0.000000e+00 : f32
    %9 = vector.broadcast %cst_8 : f32 to vector<20x20x64xf32>
    %c0_9 = arith.constant 0 : index
    %c0_10 = arith.constant 0 : index
    %c0_11 = arith.constant 0 : index
    %10 = vector.load %arg11[%c0_9, %c0_10, %c0_11] : memref<20x20x64xf32, #tpu.memory_space<vmem>>, vector<20x20x64xf32>
    tpu.vector_store %arg11[%c0_9, %c0_10, %c0_11], %9 {strides = array<i32>} : memref<20x20x64xf32, #tpu.memory_space<vmem>>, vector<20x20x64xf32>,
    %11 = vector.shape_cast %8 : vector<16x64xf32> to vector<4x4x64xf32>
    %c8 = arith.constant 8 : index
    %c8_12 = arith.constant 8 : index
    %c0_13 = arith.constant 0 : index
    %12 = vector.load %arg11[%c8, %c8_12, %c0_13] : memref<20x20x64xf32, #tpu.memory_space<vmem>>, vector<4x4x64xf32>
    tpu.vector_store %arg11[%c8, %c8_12, %c0_13], %11 {strides = array<i32>} : memref<20x20x64xf32, #tpu.memory_space<vmem>>, vector<4x4x64xf32>,
    %cst_14 = arith.constant 0.000000e+00 : f32
    %13 = vector.broadcast %cst_14 : f32 to vector<4x4x64xf32>
    %cst_15 = arith.constant 0.000000e+00 : f32
    %14 = vector.broadcast %cst_15 : f32 to vector<4x4x64xf32>
    %c6 = arith.constant 6 : index
    %c6_16 = arith.constant 6 : index
    %c0_17 = arith.constant 0 : index
    %15 = vector.load %arg11[%c6, %c6_16, %c0_17] : memref<20x20x64xf32, #tpu.memory_space<vmem>>, vector<4x4x64xf32>
    %c0_18 = arith.constant 0 : index
    %c0_19 = arith.constant 0 : index
    %16 = vector.load %arg4[%c0_18, %c0_19] : memref<27x64xf32, #tpu.memory_space<vmem>>, vector<1x64xf32>
    %17 = vector.shape_cast %16 : vector<1x64xf32> to vector<1x1x64xf32>
    %18 = vector.broadcast %17 : vector<1x1x64xf32> to vector<4x4x64xf32>
    %19 = arith.mulf %15, %18 : vector<4x4x64xf32>
    %20 = arith.addf %14, %19 : vector<4x4x64xf32>
    %c6_20 = arith.constant 6 : index
    %c8_21 = arith.constant 8 : index
    %c0_22 = arith.constant 0 : index
    %21 = vector.load %arg11[%c6_20, %c8_21, %c0_22] : memref<20x20x64xf32, #tpu.memory_space<vmem>>, vector<4x4x64xf32>
    %c1 = arith.constant 1 : index
    %c0_23 = arith.constant 0 : index
    %22 = vector.load %arg4[%c1, %c0_23] : memref<27x64xf32, #tpu.memory_space<vmem>>, vector<1x64xf32>
    %23 = vector.shape_cast %22 : vector<1x64xf32> to vector<1x1x64xf32>
    %24 = vector.broadcast %23 : vector<1x1x64xf32> to vector<4x4x64xf32>
    %25 = arith.mulf %21, %24 : vector<4x4x64xf32>
    %26 = arith.addf %20, %25 : vector<4x4x64xf32>
    %c6_24 = arith.constant 6 : index
    %c10 = arith.constant 10 : index
    %c0_25 = arith.constant 0 : index
    %27 = vector.load %arg11[%c6_24, %c10, %c0_25] : memref<20x20x64xf32, #tpu.memory_space<vmem>>, vector<4x4x64xf32>
    %c2 = arith.constant 2 : index
    %c0_26 = arith.constant 0 : index
    %28 = vector.load %arg4[%c2, %c0_26] : memref<27x64xf32, #tpu.memory_space<vmem>>, vector<1x64xf32>
    %29 = vector.shape_cast %28 : vector<1x64xf32> to vector<1x1x64xf32>
    %30 = vector.broadcast %29 : vector<1x1x64xf32> to vector<4x4x64xf32>
    %31 = arith.mulf %27, %30 : vector<4x4x64xf32>
    %32 = arith.addf %26, %31 : vector<4x4x64xf32>
    %c8_27 = arith.constant 8 : index
    %c6_28 = arith.constant 6 : index
    %c0_29 = arith.constant 0 : index
    %33 = vector.load %arg11[%c8_27, %c6_28, %c0_29] : memref<20x20x64xf32, #tpu.memory_space<vmem>>, vector<4x4x64xf32>
    %c3 = arith.constant 3 : index
    %c0_30 = arith.constant 0 : index
    %34 = vector.load %arg4[%c3, %c0_30] : memref<27x64xf32, #tpu.memory_space<vmem>>, vector<1x64xf32>
    %35 = vector.shape_cast %34 : vector<1x64xf32> to vector<1x1x64xf32>
    %36 = vector.broadcast %35 : vector<1x1x64xf32> to vector<4x4x64xf32>
    %37 = arith.mulf %33, %36 : vector<4x4x64xf32>
    %38 = arith.addf %32, %37 : vector<4x4x64xf32>
    %c8_31 = arith.constant 8 : index
    %c8_32 = arith.constant 8 : index
    %c0_33 = arith.constant 0 : index
    %39 = vector.load %arg11[%c8_31, %c8_32, %c0_33] : memref<20x20x64xf32, #tpu.memory_space<vmem>>, vector<4x4x64xf32>
    %c4 = arith.constant 4 : index
    %c0_34 = arith.constant 0 : index
    %40 = vector.load %arg4[%c4, %c0_34] : memref<27x64xf32, #tpu.memory_space<vmem>>, vector<1x64xf32>
    %41 = vector.shape_cast %40 : vector<1x64xf32> to vector<1x1x64xf32>
    %42 = vector.broadcast %41 : vector<1x1x64xf32> to vector<4x4x64xf32>
    %43 = arith.mulf %39, %42 : vector<4x4x64xf32>
    %44 = arith.addf %38, %43 : vector<4x4x64xf32>
    %c8_35 = arith.constant 8 : index
    %c10_36 = arith.constant 10 : index
    %c0_37 = arith.constant 0 : index
    %45 = vector.load %arg11[%c8_35, %c10_36, %c0_37] : memref<20x20x64xf32, #tpu.memory_space<vmem>>, vector<4x4x64xf32>
    %c5 = arith.constant 5 : index
    %c0_38 = arith.constant 0 : index
    %46 = vector.load %arg4[%c5, %c0_38] : memref<27x64xf32, #tpu.memory_space<vmem>>, vector<1x64xf32>
    %47 = vector.shape_cast %46 : vector<1x64xf32> to vector<1x1x64xf32>
    %48 = vector.broadcast %47 : vector<1x1x64xf32> to vector<4x4x64xf32>
    %49 = arith.mulf %45, %48 : vector<4x4x64xf32>
    %50 = arith.addf %44, %49 : vector<4x4x64xf32>
    %c10_39 = arith.constant 10 : index
    %c6_40 = arith.constant 6 : index
    %c0_41 = arith.constant 0 : index
    %51 = vector.load %arg11[%c10_39, %c6_40, %c0_41] : memref<20x20x64xf32, #tpu.memory_space<vmem>>, vector<4x4x64xf32>
    %c6_42 = arith.constant 6 : index
    %c0_43 = arith.constant 0 : index
    %52 = vector.load %arg4[%c6_42, %c0_43] : memref<27x64xf32, #tpu.memory_space<vmem>>, vector<1x64xf32>
    %53 = vector.shape_cast %52 : vector<1x64xf32> to vector<1x1x64xf32>
    %54 = vector.broadcast %53 : vector<1x1x64xf32> to vector<4x4x64xf32>
    %55 = arith.mulf %51, %54 : vector<4x4x64xf32>
    %56 = arith.addf %50, %55 : vector<4x4x64xf32>
    %c10_44 = arith.constant 10 : index
    %c8_45 = arith.constant 8 : index
    %c0_46 = arith.constant 0 : index
    %57 = vector.load %arg11[%c10_44, %c8_45, %c0_46] : memref<20x20x64xf32, #tpu.memory_space<vmem>>, vector<4x4x64xf32>
    %c7 = arith.constant 7 : index
    %c0_47 = arith.constant 0 : index
    %58 = vector.load %arg4[%c7, %c0_47] : memref<27x64xf32, #tpu.memory_space<vmem>>, vector<1x64xf32>
    %59 = vector.shape_cast %58 : vector<1x64xf32> to vector<1x1x64xf32>
    %60 = vector.broadcast %59 : vector<1x1x64xf32> to vector<4x4x64xf32>
    %61 = arith.mulf %57, %60 : vector<4x4x64xf32>
    %62 = arith.addf %56, %61 : vector<4x4x64xf32>
    %c10_48 = arith.constant 10 : index
    %c10_49 = arith.constant 10 : index
    %c0_50 = arith.constant 0 : index
    %63 = vector.load %arg11[%c10_48, %c10_49, %c0_50] : memref<20x20x64xf32, #tpu.memory_space<vmem>>, vector<4x4x64xf32>
    %c8_51 = arith.constant 8 : index
    %c0_52 = arith.constant 0 : index
    %64 = vector.load %arg4[%c8_51, %c0_52] : memref<27x64xf32, #tpu.memory_space<vmem>>, vector<1x64xf32>
    %65 = vector.shape_cast %64 : vector<1x64xf32> to vector<1x1x64xf32>
    %66 = vector.broadcast %65 : vector<1x1x64xf32> to vector<4x4x64xf32>
    %67 = arith.mulf %63, %66 : vector<4x4x64xf32>
    %68 = arith.addf %62, %67 : vector<4x4x64xf32>
    %c0_53 = arith.constant 0 : index
    %c0_54 = arith.constant 0 : index
    %69 = vector.load %arg5[%c0_53, %c0_54] : memref<3x64xf32, #tpu.memory_space<vmem>>, vector<1x64xf32>
    %70 = vector.shape_cast %69 : vector<1x64xf32> to vector<1x1x64xf32>
    %71 = vector.broadcast %70 : vector<1x1x64xf32> to vector<4x4x64xf32>
    %72 = arith.addf %68, %71 : vector<4x4x64xf32>
    %cst_55 = arith.constant 0.000000e+00 : f32
    %73 = vector.broadcast %cst_55 : f32 to vector<4x4x64xf32>
    %74 = arith.maximumf %72, %73 : vector<4x4x64xf32>
    %c0_56 = arith.constant 0 : index
    %c0_57 = arith.constant 0 : index
    %75 = vector.load %arg6[%c0_56, %c0_57] : memref<3x64xf32, #tpu.memory_space<vmem>>, vector<1x64xf32>
    %76 = vector.shape_cast %75 : vector<1x64xf32> to vector<1x1x64xf32>
    %77 = vector.broadcast %76 : vector<1x1x64xf32> to vector<4x4x64xf32>
    %78 = arith.mulf %74, %77 : vector<4x4x64xf32>
    %79 = arith.addf %13, %78 : vector<4x4x64xf32>
    %cst_58 = arith.constant 0.000000e+00 : f32
    %80 = vector.broadcast %cst_58 : f32 to vector<4x4x64xf32>
    %c4_59 = arith.constant 4 : index
    %c4_60 = arith.constant 4 : index
    %c0_61 = arith.constant 0 : index
    %81 = vector.load %arg11[%c4_59, %c4_60, %c0_61] : memref<20x20x64xf32, #tpu.memory_space<vmem>>, vector<4x4x64xf32>
    %c9 = arith.constant 9 : index
    %c0_62 = arith.constant 0 : index
    %82 = vector.load %arg4[%c9, %c0_62] : memref<27x64xf32, #tpu.memory_space<vmem>>, vector<1x64xf32>
    %83 = vector.shape_cast %82 : vector<1x64xf32> to vector<1x1x64xf32>
    %84 = vector.broadcast %83 : vector<1x1x64xf32> to vector<4x4x64xf32>
    %85 = arith.mulf %81, %84 : vector<4x4x64xf32>
    %86 = arith.addf %80, %85 : vector<4x4x64xf32>
    %c4_63 = arith.constant 4 : index
    %c8_64 = arith.constant 8 : index
    %c0_65 = arith.constant 0 : index
    %87 = vector.load %arg11[%c4_63, %c8_64, %c0_65] : memref<20x20x64xf32, #tpu.memory_space<vmem>>, vector<4x4x64xf32>
    %c10_66 = arith.constant 10 : index
    %c0_67 = arith.constant 0 : index
    %88 = vector.load %arg4[%c10_66, %c0_67] : memref<27x64xf32, #tpu.memory_space<vmem>>, vector<1x64xf32>
    %89 = vector.shape_cast %88 : vector<1x64xf32> to vector<1x1x64xf32>
    %90 = vector.broadcast %89 : vector<1x1x64xf32> to vector<4x4x64xf32>
    %91 = arith.mulf %87, %90 : vector<4x4x64xf32>
    %92 = arith.addf %86, %91 : vector<4x4x64xf32>
    %c4_68 = arith.constant 4 : index
    %c12 = arith.constant 12 : index
    %c0_69 = arith.constant 0 : index
    %93 = vector.load %arg11[%c4_68, %c12, %c0_69] : memref<20x20x64xf32, #tpu.memory_space<vmem>>, vector<4x4x64xf32>
    %c11 = arith.constant 11 : index
    %c0_70 = arith.constant 0 : index
    %94 = vector.load %arg4[%c11, %c0_70] : memref<27x64xf32, #tpu.memory_space<vmem>>, vector<1x64xf32>
    %95 = vector.shape_cast %94 : vector<1x64xf32> to vector<1x1x64xf32>
    %96 = vector.broadcast %95 : vector<1x1x64xf32> to vector<4x4x64xf32>
    %97 = arith.mulf %93, %96 : vector<4x4x64xf32>
    %98 = arith.addf %92, %97 : vector<4x4x64xf32>
    %c8_71 = arith.constant 8 : index
    %c4_72 = arith.constant 4 : index
    %c0_73 = arith.constant 0 : index
    %99 = vector.load %arg11[%c8_71, %c4_72, %c0_73] : memref<20x20x64xf32, #tpu.memory_space<vmem>>, vector<4x4x64xf32>
    %c12_74 = arith.constant 12 : index
    %c0_75 = arith.constant 0 : index
    %100 = vector.load %arg4[%c12_74, %c0_75] : memref<27x64xf32, #tpu.memory_space<vmem>>, vector<1x64xf32>
    %101 = vector.shape_cast %100 : vector<1x64xf32> to vector<1x1x64xf32>
    %102 = vector.broadcast %101 : vector<1x1x64xf32> to vector<4x4x64xf32>
    %103 = arith.mulf %99, %102 : vector<4x4x64xf32>
    %104 = arith.addf %98, %103 : vector<4x4x64xf32>
    %c8_76 = arith.constant 8 : index
    %c8_77 = arith.constant 8 : index
    %c0_78 = arith.constant 0 : index
    %105 = vector.load %arg11[%c8_76, %c8_77, %c0_78] : memref<20x20x64xf32, #tpu.memory_space<vmem>>, vector<4x4x64xf32>
    %c13 = arith.constant 13 : index
    %c0_79 = arith.constant 0 : index
    %106 = vector.load %arg4[%c13, %c0_79] : memref<27x64xf32, #tpu.memory_space<vmem>>, vector<1x64xf32>
    %107 = vector.shape_cast %106 : vector<1x64xf32> to vector<1x1x64xf32>
    %108 = vector.broadcast %107 : vector<1x1x64xf32> to vector<4x4x64xf32>
    %109 = arith.mulf %105, %108 : vector<4x4x64xf32>
    %110 = arith.addf %104, %109 : vector<4x4x64xf32>
    %c8_80 = arith.constant 8 : index
    %c12_81 = arith.constant 12 : index
    %c0_82 = arith.constant 0 : index
    %111 = vector.load %arg11[%c8_80, %c12_81, %c0_82] : memref<20x20x64xf32, #tpu.memory_space<vmem>>, vector<4x4x64xf32>
    %c14 = arith.constant 14 : index
    %c0_83 = arith.constant 0 : index
    %112 = vector.load %arg4[%c14, %c0_83] : memref<27x64xf32, #tpu.memory_space<vmem>>, vector<1x64xf32>
    %113 = vector.shape_cast %112 : vector<1x64xf32> to vector<1x1x64xf32>
    %114 = vector.broadcast %113 : vector<1x1x64xf32> to vector<4x4x64xf32>
    %115 = arith.mulf %111, %114 : vector<4x4x64xf32>
    %116 = arith.addf %110, %115 : vector<4x4x64xf32>
    %c12_84 = arith.constant 12 : index
    %c4_85 = arith.constant 4 : index
    %c0_86 = arith.constant 0 : index
    %117 = vector.load %arg11[%c12_84, %c4_85, %c0_86] : memref<20x20x64xf32, #tpu.memory_space<vmem>>, vector<4x4x64xf32>
    %c15 = arith.constant 15 : index
    %c0_87 = arith.constant 0 : index
    %118 = vector.load %arg4[%c15, %c0_87] : memref<27x64xf32, #tpu.memory_space<vmem>>, vector<1x64xf32>
    %119 = vector.shape_cast %118 : vector<1x64xf32> to vector<1x1x64xf32>
    %120 = vector.broadcast %119 : vector<1x1x64xf32> to vector<4x4x64xf32>
    %121 = arith.mulf %117, %120 : vector<4x4x64xf32>
    %122 = arith.addf %116, %121 : vector<4x4x64xf32>
    %c12_88 = arith.constant 12 : index
    %c8_89 = arith.constant 8 : index
    %c0_90 = arith.constant 0 : index
    %123 = vector.load %arg11[%c12_88, %c8_89, %c0_90] : memref<20x20x64xf32, #tpu.memory_space<vmem>>, vector<4x4x64xf32>
    %c16 = arith.constant 16 : index
    %c0_91 = arith.constant 0 : index
    %124 = vector.load %arg4[%c16, %c0_91] : memref<27x64xf32, #tpu.memory_space<vmem>>, vector<1x64xf32>
    %125 = vector.shape_cast %124 : vector<1x64xf32> to vector<1x1x64xf32>
    %126 = vector.broadcast %125 : vector<1x1x64xf32> to vector<4x4x64xf32>
    %127 = arith.mulf %123, %126 : vector<4x4x64xf32>
    %128 = arith.addf %122, %127 : vector<4x4x64xf32>
    %c12_92 = arith.constant 12 : index
    %c12_93 = arith.constant 12 : index
    %c0_94 = arith.constant 0 : index
    %129 = vector.load %arg11[%c12_92, %c12_93, %c0_94] : memref<20x20x64xf32, #tpu.memory_space<vmem>>, vector<4x4x64xf32>
    %c17 = arith.constant 17 : index
    %c0_95 = arith.constant 0 : index
    %130 = vector.load %arg4[%c17, %c0_95] : memref<27x64xf32, #tpu.memory_space<vmem>>, vector<1x64xf32>
    %131 = vector.shape_cast %130 : vector<1x64xf32> to vector<1x1x64xf32>
    %132 = vector.broadcast %131 : vector<1x1x64xf32> to vector<4x4x64xf32>
    %133 = arith.mulf %129, %132 : vector<4x4x64xf32>
    %134 = arith.addf %128, %133 : vector<4x4x64xf32>
    %c1_96 = arith.constant 1 : index
    %c0_97 = arith.constant 0 : index
    %135 = vector.load %arg5[%c1_96, %c0_97] : memref<3x64xf32, #tpu.memory_space<vmem>>, vector<1x64xf32>
    %136 = vector.shape_cast %135 : vector<1x64xf32> to vector<1x1x64xf32>
    %137 = vector.broadcast %136 : vector<1x1x64xf32> to vector<4x4x64xf32>
    %138 = arith.addf %134, %137 : vector<4x4x64xf32>
    %cst_98 = arith.constant 0.000000e+00 : f32
    %139 = vector.broadcast %cst_98 : f32 to vector<4x4x64xf32>
    %140 = arith.maximumf %138, %139 : vector<4x4x64xf32>
    %c1_99 = arith.constant 1 : index
    %c0_100 = arith.constant 0 : index
    %141 = vector.load %arg6[%c1_99, %c0_100] : memref<3x64xf32, #tpu.memory_space<vmem>>, vector<1x64xf32>
    %142 = vector.shape_cast %141 : vector<1x64xf32> to vector<1x1x64xf32>
    %143 = vector.broadcast %142 : vector<1x1x64xf32> to vector<4x4x64xf32>
    %144 = arith.mulf %140, %143 : vector<4x4x64xf32>
    %145 = arith.addf %79, %144 : vector<4x4x64xf32>
    %cst_101 = arith.constant 0.000000e+00 : f32
    %146 = vector.broadcast %cst_101 : f32 to vector<4x4x64xf32>
    %c0_102 = arith.constant 0 : index
    %c0_103 = arith.constant 0 : index
    %c0_104 = arith.constant 0 : index
    %147 = vector.load %arg11[%c0_102, %c0_103, %c0_104] : memref<20x20x64xf32, #tpu.memory_space<vmem>>, vector<4x4x64xf32>
    %c18 = arith.constant 18 : index
    %c0_105 = arith.constant 0 : index
    %148 = vector.load %arg4[%c18, %c0_105] : memref<27x64xf32, #tpu.memory_space<vmem>>, vector<1x64xf32>
    %149 = vector.shape_cast %148 : vector<1x64xf32> to vector<1x1x64xf32>
    %150 = vector.broadcast %149 : vector<1x1x64xf32> to vector<4x4x64xf32>
    %151 = arith.mulf %147, %150 : vector<4x4x64xf32>
    %152 = arith.addf %146, %151 : vector<4x4x64xf32>
    %c0_106 = arith.constant 0 : index
    %c8_107 = arith.constant 8 : index
    %c0_108 = arith.constant 0 : index
    %153 = vector.load %arg11[%c0_106, %c8_107, %c0_108] : memref<20x20x64xf32, #tpu.memory_space<vmem>>, vector<4x4x64xf32>
    %c19 = arith.constant 19 : index
    %c0_109 = arith.constant 0 : index
    %154 = vector.load %arg4[%c19, %c0_109] : memref<27x64xf32, #tpu.memory_space<vmem>>, vector<1x64xf32>
    %155 = vector.shape_cast %154 : vector<1x64xf32> to vector<1x1x64xf32>
    %156 = vector.broadcast %155 : vector<1x1x64xf32> to vector<4x4x64xf32>
    %157 = arith.mulf %153, %156 : vector<4x4x64xf32>
    %158 = arith.addf %152, %157 : vector<4x4x64xf32>
    %c0_110 = arith.constant 0 : index
    %c16_111 = arith.constant 16 : index
    %c0_112 = arith.constant 0 : index
    %159 = vector.load %arg11[%c0_110, %c16_111, %c0_112] : memref<20x20x64xf32, #tpu.memory_space<vmem>>, vector<4x4x64xf32>
    %c20 = arith.constant 20 : index
    %c0_113 = arith.constant 0 : index
    %160 = vector.load %arg4[%c20, %c0_113] : memref<27x64xf32, #tpu.memory_space<vmem>>, vector<1x64xf32>
    %161 = vector.shape_cast %160 : vector<1x64xf32> to vector<1x1x64xf32>
    %162 = vector.broadcast %161 : vector<1x1x64xf32> to vector<4x4x64xf32>
    %163 = arith.mulf %159, %162 : vector<4x4x64xf32>
    %164 = arith.addf %158, %163 : vector<4x4x64xf32>
    %c8_114 = arith.constant 8 : index
    %c0_115 = arith.constant 0 : index
    %c0_116 = arith.constant 0 : index
    %165 = vector.load %arg11[%c8_114, %c0_115, %c0_116] : memref<20x20x64xf32, #tpu.memory_space<vmem>>, vector<4x4x64xf32>
    %c21 = arith.constant 21 : index
    %c0_117 = arith.constant 0 : index
    %166 = vector.load %arg4[%c21, %c0_117] : memref<27x64xf32, #tpu.memory_space<vmem>>, vector<1x64xf32>
    %167 = vector.shape_cast %166 : vector<1x64xf32> to vector<1x1x64xf32>
    %168 = vector.broadcast %167 : vector<1x1x64xf32> to vector<4x4x64xf32>
    %169 = arith.mulf %165, %168 : vector<4x4x64xf32>
    %170 = arith.addf %164, %169 : vector<4x4x64xf32>
    %c8_118 = arith.constant 8 : index
    %c8_119 = arith.constant 8 : index
    %c0_120 = arith.constant 0 : index
    %171 = vector.load %arg11[%c8_118, %c8_119, %c0_120] : memref<20x20x64xf32, #tpu.memory_space<vmem>>, vector<4x4x64xf32>
    %c22 = arith.constant 22 : index
    %c0_121 = arith.constant 0 : index
    %172 = vector.load %arg4[%c22, %c0_121] : memref<27x64xf32, #tpu.memory_space<vmem>>, vector<1x64xf32>
    %173 = vector.shape_cast %172 : vector<1x64xf32> to vector<1x1x64xf32>
    %174 = vector.broadcast %173 : vector<1x1x64xf32> to vector<4x4x64xf32>
    %175 = arith.mulf %171, %174 : vector<4x4x64xf32>
    %176 = arith.addf %170, %175 : vector<4x4x64xf32>
    %c8_122 = arith.constant 8 : index
    %c16_123 = arith.constant 16 : index
    %c0_124 = arith.constant 0 : index
    %177 = vector.load %arg11[%c8_122, %c16_123, %c0_124] : memref<20x20x64xf32, #tpu.memory_space<vmem>>, vector<4x4x64xf32>
    %c23 = arith.constant 23 : index
    %c0_125 = arith.constant 0 : index
    %178 = vector.load %arg4[%c23, %c0_125] : memref<27x64xf32, #tpu.memory_space<vmem>>, vector<1x64xf32>
    %179 = vector.shape_cast %178 : vector<1x64xf32> to vector<1x1x64xf32>
    %180 = vector.broadcast %179 : vector<1x1x64xf32> to vector<4x4x64xf32>
    %181 = arith.mulf %177, %180 : vector<4x4x64xf32>
    %182 = arith.addf %176, %181 : vector<4x4x64xf32>
    %c16_126 = arith.constant 16 : index
    %c0_127 = arith.constant 0 : index
    %c0_128 = arith.constant 0 : index
    %183 = vector.load %arg11[%c16_126, %c0_127, %c0_128] : memref<20x20x64xf32, #tpu.memory_space<vmem>>, vector<4x4x64xf32>
    %c24 = arith.constant 24 : index
    %c0_129 = arith.constant 0 : index
    %184 = vector.load %arg4[%c24, %c0_129] : memref<27x64xf32, #tpu.memory_space<vmem>>, vector<1x64xf32>
    %185 = vector.shape_cast %184 : vector<1x64xf32> to vector<1x1x64xf32>
    %186 = vector.broadcast %185 : vector<1x1x64xf32> to vector<4x4x64xf32>
    %187 = arith.mulf %183, %186 : vector<4x4x64xf32>
    %188 = arith.addf %182, %187 : vector<4x4x64xf32>
    %c16_130 = arith.constant 16 : index
    %c8_131 = arith.constant 8 : index
    %c0_132 = arith.constant 0 : index
    %189 = vector.load %arg11[%c16_130, %c8_131, %c0_132] : memref<20x20x64xf32, #tpu.memory_space<vmem>>, vector<4x4x64xf32>
    %c25 = arith.constant 25 : index
    %c0_133 = arith.constant 0 : index
    %190 = vector.load %arg4[%c25, %c0_133] : memref<27x64xf32, #tpu.memory_space<vmem>>, vector<1x64xf32>
    %191 = vector.shape_cast %190 : vector<1x64xf32> to vector<1x1x64xf32>
    %192 = vector.broadcast %191 : vector<1x1x64xf32> to vector<4x4x64xf32>
    %193 = arith.mulf %189, %192 : vector<4x4x64xf32>
    %194 = arith.addf %188, %193 : vector<4x4x64xf32>
    %c16_134 = arith.constant 16 : index
    %c16_135 = arith.constant 16 : index
    %c0_136 = arith.constant 0 : index
    %195 = vector.load %arg11[%c16_134, %c16_135, %c0_136] : memref<20x20x64xf32, #tpu.memory_space<vmem>>, vector<4x4x64xf32>
    %c26 = arith.constant 26 : index
    %c0_137 = arith.constant 0 : index
    %196 = vector.load %arg4[%c26, %c0_137] : memref<27x64xf32, #tpu.memory_space<vmem>>, vector<1x64xf32>
    %197 = vector.shape_cast %196 : vector<1x64xf32> to vector<1x1x64xf32>
    %198 = vector.broadcast %197 : vector<1x1x64xf32> to vector<4x4x64xf32>
    %199 = arith.mulf %195, %198 : vector<4x4x64xf32>
    %200 = arith.addf %194, %199 : vector<4x4x64xf32>
    %c2_138 = arith.constant 2 : index
    %c0_139 = arith.constant 0 : index
    %201 = vector.load %arg5[%c2_138, %c0_139] : memref<3x64xf32, #tpu.memory_space<vmem>>, vector<1x64xf32>
    %202 = vector.shape_cast %201 : vector<1x64xf32> to vector<1x1x64xf32>
    %203 = vector.broadcast %202 : vector<1x1x64xf32> to vector<4x4x64xf32>
    %204 = arith.addf %200, %203 : vector<4x4x64xf32>
    %cst_140 = arith.constant 0.000000e+00 : f32
    %205 = vector.broadcast %cst_140 : f32 to vector<4x4x64xf32>
    %206 = arith.maximumf %204, %205 : vector<4x4x64xf32>
    %c2_141 = arith.constant 2 : index
    %c0_142 = arith.constant 0 : index
    %207 = vector.load %arg6[%c2_141, %c0_142] : memref<3x64xf32, #tpu.memory_space<vmem>>, vector<1x64xf32>
    %208 = vector.shape_cast %207 : vector<1x64xf32> to vector<1x1x64xf32>
    %209 = vector.broadcast %208 : vector<1x1x64xf32> to vector<4x4x64xf32>
    %210 = arith.mulf %206, %209 : vector<4x4x64xf32>
    %211 = arith.addf %145, %210 : vector<4x4x64xf32>
    %c0_143 = arith.constant 0 : index
    %c0_144 = arith.constant 0 : index
    %212 = vector.load %arg7[%c0_143, %c0_144] : memref<3x64xf32, #tpu.memory_space<vmem>>, vector<1x64xf32>
    %213 = vector.shape_cast %212 : vector<1x64xf32> to vector<1x1x64xf32>
    %214 = vector.broadcast %213 : vector<1x1x64xf32> to vector<4x4x64xf32>
    %215 = arith.addf %211, %214 : vector<4x4x64xf32>
    %cst_145 = arith.constant 0.000000e+00 : f32
    %216 = vector.broadcast %cst_145 : f32 to vector<4x4x64xf32>
    %217 = arith.maximumf %215, %216 : vector<4x4x64xf32>
    %c1_146 = arith.constant 1 : index
    %c0_147 = arith.constant 0 : index
    %218 = vector.load %arg7[%c1_146, %c0_147] : memref<3x64xf32, #tpu.memory_space<vmem>>, vector<1x64xf32>
    %219 = vector.shape_cast %218 : vector<1x64xf32> to vector<1x1x64xf32>
    %220 = vector.broadcast %219 : vector<1x1x64xf32> to vector<4x4x64xf32>
    %221 = arith.mulf %217, %220 : vector<4x4x64xf32>
    %c2_148 = arith.constant 2 : index
    %c0_149 = arith.constant 0 : index
    %222 = vector.load %arg7[%c2_148, %c0_149] : memref<3x64xf32, #tpu.memory_space<vmem>>, vector<1x64xf32>
    %223 = vector.shape_cast %222 : vector<1x64xf32> to vector<1x1x64xf32>
    %224 = vector.broadcast %223 : vector<1x1x64xf32> to vector<4x4x64xf32>
    %225 = arith.addf %221, %224 : vector<4x4x64xf32>
    %cst_150 = arith.constant 0.000000e+00 : f32
    %226 = vector.broadcast %cst_150 : f32 to vector<4x4x64xf32>
    %227 = arith.maximumf %225, %226 : vector<4x4x64xf32>
    %228 = vector.shape_cast %227 : vector<4x4x64xf32> to vector<16x64xf32>
    %229 = arith.truncf %228 : vector<16x64xf32> to vector<16x64xbf16>
    %c0_151 = arith.constant 0 : index
    %c0_152 = arith.constant 0 : index
    %230 = vector.load %arg8[%c0_151, %c0_152] : memref<64x128xbf16, #tpu.memory_space<vmem>>, vector<64x128xbf16>
    %cst_153 = arith.constant dense<0.000000e+00> : vector<16x128xf32>
    %231 = tpu.matmul %229, %230, %cst_153 {dimension_numbers = #tpu.dot_dimension_numbers<[1], [0], [0], [1], [0, 0, 1, 1], [], []>} : vector<16x64xbf16>, vector<64x128xbf16>, vector<16x128xf32> -> vector<16x128xf32>
    %c0_154 = arith.constant 0 : index
    %c0_155 = arith.constant 0 : index
    %232 = vector.load %arg9[%c0_154, %c0_155] : memref<1x128xf32, #tpu.memory_space<vmem>>, vector<1x128xf32>
    %233 = vector.broadcast %232 : vector<1x128xf32> to vector<16x128xf32>
    %234 = arith.addf %231, %233 : vector<16x128xf32>
    %cst_156 = arith.constant 0.000000e+00 : f32
    %235 = vector.broadcast %cst_156 : f32 to vector<16x128xf32>
    %236 = arith.maximumf %234, %235 : vector<16x128xf32>
    %237 = vector.shape_cast %236 : vector<16x128xf32> to vector<1x4x4x128xf32>
    %c0_157 = arith.constant 0 : index
    %c0_158 = arith.constant 0 : index
    %c0_159 = arith.constant 0 : index
    %c0_160 = arith.constant 0 : index
    %238 = vector.load %arg10[%c0_157, %c0_158, %c0_159, %c0_160] : memref<1x4x4x128xf32, #tpu.memory_space<vmem>>, vector<1x4x4x128xf32>
    tpu.vector_store %arg10[%c0_157, %c0_158, %c0_159, %c0_160], %237 {strides = array<i32>} : memref<1x4x4x128xf32, #tpu.memory_space<vmem>>, vector<1x4x4x128xf32>,
    return
  }
  func.func @transform_0(%arg0: i32) -> (i32, i32, i32, i32) {
    %c0_i32 = arith.constant 0 : i32
    %c0_i32_0 = arith.constant 0 : i32
    %c0_i32_1 = arith.constant 0 : i32
    %c0_i32_2 = arith.constant 0 : i32
    return %arg0, %c0_i32, %c0_i32_0, %c0_i32_1 : i32, i32, i32, i32
  }
  func.func @transform_1(%arg0: i32) -> (i32, i32) {
    %c0_i32 = arith.constant 0 : i32
    %c0_i32_0 = arith.constant 0 : i32
    %c0_i32_1 = arith.constant 0 : i32
    return %c0_i32, %c0_i32_0 : i32, i32
  }
  func.func @transform_2(%arg0: i32) -> (i32, i32) {
    %c0_i32 = arith.constant 0 : i32
    %c0_i32_0 = arith.constant 0 : i32
    %c0_i32_1 = arith.constant 0 : i32
    return %c0_i32, %c0_i32_0 : i32, i32
  }
  func.func @transform_3(%arg0: i32) -> (i32, i32) {
    %c0_i32 = arith.constant 0 : i32
    %c0_i32_0 = arith.constant 0 : i32
    %c0_i32_1 = arith.constant 0 : i32
    return %c0_i32, %c0_i32_0 : i32, i32
  }
  func.func @transform_4(%arg0: i32) -> (i32, i32) {
    %c0_i32 = arith.constant 0 : i32
    %c0_i32_0 = arith.constant 0 : i32
    %c0_i32_1 = arith.constant 0 : i32
    return %c0_i32, %c0_i32_0 : i32, i32
  }
  func.func @transform_5(%arg0: i32) -> (i32, i32) {
    %c0_i32 = arith.constant 0 : i32
    %c0_i32_0 = arith.constant 0 : i32
    %c0_i32_1 = arith.constant 0 : i32
    return %c0_i32, %c0_i32_0 : i32, i32
  }
  func.func @transform_6(%arg0: i32) -> (i32, i32) {
    %c0_i32 = arith.constant 0 : i32
    %c0_i32_0 = arith.constant 0 : i32
    %c0_i32_1 = arith.constant 0 : i32
    return %c0_i32, %c0_i32_0 : i32, i32
  }
  func.func @transform_7(%arg0: i32) -> (i32, i32) {
    %c0_i32 = arith.constant 0 : i32
    %c0_i32_0 = arith.constant 0 : i32
    %c0_i32_1 = arith.constant 0 : i32
    return %c0_i32, %c0_i32_0 : i32, i32
  }
  func.func @transform_8(%arg0: i32) -> (i32, i32) {
    %c0_i32 = arith.constant 0 : i32
    %c0_i32_0 = arith.constant 0 : i32
    %c0_i32_1 = arith.constant 0 : i32
    return %c0_i32, %c0_i32_0 : i32, i32
  }
  func.func @transform_9(%arg0: i32) -> (i32, i32, i32, i32) {
    %c0_i32 = arith.constant 0 : i32
    %c0_i32_0 = arith.constant 0 : i32
    %c0_i32_1 = arith.constant 0 : i32
    %c0_i32_2 = arith.constant 0 : i32
    return %arg0, %c0_i32, %c0_i32_0, %c0_i32_1 : i32, i32, i32, i32
  }
}

module attributes {stable_mosaic.version = 11 : i64} {
  func.func @_mm_kernel(%arg0: i32, %arg1: memref<128x64xbf16, #tpu.memory_space<vmem>>, %arg2: memref<64x128xbf16, #tpu.memory_space<vmem>>, %arg3: memref<1x128xf32, #tpu.memory_space<vmem>>, %arg4: memref<128x128xf32, #tpu.memory_space<vmem>>) attributes {dimension_semantics = [#tpu.dimension_semantics<parallel>], iteration_bounds = array<i64: 1>, scalar_prefetch = 0 : i64, scratch_operands = 0 : i64, tpu.core_type = #tpu.core_type<tc>, window_params = [{transform_indices = @transform_0, window_bounds = array<i64: 128, 64>}, {pipeline_mode = #tpu.pipeline_mode<synchronous>, transform_indices = @transform_1, window_bounds = array<i64: 64, 128>}, {pipeline_mode = #tpu.pipeline_mode<synchronous>, transform_indices = @transform_2, window_bounds = array<i64: 1, 128>}, {transform_indices = @transform_3, window_bounds = array<i64: 128, 128>}]} {
    %c0 = arith.constant 0 : index
    %c0_0 = arith.constant 0 : index
    %0 = vector.load %arg1[%c0, %c0_0] : memref<128x64xbf16, #tpu.memory_space<vmem>>, vector<128x64xbf16>
    %c0_1 = arith.constant 0 : index
    %c0_2 = arith.constant 0 : index
    %1 = vector.load %arg2[%c0_1, %c0_2] : memref<64x128xbf16, #tpu.memory_space<vmem>>, vector<64x128xbf16>
    %cst = arith.constant dense<0.000000e+00> : vector<128x128xf32>
    %2 = tpu.matmul %0, %1, %cst {dimension_numbers = #tpu.dot_dimension_numbers<[1], [0], [0], [1], [0, 0, 1, 1], [], []>} : vector<128x64xbf16>, vector<64x128xbf16>, vector<128x128xf32> -> vector<128x128xf32>
    %c0_3 = arith.constant 0 : index
    %c0_4 = arith.constant 0 : index
    %3 = vector.load %arg3[%c0_3, %c0_4] : memref<1x128xf32, #tpu.memory_space<vmem>>, vector<1x128xf32>
    %4 = vector.broadcast %3 : vector<1x128xf32> to vector<128x128xf32>
    %5 = arith.addf %2, %4 : vector<128x128xf32>
    %cst_5 = arith.constant 0.000000e+00 : f32
    %6 = vector.broadcast %cst_5 : f32 to vector<128x128xf32>
    %7 = arith.maximumf %5, %6 : vector<128x128xf32>
    %c0_6 = arith.constant 0 : index
    %c0_7 = arith.constant 0 : index
    %8 = vector.load %arg4[%c0_6, %c0_7] : memref<128x128xf32, #tpu.memory_space<vmem>>, vector<128x128xf32>
    tpu.vector_store %arg4[%c0_6, %c0_7], %7 {strides = array<i32>} : memref<128x128xf32, #tpu.memory_space<vmem>>, vector<128x128xf32>,
    return
  }
  func.func @transform_0(%arg0: i32) -> (i32, i32) {
    %c0_i32 = arith.constant 0 : i32
    %c0_i32_0 = arith.constant 0 : i32
    return %arg0, %c0_i32 : i32, i32
  }
  func.func @transform_1(%arg0: i32) -> (i32, i32) {
    %c0_i32 = arith.constant 0 : i32
    %c0_i32_0 = arith.constant 0 : i32
    %c0_i32_1 = arith.constant 0 : i32
    return %c0_i32, %c0_i32_0 : i32, i32
  }
  func.func @transform_2(%arg0: i32) -> (i32, i32) {
    %c0_i32 = arith.constant 0 : i32
    %c0_i32_0 = arith.constant 0 : i32
    %c0_i32_1 = arith.constant 0 : i32
    return %c0_i32, %c0_i32_0 : i32, i32
  }
  func.func @transform_3(%arg0: i32) -> (i32, i32) {
    %c0_i32 = arith.constant 0 : i32
    %c0_i32_0 = arith.constant 0 : i32
    return %arg0, %c0_i32 : i32, i32
  }
}

module attributes {stable_mosaic.version = 11 : i64} {
  func.func @_conv8_kernel(%arg0: i32, %arg1: i32, %arg2: memref<1x1x10x10x128xbf16, #tpu.memory_space<vmem>>, %arg3: memref<1x1x10x10x128xbf16, #tpu.memory_space<vmem>>, %arg4: memref<9x128x64xbf16, #tpu.memory_space<vmem>>, %arg5: memref<1x64xf32, #tpu.memory_space<vmem>>, %arg6: memref<1x1x8x8x64xf32, #tpu.memory_space<vmem>>) attributes {dimension_semantics = [#tpu.dimension_semantics<parallel>, #tpu.dimension_semantics<parallel>], iteration_bounds = array<i64: 2, 1>, scalar_prefetch = 0 : i64, scratch_operands = 0 : i64, tpu.core_type = #tpu.core_type<tc>, window_params = [{transform_indices = @transform_0, window_bounds = array<i64: 1, 1, 10, 10, 128>}, {transform_indices = @transform_1, window_bounds = array<i64: 1, 1, 10, 10, 128>}, {pipeline_mode = #tpu.pipeline_mode<synchronous>, transform_indices = @transform_2, window_bounds = array<i64: 9, 128, 64>}, {pipeline_mode = #tpu.pipeline_mode<synchronous>, transform_indices = @transform_3, window_bounds = array<i64: 1, 64>}, {transform_indices = @transform_4, window_bounds = array<i64: 1, 1, 8, 8, 64>}]} {
    %c0 = arith.constant 0 : index
    %c0_0 = arith.constant 0 : index
    %c0_1 = arith.constant 0 : index
    %c0_2 = arith.constant 0 : index
    %c0_3 = arith.constant 0 : index
    %0 = vector.load %arg2[%c0, %c0_0, %c0_1, %c0_2, %c0_3] : memref<1x1x10x10x128xbf16, #tpu.memory_space<vmem>>, vector<1x1x10x10x128xbf16>
    %c0_4 = arith.constant 0 : index
    %c0_5 = arith.constant 0 : index
    %c0_6 = arith.constant 0 : index
    %c0_7 = arith.constant 0 : index
    %c0_8 = arith.constant 0 : index
    %1 = vector.load %arg3[%c0_4, %c0_5, %c0_6, %c0_7, %c0_8] : memref<1x1x10x10x128xbf16, #tpu.memory_space<vmem>>, vector<1x1x10x10x128xbf16>
    %2 = arith.addf %0, %1 : vector<1x1x10x10x128xbf16>
    %3 = vector.shape_cast %2 : vector<1x1x10x10x128xbf16> to vector<10x10x128xbf16>
    %c0_9 = arith.constant 0 : index
    %c0_10 = arith.constant 0 : index
    %c0_11 = arith.constant 0 : index
    %4 = vector.load %arg4[%c0_9, %c0_10, %c0_11] : memref<9x128x64xbf16, #tpu.memory_space<vmem>>, vector<9x128x64xbf16>
    %cst = arith.constant 0.000000e+00 : f32
    %5 = vector.broadcast %cst : f32 to vector<64x64xf32>
    %6 = vector.extract_strided_slice %3 {offsets = [0, 0, 0], sizes = [8, 8, 128], strides = [1, 1, 1]} : vector<10x10x128xbf16> to vector<8x8x128xbf16>
    %7 = vector.shape_cast %6 : vector<8x8x128xbf16> to vector<64x128xbf16>
    %8 = vector.extract_strided_slice %4 {offsets = [0, 0, 0], sizes = [1, 128, 64], strides = [1, 1, 1]} : vector<9x128x64xbf16> to vector<1x128x64xbf16>
    %9 = vector.shape_cast %8 : vector<1x128x64xbf16> to vector<128x64xbf16>
    %cst_12 = arith.constant dense<0.000000e+00> : vector<64x64xf32>
    %10 = tpu.matmul %7, %9, %cst_12 {dimension_numbers = #tpu.dot_dimension_numbers<[1], [0], [0], [1], [0, 0, 1, 1], [], []>} : vector<64x128xbf16>, vector<128x64xbf16>, vector<64x64xf32> -> vector<64x64xf32>
    %11 = arith.addf %5, %10 : vector<64x64xf32>
    %12 = vector.extract_strided_slice %3 {offsets = [0, 1, 0], sizes = [8, 8, 128], strides = [1, 1, 1]} : vector<10x10x128xbf16> to vector<8x8x128xbf16>
    %13 = vector.shape_cast %12 : vector<8x8x128xbf16> to vector<64x128xbf16>
    %14 = vector.extract_strided_slice %4 {offsets = [1, 0, 0], sizes = [1, 128, 64], strides = [1, 1, 1]} : vector<9x128x64xbf16> to vector<1x128x64xbf16>
    %15 = vector.shape_cast %14 : vector<1x128x64xbf16> to vector<128x64xbf16>
    %cst_13 = arith.constant dense<0.000000e+00> : vector<64x64xf32>
    %16 = tpu.matmul %13, %15, %cst_13 {dimension_numbers = #tpu.dot_dimension_numbers<[1], [0], [0], [1], [0, 0, 1, 1], [], []>} : vector<64x128xbf16>, vector<128x64xbf16>, vector<64x64xf32> -> vector<64x64xf32>
    %17 = arith.addf %11, %16 : vector<64x64xf32>
    %18 = vector.extract_strided_slice %3 {offsets = [0, 2, 0], sizes = [8, 8, 128], strides = [1, 1, 1]} : vector<10x10x128xbf16> to vector<8x8x128xbf16>
    %19 = vector.shape_cast %18 : vector<8x8x128xbf16> to vector<64x128xbf16>
    %20 = vector.extract_strided_slice %4 {offsets = [2, 0, 0], sizes = [1, 128, 64], strides = [1, 1, 1]} : vector<9x128x64xbf16> to vector<1x128x64xbf16>
    %21 = vector.shape_cast %20 : vector<1x128x64xbf16> to vector<128x64xbf16>
    %cst_14 = arith.constant dense<0.000000e+00> : vector<64x64xf32>
    %22 = tpu.matmul %19, %21, %cst_14 {dimension_numbers = #tpu.dot_dimension_numbers<[1], [0], [0], [1], [0, 0, 1, 1], [], []>} : vector<64x128xbf16>, vector<128x64xbf16>, vector<64x64xf32> -> vector<64x64xf32>
    %23 = arith.addf %17, %22 : vector<64x64xf32>
    %24 = vector.extract_strided_slice %3 {offsets = [1, 0, 0], sizes = [8, 8, 128], strides = [1, 1, 1]} : vector<10x10x128xbf16> to vector<8x8x128xbf16>
    %25 = vector.shape_cast %24 : vector<8x8x128xbf16> to vector<64x128xbf16>
    %26 = vector.extract_strided_slice %4 {offsets = [3, 0, 0], sizes = [1, 128, 64], strides = [1, 1, 1]} : vector<9x128x64xbf16> to vector<1x128x64xbf16>
    %27 = vector.shape_cast %26 : vector<1x128x64xbf16> to vector<128x64xbf16>
    %cst_15 = arith.constant dense<0.000000e+00> : vector<64x64xf32>
    %28 = tpu.matmul %25, %27, %cst_15 {dimension_numbers = #tpu.dot_dimension_numbers<[1], [0], [0], [1], [0, 0, 1, 1], [], []>} : vector<64x128xbf16>, vector<128x64xbf16>, vector<64x64xf32> -> vector<64x64xf32>
    %29 = arith.addf %23, %28 : vector<64x64xf32>
    %30 = vector.extract_strided_slice %3 {offsets = [1, 1, 0], sizes = [8, 8, 128], strides = [1, 1, 1]} : vector<10x10x128xbf16> to vector<8x8x128xbf16>
    %31 = vector.shape_cast %30 : vector<8x8x128xbf16> to vector<64x128xbf16>
    %32 = vector.extract_strided_slice %4 {offsets = [4, 0, 0], sizes = [1, 128, 64], strides = [1, 1, 1]} : vector<9x128x64xbf16> to vector<1x128x64xbf16>
    %33 = vector.shape_cast %32 : vector<1x128x64xbf16> to vector<128x64xbf16>
    %cst_16 = arith.constant dense<0.000000e+00> : vector<64x64xf32>
    %34 = tpu.matmul %31, %33, %cst_16 {dimension_numbers = #tpu.dot_dimension_numbers<[1], [0], [0], [1], [0, 0, 1, 1], [], []>} : vector<64x128xbf16>, vector<128x64xbf16>, vector<64x64xf32> -> vector<64x64xf32>
    %35 = arith.addf %29, %34 : vector<64x64xf32>
    %36 = vector.extract_strided_slice %3 {offsets = [1, 2, 0], sizes = [8, 8, 128], strides = [1, 1, 1]} : vector<10x10x128xbf16> to vector<8x8x128xbf16>
    %37 = vector.shape_cast %36 : vector<8x8x128xbf16> to vector<64x128xbf16>
    %38 = vector.extract_strided_slice %4 {offsets = [5, 0, 0], sizes = [1, 128, 64], strides = [1, 1, 1]} : vector<9x128x64xbf16> to vector<1x128x64xbf16>
    %39 = vector.shape_cast %38 : vector<1x128x64xbf16> to vector<128x64xbf16>
    %cst_17 = arith.constant dense<0.000000e+00> : vector<64x64xf32>
    %40 = tpu.matmul %37, %39, %cst_17 {dimension_numbers = #tpu.dot_dimension_numbers<[1], [0], [0], [1], [0, 0, 1, 1], [], []>} : vector<64x128xbf16>, vector<128x64xbf16>, vector<64x64xf32> -> vector<64x64xf32>
    %41 = arith.addf %35, %40 : vector<64x64xf32>
    %42 = vector.extract_strided_slice %3 {offsets = [2, 0, 0], sizes = [8, 8, 128], strides = [1, 1, 1]} : vector<10x10x128xbf16> to vector<8x8x128xbf16>
    %43 = vector.shape_cast %42 : vector<8x8x128xbf16> to vector<64x128xbf16>
    %44 = vector.extract_strided_slice %4 {offsets = [6, 0, 0], sizes = [1, 128, 64], strides = [1, 1, 1]} : vector<9x128x64xbf16> to vector<1x128x64xbf16>
    %45 = vector.shape_cast %44 : vector<1x128x64xbf16> to vector<128x64xbf16>
    %cst_18 = arith.constant dense<0.000000e+00> : vector<64x64xf32>
    %46 = tpu.matmul %43, %45, %cst_18 {dimension_numbers = #tpu.dot_dimension_numbers<[1], [0], [0], [1], [0, 0, 1, 1], [], []>} : vector<64x128xbf16>, vector<128x64xbf16>, vector<64x64xf32> -> vector<64x64xf32>
    %47 = arith.addf %41, %46 : vector<64x64xf32>
    %48 = vector.extract_strided_slice %3 {offsets = [2, 1, 0], sizes = [8, 8, 128], strides = [1, 1, 1]} : vector<10x10x128xbf16> to vector<8x8x128xbf16>
    %49 = vector.shape_cast %48 : vector<8x8x128xbf16> to vector<64x128xbf16>
    %50 = vector.extract_strided_slice %4 {offsets = [7, 0, 0], sizes = [1, 128, 64], strides = [1, 1, 1]} : vector<9x128x64xbf16> to vector<1x128x64xbf16>
    %51 = vector.shape_cast %50 : vector<1x128x64xbf16> to vector<128x64xbf16>
    %cst_19 = arith.constant dense<0.000000e+00> : vector<64x64xf32>
    %52 = tpu.matmul %49, %51, %cst_19 {dimension_numbers = #tpu.dot_dimension_numbers<[1], [0], [0], [1], [0, 0, 1, 1], [], []>} : vector<64x128xbf16>, vector<128x64xbf16>, vector<64x64xf32> -> vector<64x64xf32>
    %53 = arith.addf %47, %52 : vector<64x64xf32>
    %54 = vector.extract_strided_slice %3 {offsets = [2, 2, 0], sizes = [8, 8, 128], strides = [1, 1, 1]} : vector<10x10x128xbf16> to vector<8x8x128xbf16>
    %55 = vector.shape_cast %54 : vector<8x8x128xbf16> to vector<64x128xbf16>
    %56 = vector.extract_strided_slice %4 {offsets = [8, 0, 0], sizes = [1, 128, 64], strides = [1, 1, 1]} : vector<9x128x64xbf16> to vector<1x128x64xbf16>
    %57 = vector.shape_cast %56 : vector<1x128x64xbf16> to vector<128x64xbf16>
    %cst_20 = arith.constant dense<0.000000e+00> : vector<64x64xf32>
    %58 = tpu.matmul %55, %57, %cst_20 {dimension_numbers = #tpu.dot_dimension_numbers<[1], [0], [0], [1], [0, 0, 1, 1], [], []>} : vector<64x128xbf16>, vector<128x64xbf16>, vector<64x64xf32> -> vector<64x64xf32>
    %59 = arith.addf %53, %58 : vector<64x64xf32>
    %c0_21 = arith.constant 0 : index
    %c0_22 = arith.constant 0 : index
    %60 = vector.load %arg5[%c0_21, %c0_22] : memref<1x64xf32, #tpu.memory_space<vmem>>, vector<1x64xf32>
    %61 = vector.broadcast %60 : vector<1x64xf32> to vector<64x64xf32>
    %62 = arith.addf %59, %61 : vector<64x64xf32>
    %cst_23 = arith.constant 0.000000e+00 : f32
    %63 = vector.broadcast %cst_23 : f32 to vector<64x64xf32>
    %64 = arith.maximumf %62, %63 : vector<64x64xf32>
    %65 = vector.shape_cast %64 : vector<64x64xf32> to vector<1x1x8x8x64xf32>
    %c0_24 = arith.constant 0 : index
    %c0_25 = arith.constant 0 : index
    %c0_26 = arith.constant 0 : index
    %c0_27 = arith.constant 0 : index
    %c0_28 = arith.constant 0 : index
    %66 = vector.load %arg6[%c0_24, %c0_25, %c0_26, %c0_27, %c0_28] : memref<1x1x8x8x64xf32, #tpu.memory_space<vmem>>, vector<1x1x8x8x64xf32>
    tpu.vector_store %arg6[%c0_24, %c0_25, %c0_26, %c0_27, %c0_28], %65 {strides = array<i32>} : memref<1x1x8x8x64xf32, #tpu.memory_space<vmem>>, vector<1x1x8x8x64xf32>,
    return
  }
  func.func @transform_0(%arg0: i32, %arg1: i32) -> (i32, i32, i32, i32, i32) {
    %c0_i32 = arith.constant 0 : i32
    %c0_i32_0 = arith.constant 0 : i32
    %c0_i32_1 = arith.constant 0 : i32
    %c0_i32_2 = arith.constant 0 : i32
    return %arg0, %arg1, %c0_i32, %c0_i32_0, %c0_i32_1 : i32, i32, i32, i32, i32
  }
  func.func @transform_1(%arg0: i32, %arg1: i32) -> (i32, i32, i32, i32, i32) {
    %c0_i32 = arith.constant 0 : i32
    %c0_i32_0 = arith.constant 0 : i32
    %c0_i32_1 = arith.constant 0 : i32
    %c0_i32_2 = arith.constant 0 : i32
    return %arg0, %arg1, %c0_i32, %c0_i32_0, %c0_i32_1 : i32, i32, i32, i32, i32
  }
  func.func @transform_2(%arg0: i32, %arg1: i32) -> (i32, i32, i32) {
    %c0_i32 = arith.constant 0 : i32
    %c0_i32_0 = arith.constant 0 : i32
    %c0_i32_1 = arith.constant 0 : i32
    %c0_i32_2 = arith.constant 0 : i32
    return %c0_i32, %c0_i32_0, %c0_i32_1 : i32, i32, i32
  }
  func.func @transform_3(%arg0: i32, %arg1: i32) -> (i32, i32) {
    %c0_i32 = arith.constant 0 : i32
    %c0_i32_0 = arith.constant 0 : i32
    %c0_i32_1 = arith.constant 0 : i32
    return %c0_i32, %c0_i32_0 : i32, i32
  }
  func.func @transform_4(%arg0: i32, %arg1: i32) -> (i32, i32, i32, i32, i32) {
    %c0_i32 = arith.constant 0 : i32
    %c0_i32_0 = arith.constant 0 : i32
    %c0_i32_1 = arith.constant 0 : i32
    %c0_i32_2 = arith.constant 0 : i32
    return %arg0, %arg1, %c0_i32, %c0_i32_0, %c0_i32_1 : i32, i32, i32, i32, i32
  }
}

module attributes {stable_mosaic.version = 11 : i64} {
  func.func @_mm_kernel(%arg0: i32, %arg1: memref<512x32xbf16, #tpu.memory_space<vmem>>, %arg2: memref<32x16xbf16, #tpu.memory_space<vmem>>, %arg3: memref<1x16xf32, #tpu.memory_space<vmem>>, %arg4: memref<512x16xf32, #tpu.memory_space<vmem>>) attributes {dimension_semantics = [#tpu.dimension_semantics<parallel>], iteration_bounds = array<i64: 1>, scalar_prefetch = 0 : i64, scratch_operands = 0 : i64, tpu.core_type = #tpu.core_type<tc>, window_params = [{transform_indices = @transform_0, window_bounds = array<i64: 512, 32>}, {pipeline_mode = #tpu.pipeline_mode<synchronous>, transform_indices = @transform_1, window_bounds = array<i64: 32, 16>}, {pipeline_mode = #tpu.pipeline_mode<synchronous>, transform_indices = @transform_2, window_bounds = array<i64: 1, 16>}, {transform_indices = @transform_3, window_bounds = array<i64: 512, 16>}]} {
    %c0 = arith.constant 0 : index
    %c0_0 = arith.constant 0 : index
    %0 = vector.load %arg1[%c0, %c0_0] : memref<512x32xbf16, #tpu.memory_space<vmem>>, vector<512x32xbf16>
    %c0_1 = arith.constant 0 : index
    %c0_2 = arith.constant 0 : index
    %1 = vector.load %arg2[%c0_1, %c0_2] : memref<32x16xbf16, #tpu.memory_space<vmem>>, vector<32x16xbf16>
    %cst = arith.constant dense<0.000000e+00> : vector<512x16xf32>
    %2 = tpu.matmul %0, %1, %cst {dimension_numbers = #tpu.dot_dimension_numbers<[1], [0], [0], [1], [0, 0, 1, 1], [], []>} : vector<512x32xbf16>, vector<32x16xbf16>, vector<512x16xf32> -> vector<512x16xf32>
    %c0_3 = arith.constant 0 : index
    %c0_4 = arith.constant 0 : index
    %3 = vector.load %arg3[%c0_3, %c0_4] : memref<1x16xf32, #tpu.memory_space<vmem>>, vector<1x16xf32>
    %4 = vector.broadcast %3 : vector<1x16xf32> to vector<512x16xf32>
    %5 = arith.addf %2, %4 : vector<512x16xf32>
    %cst_5 = arith.constant 0.000000e+00 : f32
    %6 = vector.broadcast %cst_5 : f32 to vector<512x16xf32>
    %7 = arith.maximumf %5, %6 : vector<512x16xf32>
    %c0_6 = arith.constant 0 : index
    %c0_7 = arith.constant 0 : index
    %8 = vector.load %arg4[%c0_6, %c0_7] : memref<512x16xf32, #tpu.memory_space<vmem>>, vector<512x16xf32>
    tpu.vector_store %arg4[%c0_6, %c0_7], %7 {strides = array<i32>} : memref<512x16xf32, #tpu.memory_space<vmem>>, vector<512x16xf32>,
    return
  }
  func.func @transform_0(%arg0: i32) -> (i32, i32) {
    %c0_i32 = arith.constant 0 : i32
    %c0_i32_0 = arith.constant 0 : i32
    return %arg0, %c0_i32 : i32, i32
  }
  func.func @transform_1(%arg0: i32) -> (i32, i32) {
    %c0_i32 = arith.constant 0 : i32
    %c0_i32_0 = arith.constant 0 : i32
    %c0_i32_1 = arith.constant 0 : i32
    return %c0_i32, %c0_i32_0 : i32, i32
  }
  func.func @transform_2(%arg0: i32) -> (i32, i32) {
    %c0_i32 = arith.constant 0 : i32
    %c0_i32_0 = arith.constant 0 : i32
    %c0_i32_1 = arith.constant 0 : i32
    return %c0_i32, %c0_i32_0 : i32, i32
  }
  func.func @transform_3(%arg0: i32) -> (i32, i32) {
    %c0_i32 = arith.constant 0 : i32
    %c0_i32_0 = arith.constant 0 : i32
    return %arg0, %c0_i32 : i32, i32
  }
}

module attributes {stable_mosaic.version = 11 : i64} {
  func.func @_conv4_cls_kernel(%arg0: i32, %arg1: i32, %arg2: memref<1x1x18x18x64xbf16, #tpu.memory_space<vmem>>, %arg3: memref<1x1x18x18x16xbf16, #tpu.memory_space<vmem>>, %arg4: memref<9x64x64xbf16, #tpu.memory_space<vmem>>, %arg5: memref<9x16x64xbf16, #tpu.memory_space<vmem>>, %arg6: memref<1x64xf32, #tpu.memory_space<vmem>>, %arg7: memref<64x5xbf16, #tpu.memory_space<vmem>>, %arg8: memref<1x5xf32, #tpu.memory_space<vmem>>, %arg9: memref<1x1x16x16x5xf32, #tpu.memory_space<vmem>>) attributes {dimension_semantics = [#tpu.dimension_semantics<parallel>, #tpu.dimension_semantics<parallel>], iteration_bounds = array<i64: 2, 1>, scalar_prefetch = 0 : i64, scratch_operands = 0 : i64, tpu.core_type = #tpu.core_type<tc>, window_params = [{transform_indices = @transform_0, window_bounds = array<i64: 1, 1, 18, 18, 64>}, {transform_indices = @transform_1, window_bounds = array<i64: 1, 1, 18, 18, 16>}, {pipeline_mode = #tpu.pipeline_mode<synchronous>, transform_indices = @transform_2, window_bounds = array<i64: 9, 64, 64>}, {pipeline_mode = #tpu.pipeline_mode<synchronous>, transform_indices = @transform_3, window_bounds = array<i64: 9, 16, 64>}, {pipeline_mode = #tpu.pipeline_mode<synchronous>, transform_indices = @transform_4, window_bounds = array<i64: 1, 64>}, {pipeline_mode = #tpu.pipeline_mode<synchronous>, transform_indices = @transform_5, window_bounds = array<i64: 64, 5>}, {pipeline_mode = #tpu.pipeline_mode<synchronous>, transform_indices = @transform_6, window_bounds = array<i64: 1, 5>}, {transform_indices = @transform_7, window_bounds = array<i64: 1, 1, 16, 16, 5>}]} {
    %c0 = arith.constant 0 : index
    %c0_0 = arith.constant 0 : index
    %c0_1 = arith.constant 0 : index
    %c0_2 = arith.constant 0 : index
    %c0_3 = arith.constant 0 : index
    %0 = vector.load %arg2[%c0, %c0_0, %c0_1, %c0_2, %c0_3] : memref<1x1x18x18x64xbf16, #tpu.memory_space<vmem>>, vector<1x1x18x18x64xbf16>
    %1 = vector.shape_cast %0 : vector<1x1x18x18x64xbf16> to vector<18x18x64xbf16>
    %c0_4 = arith.constant 0 : index
    %c0_5 = arith.constant 0 : index
    %c0_6 = arith.constant 0 : index
    %c0_7 = arith.constant 0 : index
    %c0_8 = arith.constant 0 : index
    %2 = vector.load %arg3[%c0_4, %c0_5, %c0_6, %c0_7, %c0_8] : memref<1x1x18x18x16xbf16, #tpu.memory_space<vmem>>, vector<1x1x18x18x16xbf16>
    %3 = vector.shape_cast %2 : vector<1x1x18x18x16xbf16> to vector<18x18x16xbf16>
    %c0_9 = arith.constant 0 : index
    %c0_10 = arith.constant 0 : index
    %c0_11 = arith.constant 0 : index
    %4 = vector.load %arg4[%c0_9, %c0_10, %c0_11] : memref<9x64x64xbf16, #tpu.memory_space<vmem>>, vector<9x64x64xbf16>
    %c0_12 = arith.constant 0 : index
    %c0_13 = arith.constant 0 : index
    %c0_14 = arith.constant 0 : index
    %5 = vector.load %arg5[%c0_12, %c0_13, %c0_14] : memref<9x16x64xbf16, #tpu.memory_space<vmem>>, vector<9x16x64xbf16>
    %cst = arith.constant 0.000000e+00 : f32
    %6 = vector.broadcast %cst : f32 to vector<256x64xf32>
    %7 = vector.extract_strided_slice %1 {offsets = [0, 0, 0], sizes = [16, 16, 64], strides = [1, 1, 1]} : vector<18x18x64xbf16> to vector<16x16x64xbf16>
    %8 = vector.shape_cast %7 : vector<16x16x64xbf16> to vector<256x64xbf16>
    %9 = vector.extract_strided_slice %3 {offsets = [0, 0, 0], sizes = [16, 16, 16], strides = [1, 1, 1]} : vector<18x18x16xbf16> to vector<16x16x16xbf16>
    %10 = vector.shape_cast %9 : vector<16x16x16xbf16> to vector<256x16xbf16>
    %11 = vector.extract_strided_slice %4 {offsets = [0, 0, 0], sizes = [1, 64, 64], strides = [1, 1, 1]} : vector<9x64x64xbf16> to vector<1x64x64xbf16>
    %12 = vector.shape_cast %11 : vector<1x64x64xbf16> to vector<64x64xbf16>
    %cst_15 = arith.constant dense<0.000000e+00> : vector<256x64xf32>
    %13 = tpu.matmul %8, %12, %cst_15 {dimension_numbers = #tpu.dot_dimension_numbers<[1], [0], [0], [1], [0, 0, 1, 1], [], []>} : vector<256x64xbf16>, vector<64x64xbf16>, vector<256x64xf32> -> vector<256x64xf32>
    %14 = arith.addf %6, %13 : vector<256x64xf32>
    %15 = vector.extract_strided_slice %5 {offsets = [0, 0, 0], sizes = [1, 16, 64], strides = [1, 1, 1]} : vector<9x16x64xbf16> to vector<1x16x64xbf16>
    %16 = vector.shape_cast %15 : vector<1x16x64xbf16> to vector<16x64xbf16>
    %cst_16 = arith.constant dense<0.000000e+00> : vector<256x64xf32>
    %17 = tpu.matmul %10, %16, %cst_16 {dimension_numbers = #tpu.dot_dimension_numbers<[1], [0], [0], [1], [0, 0, 1, 1], [], []>} : vector<256x16xbf16>, vector<16x64xbf16>, vector<256x64xf32> -> vector<256x64xf32>
    %18 = arith.addf %14, %17 : vector<256x64xf32>
    %19 = vector.extract_strided_slice %1 {offsets = [0, 1, 0], sizes = [16, 16, 64], strides = [1, 1, 1]} : vector<18x18x64xbf16> to vector<16x16x64xbf16>
    %20 = vector.shape_cast %19 : vector<16x16x64xbf16> to vector<256x64xbf16>
    %21 = vector.extract_strided_slice %3 {offsets = [0, 1, 0], sizes = [16, 16, 16], strides = [1, 1, 1]} : vector<18x18x16xbf16> to vector<16x16x16xbf16>
    %22 = vector.shape_cast %21 : vector<16x16x16xbf16> to vector<256x16xbf16>
    %23 = vector.extract_strided_slice %4 {offsets = [1, 0, 0], sizes = [1, 64, 64], strides = [1, 1, 1]} : vector<9x64x64xbf16> to vector<1x64x64xbf16>
    %24 = vector.shape_cast %23 : vector<1x64x64xbf16> to vector<64x64xbf16>
    %cst_17 = arith.constant dense<0.000000e+00> : vector<256x64xf32>
    %25 = tpu.matmul %20, %24, %cst_17 {dimension_numbers = #tpu.dot_dimension_numbers<[1], [0], [0], [1], [0, 0, 1, 1], [], []>} : vector<256x64xbf16>, vector<64x64xbf16>, vector<256x64xf32> -> vector<256x64xf32>
    %26 = arith.addf %18, %25 : vector<256x64xf32>
    %27 = vector.extract_strided_slice %5 {offsets = [1, 0, 0], sizes = [1, 16, 64], strides = [1, 1, 1]} : vector<9x16x64xbf16> to vector<1x16x64xbf16>
    %28 = vector.shape_cast %27 : vector<1x16x64xbf16> to vector<16x64xbf16>
    %cst_18 = arith.constant dense<0.000000e+00> : vector<256x64xf32>
    %29 = tpu.matmul %22, %28, %cst_18 {dimension_numbers = #tpu.dot_dimension_numbers<[1], [0], [0], [1], [0, 0, 1, 1], [], []>} : vector<256x16xbf16>, vector<16x64xbf16>, vector<256x64xf32> -> vector<256x64xf32>
    %30 = arith.addf %26, %29 : vector<256x64xf32>
    %31 = vector.extract_strided_slice %1 {offsets = [0, 2, 0], sizes = [16, 16, 64], strides = [1, 1, 1]} : vector<18x18x64xbf16> to vector<16x16x64xbf16>
    %32 = vector.shape_cast %31 : vector<16x16x64xbf16> to vector<256x64xbf16>
    %33 = vector.extract_strided_slice %3 {offsets = [0, 2, 0], sizes = [16, 16, 16], strides = [1, 1, 1]} : vector<18x18x16xbf16> to vector<16x16x16xbf16>
    %34 = vector.shape_cast %33 : vector<16x16x16xbf16> to vector<256x16xbf16>
    %35 = vector.extract_strided_slice %4 {offsets = [2, 0, 0], sizes = [1, 64, 64], strides = [1, 1, 1]} : vector<9x64x64xbf16> to vector<1x64x64xbf16>
    %36 = vector.shape_cast %35 : vector<1x64x64xbf16> to vector<64x64xbf16>
    %cst_19 = arith.constant dense<0.000000e+00> : vector<256x64xf32>
    %37 = tpu.matmul %32, %36, %cst_19 {dimension_numbers = #tpu.dot_dimension_numbers<[1], [0], [0], [1], [0, 0, 1, 1], [], []>} : vector<256x64xbf16>, vector<64x64xbf16>, vector<256x64xf32> -> vector<256x64xf32>
    %38 = arith.addf %30, %37 : vector<256x64xf32>
    %39 = vector.extract_strided_slice %5 {offsets = [2, 0, 0], sizes = [1, 16, 64], strides = [1, 1, 1]} : vector<9x16x64xbf16> to vector<1x16x64xbf16>
    %40 = vector.shape_cast %39 : vector<1x16x64xbf16> to vector<16x64xbf16>
    %cst_20 = arith.constant dense<0.000000e+00> : vector<256x64xf32>
    %41 = tpu.matmul %34, %40, %cst_20 {dimension_numbers = #tpu.dot_dimension_numbers<[1], [0], [0], [1], [0, 0, 1, 1], [], []>} : vector<256x16xbf16>, vector<16x64xbf16>, vector<256x64xf32> -> vector<256x64xf32>
    %42 = arith.addf %38, %41 : vector<256x64xf32>
    %43 = vector.extract_strided_slice %1 {offsets = [1, 0, 0], sizes = [16, 16, 64], strides = [1, 1, 1]} : vector<18x18x64xbf16> to vector<16x16x64xbf16>
    %44 = vector.shape_cast %43 : vector<16x16x64xbf16> to vector<256x64xbf16>
    %45 = vector.extract_strided_slice %3 {offsets = [1, 0, 0], sizes = [16, 16, 16], strides = [1, 1, 1]} : vector<18x18x16xbf16> to vector<16x16x16xbf16>
    %46 = vector.shape_cast %45 : vector<16x16x16xbf16> to vector<256x16xbf16>
    %47 = vector.extract_strided_slice %4 {offsets = [3, 0, 0], sizes = [1, 64, 64], strides = [1, 1, 1]} : vector<9x64x64xbf16> to vector<1x64x64xbf16>
    %48 = vector.shape_cast %47 : vector<1x64x64xbf16> to vector<64x64xbf16>
    %cst_21 = arith.constant dense<0.000000e+00> : vector<256x64xf32>
    %49 = tpu.matmul %44, %48, %cst_21 {dimension_numbers = #tpu.dot_dimension_numbers<[1], [0], [0], [1], [0, 0, 1, 1], [], []>} : vector<256x64xbf16>, vector<64x64xbf16>, vector<256x64xf32> -> vector<256x64xf32>
    %50 = arith.addf %42, %49 : vector<256x64xf32>
    %51 = vector.extract_strided_slice %5 {offsets = [3, 0, 0], sizes = [1, 16, 64], strides = [1, 1, 1]} : vector<9x16x64xbf16> to vector<1x16x64xbf16>
    %52 = vector.shape_cast %51 : vector<1x16x64xbf16> to vector<16x64xbf16>
    %cst_22 = arith.constant dense<0.000000e+00> : vector<256x64xf32>
    %53 = tpu.matmul %46, %52, %cst_22 {dimension_numbers = #tpu.dot_dimension_numbers<[1], [0], [0], [1], [0, 0, 1, 1], [], []>} : vector<256x16xbf16>, vector<16x64xbf16>, vector<256x64xf32> -> vector<256x64xf32>
    %54 = arith.addf %50, %53 : vector<256x64xf32>
    %55 = vector.extract_strided_slice %1 {offsets = [1, 1, 0], sizes = [16, 16, 64], strides = [1, 1, 1]} : vector<18x18x64xbf16> to vector<16x16x64xbf16>
    %56 = vector.shape_cast %55 : vector<16x16x64xbf16> to vector<256x64xbf16>
    %57 = vector.extract_strided_slice %3 {offsets = [1, 1, 0], sizes = [16, 16, 16], strides = [1, 1, 1]} : vector<18x18x16xbf16> to vector<16x16x16xbf16>
    %58 = vector.shape_cast %57 : vector<16x16x16xbf16> to vector<256x16xbf16>
    %59 = vector.extract_strided_slice %4 {offsets = [4, 0, 0], sizes = [1, 64, 64], strides = [1, 1, 1]} : vector<9x64x64xbf16> to vector<1x64x64xbf16>
    %60 = vector.shape_cast %59 : vector<1x64x64xbf16> to vector<64x64xbf16>
    %cst_23 = arith.constant dense<0.000000e+00> : vector<256x64xf32>
    %61 = tpu.matmul %56, %60, %cst_23 {dimension_numbers = #tpu.dot_dimension_numbers<[1], [0], [0], [1], [0, 0, 1, 1], [], []>} : vector<256x64xbf16>, vector<64x64xbf16>, vector<256x64xf32> -> vector<256x64xf32>
    %62 = arith.addf %54, %61 : vector<256x64xf32>
    %63 = vector.extract_strided_slice %5 {offsets = [4, 0, 0], sizes = [1, 16, 64], strides = [1, 1, 1]} : vector<9x16x64xbf16> to vector<1x16x64xbf16>
    %64 = vector.shape_cast %63 : vector<1x16x64xbf16> to vector<16x64xbf16>
    %cst_24 = arith.constant dense<0.000000e+00> : vector<256x64xf32>
    %65 = tpu.matmul %58, %64, %cst_24 {dimension_numbers = #tpu.dot_dimension_numbers<[1], [0], [0], [1], [0, 0, 1, 1], [], []>} : vector<256x16xbf16>, vector<16x64xbf16>, vector<256x64xf32> -> vector<256x64xf32>
    %66 = arith.addf %62, %65 : vector<256x64xf32>
    %67 = vector.extract_strided_slice %1 {offsets = [1, 2, 0], sizes = [16, 16, 64], strides = [1, 1, 1]} : vector<18x18x64xbf16> to vector<16x16x64xbf16>
    %68 = vector.shape_cast %67 : vector<16x16x64xbf16> to vector<256x64xbf16>
    %69 = vector.extract_strided_slice %3 {offsets = [1, 2, 0], sizes = [16, 16, 16], strides = [1, 1, 1]} : vector<18x18x16xbf16> to vector<16x16x16xbf16>
    %70 = vector.shape_cast %69 : vector<16x16x16xbf16> to vector<256x16xbf16>
    %71 = vector.extract_strided_slice %4 {offsets = [5, 0, 0], sizes = [1, 64, 64], strides = [1, 1, 1]} : vector<9x64x64xbf16> to vector<1x64x64xbf16>
    %72 = vector.shape_cast %71 : vector<1x64x64xbf16> to vector<64x64xbf16>
    %cst_25 = arith.constant dense<0.000000e+00> : vector<256x64xf32>
    %73 = tpu.matmul %68, %72, %cst_25 {dimension_numbers = #tpu.dot_dimension_numbers<[1], [0], [0], [1], [0, 0, 1, 1], [], []>} : vector<256x64xbf16>, vector<64x64xbf16>, vector<256x64xf32> -> vector<256x64xf32>
    %74 = arith.addf %66, %73 : vector<256x64xf32>
    %75 = vector.extract_strided_slice %5 {offsets = [5, 0, 0], sizes = [1, 16, 64], strides = [1, 1, 1]} : vector<9x16x64xbf16> to vector<1x16x64xbf16>
    %76 = vector.shape_cast %75 : vector<1x16x64xbf16> to vector<16x64xbf16>
    %cst_26 = arith.constant dense<0.000000e+00> : vector<256x64xf32>
    %77 = tpu.matmul %70, %76, %cst_26 {dimension_numbers = #tpu.dot_dimension_numbers<[1], [0], [0], [1], [0, 0, 1, 1], [], []>} : vector<256x16xbf16>, vector<16x64xbf16>, vector<256x64xf32> -> vector<256x64xf32>
    %78 = arith.addf %74, %77 : vector<256x64xf32>
    %79 = vector.extract_strided_slice %1 {offsets = [2, 0, 0], sizes = [16, 16, 64], strides = [1, 1, 1]} : vector<18x18x64xbf16> to vector<16x16x64xbf16>
    %80 = vector.shape_cast %79 : vector<16x16x64xbf16> to vector<256x64xbf16>
    %81 = vector.extract_strided_slice %3 {offsets = [2, 0, 0], sizes = [16, 16, 16], strides = [1, 1, 1]} : vector<18x18x16xbf16> to vector<16x16x16xbf16>
    %82 = vector.shape_cast %81 : vector<16x16x16xbf16> to vector<256x16xbf16>
    %83 = vector.extract_strided_slice %4 {offsets = [6, 0, 0], sizes = [1, 64, 64], strides = [1, 1, 1]} : vector<9x64x64xbf16> to vector<1x64x64xbf16>
    %84 = vector.shape_cast %83 : vector<1x64x64xbf16> to vector<64x64xbf16>
    %cst_27 = arith.constant dense<0.000000e+00> : vector<256x64xf32>
    %85 = tpu.matmul %80, %84, %cst_27 {dimension_numbers = #tpu.dot_dimension_numbers<[1], [0], [0], [1], [0, 0, 1, 1], [], []>} : vector<256x64xbf16>, vector<64x64xbf16>, vector<256x64xf32> -> vector<256x64xf32>
    %86 = arith.addf %78, %85 : vector<256x64xf32>
    %87 = vector.extract_strided_slice %5 {offsets = [6, 0, 0], sizes = [1, 16, 64], strides = [1, 1, 1]} : vector<9x16x64xbf16> to vector<1x16x64xbf16>
    %88 = vector.shape_cast %87 : vector<1x16x64xbf16> to vector<16x64xbf16>
    %cst_28 = arith.constant dense<0.000000e+00> : vector<256x64xf32>
    %89 = tpu.matmul %82, %88, %cst_28 {dimension_numbers = #tpu.dot_dimension_numbers<[1], [0], [0], [1], [0, 0, 1, 1], [], []>} : vector<256x16xbf16>, vector<16x64xbf16>, vector<256x64xf32> -> vector<256x64xf32>
    %90 = arith.addf %86, %89 : vector<256x64xf32>
    %91 = vector.extract_strided_slice %1 {offsets = [2, 1, 0], sizes = [16, 16, 64], strides = [1, 1, 1]} : vector<18x18x64xbf16> to vector<16x16x64xbf16>
    %92 = vector.shape_cast %91 : vector<16x16x64xbf16> to vector<256x64xbf16>
    %93 = vector.extract_strided_slice %3 {offsets = [2, 1, 0], sizes = [16, 16, 16], strides = [1, 1, 1]} : vector<18x18x16xbf16> to vector<16x16x16xbf16>
    %94 = vector.shape_cast %93 : vector<16x16x16xbf16> to vector<256x16xbf16>
    %95 = vector.extract_strided_slice %4 {offsets = [7, 0, 0], sizes = [1, 64, 64], strides = [1, 1, 1]} : vector<9x64x64xbf16> to vector<1x64x64xbf16>
    %96 = vector.shape_cast %95 : vector<1x64x64xbf16> to vector<64x64xbf16>
    %cst_29 = arith.constant dense<0.000000e+00> : vector<256x64xf32>
    %97 = tpu.matmul %92, %96, %cst_29 {dimension_numbers = #tpu.dot_dimension_numbers<[1], [0], [0], [1], [0, 0, 1, 1], [], []>} : vector<256x64xbf16>, vector<64x64xbf16>, vector<256x64xf32> -> vector<256x64xf32>
    %98 = arith.addf %90, %97 : vector<256x64xf32>
    %99 = vector.extract_strided_slice %5 {offsets = [7, 0, 0], sizes = [1, 16, 64], strides = [1, 1, 1]} : vector<9x16x64xbf16> to vector<1x16x64xbf16>
    %100 = vector.shape_cast %99 : vector<1x16x64xbf16> to vector<16x64xbf16>
    %cst_30 = arith.constant dense<0.000000e+00> : vector<256x64xf32>
    %101 = tpu.matmul %94, %100, %cst_30 {dimension_numbers = #tpu.dot_dimension_numbers<[1], [0], [0], [1], [0, 0, 1, 1], [], []>} : vector<256x16xbf16>, vector<16x64xbf16>, vector<256x64xf32> -> vector<256x64xf32>
    %102 = arith.addf %98, %101 : vector<256x64xf32>
    %103 = vector.extract_strided_slice %1 {offsets = [2, 2, 0], sizes = [16, 16, 64], strides = [1, 1, 1]} : vector<18x18x64xbf16> to vector<16x16x64xbf16>
    %104 = vector.shape_cast %103 : vector<16x16x64xbf16> to vector<256x64xbf16>
    %105 = vector.extract_strided_slice %3 {offsets = [2, 2, 0], sizes = [16, 16, 16], strides = [1, 1, 1]} : vector<18x18x16xbf16> to vector<16x16x16xbf16>
    %106 = vector.shape_cast %105 : vector<16x16x16xbf16> to vector<256x16xbf16>
    %107 = vector.extract_strided_slice %4 {offsets = [8, 0, 0], sizes = [1, 64, 64], strides = [1, 1, 1]} : vector<9x64x64xbf16> to vector<1x64x64xbf16>
    %108 = vector.shape_cast %107 : vector<1x64x64xbf16> to vector<64x64xbf16>
    %cst_31 = arith.constant dense<0.000000e+00> : vector<256x64xf32>
    %109 = tpu.matmul %104, %108, %cst_31 {dimension_numbers = #tpu.dot_dimension_numbers<[1], [0], [0], [1], [0, 0, 1, 1], [], []>} : vector<256x64xbf16>, vector<64x64xbf16>, vector<256x64xf32> -> vector<256x64xf32>
    %110 = arith.addf %102, %109 : vector<256x64xf32>
    %111 = vector.extract_strided_slice %5 {offsets = [8, 0, 0], sizes = [1, 16, 64], strides = [1, 1, 1]} : vector<9x16x64xbf16> to vector<1x16x64xbf16>
    %112 = vector.shape_cast %111 : vector<1x16x64xbf16> to vector<16x64xbf16>
    %cst_32 = arith.constant dense<0.000000e+00> : vector<256x64xf32>
    %113 = tpu.matmul %106, %112, %cst_32 {dimension_numbers = #tpu.dot_dimension_numbers<[1], [0], [0], [1], [0, 0, 1, 1], [], []>} : vector<256x16xbf16>, vector<16x64xbf16>, vector<256x64xf32> -> vector<256x64xf32>
    %114 = arith.addf %110, %113 : vector<256x64xf32>
    %c0_33 = arith.constant 0 : index
    %c0_34 = arith.constant 0 : index
    %115 = vector.load %arg6[%c0_33, %c0_34] : memref<1x64xf32, #tpu.memory_space<vmem>>, vector<1x64xf32>
    %116 = vector.broadcast %115 : vector<1x64xf32> to vector<256x64xf32>
    %117 = arith.addf %114, %116 : vector<256x64xf32>
    %cst_35 = arith.constant 0.000000e+00 : f32
    %118 = vector.broadcast %cst_35 : f32 to vector<256x64xf32>
    %119 = arith.maximumf %117, %118 : vector<256x64xf32>
    %120 = arith.truncf %119 : vector<256x64xf32> to vector<256x64xbf16>
    %c0_36 = arith.constant 0 : index
    %c0_37 = arith.constant 0 : index
    %121 = vector.load %arg7[%c0_36, %c0_37] : memref<64x5xbf16, #tpu.memory_space<vmem>>, vector<64x5xbf16>
    %cst_38 = arith.constant dense<0.000000e+00> : vector<256x5xf32>
    %122 = tpu.matmul %120, %121, %cst_38 {dimension_numbers = #tpu.dot_dimension_numbers<[1], [0], [0], [1], [0, 0, 1, 1], [], []>} : vector<256x64xbf16>, vector<64x5xbf16>, vector<256x5xf32> -> vector<256x5xf32>
    %c0_39 = arith.constant 0 : index
    %c0_40 = arith.constant 0 : index
    %123 = vector.load %arg8[%c0_39, %c0_40] : memref<1x5xf32, #tpu.memory_space<vmem>>, vector<1x5xf32>
    %124 = vector.broadcast %123 : vector<1x5xf32> to vector<256x5xf32>
    %125 = arith.addf %122, %124 : vector<256x5xf32>
    %126 = vector.shape_cast %125 : vector<256x5xf32> to vector<1x1x16x16x5xf32>
    %c0_41 = arith.constant 0 : index
    %c0_42 = arith.constant 0 : index
    %c0_43 = arith.constant 0 : index
    %c0_44 = arith.constant 0 : index
    %c0_45 = arith.constant 0 : index
    %127 = vector.load %arg9[%c0_41, %c0_42, %c0_43, %c0_44, %c0_45] : memref<1x1x16x16x5xf32, #tpu.memory_space<vmem>>, vector<1x1x16x16x5xf32>
    tpu.vector_store %arg9[%c0_41, %c0_42, %c0_43, %c0_44, %c0_45], %126 {strides = array<i32>} : memref<1x1x16x16x5xf32, #tpu.memory_space<vmem>>, vector<1x1x16x16x5xf32>,
    return
  }
  func.func @transform_0(%arg0: i32, %arg1: i32) -> (i32, i32, i32, i32, i32) {
    %c0_i32 = arith.constant 0 : i32
    %c0_i32_0 = arith.constant 0 : i32
    %c0_i32_1 = arith.constant 0 : i32
    %c0_i32_2 = arith.constant 0 : i32
    return %arg0, %arg1, %c0_i32, %c0_i32_0, %c0_i32_1 : i32, i32, i32, i32, i32
  }
  func.func @transform_1(%arg0: i32, %arg1: i32) -> (i32, i32, i32, i32, i32) {
    %c0_i32 = arith.constant 0 : i32
    %c0_i32_0 = arith.constant 0 : i32
    %c0_i32_1 = arith.constant 0 : i32
    %c0_i32_2 = arith.constant 0 : i32
    return %arg0, %arg1, %c0_i32, %c0_i32_0, %c0_i32_1 : i32, i32, i32, i32, i32
  }
  func.func @transform_2(%arg0: i32, %arg1: i32) -> (i32, i32, i32) {
    %c0_i32 = arith.constant 0 : i32
    %c0_i32_0 = arith.constant 0 : i32
    %c0_i32_1 = arith.constant 0 : i32
    %c0_i32_2 = arith.constant 0 : i32
    return %c0_i32, %c0_i32_0, %c0_i32_1 : i32, i32, i32
  }
  func.func @transform_3(%arg0: i32, %arg1: i32) -> (i32, i32, i32) {
    %c0_i32 = arith.constant 0 : i32
    %c0_i32_0 = arith.constant 0 : i32
    %c0_i32_1 = arith.constant 0 : i32
    %c0_i32_2 = arith.constant 0 : i32
    return %c0_i32, %c0_i32_0, %c0_i32_1 : i32, i32, i32
  }
  func.func @transform_4(%arg0: i32, %arg1: i32) -> (i32, i32) {
    %c0_i32 = arith.constant 0 : i32
    %c0_i32_0 = arith.constant 0 : i32
    %c0_i32_1 = arith.constant 0 : i32
    return %c0_i32, %c0_i32_0 : i32, i32
  }
  func.func @transform_5(%arg0: i32, %arg1: i32) -> (i32, i32) {
    %c0_i32 = arith.constant 0 : i32
    %c0_i32_0 = arith.constant 0 : i32
    %c0_i32_1 = arith.constant 0 : i32
    return %c0_i32, %c0_i32_0 : i32, i32
  }
  func.func @transform_6(%arg0: i32, %arg1: i32) -> (i32, i32) {
    %c0_i32 = arith.constant 0 : i32
    %c0_i32_0 = arith.constant 0 : i32
    %c0_i32_1 = arith.constant 0 : i32
    return %c0_i32, %c0_i32_0 : i32, i32
  }
  func.func @transform_7(%arg0: i32, %arg1: i32) -> (i32, i32, i32, i32, i32) {
    %c0_i32 = arith.constant 0 : i32
    %c0_i32_0 = arith.constant 0 : i32
    %c0_i32_1 = arith.constant 0 : i32
    %c0_i32_2 = arith.constant 0 : i32
    return %arg0, %arg1, %c0_i32, %c0_i32_0, %c0_i32_1 : i32, i32, i32, i32, i32
  }
}

</mosaic_0001>

<llo_original>
// kernel: easpp_decoder5_forward.6
$region0: #{easpp_decoder5_forward.6}
  #allocation0 [shape = 'u32[]', space=smem, size = 0x4, offset = 0x4, fixed_abs, tag = 'smem constant byte address 0x4 - core index']
  #allocation1 [shape = 'u32[144,128]{1,0:T(1,128)}', space=vmem, size = 0x12000, scoped, tag = 'internal scratch']
  %s0 = inlined_call_operand.vmem [shape: bf16[128,64], index: 0, kind: input, shape index: {}]
  %s1 = inlined_call_operand.vmem [shape: bf16[64,128], index: 1, kind: input, shape index: {}]
  %s2 = inlined_call_operand.vmem [shape: f32[1,128], index: 2, kind: input, shape index: {}]
  %s3 = inlined_call_operand.vmem [shape: f32[128,128], index: 3, kind: output, shape index: {}]
  %s4 = sld [smem:[#allocation0]]
  $region22: #{easpp_decoder5_forward.6} parent=0
    _
  %s6 = ssub.s32 1, %s4
  %s7 = scalar_select 0, %s6, %s4
  // Predicated region
  $region2: #{easpp_decoder5_forward.6} parent=0 // pred_check
    _
  $region3: #{easpp_decoder5_forward.6} parent=0 // pred_check_branch
    %9 = sbr.rel (0) target = $region5
  $region4: #{easpp_decoder5_forward.6} parent=0 // pred_region
    _
  $region5: #{easpp_decoder5_forward.6} parent=0 // pred_fallthru
    _
  // Predicated region
  $region6: #{easpp_decoder5_forward.6} parent=0 // pred_check
    _
  $region7: #{easpp_decoder5_forward.6} parent=0 // pred_check_branch
    %11 = sbr.rel (0) target = $region9
  $region8: #{easpp_decoder5_forward.6} parent=0 // pred_region
    _
  $region9: #{easpp_decoder5_forward.6} parent=0 // pred_fallthru
    _
  // Predicated region
  $region10: #{easpp_decoder5_forward.6} parent=0 // pred_check
    _
  $region11: #{easpp_decoder5_forward.6} parent=0 // pred_check_branch
    %13 = sbr.rel (0) target = $region13
  $region12: #{easpp_decoder5_forward.6} parent=0 // pred_region
    _
  $region13: #{easpp_decoder5_forward.6} parent=0 // pred_fallthru
    _
  %v15 = vld [vmem:[%s0] sm:$0xf]
  %v16 = vld [vmem:[%s0 + $0x4] sm:$0xf]
  %v17 = vld [vmem:[%s0 + $0x8] sm:$0xf]
  %v18 = vld [vmem:[%s0 + $0xc] sm:$0xf]
  %v19 = vld [vmem:[%s0 + $0x10] sm:$0xf]
  %v20 = vld [vmem:[%s0 + $0x14] sm:$0xf]
  %v21 = vld [vmem:[%s0 + $0x18] sm:$0xf]
  %v22 = vld [vmem:[%s0 + $0x1c] sm:$0xf]
  %v23 = vld [vmem:[%s0 + $0x20] sm:$0xf]
  %v24 = vld [vmem:[%s0 + $0x24] sm:$0xf]
  %v25 = vld [vmem:[%s0 + $0x28] sm:$0xf]
  %v26 = vld [vmem:[%s0 + $0x2c] sm:$0xf]
  %v27 = vld [vmem:[%s0 + $0x30] sm:$0xf]
  %v28 = vld [vmem:[%s0 + $0x34] sm:$0xf]
  %v29 = vld [vmem:[%s0 + $0x38] sm:$0xf]
  %v30 = vld [vmem:[%s0 + $0x3c] sm:$0xf]
  %v31 = vld [vmem:[%s1] sm:$0xf]
  %v32 = vld [vmem:[%s1 + $0x4] sm:$0xf]
  %v33 = vld [vmem:[%s1 + $0x8] sm:$0xf]
  %v34 = vld [vmem:[%s1 + $0xc] sm:$0xf]
  %v35 = vld [vmem:[%s1 + $0x10] sm:$0xf]
  %v36 = vld [vmem:[%s1 + $0x14] sm:$0xf]
  %v37 = vld [vmem:[%s1 + $0x18] sm:$0xf]
  %v38 = vld [vmem:[%s1 + $0x1c] sm:$0xf]
  %v39 = vld [vmem:[%s2] sm:$0x1]
  %v41 = vlaneseq
  %v42 = vshrl.u32 %v41, 7
  %v43 = vsub.s32 0, %v42
  %v44 = vrot.slane %v39, %v43
  %v62 = vunpack.c.l.b16 %v15
  %v63 = vunpack.c.l.b16 %v16
  %v64 = vunpack.c.l.b16 %v17
  %v65 = vunpack.c.l.b16 %v18
  %v66 = vunpack.c.l.b16 %v19
  %v67 = vunpack.c.l.b16 %v20
  %v68 = vunpack.c.l.b16 %v21
  %v69 = vunpack.c.l.b16 %v22
  %v70 = vunpack.c.l.b16 %v23
  %v71 = vunpack.c.l.b16 %v24
  %v72 = vunpack.c.l.b16 %v25
  %v73 = vunpack.c.l.b16 %v26
  %v74 = vunpack.c.l.b16 %v27
  %v75 = vunpack.c.l.b16 %v28
  %v76 = vunpack.c.l.b16 %v29
  %v77 = vunpack.c.l.b16 %v30
  %v78 = vpack.c.b16 %v63, %v62
  %v79 = vpack.c.b16 %v65, %v64
  %v80 = vpack.c.b16 %v67, %v66
  %v81 = vpack.c.b16 %v69, %v68
  %v82 = vpack.c.b16 %v71, %v70
  %v83 = vpack.c.b16 %v73, %v72
  %v84 = vpack.c.b16 %v75, %v74
  %v85 = vpack.c.b16 %v77, %v76
  %v94 = vunpack.c.l.b16 %v31
  %v95 = vunpack.c.l.b16 %v32
  %v96 = vunpack.c.l.b16 %v33
  %v97 = vunpack.c.l.b16 %v34
  %v98 = vunpack.c.l.b16 %v35
  %v99 = vunpack.c.l.b16 %v36
  %v100 = vunpack.c.l.b16 %v37
  %v101 = vunpack.c.l.b16 %v38
  %v102 = vpack.c.b16 %v95, %v94
  %v103 = vpack.c.b16 %v97, %v96
  %v104 = vpack.c.b16 %v99, %v98
  %v105 = vpack.c.b16 %v101, %v100
  %vm110 = vcmask 523264
  %v112 = vsel %vm110, %v78, 0
  %v115 = vsel %vm110, %v79, 0
  %v118 = vsel %vm110, %v80, 0
  %v121 = vsel %vm110, %v81, 0
  %v124 = vsel %vm110, %v82, 0
  %v127 = vsel %vm110, %v83, 0
  %v130 = vsel %vm110, %v84, 0
  %v133 = vsel %vm110, %v85, 0
  %135 = vmatprep.subr.bf16.mxu0 0
  %136 = vmatpush1.bf16.msra.mxu0 %v102
  %137 = vmatprep.subr.bf16.mxu0 0
  %138 = vmatpush1.bf16.msra.mxu0 %v103
  %139 = vmatprep.subr.bf16.mxu0 0
  %140 = vmatpush1.bf16.msra.mxu0 %v104
  %141 = vmatprep.subr.bf16.mxu0 0
  %142 = vmatpush1.bf16.msra.mxu0 %v105
  %143 = vmatprep.subr.bf16.mxu0 0
  %144 = vmatpush1.bf16.msra.mxu0 0
  %145 = vmatprep.subr.bf16.mxu0 0
  %146 = vmatpush1.bf16.msra.mxu0 0
  %147 = vmatprep.subr.bf16.mxu0 0
  %148 = vmatpush1.bf16.msra.mxu0 0
  %149 = vmatprep.subr.bf16.mxu0 0
  %150 = vmatpush1.bf16.msra.mxu0 0
  %151 = vmatprep.subr.bf16.mxu0 0
  %152 = vmatpush1.bf16.msra.mxu0 0
  %153 = vmatprep.subr.bf16.mxu0 0
  %154 = vmatpush1.bf16.msra.mxu0 0
  %155 = vmatprep.subr.bf16.mxu0 0
  %156 = vmatpush1.bf16.msra.mxu0 0
  %157 = vmatprep.subr.bf16.mxu0 0
  %158 = vmatpush1.bf16.msra.mxu0 0
  %159 = vmatprep.subr.bf16.mxu0 0
  %160 = vmatpush1.bf16.msra.mxu0 0
  %161 = vmatprep.subr.bf16.mxu0 0
  %162 = vmatpush1.bf16.msra.mxu0 0
  %163 = vmatprep.subr.bf16.mxu0 0
  %164 = vmatpush1.bf16.msra.mxu0 0
  %165 = vmatprep.subr.bf16.mxu0 0
  %166 = vmatpush1.bf16.msra.mxu0 0
  %167 = vmatprep.mubr.bf16.mxu0 0
  %168 = vmatmul.mubr.bf16.gmra.mrb[0].mxu0 %v112
  %v169 = vpop.f32.mrb[0].mxu0
  %v170 = vadd.f32 %v44, %v169
  %v171 = vpop.f32.mrb[0].mxu0
  %v172 = vpop.f32.mrb[0].mxu0
  %v173 = vadd.f32 %v44, %v172
  %v174 = vpop.f32.mrb[0].mxu0
  %175 = vmatprep.mubr.bf16.mxu0 0
  %176 = vmatmul.mubr.bf16.gmra.mrb[0].mxu0 %v115
  %v177 = vpop.f32.mrb[0].mxu0
  %v178 = vadd.f32 %v44, %v177
  %v179 = vpop.f32.mrb[0].mxu0
  %v180 = vpop.f32.mrb[0].mxu0
  %v181 = vadd.f32 %v44, %v180
  %v182 = vpop.f32.mrb[0].mxu0
  %183 = vmatprep.mubr.bf16.mxu0 0
  %184 = vmatmul.mubr.bf16.gmra.mrb[0].mxu0 %v118
  %v185 = vpop.f32.mrb[0].mxu0
  %v186 = vadd.f32 %v44, %v185
  %v187 = vpop.f32.mrb[0].mxu0
  %v188 = vpop.f32.mrb[0].mxu0
  %v189 = vadd.f32 %v44, %v188
  %v190 = vpop.f32.mrb[0].mxu0
  %191 = vmatprep.mubr.bf16.mxu0 0
  %192 = vmatmul.mubr.bf16.gmra.mrb[0].mxu0 %v121
  %v193 = vpop.f32.mrb[0].mxu0
  %v194 = vadd.f32 %v44, %v193
  %v195 = vpop.f32.mrb[0].mxu0
  %v196 = vpop.f32.mrb[0].mxu0
  %v197 = vadd.f32 %v44, %v196
  %v198 = vpop.f32.mrb[0].mxu0
  %199 = vmatprep.mubr.bf16.mxu0 0
  %200 = vmatmul.mubr.bf16.gmra.mrb[0].mxu0 %v124
  %v201 = vpop.f32.mrb[0].mxu0
  %v202 = vadd.f32 %v44, %v201
  %v203 = vpop.f32.mrb[0].mxu0
  %v204 = vpop.f32.mrb[0].mxu0
  %v205 = vadd.f32 %v44, %v204
  %v206 = vpop.f32.mrb[0].mxu0
  %207 = vmatprep.mubr.bf16.mxu0 0
  %208 = vmatmul.mubr.bf16.gmra.mrb[0].mxu0 %v127
  %v209 = vpop.f32.mrb[0].mxu0
  %v210 = vadd.f32 %v44, %v209
  %v211 = vpop.f32.mrb[0].mxu0
  %v212 = vpop.f32.mrb[0].mxu0
  %v213 = vadd.f32 %v44, %v212
  %v214 = vpop.f32.mrb[0].mxu0
  %215 = vmatprep.mubr.bf16.mxu0 0
  %216 = vmatmul.mubr.bf16.gmra.mrb[0].mxu0 %v130
  %v217 = vpop.f32.mrb[0].mxu0
  %v218 = vadd.f32 %v44, %v217
  %v219 = vpop.f32.mrb[0].mxu0
  %v220 = vpop.f32.mrb[0].mxu0
  %v221 = vadd.f32 %v44, %v220
  %v222 = vpop.f32.mrb[0].mxu0
  %223 = vmatprep.mubr.bf16.mxu0 0
  %224 = vmatmul.mubr.bf16.gmra.mrb[0].mxu0 %v133
  %v225 = vpop.f32.mrb[0].mxu0
  %v226 = vadd.f32 %v44, %v225
  %v227 = vpop.f32.mrb[0].mxu0
  %v228 = vpop.f32.mrb[0].mxu0
  %v229 = vadd.f32 %v44, %v228
  %v230 = vpop.f32.mrb[0].mxu0
  %231 = vdwg.mxu0
  %v232 = vmax.f32 %v170, 0.0
  %v233 = vmax.f32 %v173, 0.0
  %v234 = vmax.f32 %v178, 0.0
  %v235 = vmax.f32 %v181, 0.0
  %v236 = vmax.f32 %v186, 0.0
  %v237 = vmax.f32 %v189, 0.0
  %v238 = vmax.f32 %v194, 0.0
  %v239 = vmax.f32 %v197, 0.0
  %v240 = vmax.f32 %v202, 0.0
  %v241 = vmax.f32 %v205, 0.0
  %v242 = vmax.f32 %v210, 0.0
  %v243 = vmax.f32 %v213, 0.0
  %v244 = vmax.f32 %v218, 0.0
  %v245 = vmax.f32 %v221, 0.0
  %v246 = vmax.f32 %v226, 0.0
  %v247 = vmax.f32 %v229, 0.0
  %248 = vst [vmem:[%s3] sm:$0xff] %v232
  %249 = vst [vmem:[%s3 + $0x8] sm:$0xff] %v233
  %250 = vst [vmem:[%s3 + $0x10] sm:$0xff] %v234
  %251 = vst [vmem:[%s3 + $0x18] sm:$0xff] %v235
  %252 = vst [vmem:[%s3 + $0x20] sm:$0xff] %v236
  %253 = vst [vmem:[%s3 + $0x28] sm:$0xff] %v237
  %254 = vst [vmem:[%s3 + $0x30] sm:$0xff] %v238
  %255 = vst [vmem:[%s3 + $0x38] sm:$0xff] %v239
  %256 = vst [vmem:[%s3 + $0x40] sm:$0xff] %v240
  %257 = vst [vmem:[%s3 + $0x48] sm:$0xff] %v241
  %258 = vst [vmem:[%s3 + $0x50] sm:$0xff] %v242
  %259 = vst [vmem:[%s3 + $0x58] sm:$0xff] %v243
  %260 = vst [vmem:[%s3 + $0x60] sm:$0xff] %v244
  %261 = vst [vmem:[%s3 + $0x68] sm:$0xff] %v245
  %262 = vst [vmem:[%s3 + $0x70] sm:$0xff] %v246
  %263 = vst [vmem:[%s3 + $0x78] sm:$0xff] %v247
  // Predicated region
  $region14: #{easpp_decoder5_forward.6} parent=0 // pred_check
    _
  $region15: #{easpp_decoder5_forward.6} parent=0 // pred_check_branch
    %265 = sbr.rel (0) target = $region17
  $region16: #{easpp_decoder5_forward.6} parent=0 // pred_region
    _
  $region17: #{easpp_decoder5_forward.6} parent=0 // pred_fallthru
    _
  // Predicated region
  $region18: #{easpp_decoder5_forward.6} parent=0 // pred_check
    _
  $region19: #{easpp_decoder5_forward.6} parent=0 // pred_check_branch
    %267 = sbr.rel (0) target = $region21
  $region20: #{easpp_decoder5_forward.6} parent=0 // pred_region
    _
  $region21: #{easpp_decoder5_forward.6} parent=0 // pred_fallthru
    _

// kernel: easpp_decoder5_forward.5
$region0: #{easpp_decoder5_forward.5}
  #allocation0 [shape = 'u32[]', space=smem, size = 0x4, offset = 0x4, fixed_abs, tag = 'smem constant byte address 0x4 - core index']
  #allocation1 [shape = 'u32[144,128]{1,0:T(1,128)}', space=vmem, size = 0x12000, scoped, tag = 'internal scratch']
  #allocation2 [shape = 'f32[20,20,64]{2,1,0:T(8,128)}', space=vmem, size = 0x3c000, scoped, tag = 'scratch operand']
  %s0 = inlined_call_operand.vmem [shape: bf16[2,4,4,256], index: 0, kind: input, shape index: {}]
  %s1 = inlined_call_operand.vmem [shape: bf16[256,64], index: 1, kind: input, shape index: {}]
  %s2 = inlined_call_operand.vmem [shape: f32[1,64], index: 2, kind: input, shape index: {}]
  %s3 = inlined_call_operand.vmem [shape: f32[27,64], index: 3, kind: input, shape index: {}]
  %s4 = inlined_call_operand.vmem [shape: f32[3,64], index: 4, kind: input, shape index: {}]
  %s5 = inlined_call_operand.vmem [shape: f32[3,64], index: 5, kind: input, shape index: {}]
  %s6 = inlined_call_operand.vmem [shape: f32[3,64], index: 6, kind: input, shape index: {}]
  %s7 = inlined_call_operand.vmem [shape: bf16[64,128], index: 7, kind: input, shape index: {}]
  %s8 = inlined_call_operand.vmem [shape: f32[1,128], index: 8, kind: input, shape index: {}]
  %s9 = inlined_call_operand.vmem [shape: f32[2,4,4,128], index: 9, kind: output, shape index: {}]
  %s10 = sld [smem:[#allocation0]]
  $region69: #{easpp_decoder5_forward.5} parent=0
    _
  %s12 = ssub.s32 1, %s10
  %s13 = scalar_select 0, %s12, %s10
  loop: start=0, step=1, limit=4
  $region2: #{easpp_decoder5_forward.5} parent=0 // loop_pre_header
    _
  $region3: #{easpp_decoder5_forward.5} parent=0 // loop_header
    %s15 = sphi 0, %s19
    %p16 = scmp.ge.s32.totalorder %s15, 4
    %s25 = sphi 0, %s27
    %s28 = sphi 0, %s25
    %s29 = sphi 0, %s28
    %s45 = sphi 0, %s29
    %s49 = sphi 0, %s49
    %s51 = sphi 0, %s49
    %s52 = sphi 0, %s51
    %s66 = sphi 0, %s52
    %s70 = sphi 0, %s70
    %s72 = sphi 0, %s70
    %s73 = sphi 0, %s72
    %s87 = sphi 0, %s73
    %s91 = sphi 0, %s91
    %s93 = sphi 0, %s91
    %s94 = sphi 0, %s93
    %s108 = sphi 0, %s94
    %s112 = sphi 0, %s112
    %s114 = sphi 0, %s112
    %s115 = sphi 0, %s114
    %s129 = sphi 0, %s115
    %s133 = sphi 0, %s133
    %s135 = sphi 0, %s133
    %s136 = sphi 0, %s135
    %s150 = sphi 0, %s136
    %s154 = sphi 0, %s154
    %s156 = sphi 0, %s154
    %s157 = sphi 0, %s156
    %s171 = sphi 0, %s157
    %s175 = sphi 0, %s175
    %s177 = sphi 0, %s175
    %s178 = sphi 0, %s177
    %s192 = sphi 0, %s178
    %s196 = sphi 0, %s196
    %s198 = sphi 0, %s196
    %s199 = sphi 0, %s198
    %s213 = sphi 0, %s199
    %s219 = sphi 0, %s221
    %s222 = sphi 0, %s219
    %s223 = sphi 0, %s222
    %s239 = sphi 0, %s223
  $region4: #{easpp_decoder5_forward.5} parent=0 // loop_header_branch
    %18 = sbr.rel (%p16) target = $region8
  $region5: #{easpp_decoder5_forward.5} parent=0 // loop_body
    %s20 = ssub.s32 %s15, 1
    %s21 = ssub.s32 %s15, 2
    %s22 = sadd.s32 %s15, 1
    %s23 = ssub.s32 %s15, %s22
    %p24 = scmp.eq.s32.totalorder %s23, 0
    %s26 = sadd.s32 %s25, 1
    %s27 = scalar_select %p24, %s25, %s26
    %p30 = pneg %p24
    %p31 = scmp.eq.s32.totalorder %s15, 1
    %p32 = por %p30, %p31
    %p33 = scmp.ne.s32.totalorder %s25, %s28
    %p34 = scmp.eq.s32.totalorder %s15, 0
    %p35 = por %p33, %p34
    %p36 = scmp.ne.s32.totalorder %s25, %s28
    %p37 = scmp.eq.s32.totalorder %s20, 1
    %p38 = por %p36, %p37
    %p39 = scmp.ne.s32.totalorder %s28, %s29
    %p40 = scmp.eq.s32.totalorder %s20, 0
    %p41 = por %p39, %p40
    %p42 = scmp.ne.s32.totalorder %s28, %s29
    %p43 = scmp.eq.s32.totalorder %s21, 1
    %p44 = por %p42, %p43
    %p46 = scmp.ne.s32.totalorder %s29, %s45
    %p47 = scmp.eq.s32.totalorder %s21, 0
    %p48 = por %p46, %p47
    %s50 = sadd.s32 %s49, 1
    %p53 = scmp.eq.s32.totalorder %s15, 1
    %p54 = scmp.ne.s32.totalorder %s49, %s51
    %p55 = scmp.eq.s32.totalorder %s15, 0
    %p56 = por %p54, %p55
    %p57 = scmp.ne.s32.totalorder %s49, %s51
    %p58 = scmp.eq.s32.totalorder %s20, 1
    %p59 = por %p57, %p58
    %p60 = scmp.ne.s32.totalorder %s51, %s52
    %p61 = scmp.eq.s32.totalorder %s20, 0
    %p62 = por %p60, %p61
    %p63 = scmp.ne.s32.totalorder %s51, %s52
    %p64 = scmp.eq.s32.totalorder %s21, 1
    %p65 = por %p63, %p64
    %p67 = scmp.ne.s32.totalorder %s52, %s66
    %p68 = scmp.eq.s32.totalorder %s21, 0
    %p69 = por %p67, %p68
    %s71 = sadd.s32 %s70, 1
    %p74 = scmp.eq.s32.totalorder %s15, 1
    %p75 = scmp.ne.s32.totalorder %s70, %s72
    %p76 = scmp.eq.s32.totalorder %s15, 0
    %p77 = por %p75, %p76
    %p78 = scmp.ne.s32.totalorder %s70, %s72
    %p79 = scmp.eq.s32.totalorder %s20, 1
    %p80 = por %p78, %p79
    %p81 = scmp.ne.s32.totalorder %s72, %s73
    %p82 = scmp.eq.s32.totalorder %s20, 0
    %p83 = por %p81, %p82
    %p84 = scmp.ne.s32.totalorder %s72, %s73
    %p85 = scmp.eq.s32.totalorder %s21, 1
    %p86 = por %p84, %p85
    %p88 = scmp.ne.s32.totalorder %s73, %s87
    %p89 = scmp.eq.s32.totalorder %s21, 0
    %p90 = por %p88, %p89
    %s92 = sadd.s32 %s91, 1
    %p95 = scmp.eq.s32.totalorder %s15, 1
    %p96 = scmp.ne.s32.totalorder %s91, %s93
    %p97 = scmp.eq.s32.totalorder %s15, 0
    %p98 = por %p96, %p97
    %p99 = scmp.ne.s32.totalorder %s91, %s93
    %p100 = scmp.eq.s32.totalorder %s20, 1
    %p101 = por %p99, %p100
    %p102 = scmp.ne.s32.totalorder %s93, %s94
    %p103 = scmp.eq.s32.totalorder %s20, 0
    %p104 = por %p102, %p103
    %p105 = scmp.ne.s32.totalorder %s93, %s94
    %p106 = scmp.eq.s32.totalorder %s21, 1
    %p107 = por %p105, %p106
    %p109 = scmp.ne.s32.totalorder %s94, %s108
    %p110 = scmp.eq.s32.totalorder %s21, 0
    %p111 = por %p109, %p110
    %s113 = sadd.s32 %s112, 1
    %p116 = scmp.eq.s32.totalorder %s15, 1
    %p117 = scmp.ne.s32.totalorder %s112, %s114
    %p118 = scmp.eq.s32.totalorder %s15, 0
    %p119 = por %p117, %p118
    %p120 = scmp.ne.s32.totalorder %s112, %s114
    %p121 = scmp.eq.s32.totalorder %s20, 1
    %p122 = por %p120, %p121
    %p123 = scmp.ne.s32.totalorder %s114, %s115
    %p124 = scmp.eq.s32.totalorder %s20, 0
    %p125 = por %p123, %p124
    %p126 = scmp.ne.s32.totalorder %s114, %s115
    %p127 = scmp.eq.s32.totalorder %s21, 1
    %p128 = por %p126, %p127
    %p130 = scmp.ne.s32.totalorder %s115, %s129
    %p131 = scmp.eq.s32.totalorder %s21, 0
    %p132 = por %p130, %p131
    %s134 = sadd.s32 %s133, 1
    %p137 = scmp.eq.s32.totalorder %s15, 1
    %p138 = scmp.ne.s32.totalorder %s133, %s135
    %p139 = scmp.eq.s32.totalorder %s15, 0
    %p140 = por %p138, %p139
    %p141 = scmp.ne.s32.totalorder %s133, %s135
    %p142 = scmp.eq.s32.totalorder %s20, 1
    %p143 = por %p141, %p142
    %p144 = scmp.ne.s32.totalorder %s135, %s136
    %p145 = scmp.eq.s32.totalorder %s20, 0
    %p146 = por %p144, %p145
    %p147 = scmp.ne.s32.totalorder %s135, %s136
    %p148 = scmp.eq.s32.totalorder %s21, 1
    %p149 = por %p147, %p148
    %p151 = scmp.ne.s32.totalorder %s136, %s150
    %p152 = scmp.eq.s32.totalorder %s21, 0
    %p153 = por %p151, %p152
    %s155 = sadd.s32 %s154, 1
    %p158 = scmp.eq.s32.totalorder %s15, 1
    %p159 = scmp.ne.s32.totalorder %s154, %s156
    %p160 = scmp.eq.s32.totalorder %s15, 0
    %p161 = por %p159, %p160
    %p162 = scmp.ne.s32.totalorder %s154, %s156
    %p163 = scmp.eq.s32.totalorder %s20, 1
    %p164 = por %p162, %p163
    %p165 = scmp.ne.s32.totalorder %s156, %s157
    %p166 = scmp.eq.s32.totalorder %s20, 0
    %p167 = por %p165, %p166
    %p168 = scmp.ne.s32.totalorder %s156, %s157
    %p169 = scmp.eq.s32.totalorder %s21, 1
    %p170 = por %p168, %p169
    %p172 = scmp.ne.s32.totalorder %s157, %s171
    %p173 = scmp.eq.s32.totalorder %s21, 0
    %p174 = por %p172, %p173
    %s176 = sadd.s32 %s175, 1
    %p179 = scmp.eq.s32.totalorder %s15, 1
    %p180 = scmp.ne.s32.totalorder %s175, %s177
    %p181 = scmp.eq.s32.totalorder %s15, 0
    %p182 = por %p180, %p181
    %p183 = scmp.ne.s32.totalorder %s175, %s177
    %p184 = scmp.eq.s32.totalorder %s20, 1
    %p185 = por %p183, %p184
    %p186 = scmp.ne.s32.totalorder %s177, %s178
    %p187 = scmp.eq.s32.totalorder %s20, 0
    %p188 = por %p186, %p187
    %p189 = scmp.ne.s32.totalorder %s177, %s178
    %p190 = scmp.eq.s32.totalorder %s21, 1
    %p191 = por %p189, %p190
    %p193 = scmp.ne.s32.totalorder %s178, %s192
    %p194 = scmp.eq.s32.totalorder %s21, 0
    %p195 = por %p193, %p194
    %s197 = sadd.s32 %s196, 1
    %p200 = scmp.eq.s32.totalorder %s15, 1
    %p201 = scmp.ne.s32.totalorder %s196, %s198
    %p202 = scmp.eq.s32.totalorder %s15, 0
    %p203 = por %p201, %p202
    %p204 = scmp.ne.s32.totalorder %s196, %s198
    %p205 = scmp.eq.s32.totalorder %s20, 1
    %p206 = por %p204, %p205
    %p207 = scmp.ne.s32.totalorder %s198, %s199
    %p208 = scmp.eq.s32.totalorder %s20, 0
    %p209 = por %p207, %p208
    %p210 = scmp.ne.s32.totalorder %s198, %s199
    %p211 = scmp.eq.s32.totalorder %s21, 1
    %p212 = por %p210, %p211
    %p214 = scmp.ne.s32.totalorder %s199, %s213
    %p215 = scmp.eq.s32.totalorder %s21, 0
    %p216 = por %p214, %p215
    %s217 = ssub.s32 %s15, %s22
    %p218 = scmp.eq.s32.totalorder %s217, 0
    %s220 = sadd.s32 %s219, 1
    %s221 = scalar_select %p218, %s219, %s220
    %p224 = pneg %p218
    %p225 = scmp.eq.s32.totalorder %s15, 1
    %p226 = por %p224, %p225
    %p227 = scmp.ne.s32.totalorder %s219, %s222
    %p228 = scmp.eq.s32.totalorder %s15, 0
    %p229 = por %p227, %p228
    %p230 = scmp.ne.s32.totalorder %s219, %s222
    %p231 = scmp.eq.s32.totalorder %s20, 1
    %p232 = por %p230, %p231
    %p233 = scmp.ne.s32.totalorder %s222, %s223
    %p234 = scmp.eq.s32.totalorder %s20, 0
    %p235 = por %p233, %p234
    %p236 = scmp.ne.s32.totalorder %s222, %s223
    %p237 = scmp.eq.s32.totalorder %s21, 1
    %p238 = por %p236, %p237
    %p240 = scmp.ne.s32.totalorder %s223, %s239
    %p241 = scmp.eq.s32.totalorder %s21, 0
    %p242 = por %p240, %p241
    %p243 = scmp.le.s32.totalorder 1, %s15
    %p244 = scmp.lt.s32.totalorder %s15, 3
    %p245 = pnand %p243, %p244
    %p246 = pneg %p245
    // Predicated region
    $region9: #{easpp_decoder5_forward.5} parent=5 // pred_check
      _
    $region10: #{easpp_decoder5_forward.5} parent=5 // pred_check_branch
      %248 = sbr.rel (%p245) target = $region12
    $region11: #{easpp_decoder5_forward.5} parent=5 // pred_region
      %s249 = ssub.s32 %s15, 1
      // Predicated region
      $region13: #{easpp_decoder5_forward.5} parent=11 // pred_check
        %p250 = pneg %p62
      $region14: #{easpp_decoder5_forward.5} parent=11 // pred_check_branch
        %252 = sbr.rel (%p250) target = $region16
      $region15: #{easpp_decoder5_forward.5} parent=11 // pred_region
        _
      $region16: #{easpp_decoder5_forward.5} parent=11 // pred_fallthru
        _
      // Predicated region
      $region17: #{easpp_decoder5_forward.5} parent=11 // pred_check
        %p253 = pneg %p83
      $region18: #{easpp_decoder5_forward.5} parent=11 // pred_check_branch
        %255 = sbr.rel (%p253) target = $region20
      $region19: #{easpp_decoder5_forward.5} parent=11 // pred_region
        _
      $region20: #{easpp_decoder5_forward.5} parent=11 // pred_fallthru
        _
      // Predicated region
      $region21: #{easpp_decoder5_forward.5} parent=11 // pred_check
        %p256 = pneg %p104
      $region22: #{easpp_decoder5_forward.5} parent=11 // pred_check_branch
        %258 = sbr.rel (%p256) target = $region24
      $region23: #{easpp_decoder5_forward.5} parent=11 // pred_region
        _
      $region24: #{easpp_decoder5_forward.5} parent=11 // pred_fallthru
        _
      // Predicated region
      $region25: #{easpp_decoder5_forward.5} parent=11 // pred_check
        %p259 = pneg %p125
      $region26: #{easpp_decoder5_forward.5} parent=11 // pred_check_branch
        %261 = sbr.rel (%p259) target = $region28
      $region27: #{easpp_decoder5_forward.5} parent=11 // pred_region
        _
      $region28: #{easpp_decoder5_forward.5} parent=11 // pred_fallthru
        _
      // Predicated region
      $region29: #{easpp_decoder5_forward.5} parent=11 // pred_check
        %p262 = pneg %p146
      $region30: #{easpp_decoder5_forward.5} parent=11 // pred_check_branch
        %264 = sbr.rel (%p262) target = $region32
      $region31: #{easpp_decoder5_forward.5} parent=11 // pred_region
        _
      $region32: #{easpp_decoder5_forward.5} parent=11 // pred_fallthru
        _
      // Predicated region
      $region33: #{easpp_decoder5_forward.5} parent=11 // pred_check
        %p265 = pneg %p167
      $region34: #{easpp_decoder5_forward.5} parent=11 // pred_check_branch
        %267 = sbr.rel (%p265) target = $region36
      $region35: #{easpp_decoder5_forward.5} parent=11 // pred_region
        _
      $region36: #{easpp_decoder5_forward.5} parent=11 // pred_fallthru
        _
      // Predicated region
      $region37: #{easpp_decoder5_forward.5} parent=11 // pred_check
        %p268 = pneg %p188
      $region38: #{easpp_decoder5_forward.5} parent=11 // pred_check_branch
        %270 = sbr.rel (%p268) target = $region40
      $region39: #{easpp_decoder5_forward.5} parent=11 // pred_region
        _
      $region40: #{easpp_decoder5_forward.5} parent=11 // pred_fallthru
        _
      // Predicated region
      $region41: #{easpp_decoder5_forward.5} parent=11 // pred_check
        %p271 = pneg %p209
      $region42: #{easpp_decoder5_forward.5} parent=11 // pred_check_branch
        %273 = sbr.rel (%p271) target = $region44
      $region43: #{easpp_decoder5_forward.5} parent=11 // pred_region
        _
      $region44: #{easpp_decoder5_forward.5} parent=11 // pred_fallthru
        _
    $region12: #{easpp_decoder5_forward.5} parent=5 // pred_fallthru
      _
    %p274 = scmp.lt.s32.totalorder %s15, 2
    // Predicated region
    $region45: #{easpp_decoder5_forward.5} parent=5 // pred_check
      %p275 = pneg %p274
    $region46: #{easpp_decoder5_forward.5} parent=5 // pred_check_branch
      %277 = sbr.rel (%p275) target = $region48
    $region47: #{easpp_decoder5_forward.5} parent=5 // pred_region
      // Predicated region
      $region49: #{easpp_decoder5_forward.5} parent=47 // pred_check
        %p278 = pneg %p35
      $region50: #{easpp_decoder5_forward.5} parent=47 // pred_check_branch
        %280 = sbr.rel (%p278) target = $region52
      $region51: #{easpp_decoder5_forward.5} parent=47 // pred_region
        %p281 = scmp.lt.s32.totalorder %s15, 1
        %s282 = scalar_select %p281, %s15, 1
        %s283 = smul.addr %s282, 8
        %s284 = smul.addr %s283, 2
        %s285 = scalar_lea.vmem %s0, %s284
      $region52: #{easpp_decoder5_forward.5} parent=47 // pred_fallthru
        _
    $region48: #{easpp_decoder5_forward.5} parent=5 // pred_fallthru
      _
    %p286 = scmp.le.s32.totalorder 1, %s15
    %p287 = scmp.lt.s32.totalorder %s15, 3
    %p288 = pnand %p286, %p287
    %p289 = pneg %p288
    // Predicated region
    $region53: #{easpp_decoder5_forward.5} parent=5 // pred_check
      _
    $region54: #{easpp_decoder5_forward.5} parent=5 // pred_check_branch
      %291 = sbr.rel (%p288) target = $region56
    $region55: #{easpp_decoder5_forward.5} parent=5 // pred_region
      %s292 = ssub.s32 %s15, 1
      %p293 = scmp.lt.s32.totalorder %s20, 1
      %s294 = scalar_select %p293, %s20, 1
      %s295 = smul.addr %s294, 8
      %s296 = smul.addr %s295, 2
      %s297 = scalar_lea.vmem %s0, %s296
      %p298 = pneg %p41
      %p299 = pneg %p38
      %p300 = pneg %p62
      %p301 = pneg %p59
      %p302 = pneg %p83
      %p303 = pneg %p80
      %p304 = pneg %p104
      %p305 = pneg %p101
      %p306 = pneg %p125
      %p307 = pneg %p122
      %p308 = pneg %p146
      %p309 = pneg %p143
      %p310 = pneg %p167
      %p311 = pneg %p164
      %p312 = pneg %p188
      %p313 = pneg %p185
      %p314 = pneg %p209
      %p315 = pneg %p206
      %p316 = pneg %p235
      %p317 = pneg %p232
      %p318 = scmp.lt.s32.totalorder %s20, 1
      %s319 = scalar_select %p318, %s20, 1
      %s320 = smul.addr %s319, 4
      %s321 = smul.addr %s320, 4
      %s322 = scalar_lea.vmem %s9, %s321
      %p323 = scmp.lt.s32.totalorder %s20, 1
      %s324 = scalar_select %p323, %s20, 1
      %s325 = smul.addr %s324, 8
      %s326 = smul.addr %s325, 2
      %s327 = scalar_lea.vmem %s0, %s326
      %p328 = scmp.lt.s32.totalorder %s20, 1
      %s329 = scalar_select %p328, %s20, 1
      %s330 = smul.addr %s329, 4
      %s331 = smul.addr %s330, 4
      %s332 = scalar_lea.vmem %s9, %s331
      %v334 = vld [vmem:[%s327] sm:$0xf]
      %v335 = vld [vmem:[%s327 + $0x4] sm:$0xf]
      %v336 = vld [vmem:[%s327 + $0x8] sm:$0xf]
      %v337 = vld [vmem:[%s327 + $0xc] sm:$0xf]
      %v338 = vld [vmem:[%s1] sm:$0xf]
      %v339 = vld [vmem:[%s1 + $0x4] sm:$0xf]
      %v340 = vld [vmem:[%s1 + $0x8] sm:$0xf]
      %v341 = vld [vmem:[%s1 + $0xc] sm:$0xf]
      %v342 = vld [vmem:[%s1 + $0x10] sm:$0xf]
      %v343 = vld [vmem:[%s1 + $0x14] sm:$0xf]
      %v344 = vld [vmem:[%s1 + $0x18] sm:$0xf]
      %v345 = vld [vmem:[%s1 + $0x1c] sm:$0xf]
      %v346 = vld [vmem:[%s1 + $0x20] sm:$0xf]
      %v347 = vld [vmem:[%s1 + $0x24] sm:$0xf]
      %v348 = vld [vmem:[%s1 + $0x28] sm:$0xf]
      %v349 = vld [vmem:[%s1 + $0x2c] sm:$0xf]
      %v350 = vld [vmem:[%s1 + $0x30] sm:$0xf]
      %v351 = vld [vmem:[%s1 + $0x34] sm:$0xf]
      %v352 = vld [vmem:[%s1 + $0x38] sm:$0xf]
      %v353 = vld [vmem:[%s1 + $0x3c] sm:$0xf]
      %v354 = vld [vmem:[%s1 + $0x40] sm:$0xf]
      %v355 = vld [vmem:[%s1 + $0x44] sm:$0xf]
      %v356 = vld [vmem:[%s1 + $0x48] sm:$0xf]
      %v357 = vld [vmem:[%s1 + $0x4c] sm:$0xf]
      %v358 = vld [vmem:[%s1 + $0x50] sm:$0xf]
      %v359 = vld [vmem:[%s1 + $0x54] sm:$0xf]
      %v360 = vld [vmem:[%s1 + $0x58] sm:$0xf]
      %v361 = vld [vmem:[%s1 + $0x5c] sm:$0xf]
      %v362 = vld [vmem:[%s1 + $0x60] sm:$0xf]
      %v363 = vld [vmem:[%s1 + $0x64] sm:$0xf]
      %v364 = vld [vmem:[%s1 + $0x68] sm:$0xf]
      %v365 = vld [vmem:[%s1 + $0x6c] sm:$0xf]
      %v366 = vld [vmem:[%s1 + $0x70] sm:$0xf]
      %v367 = vld [vmem:[%s1 + $0x74] sm:$0xf]
      %v368 = vld [vmem:[%s1 + $0x78] sm:$0xf]
      %v369 = vld [vmem:[%s1 + $0x7c] sm:$0xf]
      %v370 = vld [vmem:[%s2] sm:$0x1]
      %v372 = vlaneseq
      %v373 = vshrl.u32 %v372, 7
      %v374 = vsub.s32 0, %v373
      %v375 = vrot.slane %v370, %v374
      %v381 = vcombine.low %v334, %v335
      %v382 = vcombine.low %v336, %v337
      %v384 = vunpack.c.l.s4 1983009808
      %v385 = vunpack.c.0.s8 %v384
      %v386 = vlaneseq
      %v387 = vshrl.u32 %v386, 7
      %v388 = vsub.s32 %v385, %v387
      %v389 = vrot.slane %v381, %v388
      %v391 = vunpack.c.l.s4 1983009808
      %v392 = vunpack.c.0.s8 %v391
      %v393 = vlaneseq
      %v394 = vshrl.u32 %v393, 7
      %v395 = vsub.s32 %v392, %v394
      %v396 = vrot.slane %v382, %v395
      %v397 = vcombine.low %v389, %v396
      %v398 = vcombine.high %v389, %v396
      %v433 = vunpack.c.l.b16 %v338
      %v434 = vunpack.c.l.b16 %v339
      %v435 = vunpack.c.l.b16 %v340
      %v436 = vunpack.c.l.b16 %v341
      %v437 = vunpack.c.l.b16 %v342
      %v438 = vunpack.c.l.b16 %v343
      %v439 = vunpack.c.l.b16 %v344
      %v440 = vunpack.c.l.b16 %v345
      %v441 = vunpack.c.l.b16 %v346
      %v442 = vunpack.c.l.b16 %v347
      %v443 = vunpack.c.l.b16 %v348
      %v444 = vunpack.c.l.b16 %v349
      %v445 = vunpack.c.l.b16 %v350
      %v446 = vunpack.c.l.b16 %v351
      %v447 = vunpack.c.l.b16 %v352
      %v448 = vunpack.c.l.b16 %v353
      %v449 = vunpack.c.l.b16 %v354
      %v450 = vunpack.c.l.b16 %v355
      %v451 = vunpack.c.l.b16 %v356
      %v452 = vunpack.c.l.b16 %v357
      %v453 = vunpack.c.l.b16 %v358
      %v454 = vunpack.c.l.b16 %v359
      %v455 = vunpack.c.l.b16 %v360
      %v456 = vunpack.c.l.b16 %v361
      %v457 = vunpack.c.l.b16 %v362
      %v458 = vunpack.c.l.b16 %v363
      %v459 = vunpack.c.l.b16 %v364
      %v460 = vunpack.c.l.b16 %v365
      %v461 = vunpack.c.l.b16 %v366
      %v462 = vunpack.c.l.b16 %v367
      %v463 = vunpack.c.l.b16 %v368
      %v464 = vunpack.c.l.b16 %v369
      %v465 = vpack.c.b16 %v434, %v433
      %v466 = vpack.c.b16 %v436, %v435
      %v467 = vpack.c.b16 %v438, %v437
      %v468 = vpack.c.b16 %v440, %v439
      %v469 = vpack.c.b16 %v442, %v441
      %v470 = vpack.c.b16 %v444, %v443
      %v471 = vpack.c.b16 %v446, %v445
      %v472 = vpack.c.b16 %v448, %v447
      %v473 = vpack.c.b16 %v450, %v449
      %v474 = vpack.c.b16 %v452, %v451
      %v475 = vpack.c.b16 %v454, %v453
      %v476 = vpack.c.b16 %v456, %v455
      %v477 = vpack.c.b16 %v458, %v457
      %v478 = vpack.c.b16 %v460, %v459
      %v479 = vpack.c.b16 %v462, %v461
      %v480 = vpack.c.b16 %v464, %v463
      %497 = vmatprep.subr.bf16.mxu0 0
      %498 = vmatpush1.bf16.msra.mxu0 %v465
      %499 = vmatprep.subr.bf16.mxu0 0
      %500 = vmatpush1.bf16.msra.mxu0 %v466
      %501 = vmatprep.subr.bf16.mxu0 0
      %502 = vmatpush1.bf16.msra.mxu0 %v467
      %503 = vmatprep.subr.bf16.mxu0 0
      %504 = vmatpush1.bf16.msra.mxu0 %v468
      %505 = vmatprep.subr.bf16.mxu0 0
      %506 = vmatpush1.bf16.msra.mxu0 %v469
      %507 = vmatprep.subr.bf16.mxu0 0
      %508 = vmatpush1.bf16.msra.mxu0 %v470
      %509 = vmatprep.subr.bf16.mxu0 0
      %510 = vmatpush1.bf16.msra.mxu0 %v471
      %511 = vmatprep.subr.bf16.mxu0 0
      %512 = vmatpush1.bf16.msra.mxu0 %v472
      %513 = vmatprep.subr.bf16.mxu0 0
      %514 = vmatpush1.bf16.msra.mxu0 %v473
      %515 = vmatprep.subr.bf16.mxu0 0
      %516 = vmatpush1.bf16.msra.mxu0 %v474
      %517 = vmatprep.subr.bf16.mxu0 0
      %518 = vmatpush1.bf16.msra.mxu0 %v475
      %519 = vmatprep.subr.bf16.mxu0 0
      %520 = vmatpush1.bf16.msra.mxu0 %v476
      %521 = vmatprep.subr.bf16.mxu0 0
      %522 = vmatpush1.bf16.msra.mxu0 %v477
      %523 = vmatprep.subr.bf16.mxu0 0
      %524 = vmatpush1.bf16.msra.mxu0 %v478
      %525 = vmatprep.subr.bf16.mxu0 0
      %526 = vmatpush1.bf16.msra.mxu0 %v479
      %527 = vmatprep.subr.bf16.mxu0 0
      %528 = vmatpush1.bf16.msra.mxu0 %v480
      %529 = vmatprep.mubr.bf16.mxu0 %v398
      %530 = vmatmul.mubr.bf16.gmra.mrb[0].mxu0 %v397
      %v531 = vpop.f32.mrb[0].mxu0
      %v532 = vadd.f32 %v375, %v531
      %v533 = vpop.f32.mrb[0].mxu0
      %v534 = vpop.f32.mrb[0].mxu0
      %v535 = vadd.f32 %v375, %v534
      %v536 = vpop.f32.mrb[0].mxu0
      %537 = vdwg.mxu0
      %v538 = vmax.f32 %v532, 0.0
      %v539 = vmax.f32 %v535, 0.0
      %vm540 = vcmask 523264
      %541 = vst.msk [vmem:[#allocation2] sm:$0xff] %vm540, 0.0
      %542 = vst.msk [vmem:[#allocation2 + $0x8] sm:$0xff] %vm540, 0.0
      %vm543 = vcmask 519168
      %544 = vst.msk [vmem:[#allocation2 + $0x10] sm:$0xf] %vm543, 0.0
      %545 = vst.msk [vmem:[#allocation2 + $0x18] sm:$0xff] %vm540, 0.0
      %546 = vst.msk [vmem:[#allocation2 + $0x20] sm:$0xff] %vm540, 0.0
      %547 = vst.msk [vmem:[#allocation2 + $0x28] sm:$0xf] %vm543, 0.0
      %548 = vst.msk [vmem:[#allocation2 + $0x30] sm:$0xff] %vm540, 0.0
      %549 = vst.msk [vmem:[#allocation2 + $0x38] sm:$0xff] %vm540, 0.0
      %550 = vst.msk [vmem:[#allocation2 + $0x40] sm:$0xf] %vm543, 0.0
      %551 = vst.msk [vmem:[#allocation2 + $0x48] sm:$0xff] %vm540, 0.0
      %552 = vst.msk [vmem:[#allocation2 + $0x50] sm:$0xff] %vm540, 0.0
      %553 = vst.msk [vmem:[#allocation2 + $0x58] sm:$0xf] %vm543, 0.0
      %554 = vst.msk [vmem:[#allocation2 + $0x60] sm:$0xff] %vm540, 0.0
      %555 = vst.msk [vmem:[#allocation2 + $0x68] sm:$0xff] %vm540, 0.0
      %556 = vst.msk [vmem:[#allocation2 + $0x70] sm:$0xf] %vm543, 0.0
      %557 = vst.msk [vmem:[#allocation2 + $0x78] sm:$0xff] %vm540, 0.0
      %558 = vst.msk [vmem:[#allocation2 + $0x80] sm:$0xff] %vm540, 0.0
      %559 = vst.msk [vmem:[#allocation2 + $0x88] sm:$0xf] %vm543, 0.0
      %560 = vst.msk [vmem:[#allocation2 + $0x90] sm:$0xff] %vm540, 0.0
      %561 = vst.msk [vmem:[#allocation2 + $0x98] sm:$0xff] %vm540, 0.0
      %562 = vst.msk [vmem:[#allocation2 + $0xa0] sm:$0xf] %vm543, 0.0
      %563 = vst.msk [vmem:[#allocation2 + $0xa8] sm:$0xff] %vm540, 0.0
      %564 = vst.msk [vmem:[#allocation2 + $0xb0] sm:$0xff] %vm540, 0.0
      %565 = vst.msk [vmem:[#allocation2 + $0xb8] sm:$0xf] %vm543, 0.0
      %566 = vst.msk [vmem:[#allocation2 + $0xc0] sm:$0xff] %vm540, 0.0
      %567 = vst.msk [vmem:[#allocation2 + $0xc8] sm:$0xff] %vm540, 0.0
      %568 = vst.msk [vmem:[#allocation2 + $0xd0] sm:$0xf] %vm543, 0.0
      %569 = vst.msk [vmem:[#allocation2 + $0xd8] sm:$0xff] %vm540, 0.0
      %570 = vst.msk [vmem:[#allocation2 + $0xe0] sm:$0xff] %vm540, 0.0
      %571 = vst.msk [vmem:[#allocation2 + $0xe8] sm:$0xf] %vm543, 0.0
      %572 = vst.msk [vmem:[#allocation2 + $0xf0] sm:$0xff] %vm540, 0.0
      %573 = vst.msk [vmem:[#allocation2 + $0xf8] sm:$0xff] %vm540, 0.0
      %574 = vst.msk [vmem:[#allocation2 + $0x100] sm:$0xf] %vm543, 0.0
      %575 = vst.msk [vmem:[#allocation2 + $0x108] sm:$0xff] %vm540, 0.0
      %576 = vst.msk [vmem:[#allocation2 + $0x110] sm:$0xff] %vm540, 0.0
      %577 = vst.msk [vmem:[#allocation2 + $0x118] sm:$0xf] %vm543, 0.0
      %578 = vst.msk [vmem:[#allocation2 + $0x120] sm:$0xff] %vm540, 0.0
      %579 = vst.msk [vmem:[#allocation2 + $0x128] sm:$0xff] %vm540, 0.0
      %580 = vst.msk [vmem:[#allocation2 + $0x130] sm:$0xf] %vm543, 0.0
      %581 = vst.msk [vmem:[#allocation2 + $0x138] sm:$0xff] %vm540, 0.0
      %582 = vst.msk [vmem:[#allocation2 + $0x140] sm:$0xff] %vm540, 0.0
      %583 = vst.msk [vmem:[#allocation2 + $0x148] sm:$0xf] %vm543, 0.0
      %584 = vst.msk [vmem:[#allocation2 + $0x150] sm:$0xff] %vm540, 0.0
      %585 = vst.msk [vmem:[#allocation2 + $0x158] sm:$0xff] %vm540, 0.0
      %586 = vst.msk [vmem:[#allocation2 + $0x160] sm:$0xf] %vm543, 0.0
      %587 = vst.msk [vmem:[#allocation2 + $0x168] sm:$0xff] %vm540, 0.0
      %588 = vst.msk [vmem:[#allocation2 + $0x170] sm:$0xff] %vm540, 0.0
      %589 = vst.msk [vmem:[#allocation2 + $0x178] sm:$0xf] %vm543, 0.0
      %590 = vst.msk [vmem:[#allocation2 + $0x180] sm:$0xff] %vm540, 0.0
      %591 = vst.msk [vmem:[#allocation2 + $0x188] sm:$0xff] %vm540, 0.0
      %592 = vst.msk [vmem:[#allocation2 + $0x190] sm:$0xf] %vm543, 0.0
      %593 = vst.msk [vmem:[#allocation2 + $0x198] sm:$0xff] %vm540, 0.0
      %594 = vst.msk [vmem:[#allocation2 + $0x1a0] sm:$0xff] %vm540, 0.0
      %595 = vst.msk [vmem:[#allocation2 + $0x1a8] sm:$0xf] %vm543, 0.0
      %596 = vst.msk [vmem:[#allocation2 + $0x1b0] sm:$0xff] %vm540, 0.0
      %597 = vst.msk [vmem:[#allocation2 + $0x1b8] sm:$0xff] %vm540, 0.0
      %598 = vst.msk [vmem:[#allocation2 + $0x1c0] sm:$0xf] %vm543, 0.0
      %599 = vst.msk [vmem:[#allocation2 + $0x1c8] sm:$0xff] %vm540, 0.0
      %600 = vst.msk [vmem:[#allocation2 + $0x1d0] sm:$0xff] %vm540, 0.0
      %601 = vst.msk [vmem:[#allocation2 + $0x1d8] sm:$0xf] %vm543, 0.0
      %v604 = vcombine.high %v538, %v538
      %v605 = vcombine.high %v539, %v539
      %s608 = scalar_lea.vmem [#allocation2], 192
      %609 = vst.msk [vmem:[%s608 + $0x8] sm:$0xf] %vm543, %v538
      %610 = vst.msk [vmem:[%s608 + $0x20] sm:$0xf] %vm543, %v604
      %611 = vst.msk [vmem:[%s608 + $0x38] sm:$0xf] %vm543, %v539
      %612 = vst.msk [vmem:[%s608 + $0x50] sm:$0xf] %vm543, %v605
      %s613 = scalar_lea.vmem [#allocation2], 144
      %v614 = vld [vmem:[%s613 + $0x6] sm:$0xf]
      %v615 = vld [vmem:[%s613 + $0x1e] sm:$0xf]
      %v616 = vld [vmem:[%s613 + $0x36] sm:$0xf]
      %v617 = vld [vmem:[%s613 + $0x4e] sm:$0xf]
      %v618 = vld [vmem:[%s3] sm:$0x1]
      %v619 = vlaneseq
      %v620 = vshrl.u32 %v619, 7
      %v621 = vsub.s32 0, %v620
      %v622 = vrot.slane %v618, %v621
      %v623 = vmul.f32 %v614, %v622
      %v624 = vmul.f32 %v615, %v622
      %v625 = vmul.f32 %v616, %v622
      %v626 = vmul.f32 %v617, %v622
      %v627 = vadd.f32 %v623, 0.0
      %v628 = vadd.f32 %v624, 0.0
      %v629 = vadd.f32 %v625, 0.0
      %v630 = vadd.f32 %v626, 0.0
      %v631 = vld [vmem:[%s613 + $0x8] sm:$0xf]
      %v632 = vld [vmem:[%s613 + $0x20] sm:$0xf]
      %v633 = vld [vmem:[%s613 + $0x38] sm:$0xf]
      %v634 = vld [vmem:[%s613 + $0x50] sm:$0xf]
      %v635 = vld [vmem:[%s3 + $0x1] sm:$0x1]
      %v636 = vlaneseq
      %v637 = vshrl.u32 %v636, 7
      %v638 = vsub.s32 0, %v637
      %v639 = vrot.slane %v635, %v638
      %v640 = vmul.f32 %v631, %v639
      %v641 = vmul.f32 %v632, %v639
      %v642 = vmul.f32 %v633, %v639
      %v643 = vmul.f32 %v634, %v639
      %v644 = vadd.f32 %v627, %v640
      %v645 = vadd.f32 %v628, %v641
      %v646 = vadd.f32 %v629, %v642
      %v647 = vadd.f32 %v630, %v643
      %v648 = vld [vmem:[%s613 + $0xa] sm:$0xf]
      %v649 = vld [vmem:[%s613 + $0x22] sm:$0xf]
      %v650 = vld [vmem:[%s613 + $0x3a] sm:$0xf]
      %v651 = vld [vmem:[%s613 + $0x52] sm:$0xf]
      %v652 = vld [vmem:[%s3 + $0x2] sm:$0x1]
      %v653 = vlaneseq
      %v654 = vshrl.u32 %v653, 7
      %v655 = vsub.s32 0, %v654
      %v656 = vrot.slane %v652, %v655
      %v657 = vmul.f32 %v648, %v656
      %v658 = vmul.f32 %v649, %v656
      %v659 = vmul.f32 %v650, %v656
      %v660 = vmul.f32 %v651, %v656
      %v661 = vadd.f32 %v644, %v657
      %v662 = vadd.f32 %v645, %v658
      %v663 = vadd.f32 %v646, %v659
      %v664 = vadd.f32 %v647, %v660
      %v665 = vld [vmem:[%s608 + $0x6] sm:$0xf]
      %v666 = vld [vmem:[%s608 + $0x1e] sm:$0xf]
      %v667 = vld [vmem:[%s608 + $0x36] sm:$0xf]
      %v668 = vld [vmem:[%s608 + $0x4e] sm:$0xf]
      %v669 = vld [vmem:[%s3 + $0x3] sm:$0x1]
      %v670 = vlaneseq
      %v671 = vshrl.u32 %v670, 7
      %v672 = vsub.s32 0, %v671
      %v673 = vrot.slane %v669, %v672
      %v674 = vmul.f32 %v665, %v673
      %v675 = vmul.f32 %v666, %v673
      %v676 = vmul.f32 %v667, %v673
      %v677 = vmul.f32 %v668, %v673
      %v678 = vadd.f32 %v661, %v674
      %v679 = vadd.f32 %v662, %v675
      %v680 = vadd.f32 %v663, %v676
      %v681 = vadd.f32 %v664, %v677
      %v682 = vld [vmem:[%s608 + $0x8] sm:$0xf]
      %v683 = vld [vmem:[%s608 + $0x20] sm:$0xf]
      %v684 = vld [vmem:[%s608 + $0x38] sm:$0xf]
      %v685 = vld [vmem:[%s608 + $0x50] sm:$0xf]
      %v686 = vld [vmem:[%s3 + $0x4] sm:$0x1]
      %v687 = vlaneseq
      %v688 = vshrl.u32 %v687, 7
      %v689 = vsub.s32 0, %v688
      %v690 = vrot.slane %v686, %v689
      %v691 = vmul.f32 %v682, %v690
      %v692 = vmul.f32 %v683, %v690
      %v693 = vmul.f32 %v684, %v690
      %v694 = vmul.f32 %v685, %v690
      %v695 = vadd.f32 %v678, %v691
      %v696 = vadd.f32 %v679, %v692
      %v697 = vadd.f32 %v680, %v693
      %v698 = vadd.f32 %v681, %v694
      %v699 = vld [vmem:[%s608 + $0xa] sm:$0xf]
      %v700 = vld [vmem:[%s608 + $0x22] sm:$0xf]
      %v701 = vld [vmem:[%s608 + $0x3a] sm:$0xf]
      %v702 = vld [vmem:[%s608 + $0x52] sm:$0xf]
      %v703 = vld [vmem:[%s3 + $0x5] sm:$0x1]
      %v704 = vlaneseq
      %v705 = vshrl.u32 %v704, 7
      %v706 = vsub.s32 0, %v705
      %v707 = vrot.slane %v703, %v706
      %v708 = vmul.f32 %v699, %v707
      %v709 = vmul.f32 %v700, %v707
      %v710 = vmul.f32 %v701, %v707
      %v711 = vmul.f32 %v702, %v707
      %v712 = vadd.f32 %v695, %v708
      %v713 = vadd.f32 %v696, %v709
      %v714 = vadd.f32 %v697, %v710
      %v715 = vadd.f32 %v698, %v711
      %s716 = scalar_lea.vmem [#allocation2], 240
      %v717 = vld [vmem:[%s716 + $0x6] sm:$0xf]
      %v718 = vld [vmem:[%s716 + $0x1e] sm:$0xf]
      %v719 = vld [vmem:[%s716 + $0x36] sm:$0xf]
      %v720 = vld [vmem:[%s716 + $0x4e] sm:$0xf]
      %v721 = vld [vmem:[%s3 + $0x6] sm:$0x1]
      %v722 = vlaneseq
      %v723 = vshrl.u32 %v722, 7
      %v724 = vsub.s32 0, %v723
      %v725 = vrot.slane %v721, %v724
      %v726 = vmul.f32 %v717, %v725
      %v727 = vmul.f32 %v718, %v725
      %v728 = vmul.f32 %v719, %v725
      %v729 = vmul.f32 %v720, %v725
      %v730 = vadd.f32 %v712, %v726
      %v731 = vadd.f32 %v713, %v727
      %v732 = vadd.f32 %v714, %v728
      %v733 = vadd.f32 %v715, %v729
      %v734 = vld [vmem:[%s716 + $0x8] sm:$0xf]
      %v735 = vld [vmem:[%s716 + $0x20] sm:$0xf]
      %v736 = vld [vmem:[%s716 + $0x38] sm:$0xf]
      %v737 = vld [vmem:[%s716 + $0x50] sm:$0xf]
      %v738 = vld [vmem:[%s3 + $0x7] sm:$0x1]
      %v739 = vlaneseq
      %v740 = vshrl.u32 %v739, 7
      %v741 = vsub.s32 0, %v740
      %v742 = vrot.slane %v738, %v741
      %v743 = vmul.f32 %v734, %v742
      %v744 = vmul.f32 %v735, %v742
      %v745 = vmul.f32 %v736, %v742
      %v746 = vmul.f32 %v737, %v742
      %v747 = vadd.f32 %v730, %v743
      %v748 = vadd.f32 %v731, %v744
      %v749 = vadd.f32 %v732, %v745
      %v750 = vadd.f32 %v733, %v746
      %v751 = vld [vmem:[%s716 + $0xa] sm:$0xf]
      %v752 = vld [vmem:[%s716 + $0x22] sm:$0xf]
      %v753 = vld [vmem:[%s716 + $0x3a] sm:$0xf]
      %v754 = vld [vmem:[%s716 + $0x52] sm:$0xf]
      %v755 = vld [vmem:[%s3 + $0x8] sm:$0x1]
      %v756 = vlaneseq
      %v757 = vshrl.u32 %v756, 7
      %v758 = vsub.s32 0, %v757
      %v759 = vrot.slane %v755, %v758
      %v760 = vmul.f32 %v751, %v759
      %v761 = vmul.f32 %v752, %v759
      %v762 = vmul.f32 %v753, %v759
      %v763 = vmul.f32 %v754, %v759
      %v764 = vadd.f32 %v747, %v760
      %v765 = vadd.f32 %v748, %v761
      %v766 = vadd.f32 %v749, %v762
      %v767 = vadd.f32 %v750, %v763
      %v768 = vld [vmem:[%s4] sm:$0x1]
      %v769 = vlaneseq
      %v770 = vshrl.u32 %v769, 7
      %v771 = vsub.s32 0, %v770
      %v772 = vrot.slane %v768, %v771
      %v773 = vadd.f32 %v764, %v772
      %v774 = vadd.f32 %v765, %v772
      %v775 = vadd.f32 %v766, %v772
      %v776 = vadd.f32 %v767, %v772
      %v777 = vmax.f32 %v773, 0.0
      %v778 = vmax.f32 %v774, 0.0
      %v779 = vmax.f32 %v775, 0.0
      %v780 = vmax.f32 %v776, 0.0
      %v781 = vld [vmem:[%s5] sm:$0x1]
      %v782 = vlaneseq
      %v783 = vshrl.u32 %v782, 7
      %v784 = vsub.s32 0, %v783
      %v785 = vrot.slane %v781, %v784
      %v786 = vmul.f32 %v777, %v785
      %v787 = vmul.f32 %v778, %v785
      %v788 = vmul.f32 %v779, %v785
      %v789 = vmul.f32 %v780, %v785
      %v790 = vadd.f32 %v786, 0.0
      %v791 = vadd.f32 %v787, 0.0
      %v792 = vadd.f32 %v788, 0.0
      %v793 = vadd.f32 %v789, 0.0
      %s794 = scalar_lea.vmem [#allocation2], 96
      %v795 = vld [vmem:[%s794 + $0x4] sm:$0xf]
      %v796 = vld [vmem:[%s794 + $0x1c] sm:$0xf]
      %v797 = vld [vmem:[%s794 + $0x34] sm:$0xf]
      %v798 = vld [vmem:[%s794 + $0x4c] sm:$0xf]
      %v799 = vld [vmem:[%s3 + $0x9] sm:$0x1]
      %v800 = vlaneseq
      %v801 = vshrl.u32 %v800, 7
      %v802 = vsub.s32 0, %v801
      %v803 = vrot.slane %v799, %v802
      %v804 = vmul.f32 %v795, %v803
      %v805 = vmul.f32 %v796, %v803
      %v806 = vmul.f32 %v797, %v803
      %v807 = vmul.f32 %v798, %v803
      %v808 = vadd.f32 %v804, 0.0
      %v809 = vadd.f32 %v805, 0.0
      %v810 = vadd.f32 %v806, 0.0
      %v811 = vadd.f32 %v807, 0.0
      %v812 = vld [vmem:[%s794 + $0x8] sm:$0xf]
      %v813 = vld [vmem:[%s794 + $0x20] sm:$0xf]
      %v814 = vld [vmem:[%s794 + $0x38] sm:$0xf]
      %v815 = vld [vmem:[%s794 + $0x50] sm:$0xf]
      %v816 = vld [vmem:[%s3 + $0xa] sm:$0x1]
      %v817 = vlaneseq
      %v818 = vshrl.u32 %v817, 7
      %v819 = vsub.s32 0, %v818
      %v820 = vrot.slane %v816, %v819
      %v821 = vmul.f32 %v812, %v820
      %v822 = vmul.f32 %v813, %v820
      %v823 = vmul.f32 %v814, %v820
      %v824 = vmul.f32 %v815, %v820
      %v825 = vadd.f32 %v808, %v821
      %v826 = vadd.f32 %v809, %v822
      %v827 = vadd.f32 %v810, %v823
      %v828 = vadd.f32 %v811, %v824
      %v829 = vld [vmem:[%s794 + $0xc] sm:$0xf]
      %v830 = vld [vmem:[%s794 + $0x24] sm:$0xf]
      %v831 = vld [vmem:[%s794 + $0x3c] sm:$0xf]
      %v832 = vld [vmem:[%s794 + $0x54] sm:$0xf]
      %v833 = vld [vmem:[%s3 + $0xb] sm:$0x1]
      %v834 = vlaneseq
      %v835 = vshrl.u32 %v834, 7
      %v836 = vsub.s32 0, %v835
      %v837 = vrot.slane %v833, %v836
      %v838 = vmul.f32 %v829, %v837
      %v839 = vmul.f32 %v830, %v837
      %v840 = vmul.f32 %v831, %v837
      %v841 = vmul.f32 %v832, %v837
      %v842 = vadd.f32 %v825, %v838
      %v843 = vadd.f32 %v826, %v839
      %v844 = vadd.f32 %v827, %v840
      %v845 = vadd.f32 %v828, %v841
      %v846 = vld [vmem:[%s608 + $0x4] sm:$0xf]
      %v847 = vld [vmem:[%s608 + $0x1c] sm:$0xf]
      %v848 = vld [vmem:[%s608 + $0x34] sm:$0xf]
      %v849 = vld [vmem:[%s608 + $0x4c] sm:$0xf]
      %v850 = vld [vmem:[%s3 + $0xc] sm:$0x1]
      %v851 = vlaneseq
      %v852 = vshrl.u32 %v851, 7
      %v853 = vsub.s32 0, %v852
      %v854 = vrot.slane %v850, %v853
      %v855 = vmul.f32 %v846, %v854
      %v856 = vmul.f32 %v847, %v854
      %v857 = vmul.f32 %v848, %v854
      %v858 = vmul.f32 %v849, %v854
      %v859 = vadd.f32 %v842, %v855
      %v860 = vadd.f32 %v843, %v856
      %v861 = vadd.f32 %v844, %v857
      %v862 = vadd.f32 %v845, %v858
      %v863 = vld [vmem:[%s3 + $0xd] sm:$0x1]
      %v864 = vlaneseq
      %v865 = vshrl.u32 %v864, 7
      %v866 = vsub.s32 0, %v865
      %v867 = vrot.slane %v863, %v866
      %v868 = vmul.f32 %v682, %v867
      %v869 = vmul.f32 %v683, %v867
      %v870 = vmul.f32 %v684, %v867
      %v871 = vmul.f32 %v685, %v867
      %v872 = vadd.f32 %v859, %v868
      %v873 = vadd.f32 %v860, %v869
      %v874 = vadd.f32 %v861, %v870
      %v875 = vadd.f32 %v862, %v871
      %v876 = vld [vmem:[%s608 + $0xc] sm:$0xf]
      %v877 = vld [vmem:[%s608 + $0x24] sm:$0xf]
      %v878 = vld [vmem:[%s608 + $0x3c] sm:$0xf]
      %v879 = vld [vmem:[%s608 + $0x54] sm:$0xf]
      %v880 = vld [vmem:[%s3 + $0xe] sm:$0x1]
      %v881 = vlaneseq
      %v882 = vshrl.u32 %v881, 7
      %v883 = vsub.s32 0, %v882
      %v884 = vrot.slane %v880, %v883
      %v885 = vmul.f32 %v876, %v884
      %v886 = vmul.f32 %v877, %v884
      %v887 = vmul.f32 %v878, %v884
      %v888 = vmul.f32 %v879, %v884
      %v889 = vadd.f32 %v872, %v885
      %v890 = vadd.f32 %v873, %v886
      %v891 = vadd.f32 %v874, %v887
      %v892 = vadd.f32 %v875, %v888
      %s893 = scalar_lea.vmem [#allocation2], 288
      %v894 = vld [vmem:[%s893 + $0x4] sm:$0xf]
      %v895 = vld [vmem:[%s893 + $0x1c] sm:$0xf]
      %v896 = vld [vmem:[%s893 + $0x34] sm:$0xf]
      %v897 = vld [vmem:[%s893 + $0x4c] sm:$0xf]
      %v898 = vld [vmem:[%s3 + $0xf] sm:$0x1]
      %v899 = vlaneseq
      %v900 = vshrl.u32 %v899, 7
      %v901 = vsub.s32 0, %v900
      %v902 = vrot.slane %v898, %v901
      %v903 = vmul.f32 %v894, %v902
      %v904 = vmul.f32 %v895, %v902
      %v905 = vmul.f32 %v896, %v902
      %v906 = vmul.f32 %v897, %v902
      %v907 = vadd.f32 %v889, %v903
      %v908 = vadd.f32 %v890, %v904
      %v909 = vadd.f32 %v891, %v905
      %v910 = vadd.f32 %v892, %v906
      %v911 = vld [vmem:[%s893 + $0x8] sm:$0xf]
      %v912 = vld [vmem:[%s893 + $0x20] sm:$0xf]
      %v913 = vld [vmem:[%s893 + $0x38] sm:$0xf]
      %v914 = vld [vmem:[%s893 + $0x50] sm:$0xf]
      %v915 = vld [vmem:[%s3 + $0x10] sm:$0x1]
      %v916 = vlaneseq
      %v917 = vshrl.u32 %v916, 7
      %v918 = vsub.s32 0, %v917
      %v919 = vrot.slane %v915, %v918
      %v920 = vmul.f32 %v911, %v919
      %v921 = vmul.f32 %v912, %v919
      %v922 = vmul.f32 %v913, %v919
      %v923 = vmul.f32 %v914, %v919
      %v924 = vadd.f32 %v907, %v920
      %v925 = vadd.f32 %v908, %v921
      %v926 = vadd.f32 %v909, %v922
      %v927 = vadd.f32 %v910, %v923
      %v928 = vld [vmem:[%s893 + $0xc] sm:$0xf]
      %v929 = vld [vmem:[%s893 + $0x24] sm:$0xf]
      %v930 = vld [vmem:[%s893 + $0x3c] sm:$0xf]
      %v931 = vld [vmem:[%s893 + $0x54] sm:$0xf]
      %v932 = vld [vmem:[%s3 + $0x11] sm:$0x1]
      %v933 = vlaneseq
      %v934 = vshrl.u32 %v933, 7
      %v935 = vsub.s32 0, %v934
      %v936 = vrot.slane %v932, %v935
      %v937 = vmul.f32 %v928, %v936
      %v938 = vmul.f32 %v929, %v936
      %v939 = vmul.f32 %v930, %v936
      %v940 = vmul.f32 %v931, %v936
      %v941 = vadd.f32 %v924, %v937
      %v942 = vadd.f32 %v925, %v938
      %v943 = vadd.f32 %v926, %v939
      %v944 = vadd.f32 %v927, %v940
      %v945 = vld [vmem:[%s4 + $0x1] sm:$0x1]
      %v946 = vlaneseq
      %v947 = vshrl.u32 %v946, 7
      %v948 = vsub.s32 0, %v947
      %v949 = vrot.slane %v945, %v948
      %v950 = vadd.f32 %v941, %v949
      %v951 = vadd.f32 %v942, %v949
      %v952 = vadd.f32 %v943, %v949
      %v953 = vadd.f32 %v944, %v949
      %v954 = vmax.f32 %v950, 0.0
      %v955 = vmax.f32 %v951, 0.0
      %v956 = vmax.f32 %v952, 0.0
      %v957 = vmax.f32 %v953, 0.0
      %v958 = vld [vmem:[%s5 + $0x1] sm:$0x1]
      %v959 = vlaneseq
      %v960 = vshrl.u32 %v959, 7
      %v961 = vsub.s32 0, %v960
      %v962 = vrot.slane %v958, %v961
      %v963 = vmul.f32 %v954, %v962
      %v964 = vmul.f32 %v955, %v962
      %v965 = vmul.f32 %v956, %v962
      %v966 = vmul.f32 %v957, %v962
      %v967 = vadd.f32 %v790, %v963
      %v968 = vadd.f32 %v791, %v964
      %v969 = vadd.f32 %v792, %v965
      %v970 = vadd.f32 %v793, %v966
      %v971 = vld [vmem:[#allocation2] sm:$0xf]
      %v972 = vld [vmem:[#allocation2 + $0x18] sm:$0xf]
      %v973 = vld [vmem:[#allocation2 + $0x30] sm:$0xf]
      %v974 = vld [vmem:[#allocation2 + $0x48] sm:$0xf]
      %v975 = vld [vmem:[%s3 + $0x12] sm:$0x1]
      %v976 = vlaneseq
      %v977 = vshrl.u32 %v976, 7
      %v978 = vsub.s32 0, %v977
      %v979 = vrot.slane %v975, %v978
      %v980 = vmul.f32 %v971, %v979
      %v981 = vmul.f32 %v972, %v979
      %v982 = vmul.f32 %v973, %v979
      %v983 = vmul.f32 %v974, %v979
      %v984 = vadd.f32 %v980, 0.0
      %v985 = vadd.f32 %v981, 0.0
      %v986 = vadd.f32 %v982, 0.0
      %v987 = vadd.f32 %v983, 0.0
      %v988 = vld [vmem:[#allocation2 + $0x8] sm:$0xf]
      %v989 = vld [vmem:[#allocation2 + $0x20] sm:$0xf]
      %v990 = vld [vmem:[#allocation2 + $0x38] sm:$0xf]
      %v991 = vld [vmem:[#allocation2 + $0x50] sm:$0xf]
      %v992 = vld [vmem:[%s3 + $0x13] sm:$0x1]
      %v993 = vlaneseq
      %v994 = vshrl.u32 %v993, 7
      %v995 = vsub.s32 0, %v994
      %v996 = vrot.slane %v992, %v995
      %v997 = vmul.f32 %v988, %v996
      %v998 = vmul.f32 %v989, %v996
      %v999 = vmul.f32 %v990, %v996
      %v1000 = vmul.f32 %v991, %v996
      %v1001 = vadd.f32 %v984, %v997
      %v1002 = vadd.f32 %v985, %v998
      %v1003 = vadd.f32 %v986, %v999
      %v1004 = vadd.f32 %v987, %v1000
      %v1005 = vld [vmem:[#allocation2 + $0x10] sm:$0xf]
      %v1006 = vld [vmem:[#allocation2 + $0x28] sm:$0xf]
      %v1007 = vld [vmem:[#allocation2 + $0x40] sm:$0xf]
      %v1008 = vld [vmem:[#allocation2 + $0x58] sm:$0xf]
      %v1009 = vld [vmem:[%s3 + $0x14] sm:$0x1]
      %v1010 = vlaneseq
      %v1011 = vshrl.u32 %v1010, 7
      %v1012 = vsub.s32 0, %v1011
      %v1013 = vrot.slane %v1009, %v1012
      %v1014 = vmul.f32 %v1005, %v1013
      %v1015 = vmul.f32 %v1006, %v1013
      %v1016 = vmul.f32 %v1007, %v1013
      %v1017 = vmul.f32 %v1008, %v1013
      %v1018 = vadd.f32 %v1001, %v1014
      %v1019 = vadd.f32 %v1002, %v1015
      %v1020 = vadd.f32 %v1003, %v1016
      %v1021 = vadd.f32 %v1004, %v1017
      %v1022 = vld [vmem:[%s608] sm:$0xf]
      %v1023 = vld [vmem:[%s608 + $0x18] sm:$0xf]
      %v1024 = vld [vmem:[%s608 + $0x30] sm:$0xf]
      %v1025 = vld [vmem:[%s608 + $0x48] sm:$0xf]
      %v1026 = vld [vmem:[%s3 + $0x15] sm:$0x1]
      %v1027 = vlaneseq
      %v1028 = vshrl.u32 %v1027, 7
      %v1029 = vsub.s32 0, %v1028
      %v1030 = vrot.slane %v1026, %v1029
      %v1031 = vmul.f32 %v1022, %v1030
      %v1032 = vmul.f32 %v1023, %v1030
      %v1033 = vmul.f32 %v1024, %v1030
      %v1034 = vmul.f32 %v1025, %v1030
      %v1035 = vadd.f32 %v1018, %v1031
      %v1036 = vadd.f32 %v1019, %v1032
      %v1037 = vadd.f32 %v1020, %v1033
      %v1038 = vadd.f32 %v1021, %v1034
      %v1039 = vld [vmem:[%s3 + $0x16] sm:$0x1]
      %v1040 = vlaneseq
      %v1041 = vshrl.u32 %v1040, 7
      %v1042 = vsub.s32 0, %v1041
      %v1043 = vrot.slane %v1039, %v1042
      %v1044 = vmul.f32 %v682, %v1043
      %v1045 = vmul.f32 %v683, %v1043
      %v1046 = vmul.f32 %v684, %v1043
      %v1047 = vmul.f32 %v685, %v1043
      %v1048 = vadd.f32 %v1035, %v1044
      %v1049 = vadd.f32 %v1036, %v1045
      %v1050 = vadd.f32 %v1037, %v1046
      %v1051 = vadd.f32 %v1038, %v1047
      %v1052 = vld [vmem:[%s608 + $0x10] sm:$0xf]
      %v1053 = vld [vmem:[%s608 + $0x28] sm:$0xf]
      %v1054 = vld [vmem:[%s608 + $0x40] sm:$0xf]
      %v1055 = vld [vmem:[%s608 + $0x58] sm:$0xf]
      %v1056 = vld [vmem:[%s3 + $0x17] sm:$0x1]
      %v1057 = vlaneseq
      %v1058 = vshrl.u32 %v1057, 7
      %v1059 = vsub.s32 0, %v1058
      %v1060 = vrot.slane %v1056, %v1059
      %v1061 = vmul.f32 %v1052, %v1060
      %v1062 = vmul.f32 %v1053, %v1060
      %v1063 = vmul.f32 %v1054, %v1060
      %v1064 = vmul.f32 %v1055, %v1060
      %v1065 = vadd.f32 %v1048, %v1061
      %v1066 = vadd.f32 %v1049, %v1062
      %v1067 = vadd.f32 %v1050, %v1063
      %v1068 = vadd.f32 %v1051, %v1064
      %s1069 = scalar_lea.vmem [#allocation2], 384
      %v1070 = vld [vmem:[%s1069] sm:$0xf]
      %v1071 = vld [vmem:[%s1069 + $0x18] sm:$0xf]
      %v1072 = vld [vmem:[%s1069 + $0x30] sm:$0xf]
      %v1073 = vld [vmem:[%s1069 + $0x48] sm:$0xf]
      %v1074 = vld [vmem:[%s3 + $0x18] sm:$0x1]
      %v1075 = vlaneseq
      %v1076 = vshrl.u32 %v1075, 7
      %v1077 = vsub.s32 0, %v1076
      %v1078 = vrot.slane %v1074, %v1077
      %v1079 = vmul.f32 %v1070, %v1078
      %v1080 = vmul.f32 %v1071, %v1078
      %v1081 = vmul.f32 %v1072, %v1078
      %v1082 = vmul.f32 %v1073, %v1078
      %v1083 = vadd.f32 %v1065, %v1079
      %v1084 = vadd.f32 %v1066, %v1080
      %v1085 = vadd.f32 %v1067, %v1081
      %v1086 = vadd.f32 %v1068, %v1082
      %v1087 = vld [vmem:[%s1069 + $0x8] sm:$0xf]
      %v1088 = vld [vmem:[%s1069 + $0x20] sm:$0xf]
      %v1089 = vld [vmem:[%s1069 + $0x38] sm:$0xf]
      %v1090 = vld [vmem:[%s1069 + $0x50] sm:$0xf]
      %v1091 = vld [vmem:[%s3 + $0x19] sm:$0x1]
      %v1092 = vlaneseq
      %v1093 = vshrl.u32 %v1092, 7
      %v1094 = vsub.s32 0, %v1093
      %v1095 = vrot.slane %v1091, %v1094
      %v1096 = vmul.f32 %v1087, %v1095
      %v1097 = vmul.f32 %v1088, %v1095
      %v1098 = vmul.f32 %v1089, %v1095
      %v1099 = vmul.f32 %v1090, %v1095
      %v1100 = vadd.f32 %v1083, %v1096
      %v1101 = vadd.f32 %v1084, %v1097
      %v1102 = vadd.f32 %v1085, %v1098
      %v1103 = vadd.f32 %v1086, %v1099
      %v1104 = vld [vmem:[%s1069 + $0x10] sm:$0xf]
      %v1105 = vld [vmem:[%s1069 + $0x28] sm:$0xf]
      %v1106 = vld [vmem:[%s1069 + $0x40] sm:$0xf]
      %v1107 = vld [vmem:[%s1069 + $0x58] sm:$0xf]
      %v1108 = vld [vmem:[%s3 + $0x1a] sm:$0x1]
      %v1109 = vlaneseq
      %v1110 = vshrl.u32 %v1109, 7
      %v1111 = vsub.s32 0, %v1110
      %v1112 = vrot.slane %v1108, %v1111
      %v1113 = vmul.f32 %v1104, %v1112
      %v1114 = vmul.f32 %v1105, %v1112
      %v1115 = vmul.f32 %v1106, %v1112
      %v1116 = vmul.f32 %v1107, %v1112
      %v1117 = vadd.f32 %v1100, %v1113
      %v1118 = vadd.f32 %v1101, %v1114
      %v1119 = vadd.f32 %v1102, %v1115
      %v1120 = vadd.f32 %v1103, %v1116
      %v1121 = vld [vmem:[%s4 + $0x2] sm:$0x1]
      %v1122 = vlaneseq
      %v1123 = vshrl.u32 %v1122, 7
      %v1124 = vsub.s32 0, %v1123
      %v1125 = vrot.slane %v1121, %v1124
      %v1126 = vadd.f32 %v1117, %v1125
      %v1127 = vadd.f32 %v1118, %v1125
      %v1128 = vadd.f32 %v1119, %v1125
      %v1129 = vadd.f32 %v1120, %v1125
      %v1130 = vmax.f32 %v1126, 0.0
      %v1131 = vmax.f32 %v1127, 0.0
      %v1132 = vmax.f32 %v1128, 0.0
      %v1133 = vmax.f32 %v1129, 0.0
      %v1134 = vld [vmem:[%s5 + $0x2] sm:$0x1]
      %v1135 = vlaneseq
      %v1136 = vshrl.u32 %v1135, 7
      %v1137 = vsub.s32 0, %v1136
      %v1138 = vrot.slane %v1134, %v1137
      %v1139 = vmul.f32 %v1130, %v1138
      %v1140 = vmul.f32 %v1131, %v1138
      %v1141 = vmul.f32 %v1132, %v1138
      %v1142 = vmul.f32 %v1133, %v1138
      %v1143 = vadd.f32 %v967, %v1139
      %v1144 = vadd.f32 %v968, %v1140
      %v1145 = vadd.f32 %v969, %v1141
      %v1146 = vadd.f32 %v970, %v1142
      %v1147 = vld [vmem:[%s6] sm:$0x1]
      %v1148 = vlaneseq
      %v1149 = vshrl.u32 %v1148, 7
      %v1150 = vsub.s32 0, %v1149
      %v1151 = vrot.slane %v1147, %v1150
      %v1152 = vadd.f32 %v1143, %v1151
      %v1153 = vadd.f32 %v1144, %v1151
      %v1154 = vadd.f32 %v1145, %v1151
      %v1155 = vadd.f32 %v1146, %v1151
      %v1156 = vmax.f32 %v1152, 0.0
      %v1157 = vmax.f32 %v1153, 0.0
      %v1158 = vmax.f32 %v1154, 0.0
      %v1159 = vmax.f32 %v1155, 0.0
      %v1160 = vld [vmem:[%s6 + $0x1] sm:$0x1]
      %v1161 = vlaneseq
      %v1162 = vshrl.u32 %v1161, 7
      %v1163 = vsub.s32 0, %v1162
      %v1164 = vrot.slane %v1160, %v1163
      %v1165 = vmul.f32 %v1156, %v1164
      %v1166 = vmul.f32 %v1157, %v1164
      %v1167 = vmul.f32 %v1158, %v1164
      %v1168 = vmul.f32 %v1159, %v1164
      %v1169 = vld [vmem:[%s6 + $0x2] sm:$0x1]
      %v1170 = vlaneseq
      %v1171 = vshrl.u32 %v1170, 7
      %v1172 = vsub.s32 0, %v1171
      %v1173 = vrot.slane %v1169, %v1172
      %v1174 = vadd.f32 %v1165, %v1173
      %v1175 = vadd.f32 %v1166, %v1173
      %v1176 = vadd.f32 %v1167, %v1173
      %v1177 = vadd.f32 %v1168, %v1173
      %v1178 = vmax.f32 %v1174, 0.0
      %v1179 = vmax.f32 %v1175, 0.0
      %v1180 = vmax.f32 %v1176, 0.0
      %v1181 = vmax.f32 %v1177, 0.0
      %v1186 = vcombine.low %v1178, %v1179
      %v1187 = vcombine.low %v1180, %v1181
      %v1190 = vpack.c.bf16 %v1187, %v1186
      %v1191 = vld [vmem:[%s7] sm:$0xf]
      %v1192 = vld [vmem:[%s7 + $0x4] sm:$0xf]
      %v1193 = vld [vmem:[%s7 + $0x8] sm:$0xf]
      %v1194 = vld [vmem:[%s7 + $0xc] sm:$0xf]
      %v1195 = vld [vmem:[%s7 + $0x10] sm:$0xf]
      %v1196 = vld [vmem:[%s7 + $0x14] sm:$0xf]
      %v1197 = vld [vmem:[%s7 + $0x18] sm:$0xf]
      %v1198 = vld [vmem:[%s7 + $0x1c] sm:$0xf]
      %v1199 = vld [vmem:[%s8] sm:$0x1]
      %v1201 = vlaneseq
      %v1202 = vshrl.u32 %v1201, 7
      %v1203 = vsub.s32 0, %v1202
      %v1204 = vrot.slane %v1199, %v1203
      %v1214 = vunpack.c.l.b16 %v1191
      %v1215 = vunpack.c.l.b16 %v1192
      %v1216 = vunpack.c.l.b16 %v1193
      %v1217 = vunpack.c.l.b16 %v1194
      %v1218 = vunpack.c.l.b16 %v1195
      %v1219 = vunpack.c.l.b16 %v1196
      %v1220 = vunpack.c.l.b16 %v1197
      %v1221 = vunpack.c.l.b16 %v1198
      %v1222 = vpack.c.b16 %v1215, %v1214
      %v1223 = vpack.c.b16 %v1217, %v1216
      %v1224 = vpack.c.b16 %v1219, %v1218
      %v1225 = vpack.c.b16 %v1221, %v1220
      %v1231 = vsel %vm540, %v1190, 0
      %1233 = vmatprep.subr.bf16.mxu0 0
      %1234 = vmatpush1.bf16.msra.mxu0 %v1222
      %1235 = vmatprep.subr.bf16.mxu0 0
      %1236 = vmatpush1.bf16.msra.mxu0 %v1223
      %1237 = vmatprep.subr.bf16.mxu0 0
      %1238 = vmatpush1.bf16.msra.mxu0 %v1224
      %1239 = vmatprep.subr.bf16.mxu0 0
      %1240 = vmatpush1.bf16.msra.mxu0 %v1225
      %1241 = vmatprep.subr.bf16.mxu0 0
      %1242 = vmatpush1.bf16.msra.mxu0 0
      %1243 = vmatprep.subr.bf16.mxu0 0
      %1244 = vmatpush1.bf16.msra.mxu0 0
      %1245 = vmatprep.subr.bf16.mxu0 0
      %1246 = vmatpush1.bf16.msra.mxu0 0
      %1247 = vmatprep.subr.bf16.mxu0 0
      %1248 = vmatpush1.bf16.msra.mxu0 0
      %1249 = vmatprep.subr.bf16.mxu0 0
      %1250 = vmatpush1.bf16.msra.mxu0 0
      %1251 = vmatprep.subr.bf16.mxu0 0
      %1252 = vmatpush1.bf16.msra.mxu0 0
      %1253 = vmatprep.subr.bf16.mxu0 0
      %1254 = vmatpush1.bf16.msra.mxu0 0
      %1255 = vmatprep.subr.bf16.mxu0 0
      %1256 = vmatpush1.bf16.msra.mxu0 0
      %1257 = vmatprep.subr.bf16.mxu0 0
      %1258 = vmatpush1.bf16.msra.mxu0 0
      %1259 = vmatprep.subr.bf16.mxu0 0
      %1260 = vmatpush1.bf16.msra.mxu0 0
      %1261 = vmatprep.subr.bf16.mxu0 0
      %1262 = vmatpush1.bf16.msra.mxu0 0
      %1263 = vmatprep.subr.bf16.mxu0 0
      %1264 = vmatpush1.bf16.msra.mxu0 0
      %1265 = vmatprep.mubr.bf16.mxu0 0
      %1266 = vmatmul.mubr.bf16.gmra.mrb[0].mxu0 %v1231
      %v1267 = vpop.f32.mrb[0].mxu0
      %v1268 = vadd.f32 %v1204, %v1267
      %v1269 = vpop.f32.mrb[0].mxu0
      %v1270 = vpop.f32.mrb[0].mxu0
      %v1271 = vadd.f32 %v1204, %v1270
      %v1272 = vpop.f32.mrb[0].mxu0
      %1273 = vdwg.mxu0
      %v1274 = vmax.f32 %v1268, 0.0
      %v1275 = vmax.f32 %v1271, 0.0
      %v1278 = vcombine.high %v1274, %v1274
      %v1279 = vcombine.high %v1275, %v1275
      %1282 = vst [vmem:[%s332] sm:$0xf] %v1274
      %1283 = vst [vmem:[%s332 + $0x4] sm:$0xf] %v1278
      %1284 = vst [vmem:[%s332 + $0x8] sm:$0xf] %v1275
      %1285 = vst [vmem:[%s332 + $0xc] sm:$0xf] %v1279
      %p1286 = scmp.lt.s32.totalorder %s20, 1
      %s1287 = scalar_select %p1286, %s20, 1
      %s1288 = smul.addr %s1287, 4
      %s1289 = smul.addr %s1288, 4
      %s1290 = scalar_lea.vmem %s9, %s1289
      // Predicated region
      $region57: #{easpp_decoder5_forward.5} parent=55 // pred_check
        %p1291 = pneg %p232
      $region58: #{easpp_decoder5_forward.5} parent=55 // pred_check_branch
        %1293 = sbr.rel (%p1291) target = $region60
      $region59: #{easpp_decoder5_forward.5} parent=55 // pred_region
        _
      $region60: #{easpp_decoder5_forward.5} parent=55 // pred_fallthru
        _
    $region56: #{easpp_decoder5_forward.5} parent=5 // pred_fallthru
      _
    %p1294 = scmp.le.s32.totalorder 2, %s15
    // Predicated region
    $region61: #{easpp_decoder5_forward.5} parent=5 // pred_check
      %p1295 = pneg %p1294
    $region62: #{easpp_decoder5_forward.5} parent=5 // pred_check_branch
      %1297 = sbr.rel (%p1295) target = $region64
    $region63: #{easpp_decoder5_forward.5} parent=5 // pred_region
      %s1298 = ssub.s32 %s15, 2
      // Predicated region
      $region65: #{easpp_decoder5_forward.5} parent=63 // pred_check
        %p1299 = pneg %p238
      $region66: #{easpp_decoder5_forward.5} parent=63 // pred_check_branch
        %1301 = sbr.rel (%p1299) target = $region68
      $region67: #{easpp_decoder5_forward.5} parent=63 // pred_region
        %p1302 = scmp.lt.s32.totalorder %s21, 1
        %s1303 = scalar_select %p1302, %s21, 1
        %s1304 = smul.addr %s1303, 4
        %s1305 = smul.addr %s1304, 4
        %s1306 = scalar_lea.vmem %s9, %s1305
      $region68: #{easpp_decoder5_forward.5} parent=63 // pred_fallthru
        _
    $region64: #{easpp_decoder5_forward.5} parent=5 // pred_fallthru
      _
  $region6: #{easpp_decoder5_forward.5} parent=0 // loop_footer
    %s19 = sadd.s32 1, %s15
  $region7: #{easpp_decoder5_forward.5} parent=0 // loop_footer_branch
    %14 = sbr.rel target = $region3
  $region8: #{easpp_decoder5_forward.5} parent=0 // loop_exit
    _

// kernel: easpp_decoder5_forward.8
$region0: #{easpp_decoder5_forward.8}
  #allocation0 [shape = 'u32[]', space=smem, size = 0x4, offset = 0x4, fixed_abs, tag = 'smem constant byte address 0x4 - core index']
  #allocation1 [shape = 'u32[144,128]{1,0:T(1,128)}', space=vmem, size = 0x12000, scoped, tag = 'internal scratch']
  %s0 = inlined_call_operand.vmem [shape: bf16[2,1,10,10,128], index: 0, kind: input, shape index: {}]
  %s1 = inlined_call_operand.vmem [shape: bf16[2,1,10,10,128], index: 1, kind: input, shape index: {}]
  %s2 = inlined_call_operand.vmem [shape: bf16[9,128,64], index: 2, kind: input, shape index: {}]
  %s3 = inlined_call_operand.vmem [shape: f32[1,64], index: 3, kind: input, shape index: {}]
  %s4 = inlined_call_operand.vmem [shape: f32[2,1,8,8,64], index: 4, kind: output, shape index: {}]
  %s5 = sld [smem:[#allocation0]]
  $region49: #{easpp_decoder5_forward.8} parent=0
    _
  %s7 = ssub.s32 1, %s5
  %s8 = scalar_select 0, %s7, %s5
  loop: start=0, step=1, limit=4
  $region2: #{easpp_decoder5_forward.8} parent=0 // loop_pre_header
    _
  $region3: #{easpp_decoder5_forward.8} parent=0 // loop_header
    %s10 = sphi 0, %s14
    %p11 = scmp.ge.s32.totalorder %s10, 4
    %s17 = sphi 0, %s29
    %s18 = sphi 0, %s25
    %s19 = sphi 0, %s17
    %s20 = sphi 0, %s18
    %s21 = sphi 0, %s19
    %s22 = sphi 0, %s20
    %s34 = sphi 0, %s36
    %s37 = sphi 0, %s34
    %s38 = sphi 0, %s37
    %s54 = sphi 0, %s38
    %s62 = sphi 0, %s64
    %s65 = sphi 0, %s62
    %s66 = sphi 0, %s65
    %s82 = sphi 0, %s66
    %s86 = sphi 0, %s86
    %s88 = sphi 0, %s86
    %s89 = sphi 0, %s88
    %s103 = sphi 0, %s89
    %s107 = sphi 0, %s107
    %s109 = sphi 0, %s107
    %s110 = sphi 0, %s109
    %s124 = sphi 0, %s110
    %s132 = sphi 0, %s134
    %s135 = sphi 0, %s132
    %s136 = sphi 0, %s135
    %s152 = sphi 0, %s136
  $region4: #{easpp_decoder5_forward.8} parent=0 // loop_header_branch
    %13 = sbr.rel (%p11) target = $region8
  $region5: #{easpp_decoder5_forward.8} parent=0 // loop_body
    %s15 = ssub.s32 %s10, 1
    %s16 = ssub.s32 %s10, 2
    %s23 = sadd.s32 1, %s18
    %p24 = scmp.ge.s32.totalorder %s23, 1
    %s25 = scalar_select %p24, 0, %s23
    %s26 = sadd.s32 1, %s17
    %s27 = scalar_select %p24, %s26, %s17
    %p28 = scmp.ge.s32.totalorder %s27, 2
    %s29 = scalar_select %p28, 0, %s27
    %s30 = ssub.s32 %s17, %s29
    %s31 = ssub.s32 %s18, %s25
    %s32 = sor.u32 %s30, %s31
    %p33 = scmp.eq.s32.totalorder %s32, 0
    %s35 = sadd.s32 %s34, 1
    %s36 = scalar_select %p33, %s34, %s35
    %p39 = pneg %p33
    %p40 = scmp.eq.s32.totalorder %s10, 1
    %p41 = por %p39, %p40
    %p42 = scmp.ne.s32.totalorder %s34, %s37
    %p43 = scmp.eq.s32.totalorder %s10, 0
    %p44 = por %p42, %p43
    %p45 = scmp.ne.s32.totalorder %s34, %s37
    %p46 = scmp.eq.s32.totalorder %s15, 1
    %p47 = por %p45, %p46
    %p48 = scmp.ne.s32.totalorder %s37, %s38
    %p49 = scmp.eq.s32.totalorder %s15, 0
    %p50 = por %p48, %p49
    %p51 = scmp.ne.s32.totalorder %s37, %s38
    %p52 = scmp.eq.s32.totalorder %s16, 1
    %p53 = por %p51, %p52
    %p55 = scmp.ne.s32.totalorder %s38, %s54
    %p56 = scmp.eq.s32.totalorder %s16, 0
    %p57 = por %p55, %p56
    %s58 = ssub.s32 %s17, %s29
    %s59 = ssub.s32 %s18, %s25
    %s60 = sor.u32 %s58, %s59
    %p61 = scmp.eq.s32.totalorder %s60, 0
    %s63 = sadd.s32 %s62, 1
    %s64 = scalar_select %p61, %s62, %s63
    %p67 = pneg %p61
    %p68 = scmp.eq.s32.totalorder %s10, 1
    %p69 = por %p67, %p68
    %p70 = scmp.ne.s32.totalorder %s62, %s65
    %p71 = scmp.eq.s32.totalorder %s10, 0
    %p72 = por %p70, %p71
    %p73 = scmp.ne.s32.totalorder %s62, %s65
    %p74 = scmp.eq.s32.totalorder %s15, 1
    %p75 = por %p73, %p74
    %p76 = scmp.ne.s32.totalorder %s65, %s66
    %p77 = scmp.eq.s32.totalorder %s15, 0
    %p78 = por %p76, %p77
    %p79 = scmp.ne.s32.totalorder %s65, %s66
    %p80 = scmp.eq.s32.totalorder %s16, 1
    %p81 = por %p79, %p80
    %p83 = scmp.ne.s32.totalorder %s66, %s82
    %p84 = scmp.eq.s32.totalorder %s16, 0
    %p85 = por %p83, %p84
    %s87 = sadd.s32 %s86, 1
    %p90 = scmp.eq.s32.totalorder %s10, 1
    %p91 = scmp.ne.s32.totalorder %s86, %s88
    %p92 = scmp.eq.s32.totalorder %s10, 0
    %p93 = por %p91, %p92
    %p94 = scmp.ne.s32.totalorder %s86, %s88
    %p95 = scmp.eq.s32.totalorder %s15, 1
    %p96 = por %p94, %p95
    %p97 = scmp.ne.s32.totalorder %s88, %s89
    %p98 = scmp.eq.s32.totalorder %s15, 0
    %p99 = por %p97, %p98
    %p100 = scmp.ne.s32.totalorder %s88, %s89
    %p101 = scmp.eq.s32.totalorder %s16, 1
    %p102 = por %p100, %p101
    %p104 = scmp.ne.s32.totalorder %s89, %s103
    %p105 = scmp.eq.s32.totalorder %s16, 0
    %p106 = por %p104, %p105
    %s108 = sadd.s32 %s107, 1
    %p111 = scmp.eq.s32.totalorder %s10, 1
    %p112 = scmp.ne.s32.totalorder %s107, %s109
    %p113 = scmp.eq.s32.totalorder %s10, 0
    %p114 = por %p112, %p113
    %p115 = scmp.ne.s32.totalorder %s107, %s109
    %p116 = scmp.eq.s32.totalorder %s15, 1
    %p117 = por %p115, %p116
    %p118 = scmp.ne.s32.totalorder %s109, %s110
    %p119 = scmp.eq.s32.totalorder %s15, 0
    %p120 = por %p118, %p119
    %p121 = scmp.ne.s32.totalorder %s109, %s110
    %p122 = scmp.eq.s32.totalorder %s16, 1
    %p123 = por %p121, %p122
    %p125 = scmp.ne.s32.totalorder %s110, %s124
    %p126 = scmp.eq.s32.totalorder %s16, 0
    %p127 = por %p125, %p126
    %s128 = ssub.s32 %s17, %s29
    %s129 = ssub.s32 %s18, %s25
    %s130 = sor.u32 %s128, %s129
    %p131 = scmp.eq.s32.totalorder %s130, 0
    %s133 = sadd.s32 %s132, 1
    %s134 = scalar_select %p131, %s132, %s133
    %p137 = pneg %p131
    %p138 = scmp.eq.s32.totalorder %s10, 1
    %p139 = por %p137, %p138
    %p140 = scmp.ne.s32.totalorder %s132, %s135
    %p141 = scmp.eq.s32.totalorder %s10, 0
    %p142 = por %p140, %p141
    %p143 = scmp.ne.s32.totalorder %s132, %s135
    %p144 = scmp.eq.s32.totalorder %s15, 1
    %p145 = por %p143, %p144
    %p146 = scmp.ne.s32.totalorder %s135, %s136
    %p147 = scmp.eq.s32.totalorder %s15, 0
    %p148 = por %p146, %p147
    %p149 = scmp.ne.s32.totalorder %s135, %s136
    %p150 = scmp.eq.s32.totalorder %s16, 1
    %p151 = por %p149, %p150
    %p153 = scmp.ne.s32.totalorder %s136, %s152
    %p154 = scmp.eq.s32.totalorder %s16, 0
    %p155 = por %p153, %p154
    %p156 = scmp.le.s32.totalorder 1, %s10
    %p157 = scmp.lt.s32.totalorder %s10, 3
    %p158 = pnand %p156, %p157
    %p159 = pneg %p158
    // Predicated region
    $region9: #{easpp_decoder5_forward.8} parent=5 // pred_check
      _
    $region10: #{easpp_decoder5_forward.8} parent=5 // pred_check_branch
      %161 = sbr.rel (%p158) target = $region12
    $region11: #{easpp_decoder5_forward.8} parent=5 // pred_region
      %s162 = ssub.s32 %s10, 1
      // Predicated region
      $region13: #{easpp_decoder5_forward.8} parent=11 // pred_check
        %p163 = pneg %p99
      $region14: #{easpp_decoder5_forward.8} parent=11 // pred_check_branch
        %165 = sbr.rel (%p163) target = $region16
      $region15: #{easpp_decoder5_forward.8} parent=11 // pred_region
        _
      $region16: #{easpp_decoder5_forward.8} parent=11 // pred_fallthru
        _
      // Predicated region
      $region17: #{easpp_decoder5_forward.8} parent=11 // pred_check
        %p166 = pneg %p120
      $region18: #{easpp_decoder5_forward.8} parent=11 // pred_check_branch
        %168 = sbr.rel (%p166) target = $region20
      $region19: #{easpp_decoder5_forward.8} parent=11 // pred_region
        _
      $region20: #{easpp_decoder5_forward.8} parent=11 // pred_fallthru
        _
    $region12: #{easpp_decoder5_forward.8} parent=5 // pred_fallthru
      _
    %p169 = scmp.lt.s32.totalorder %s10, 2
    // Predicated region
    $region21: #{easpp_decoder5_forward.8} parent=5 // pred_check
      %p170 = pneg %p169
    $region22: #{easpp_decoder5_forward.8} parent=5 // pred_check_branch
      %172 = sbr.rel (%p170) target = $region24
    $region23: #{easpp_decoder5_forward.8} parent=5 // pred_region
      // Predicated region
      $region25: #{easpp_decoder5_forward.8} parent=23 // pred_check
        %p173 = pneg %p44
      $region26: #{easpp_decoder5_forward.8} parent=23 // pred_check_branch
        %175 = sbr.rel (%p173) target = $region28
      $region27: #{easpp_decoder5_forward.8} parent=23 // pred_region
        %p176 = scmp.lt.s32.totalorder %s17, 1
        %s177 = scalar_select %p176, %s17, 1
        %p178 = scmp.lt.s32.totalorder %s18, 0
        %s179 = scalar_select %p178, %s18, 0
        %s180 = smul.addr %s179, 20
        %s181 = smul.addr %s177, 20
        %s182 = sadd.s32 %s180, %s181
        %s183 = smul.addr %s182, 4
        %s184 = scalar_lea.vmem %s0, %s183
      $region28: #{easpp_decoder5_forward.8} parent=23 // pred_fallthru
        _
      // Predicated region
      $region29: #{easpp_decoder5_forward.8} parent=23 // pred_check
        %p185 = pneg %p72
      $region30: #{easpp_decoder5_forward.8} parent=23 // pred_check_branch
        %187 = sbr.rel (%p185) target = $region32
      $region31: #{easpp_decoder5_forward.8} parent=23 // pred_region
        %p188 = scmp.lt.s32.totalorder %s17, 1
        %s189 = scalar_select %p188, %s17, 1
        %p190 = scmp.lt.s32.totalorder %s18, 0
        %s191 = scalar_select %p190, %s18, 0
        %s192 = smul.addr %s191, 20
        %s193 = smul.addr %s189, 20
        %s194 = sadd.s32 %s192, %s193
        %s195 = smul.addr %s194, 4
        %s196 = scalar_lea.vmem %s1, %s195
      $region32: #{easpp_decoder5_forward.8} parent=23 // pred_fallthru
        _
    $region24: #{easpp_decoder5_forward.8} parent=5 // pred_fallthru
      _
    %p197 = scmp.le.s32.totalorder 1, %s10
    %p198 = scmp.lt.s32.totalorder %s10, 3
    %p199 = pnand %p197, %p198
    %p200 = pneg %p199
    // Predicated region
    $region33: #{easpp_decoder5_forward.8} parent=5 // pred_check
      _
    $region34: #{easpp_decoder5_forward.8} parent=5 // pred_check_branch
      %202 = sbr.rel (%p199) target = $region36
    $region35: #{easpp_decoder5_forward.8} parent=5 // pred_region
      %s203 = ssub.s32 %s10, 1
      %p204 = scmp.lt.s32.totalorder %s19, 1
      %s205 = scalar_select %p204, %s19, 1
      %p206 = scmp.lt.s32.totalorder %s20, 0
      %s207 = scalar_select %p206, %s20, 0
      %s208 = smul.addr %s207, 20
      %s209 = smul.addr %s205, 20
      %s210 = sadd.s32 %s208, %s209
      %s211 = smul.addr %s210, 4
      %s212 = scalar_lea.vmem %s0, %s211
      %p213 = pneg %p50
      %p214 = pneg %p47
      %p215 = scmp.lt.s32.totalorder %s19, 1
      %s216 = scalar_select %p215, %s19, 1
      %p217 = scmp.lt.s32.totalorder %s20, 0
      %s218 = scalar_select %p217, %s20, 0
      %s219 = smul.addr %s218, 20
      %s220 = smul.addr %s216, 20
      %s221 = sadd.s32 %s219, %s220
      %s222 = smul.addr %s221, 4
      %s223 = scalar_lea.vmem %s1, %s222
      %p224 = pneg %p78
      %p225 = pneg %p75
      %p226 = pneg %p99
      %p227 = pneg %p96
      %p228 = pneg %p120
      %p229 = pneg %p117
      %p230 = pneg %p148
      %p231 = pneg %p145
      %p232 = scmp.lt.s32.totalorder %s19, 1
      %s233 = scalar_select %p232, %s19, 1
      %p234 = scmp.lt.s32.totalorder %s20, 0
      %s235 = scalar_select %p234, %s20, 0
      %s236 = smul.addr %s235, 8
      %s237 = smul.addr %s233, 8
      %s238 = sadd.s32 %s236, %s237
      %s239 = smul.addr %s238, 8
      %s240 = scalar_lea.vmem %s4, %s239
      %p241 = scmp.lt.s32.totalorder %s19, 1
      %s242 = scalar_select %p241, %s19, 1
      %p243 = scmp.lt.s32.totalorder %s20, 0
      %s244 = scalar_select %p243, %s20, 0
      %s245 = smul.addr %s244, 20
      %s246 = smul.addr %s242, 20
      %s247 = sadd.s32 %s245, %s246
      %s248 = smul.addr %s247, 4
      %s249 = scalar_lea.vmem %s0, %s248
      %p250 = scmp.lt.s32.totalorder %s19, 1
      %s251 = scalar_select %p250, %s19, 1
      %p252 = scmp.lt.s32.totalorder %s20, 0
      %s253 = scalar_select %p252, %s20, 0
      %s254 = smul.addr %s253, 20
      %s255 = smul.addr %s251, 20
      %s256 = sadd.s32 %s254, %s255
      %s257 = smul.addr %s256, 4
      %s258 = scalar_lea.vmem %s1, %s257
      %p259 = scmp.lt.s32.totalorder %s19, 1
      %s260 = scalar_select %p259, %s19, 1
      %p261 = scmp.lt.s32.totalorder %s20, 0
      %s262 = scalar_select %p261, %s20, 0
      %s263 = smul.addr %s262, 8
      %s264 = smul.addr %s260, 8
      %s265 = sadd.s32 %s263, %s264
      %s266 = smul.addr %s265, 8
      %s267 = scalar_lea.vmem %s4, %s266
      %v269 = vld [vmem:[%s249] sm:$0xf]
      %v270 = vld [vmem:[%s249 + $0x4] sm:$0x1]
      %v271 = vld [vmem:[%s249 + $0x8] sm:$0xf]
      %v272 = vld [vmem:[%s249 + $0xc] sm:$0x1]
      %v273 = vld [vmem:[%s249 + $0x10] sm:$0xf]
      %v274 = vld [vmem:[%s249 + $0x14] sm:$0x1]
      %v275 = vld [vmem:[%s249 + $0x18] sm:$0xf]
      %v276 = vld [vmem:[%s249 + $0x1c] sm:$0x1]
      %v277 = vld [vmem:[%s249 + $0x20] sm:$0xf]
      %v278 = vld [vmem:[%s249 + $0x24] sm:$0x1]
      %v279 = vld [vmem:[%s249 + $0x28] sm:$0xf]
      %v280 = vld [vmem:[%s249 + $0x2c] sm:$0x1]
      %v281 = vld [vmem:[%s249 + $0x30] sm:$0xf]
      %v282 = vld [vmem:[%s249 + $0x34] sm:$0x1]
      %v283 = vld [vmem:[%s249 + $0x38] sm:$0xf]
      %v284 = vld [vmem:[%s249 + $0x3c] sm:$0x1]
      %v285 = vld [vmem:[%s249 + $0x40] sm:$0xf]
      %v286 = vld [vmem:[%s249 + $0x44] sm:$0x1]
      %v287 = vld [vmem:[%s249 + $0x48] sm:$0xf]
      %v288 = vld [vmem:[%s249 + $0x4c] sm:$0x1]
      %v289 = vld [vmem:[%s258] sm:$0xf]
      %v290 = vld [vmem:[%s258 + $0x4] sm:$0x1]
      %v291 = vld [vmem:[%s258 + $0x8] sm:$0xf]
      %v292 = vld [vmem:[%s258 + $0xc] sm:$0x1]
      %v293 = vld [vmem:[%s258 + $0x10] sm:$0xf]
      %v294 = vld [vmem:[%s258 + $0x14] sm:$0x1]
      %v295 = vld [vmem:[%s258 + $0x18] sm:$0xf]
      %v296 = vld [vmem:[%s258 + $0x1c] sm:$0x1]
      %v297 = vld [vmem:[%s258 + $0x20] sm:$0xf]
      %v298 = vld [vmem:[%s258 + $0x24] sm:$0x1]
      %v299 = vld [vmem:[%s258 + $0x28] sm:$0xf]
      %v300 = vld [vmem:[%s258 + $0x2c] sm:$0x1]
      %v301 = vld [vmem:[%s258 + $0x30] sm:$0xf]
      %v302 = vld [vmem:[%s258 + $0x34] sm:$0x1]
      %v303 = vld [vmem:[%s258 + $0x38] sm:$0xf]
      %v304 = vld [vmem:[%s258 + $0x3c] sm:$0x1]
      %v305 = vld [vmem:[%s258 + $0x40] sm:$0xf]
      %v306 = vld [vmem:[%s258 + $0x44] sm:$0x1]
      %v307 = vld [vmem:[%s258 + $0x48] sm:$0xf]
      %v308 = vld [vmem:[%s258 + $0x4c] sm:$0x1]
      %v309 = vadd.bf16 %v269, %v289
      %v310 = vadd.bf16 %v270, %v290
      %v311 = vadd.bf16 %v271, %v291
      %v312 = vadd.bf16 %v272, %v292
      %v313 = vadd.bf16 %v273, %v293
      %v314 = vadd.bf16 %v274, %v294
      %v315 = vadd.bf16 %v275, %v295
      %v316 = vadd.bf16 %v276, %v296
      %v317 = vadd.bf16 %v277, %v297
      %v318 = vadd.bf16 %v278, %v298
      %v319 = vadd.bf16 %v279, %v299
      %v320 = vadd.bf16 %v280, %v300
      %v321 = vadd.bf16 %v281, %v301
      %v322 = vadd.bf16 %v282, %v302
      %v323 = vadd.bf16 %v283, %v303
      %v324 = vadd.bf16 %v284, %v304
      %v325 = vadd.bf16 %v285, %v305
      %v326 = vadd.bf16 %v286, %v306
      %v327 = vadd.bf16 %v287, %v307
      %v328 = vadd.bf16 %v288, %v308
      %v329 = vld [vmem:[%s2] sm:$0xf]
      %v330 = vld [vmem:[%s2 + $0x4] sm:$0xf]
      %v331 = vld [vmem:[%s2 + $0x8] sm:$0xf]
      %v332 = vld [vmem:[%s2 + $0xc] sm:$0xf]
      %v333 = vld [vmem:[%s2 + $0x10] sm:$0xf]
      %v334 = vld [vmem:[%s2 + $0x14] sm:$0xf]
      %v335 = vld [vmem:[%s2 + $0x18] sm:$0xf]
      %v336 = vld [vmem:[%s2 + $0x1c] sm:$0xf]
      %v337 = vld [vmem:[%s2 + $0x20] sm:$0xf]
      %v338 = vld [vmem:[%s2 + $0x24] sm:$0xf]
      %v339 = vld [vmem:[%s2 + $0x28] sm:$0xf]
      %v340 = vld [vmem:[%s2 + $0x2c] sm:$0xf]
      %v341 = vld [vmem:[%s2 + $0x30] sm:$0xf]
      %v342 = vld [vmem:[%s2 + $0x34] sm:$0xf]
      %v343 = vld [vmem:[%s2 + $0x38] sm:$0xf]
      %v344 = vld [vmem:[%s2 + $0x3c] sm:$0xf]
      %v345 = vld [vmem:[%s2 + $0x40] sm:$0xf]
      %v346 = vld [vmem:[%s2 + $0x44] sm:$0xf]
      %v347 = vld [vmem:[%s2 + $0x48] sm:$0xf]
      %v348 = vld [vmem:[%s2 + $0x4c] sm:$0xf]
      %v349 = vld [vmem:[%s2 + $0x50] sm:$0xf]
      %v350 = vld [vmem:[%s2 + $0x54] sm:$0xf]
      %v351 = vld [vmem:[%s2 + $0x58] sm:$0xf]
      %v352 = vld [vmem:[%s2 + $0x5c] sm:$0xf]
      %v353 = vld [vmem:[%s2 + $0x60] sm:$0xf]
      %v354 = vld [vmem:[%s2 + $0x64] sm:$0xf]
      %v355 = vld [vmem:[%s2 + $0x68] sm:$0xf]
      %v356 = vld [vmem:[%s2 + $0x6c] sm:$0xf]
      %v357 = vld [vmem:[%s2 + $0x70] sm:$0xf]
      %v358 = vld [vmem:[%s2 + $0x74] sm:$0xf]
      %v359 = vld [vmem:[%s2 + $0x78] sm:$0xf]
      %v360 = vld [vmem:[%s2 + $0x7c] sm:$0xf]
      %v361 = vld [vmem:[%s2 + $0x80] sm:$0xf]
      %v362 = vld [vmem:[%s2 + $0x84] sm:$0xf]
      %v363 = vld [vmem:[%s2 + $0x88] sm:$0xf]
      %v364 = vld [vmem:[%s2 + $0x8c] sm:$0xf]
      %v365 = vld [vmem:[%s2 + $0x90] sm:$0xf]
      %v366 = vld [vmem:[%s2 + $0x94] sm:$0xf]
      %v367 = vld [vmem:[%s2 + $0x98] sm:$0xf]
      %v368 = vld [vmem:[%s2 + $0x9c] sm:$0xf]
      %v369 = vld [vmem:[%s2 + $0xa0] sm:$0xf]
      %v370 = vld [vmem:[%s2 + $0xa4] sm:$0xf]
      %v371 = vld [vmem:[%s2 + $0xa8] sm:$0xf]
      %v372 = vld [vmem:[%s2 + $0xac] sm:$0xf]
      %v373 = vld [vmem:[%s2 + $0xb0] sm:$0xf]
      %v374 = vld [vmem:[%s2 + $0xb4] sm:$0xf]
      %v375 = vld [vmem:[%s2 + $0xb8] sm:$0xf]
      %v376 = vld [vmem:[%s2 + $0xbc] sm:$0xf]
      %v377 = vld [vmem:[%s2 + $0xc0] sm:$0xf]
      %v378 = vld [vmem:[%s2 + $0xc4] sm:$0xf]
      %v379 = vld [vmem:[%s2 + $0xc8] sm:$0xf]
      %v380 = vld [vmem:[%s2 + $0xcc] sm:$0xf]
      %v381 = vld [vmem:[%s2 + $0xd0] sm:$0xf]
      %v382 = vld [vmem:[%s2 + $0xd4] sm:$0xf]
      %v383 = vld [vmem:[%s2 + $0xd8] sm:$0xf]
      %v384 = vld [vmem:[%s2 + $0xdc] sm:$0xf]
      %v385 = vld [vmem:[%s2 + $0xe0] sm:$0xf]
      %v386 = vld [vmem:[%s2 + $0xe4] sm:$0xf]
      %v387 = vld [vmem:[%s2 + $0xe8] sm:$0xf]
      %v388 = vld [vmem:[%s2 + $0xec] sm:$0xf]
      %v389 = vld [vmem:[%s2 + $0xf0] sm:$0xf]
      %v390 = vld [vmem:[%s2 + $0xf4] sm:$0xf]
      %v391 = vld [vmem:[%s2 + $0xf8] sm:$0xf]
      %v392 = vld [vmem:[%s2 + $0xfc] sm:$0xf]
      %v393 = vld [vmem:[%s2 + $0x100] sm:$0xf]
      %v394 = vld [vmem:[%s2 + $0x104] sm:$0xf]
      %v395 = vld [vmem:[%s2 + $0x108] sm:$0xf]
      %v396 = vld [vmem:[%s2 + $0x10c] sm:$0xf]
      %v397 = vld [vmem:[%s2 + $0x110] sm:$0xf]
      %v398 = vld [vmem:[%s2 + $0x114] sm:$0xf]
      %v399 = vld [vmem:[%s2 + $0x118] sm:$0xf]
      %v400 = vld [vmem:[%s2 + $0x11c] sm:$0xf]
      %v401 = vld [vmem:[%s2 + $0x120] sm:$0xf]
      %v402 = vld [vmem:[%s2 + $0x124] sm:$0xf]
      %v403 = vld [vmem:[%s2 + $0x128] sm:$0xf]
      %v404 = vld [vmem:[%s2 + $0x12c] sm:$0xf]
      %v405 = vld [vmem:[%s2 + $0x130] sm:$0xf]
      %v406 = vld [vmem:[%s2 + $0x134] sm:$0xf]
      %v407 = vld [vmem:[%s2 + $0x138] sm:$0xf]
      %v408 = vld [vmem:[%s2 + $0x13c] sm:$0xf]
      %v409 = vld [vmem:[%s2 + $0x140] sm:$0xf]
      %v410 = vld [vmem:[%s2 + $0x144] sm:$0xf]
      %v411 = vld [vmem:[%s2 + $0x148] sm:$0xf]
      %v412 = vld [vmem:[%s2 + $0x14c] sm:$0xf]
      %v413 = vld [vmem:[%s2 + $0x150] sm:$0xf]
      %v414 = vld [vmem:[%s2 + $0x154] sm:$0xf]
      %v415 = vld [vmem:[%s2 + $0x158] sm:$0xf]
      %v416 = vld [vmem:[%s2 + $0x15c] sm:$0xf]
      %v417 = vld [vmem:[%s2 + $0x160] sm:$0xf]
      %v418 = vld [vmem:[%s2 + $0x164] sm:$0xf]
      %v419 = vld [vmem:[%s2 + $0x168] sm:$0xf]
      %v420 = vld [vmem:[%s2 + $0x16c] sm:$0xf]
      %v421 = vld [vmem:[%s2 + $0x170] sm:$0xf]
      %v422 = vld [vmem:[%s2 + $0x174] sm:$0xf]
      %v423 = vld [vmem:[%s2 + $0x178] sm:$0xf]
      %v424 = vld [vmem:[%s2 + $0x17c] sm:$0xf]
      %v425 = vld [vmem:[%s2 + $0x180] sm:$0xf]
      %v426 = vld [vmem:[%s2 + $0x184] sm:$0xf]
      %v427 = vld [vmem:[%s2 + $0x188] sm:$0xf]
      %v428 = vld [vmem:[%s2 + $0x18c] sm:$0xf]
      %v429 = vld [vmem:[%s2 + $0x190] sm:$0xf]
      %v430 = vld [vmem:[%s2 + $0x194] sm:$0xf]
      %v431 = vld [vmem:[%s2 + $0x198] sm:$0xf]
      %v432 = vld [vmem:[%s2 + $0x19c] sm:$0xf]
      %v433 = vld [vmem:[%s2 + $0x1a0] sm:$0xf]
      %v434 = vld [vmem:[%s2 + $0x1a4] sm:$0xf]
      %v435 = vld [vmem:[%s2 + $0x1a8] sm:$0xf]
      %v436 = vld [vmem:[%s2 + $0x1ac] sm:$0xf]
      %v437 = vld [vmem:[%s2 + $0x1b0] sm:$0xf]
      %v438 = vld [vmem:[%s2 + $0x1b4] sm:$0xf]
      %v439 = vld [vmem:[%s2 + $0x1b8] sm:$0xf]
      %v440 = vld [vmem:[%s2 + $0x1bc] sm:$0xf]
      %v441 = vld [vmem:[%s2 + $0x1c0] sm:$0xf]
      %v442 = vld [vmem:[%s2 + $0x1c4] sm:$0xf]
      %v443 = vld [vmem:[%s2 + $0x1c8] sm:$0xf]
      %v444 = vld [vmem:[%s2 + $0x1cc] sm:$0xf]
      %v445 = vld [vmem:[%s2 + $0x1d0] sm:$0xf]
      %v446 = vld [vmem:[%s2 + $0x1d4] sm:$0xf]
      %v447 = vld [vmem:[%s2 + $0x1d8] sm:$0xf]
      %v448 = vld [vmem:[%s2 + $0x1dc] sm:$0xf]
      %v449 = vld [vmem:[%s2 + $0x1e0] sm:$0xf]
      %v450 = vld [vmem:[%s2 + $0x1e4] sm:$0xf]
      %v451 = vld [vmem:[%s2 + $0x1e8] sm:$0xf]
      %v452 = vld [vmem:[%s2 + $0x1ec] sm:$0xf]
      %v453 = vld [vmem:[%s2 + $0x1f0] sm:$0xf]
      %v454 = vld [vmem:[%s2 + $0x1f4] sm:$0xf]
      %v455 = vld [vmem:[%s2 + $0x1f8] sm:$0xf]
      %v456 = vld [vmem:[%s2 + $0x1fc] sm:$0xf]
      %v457 = vld [vmem:[%s2 + $0x200] sm:$0xf]
      %v458 = vld [vmem:[%s2 + $0x204] sm:$0xf]
      %v459 = vld [vmem:[%s2 + $0x208] sm:$0xf]
      %v460 = vld [vmem:[%s2 + $0x20c] sm:$0xf]
      %v461 = vld [vmem:[%s2 + $0x210] sm:$0xf]
      %v462 = vld [vmem:[%s2 + $0x214] sm:$0xf]
      %v463 = vld [vmem:[%s2 + $0x218] sm:$0xf]
      %v464 = vld [vmem:[%s2 + $0x21c] sm:$0xf]
      %v465 = vld [vmem:[%s2 + $0x220] sm:$0xf]
      %v466 = vld [vmem:[%s2 + $0x224] sm:$0xf]
      %v467 = vld [vmem:[%s2 + $0x228] sm:$0xf]
      %v468 = vld [vmem:[%s2 + $0x22c] sm:$0xf]
      %v469 = vld [vmem:[%s2 + $0x230] sm:$0xf]
      %v470 = vld [vmem:[%s2 + $0x234] sm:$0xf]
      %v471 = vld [vmem:[%s2 + $0x238] sm:$0xf]
      %v472 = vld [vmem:[%s2 + $0x23c] sm:$0xf]
      %vm473 = vsmask.f32 3328
      %vm474 = vsmask.f32 7440
      %vm475 = vmor %vm473, %vm474
      %v477 = vshrl.u32 %v309, 16
      %v479 = vrot.slane %v477, 4
      %v480 = vshll.u32 %v309, 16
      %v482 = vrot.slane %v480, 5
      %v483 = vor.u32 %v479, %v482
      %v484 = vrot.slane %v483, 4
      %v486 = vshll.u32 %v310, 16
      %v488 = vrot.slane %v486, 5
      %v489 = vsel %vm475, %v484, %v488
      %v491 = vshrl.u32 %v311, 16
      %v493 = vrot.slane %v491, 4
      %v494 = vshll.u32 %v311, 16
      %v496 = vrot.slane %v494, 5
      %v497 = vor.u32 %v493, %v496
      %v498 = vrot.slane %v497, 4
      %v500 = vshll.u32 %v312, 16
      %v502 = vrot.slane %v500, 5
      %v503 = vsel %vm475, %v498, %v502
      %v505 = vshrl.u32 %v313, 16
      %v507 = vrot.slane %v505, 4
      %v508 = vshll.u32 %v313, 16
      %v510 = vrot.slane %v508, 5
      %v511 = vor.u32 %v507, %v510
      %v512 = vrot.slane %v511, 4
      %v514 = vshll.u32 %v314, 16
      %v516 = vrot.slane %v514, 5
      %v517 = vsel %vm475, %v512, %v516
      %v519 = vshrl.u32 %v315, 16
      %v521 = vrot.slane %v519, 4
      %v522 = vshll.u32 %v315, 16
      %v524 = vrot.slane %v522, 5
      %v525 = vor.u32 %v521, %v524
      %v526 = vrot.slane %v525, 4
      %v528 = vshll.u32 %v316, 16
      %v530 = vrot.slane %v528, 5
      %v531 = vsel %vm475, %v526, %v530
      %v533 = vshrl.u32 %v317, 16
      %v535 = vrot.slane %v533, 4
      %v536 = vshll.u32 %v317, 16
      %v538 = vrot.slane %v536, 5
      %v539 = vor.u32 %v535, %v538
      %v540 = vrot.slane %v539, 4
      %v542 = vshll.u32 %v318, 16
      %v544 = vrot.slane %v542, 5
      %v545 = vsel %vm475, %v540, %v544
      %v547 = vshrl.u32 %v319, 16
      %v549 = vrot.slane %v547, 4
      %v550 = vshll.u32 %v319, 16
      %v552 = vrot.slane %v550, 5
      %v553 = vor.u32 %v549, %v552
      %v554 = vrot.slane %v553, 4
      %v556 = vshll.u32 %v320, 16
      %v558 = vrot.slane %v556, 5
      %v559 = vsel %vm475, %v554, %v558
      %v561 = vshrl.u32 %v321, 16
      %v563 = vrot.slane %v561, 4
      %v564 = vshll.u32 %v321, 16
      %v566 = vrot.slane %v564, 5
      %v567 = vor.u32 %v563, %v566
      %v568 = vrot.slane %v567, 4
      %v570 = vshll.u32 %v322, 16
      %v572 = vrot.slane %v570, 5
      %v573 = vsel %vm475, %v568, %v572
      %v575 = vshrl.u32 %v323, 16
      %v577 = vrot.slane %v575, 4
      %v578 = vshll.u32 %v323, 16
      %v580 = vrot.slane %v578, 5
      %v581 = vor.u32 %v577, %v580
      %v582 = vrot.slane %v581, 4
      %v584 = vshll.u32 %v324, 16
      %v586 = vrot.slane %v584, 5
      %v587 = vsel %vm475, %v582, %v586
      %v588 = vunpack.c.l.b16 %v489
      %v589 = vunpack.c.l.b16 %v503
      %v590 = vunpack.c.l.b16 %v517
      %v591 = vunpack.c.l.b16 %v531
      %v592 = vunpack.c.l.b16 %v545
      %v593 = vunpack.c.l.b16 %v559
      %v594 = vunpack.c.l.b16 %v573
      %v595 = vunpack.c.l.b16 %v587
      %v596 = vpack.c.b16 %v589, %v588
      %v597 = vpack.c.b16 %v591, %v590
      %v598 = vpack.c.b16 %v593, %v592
      %v599 = vpack.c.b16 %v595, %v594
      %v620 = vunpack.c.l.b16 %v345
      %v621 = vunpack.c.l.b16 %v346
      %v622 = vunpack.c.l.b16 %v347
      %v623 = vunpack.c.l.b16 %v348
      %v624 = vunpack.c.l.b16 %v349
      %v625 = vunpack.c.l.b16 %v350
      %v626 = vunpack.c.l.b16 %v351
      %v627 = vunpack.c.l.b16 %v352
      %v628 = vunpack.c.l.b16 %v353
      %v629 = vunpack.c.l.b16 %v354
      %v630 = vunpack.c.l.b16 %v355
      %v631 = vunpack.c.l.b16 %v356
      %v632 = vunpack.c.l.b16 %v357
      %v633 = vunpack.c.l.b16 %v358
      %v634 = vunpack.c.l.b16 %v359
      %v635 = vunpack.c.l.b16 %v360
      %v636 = vpack.c.b16 %v621, %v620
      %v637 = vpack.c.b16 %v623, %v622
      %v638 = vpack.c.b16 %v625, %v624
      %v639 = vpack.c.b16 %v627, %v626
      %v640 = vpack.c.b16 %v629, %v628
      %v641 = vpack.c.b16 %v631, %v630
      %v642 = vpack.c.b16 %v633, %v632
      %v643 = vpack.c.b16 %v635, %v634
      %652 = vmatprep.subr.bf16.mxu0 0
      %653 = vmatpush1.bf16.msra.mxu0 %v636
      %654 = vmatprep.subr.bf16.mxu0 0
      %655 = vmatpush1.bf16.msra.mxu0 %v637
      %656 = vmatprep.subr.bf16.mxu0 0
      %657 = vmatpush1.bf16.msra.mxu0 %v638
      %658 = vmatprep.subr.bf16.mxu0 0
      %659 = vmatpush1.bf16.msra.mxu0 %v639
      %660 = vmatprep.subr.bf16.mxu0 0
      %661 = vmatpush1.bf16.msra.mxu0 %v640
      %662 = vmatprep.subr.bf16.mxu0 0
      %663 = vmatpush1.bf16.msra.mxu0 %v641
      %664 = vmatprep.subr.bf16.mxu0 0
      %665 = vmatpush1.bf16.msra.mxu0 %v642
      %666 = vmatprep.subr.bf16.mxu0 0
      %667 = vmatpush1.bf16.msra.mxu0 %v643
      %668 = vmatprep.subr.bf16.mxu0 0
      %669 = vmatpush1.bf16.msra.mxu0 0
      %670 = vmatprep.subr.bf16.mxu0 0
      %671 = vmatpush1.bf16.msra.mxu0 0
      %672 = vmatprep.subr.bf16.mxu0 0
      %673 = vmatpush1.bf16.msra.mxu0 0
      %674 = vmatprep.subr.bf16.mxu0 0
      %675 = vmatpush1.bf16.msra.mxu0 0
      %676 = vmatprep.subr.bf16.mxu0 0
      %677 = vmatpush1.bf16.msra.mxu0 0
      %678 = vmatprep.subr.bf16.mxu0 0
      %679 = vmatpush1.bf16.msra.mxu0 0
      %680 = vmatprep.subr.bf16.mxu0 0
      %681 = vmatpush1.bf16.msra.mxu0 0
      %682 = vmatprep.subr.bf16.mxu0 0
      %683 = vmatpush1.bf16.msra.mxu0 0
      %684 = vmatprep.mubr.bf16.mxu0 0
      %685 = vmatmul.mubr.bf16.gmra.mrb[0].mxu0 %v596
      %v686 = vpop.f32.mrb[0].mxu0
      %v687 = vadd.f32 0.0, %v686
      %v688 = vpop.f32.mrb[0].mxu0
      %v689 = vpop.f32.mrb[0].mxu0
      %v690 = vadd.f32 0.0, %v689
      %v691 = vpop.f32.mrb[0].mxu0
      %692 = vmatprep.mubr.bf16.mxu0 0
      %693 = vmatmul.mubr.bf16.gmra.mrb[0].mxu0 %v597
      %v694 = vpop.f32.mrb[0].mxu0
      %v695 = vadd.f32 0.0, %v694
      %v696 = vpop.f32.mrb[0].mxu0
      %v697 = vpop.f32.mrb[0].mxu0
      %v698 = vadd.f32 0.0, %v697
      %v699 = vpop.f32.mrb[0].mxu0
      %700 = vmatprep.mubr.bf16.mxu0 0
      %701 = vmatmul.mubr.bf16.gmra.mrb[0].mxu0 %v598
      %v702 = vpop.f32.mrb[0].mxu0
      %v703 = vadd.f32 0.0, %v702
      %v704 = vpop.f32.mrb[0].mxu0
      %v705 = vpop.f32.mrb[0].mxu0
      %v706 = vadd.f32 0.0, %v705
      %v707 = vpop.f32.mrb[0].mxu0
      %708 = vmatprep.mubr.bf16.mxu0 0
      %709 = vmatmul.mubr.bf16.gmra.mrb[0].mxu0 %v599
      %v710 = vpop.f32.mrb[0].mxu0
      %v711 = vadd.f32 0.0, %v710
      %v712 = vpop.f32.mrb[0].mxu0
      %v713 = vpop.f32.mrb[0].mxu0
      %v714 = vadd.f32 0.0, %v713
      %v715 = vpop.f32.mrb[0].mxu0
      %716 = vdwg.mxu0
      %v725 = vunpack.c.l.b16 %v309
      %v726 = vunpack.c.l.b16 %v311
      %v727 = vunpack.c.l.b16 %v313
      %v728 = vunpack.c.l.b16 %v315
      %v729 = vunpack.c.l.b16 %v317
      %v730 = vunpack.c.l.b16 %v319
      %v731 = vunpack.c.l.b16 %v321
      %v732 = vunpack.c.l.b16 %v323
      %v733 = vpack.c.b16 %v726, %v725
      %v734 = vpack.c.b16 %v728, %v727
      %v735 = vpack.c.b16 %v730, %v729
      %v736 = vpack.c.b16 %v732, %v731
      %v757 = vunpack.c.l.b16 %v329
      %v758 = vunpack.c.l.b16 %v330
      %v759 = vunpack.c.l.b16 %v331
      %v760 = vunpack.c.l.b16 %v332
      %v761 = vunpack.c.l.b16 %v333
      %v762 = vunpack.c.l.b16 %v334
      %v763 = vunpack.c.l.b16 %v335
      %v764 = vunpack.c.l.b16 %v336
      %v765 = vunpack.c.l.b16 %v337
      %v766 = vunpack.c.l.b16 %v338
      %v767 = vunpack.c.l.b16 %v339
      %v768 = vunpack.c.l.b16 %v340
      %v769 = vunpack.c.l.b16 %v341
      %v770 = vunpack.c.l.b16 %v342
      %v771 = vunpack.c.l.b16 %v343
      %v772 = vunpack.c.l.b16 %v344
      %v773 = vpack.c.b16 %v758, %v757
      %v774 = vpack.c.b16 %v760, %v759
      %v775 = vpack.c.b16 %v762, %v761
      %v776 = vpack.c.b16 %v764, %v763
      %v777 = vpack.c.b16 %v766, %v765
      %v778 = vpack.c.b16 %v768, %v767
      %v779 = vpack.c.b16 %v770, %v769
      %v780 = vpack.c.b16 %v772, %v771
      %789 = vmatprep.subr.bf16.mxu0 0
      %790 = vmatpush1.bf16.msra.mxu0 %v773
      %791 = vmatprep.subr.bf16.mxu0 0
      %792 = vmatpush1.bf16.msra.mxu0 %v774
      %793 = vmatprep.subr.bf16.mxu0 0
      %794 = vmatpush1.bf16.msra.mxu0 %v775
      %795 = vmatprep.subr.bf16.mxu0 0
      %796 = vmatpush1.bf16.msra.mxu0 %v776
      %797 = vmatprep.subr.bf16.mxu0 0
      %798 = vmatpush1.bf16.msra.mxu0 %v777
      %799 = vmatprep.subr.bf16.mxu0 0
      %800 = vmatpush1.bf16.msra.mxu0 %v778
      %801 = vmatprep.subr.bf16.mxu0 0
      %802 = vmatpush1.bf16.msra.mxu0 %v779
      %803 = vmatprep.subr.bf16.mxu0 0
      %804 = vmatpush1.bf16.msra.mxu0 %v780
      %805 = vmatprep.subr.bf16.mxu0 0
      %806 = vmatpush1.bf16.msra.mxu0 0
      %807 = vmatprep.subr.bf16.mxu0 0
      %808 = vmatpush1.bf16.msra.mxu0 0
      %809 = vmatprep.subr.bf16.mxu0 0
      %810 = vmatpush1.bf16.msra.mxu0 0
      %811 = vmatprep.subr.bf16.mxu0 0
      %812 = vmatpush1.bf16.msra.mxu0 0
      %813 = vmatprep.subr.bf16.mxu0 0
      %814 = vmatpush1.bf16.msra.mxu0 0
      %815 = vmatprep.subr.bf16.mxu0 0
      %816 = vmatpush1.bf16.msra.mxu0 0
      %817 = vmatprep.subr.bf16.mxu0 0
      %818 = vmatpush1.bf16.msra.mxu0 0
      %819 = vmatprep.subr.bf16.mxu0 0
      %820 = vmatpush1.bf16.msra.mxu0 0
      %821 = vmatprep.mubr.bf16.mxu0 0
      %822 = vmatmul.mubr.bf16.gmra.mrb[0].mxu0 %v733
      %v823 = vpop.f32.mrb[0].mxu0
      %v824 = vadd.f32 %v687, %v823
      %v825 = vpop.f32.mrb[0].mxu0
      %v826 = vpop.f32.mrb[0].mxu0
      %v827 = vadd.f32 %v690, %v826
      %v828 = vpop.f32.mrb[0].mxu0
      %829 = vmatprep.mubr.bf16.mxu0 0
      %830 = vmatmul.mubr.bf16.gmra.mrb[0].mxu0 %v734
      %v831 = vpop.f32.mrb[0].mxu0
      %v832 = vadd.f32 %v695, %v831
      %v833 = vpop.f32.mrb[0].mxu0
      %v834 = vpop.f32.mrb[0].mxu0
      %v835 = vadd.f32 %v698, %v834
      %v836 = vpop.f32.mrb[0].mxu0
      %837 = vmatprep.mubr.bf16.mxu0 0
      %838 = vmatmul.mubr.bf16.gmra.mrb[0].mxu0 %v735
      %v839 = vpop.f32.mrb[0].mxu0
      %v840 = vadd.f32 %v703, %v839
      %v841 = vpop.f32.mrb[0].mxu0
      %v842 = vpop.f32.mrb[0].mxu0
      %v843 = vadd.f32 %v706, %v842
      %v844 = vpop.f32.mrb[0].mxu0
      %845 = vmatprep.mubr.bf16.mxu0 0
      %846 = vmatmul.mubr.bf16.gmra.mrb[0].mxu0 %v736
      %v847 = vpop.f32.mrb[0].mxu0
      %v848 = vadd.f32 %v711, %v847
      %v849 = vpop.f32.mrb[0].mxu0
      %v850 = vpop.f32.mrb[0].mxu0
      %v851 = vadd.f32 %v714, %v850
      %v852 = vpop.f32.mrb[0].mxu0
      %853 = vdwg.mxu0
      %vm862 = vcmask 1042432
      %vm863 = vcmask 1046532
      %vm864 = vmor %vm862, %vm863
      %v865 = vrot.slane %v309, 5
      %v866 = vrot.slane %v865, 4
      %v867 = vrot.slane %v310, 5
      %v868 = vsel %vm864, %v866, %v867
      %v869 = vrot.slane %v311, 5
      %v870 = vrot.slane %v869, 4
      %v871 = vrot.slane %v312, 5
      %v872 = vsel %vm864, %v870, %v871
      %v873 = vrot.slane %v313, 5
      %v874 = vrot.slane %v873, 4
      %v875 = vrot.slane %v314, 5
      %v876 = vsel %vm864, %v874, %v875
      %v877 = vrot.slane %v315, 5
      %v878 = vrot.slane %v877, 4
      %v879 = vrot.slane %v316, 5
      %v880 = vsel %vm864, %v878, %v879
      %v881 = vrot.slane %v317, 5
      %v882 = vrot.slane %v881, 4
      %v883 = vrot.slane %v318, 5
      %v884 = vsel %vm864, %v882, %v883
      %v885 = vrot.slane %v319, 5
      %v886 = vrot.slane %v885, 4
      %v887 = vrot.slane %v320, 5
      %v888 = vsel %vm864, %v886, %v887
      %v889 = vrot.slane %v321, 5
      %v890 = vrot.slane %v889, 4
      %v891 = vrot.slane %v322, 5
      %v892 = vsel %vm864, %v890, %v891
      %v893 = vrot.slane %v323, 5
      %v894 = vrot.slane %v893, 4
      %v895 = vrot.slane %v324, 5
      %v896 = vsel %vm864, %v894, %v895
      %v897 = vunpack.c.l.b16 %v868
      %v898 = vunpack.c.l.b16 %v872
      %v899 = vunpack.c.l.b16 %v876
      %v900 = vunpack.c.l.b16 %v880
      %v901 = vunpack.c.l.b16 %v884
      %v902 = vunpack.c.l.b16 %v888
      %v903 = vunpack.c.l.b16 %v892
      %v904 = vunpack.c.l.b16 %v896
      %v905 = vpack.c.b16 %v898, %v897
      %v906 = vpack.c.b16 %v900, %v899
      %v907 = vpack.c.b16 %v902, %v901
      %v908 = vpack.c.b16 %v904, %v903
      %v929 = vunpack.c.l.b16 %v361
      %v930 = vunpack.c.l.b16 %v362
      %v931 = vunpack.c.l.b16 %v363
      %v932 = vunpack.c.l.b16 %v364
      %v933 = vunpack.c.l.b16 %v365
      %v934 = vunpack.c.l.b16 %v366
      %v935 = vunpack.c.l.b16 %v367
      %v936 = vunpack.c.l.b16 %v368
      %v937 = vunpack.c.l.b16 %v369
      %v938 = vunpack.c.l.b16 %v370
      %v939 = vunpack.c.l.b16 %v371
      %v940 = vunpack.c.l.b16 %v372
      %v941 = vunpack.c.l.b16 %v373
      %v942 = vunpack.c.l.b16 %v374
      %v943 = vunpack.c.l.b16 %v375
      %v944 = vunpack.c.l.b16 %v376
      %v945 = vpack.c.b16 %v930, %v929
      %v946 = vpack.c.b16 %v932, %v931
      %v947 = vpack.c.b16 %v934, %v933
      %v948 = vpack.c.b16 %v936, %v935
      %v949 = vpack.c.b16 %v938, %v937
      %v950 = vpack.c.b16 %v940, %v939
      %v951 = vpack.c.b16 %v942, %v941
      %v952 = vpack.c.b16 %v944, %v943
      %961 = vmatprep.subr.bf16.mxu0 0
      %962 = vmatpush1.bf16.msra.mxu0 %v945
      %963 = vmatprep.subr.bf16.mxu0 0
      %964 = vmatpush1.bf16.msra.mxu0 %v946
      %965 = vmatprep.subr.bf16.mxu0 0
      %966 = vmatpush1.bf16.msra.mxu0 %v947
      %967 = vmatprep.subr.bf16.mxu0 0
      %968 = vmatpush1.bf16.msra.mxu0 %v948
      %969 = vmatprep.subr.bf16.mxu0 0
      %970 = vmatpush1.bf16.msra.mxu0 %v949
      %971 = vmatprep.subr.bf16.mxu0 0
      %972 = vmatpush1.bf16.msra.mxu0 %v950
      %973 = vmatprep.subr.bf16.mxu0 0
      %974 = vmatpush1.bf16.msra.mxu0 %v951
      %975 = vmatprep.subr.bf16.mxu0 0
      %976 = vmatpush1.bf16.msra.mxu0 %v952
      %977 = vmatprep.subr.bf16.mxu0 0
      %978 = vmatpush1.bf16.msra.mxu0 0
      %979 = vmatprep.subr.bf16.mxu0 0
      %980 = vmatpush1.bf16.msra.mxu0 0
      %981 = vmatprep.subr.bf16.mxu0 0
      %982 = vmatpush1.bf16.msra.mxu0 0
      %983 = vmatprep.subr.bf16.mxu0 0
      %984 = vmatpush1.bf16.msra.mxu0 0
      %985 = vmatprep.subr.bf16.mxu0 0
      %986 = vmatpush1.bf16.msra.mxu0 0
      %987 = vmatprep.subr.bf16.mxu0 0
      %988 = vmatpush1.bf16.msra.mxu0 0
      %989 = vmatprep.subr.bf16.mxu0 0
      %990 = vmatpush1.bf16.msra.mxu0 0
      %991 = vmatprep.subr.bf16.mxu0 0
      %992 = vmatpush1.bf16.msra.mxu0 0
      %993 = vmatprep.mubr.bf16.mxu0 0
      %994 = vmatmul.mubr.bf16.gmra.mrb[0].mxu0 %v905
      %v995 = vpop.f32.mrb[0].mxu0
      %v996 = vadd.f32 0.0, %v995
      %v997 = vpop.f32.mrb[0].mxu0
      %v998 = vpop.f32.mrb[0].mxu0
      %v999 = vadd.f32 0.0, %v998
      %v1000 = vpop.f32.mrb[0].mxu0
      %1001 = vmatprep.mubr.bf16.mxu0 0
      %1002 = vmatmul.mubr.bf16.gmra.mrb[0].mxu0 %v906
      %v1003 = vpop.f32.mrb[0].mxu0
      %v1004 = vadd.f32 0.0, %v1003
      %v1005 = vpop.f32.mrb[0].mxu0
      %v1006 = vpop.f32.mrb[0].mxu0
      %v1007 = vadd.f32 0.0, %v1006
      %v1008 = vpop.f32.mrb[0].mxu0
      %1009 = vmatprep.mubr.bf16.mxu0 0
      %1010 = vmatmul.mubr.bf16.gmra.mrb[0].mxu0 %v907
      %v1011 = vpop.f32.mrb[0].mxu0
      %v1012 = vadd.f32 0.0, %v1011
      %v1013 = vpop.f32.mrb[0].mxu0
      %v1014 = vpop.f32.mrb[0].mxu0
      %v1015 = vadd.f32 0.0, %v1014
      %v1016 = vpop.f32.mrb[0].mxu0
      %1017 = vmatprep.mubr.bf16.mxu0 0
      %1018 = vmatmul.mubr.bf16.gmra.mrb[0].mxu0 %v908
      %v1019 = vpop.f32.mrb[0].mxu0
      %v1020 = vadd.f32 0.0, %v1019
      %v1021 = vpop.f32.mrb[0].mxu0
      %v1022 = vpop.f32.mrb[0].mxu0
      %v1023 = vadd.f32 0.0, %v1022
      %v1024 = vpop.f32.mrb[0].mxu0
      %1025 = vdwg.mxu0
      %v1026 = vadd.f32 %v824, %v996
      %v1027 = vadd.f32 %v827, %v999
      %v1028 = vadd.f32 %v832, %v1004
      %v1029 = vadd.f32 %v835, %v1007
      %v1030 = vadd.f32 %v840, %v1012
      %v1031 = vadd.f32 %v843, %v1015
      %v1032 = vadd.f32 %v848, %v1020
      %v1033 = vadd.f32 %v851, %v1023
      %v1035 = vunpack.c.l.b16 %v325
      %v1036 = vpack.c.b16 %v727, %v726
      %v1037 = vpack.c.b16 %v729, %v728
      %v1038 = vpack.c.b16 %v731, %v730
      %v1039 = vpack.c.b16 %v1035, %v732
      %v1060 = vunpack.c.l.b16 %v377
      %v1061 = vunpack.c.l.b16 %v378
      %v1062 = vunpack.c.l.b16 %v379
      %v1063 = vunpack.c.l.b16 %v380
      %v1064 = vunpack.c.l.b16 %v381
      %v1065 = vunpack.c.l.b16 %v382
      %v1066 = vunpack.c.l.b16 %v383
      %v1067 = vunpack.c.l.b16 %v384
      %v1068 = vunpack.c.l.b16 %v385
      %v1069 = vunpack.c.l.b16 %v386
      %v1070 = vunpack.c.l.b16 %v387
      %v1071 = vunpack.c.l.b16 %v388
      %v1072 = vunpack.c.l.b16 %v389
      %v1073 = vunpack.c.l.b16 %v390
      %v1074 = vunpack.c.l.b16 %v391
      %v1075 = vunpack.c.l.b16 %v392
      %v1076 = vpack.c.b16 %v1061, %v1060
      %v1077 = vpack.c.b16 %v1063, %v1062
      %v1078 = vpack.c.b16 %v1065, %v1064
      %v1079 = vpack.c.b16 %v1067, %v1066
      %v1080 = vpack.c.b16 %v1069, %v1068
      %v1081 = vpack.c.b16 %v1071, %v1070
      %v1082 = vpack.c.b16 %v1073, %v1072
      %v1083 = vpack.c.b16 %v1075, %v1074
      %1092 = vmatprep.subr.bf16.mxu0 0
      %1093 = vmatpush1.bf16.msra.mxu0 %v1076
      %1094 = vmatprep.subr.bf16.mxu0 0
      %1095 = vmatpush1.bf16.msra.mxu0 %v1077
      %1096 = vmatprep.subr.bf16.mxu0 0
      %1097 = vmatpush1.bf16.msra.mxu0 %v1078
      %1098 = vmatprep.subr.bf16.mxu0 0
      %1099 = vmatpush1.bf16.msra.mxu0 %v1079
      %1100 = vmatprep.subr.bf16.mxu0 0
      %1101 = vmatpush1.bf16.msra.mxu0 %v1080
      %1102 = vmatprep.subr.bf16.mxu0 0
      %1103 = vmatpush1.bf16.msra.mxu0 %v1081
      %1104 = vmatprep.subr.bf16.mxu0 0
      %1105 = vmatpush1.bf16.msra.mxu0 %v1082
      %1106 = vmatprep.subr.bf16.mxu0 0
      %1107 = vmatpush1.bf16.msra.mxu0 %v1083
      %1108 = vmatprep.subr.bf16.mxu0 0
      %1109 = vmatpush1.bf16.msra.mxu0 0
      %1110 = vmatprep.subr.bf16.mxu0 0
      %1111 = vmatpush1.bf16.msra.mxu0 0
      %1112 = vmatprep.subr.bf16.mxu0 0
      %1113 = vmatpush1.bf16.msra.mxu0 0
      %1114 = vmatprep.subr.bf16.mxu0 0
      %1115 = vmatpush1.bf16.msra.mxu0 0
      %1116 = vmatprep.subr.bf16.mxu0 0
      %1117 = vmatpush1.bf16.msra.mxu0 0
      %1118 = vmatprep.subr.bf16.mxu0 0
      %1119 = vmatpush1.bf16.msra.mxu0 0
      %1120 = vmatprep.subr.bf16.mxu0 0
      %1121 = vmatpush1.bf16.msra.mxu0 0
      %1122 = vmatprep.subr.bf16.mxu0 0
      %1123 = vmatpush1.bf16.msra.mxu0 0
      %1124 = vmatprep.mubr.bf16.mxu0 0
      %1125 = vmatmul.mubr.bf16.gmra.mrb[0].mxu0 %v1036
      %v1126 = vpop.f32.mrb[0].mxu0
      %v1127 = vadd.f32 0.0, %v1126
      %v1128 = vpop.f32.mrb[0].mxu0
      %v1129 = vpop.f32.mrb[0].mxu0
      %v1130 = vadd.f32 0.0, %v1129
      %v1131 = vpop.f32.mrb[0].mxu0
      %1132 = vmatprep.mubr.bf16.mxu0 0
      %1133 = vmatmul.mubr.bf16.gmra.mrb[0].mxu0 %v1037
      %v1134 = vpop.f32.mrb[0].mxu0
      %v1135 = vadd.f32 0.0, %v1134
      %v1136 = vpop.f32.mrb[0].mxu0
      %v1137 = vpop.f32.mrb[0].mxu0
      %v1138 = vadd.f32 0.0, %v1137
      %v1139 = vpop.f32.mrb[0].mxu0
      %1140 = vmatprep.mubr.bf16.mxu0 0
      %1141 = vmatmul.mubr.bf16.gmra.mrb[0].mxu0 %v1038
      %v1142 = vpop.f32.mrb[0].mxu0
      %v1143 = vadd.f32 0.0, %v1142
      %v1144 = vpop.f32.mrb[0].mxu0
      %v1145 = vpop.f32.mrb[0].mxu0
      %v1146 = vadd.f32 0.0, %v1145
      %v1147 = vpop.f32.mrb[0].mxu0
      %1148 = vmatprep.mubr.bf16.mxu0 0
      %1149 = vmatmul.mubr.bf16.gmra.mrb[0].mxu0 %v1039
      %v1150 = vpop.f32.mrb[0].mxu0
      %v1151 = vadd.f32 0.0, %v1150
      %v1152 = vpop.f32.mrb[0].mxu0
      %v1153 = vpop.f32.mrb[0].mxu0
      %v1154 = vadd.f32 0.0, %v1153
      %v1155 = vpop.f32.mrb[0].mxu0
      %1156 = vdwg.mxu0
      %v1157 = vadd.f32 %v1026, %v1127
      %v1158 = vadd.f32 %v1027, %v1130
      %v1159 = vadd.f32 %v1028, %v1135
      %v1160 = vadd.f32 %v1029, %v1138
      %v1161 = vadd.f32 %v1030, %v1143
      %v1162 = vadd.f32 %v1031, %v1146
      %v1163 = vadd.f32 %v1032, %v1151
      %v1164 = vadd.f32 %v1033, %v1154
      %v1166 = vshrl.u32 %v325, 16
      %v1168 = vrot.slane %v1166, 4
      %v1169 = vshll.u32 %v325, 16
      %v1171 = vrot.slane %v1169, 5
      %v1172 = vor.u32 %v1168, %v1171
      %v1173 = vrot.slane %v1172, 4
      %v1175 = vshll.u32 %v326, 16
      %v1177 = vrot.slane %v1175, 5
      %v1178 = vsel %vm475, %v1173, %v1177
      %v1179 = vunpack.c.l.b16 %v1178
      %v1180 = vpack.c.b16 %v590, %v589
      %v1181 = vpack.c.b16 %v592, %v591
      %v1182 = vpack.c.b16 %v594, %v593
      %v1183 = vpack.c.b16 %v1179, %v595
      %v1204 = vunpack.c.l.b16 %v393
      %v1205 = vunpack.c.l.b16 %v394
      %v1206 = vunpack.c.l.b16 %v395
      %v1207 = vunpack.c.l.b16 %v396
      %v1208 = vunpack.c.l.b16 %v397
      %v1209 = vunpack.c.l.b16 %v398
      %v1210 = vunpack.c.l.b16 %v399
      %v1211 = vunpack.c.l.b16 %v400
      %v1212 = vunpack.c.l.b16 %v401
      %v1213 = vunpack.c.l.b16 %v402
      %v1214 = vunpack.c.l.b16 %v403
      %v1215 = vunpack.c.l.b16 %v404
      %v1216 = vunpack.c.l.b16 %v405
      %v1217 = vunpack.c.l.b16 %v406
      %v1218 = vunpack.c.l.b16 %v407
      %v1219 = vunpack.c.l.b16 %v408
      %v1220 = vpack.c.b16 %v1205, %v1204
      %v1221 = vpack.c.b16 %v1207, %v1206
      %v1222 = vpack.c.b16 %v1209, %v1208
      %v1223 = vpack.c.b16 %v1211, %v1210
      %v1224 = vpack.c.b16 %v1213, %v1212
      %v1225 = vpack.c.b16 %v1215, %v1214
      %v1226 = vpack.c.b16 %v1217, %v1216
      %v1227 = vpack.c.b16 %v1219, %v1218
      %1236 = vmatprep.subr.bf16.mxu0 0
      %1237 = vmatpush1.bf16.msra.mxu0 %v1220
      %1238 = vmatprep.subr.bf16.mxu0 0
      %1239 = vmatpush1.bf16.msra.mxu0 %v1221
      %1240 = vmatprep.subr.bf16.mxu0 0
      %1241 = vmatpush1.bf16.msra.mxu0 %v1222
      %1242 = vmatprep.subr.bf16.mxu0 0
      %1243 = vmatpush1.bf16.msra.mxu0 %v1223
      %1244 = vmatprep.subr.bf16.mxu0 0
      %1245 = vmatpush1.bf16.msra.mxu0 %v1224
      %1246 = vmatprep.subr.bf16.mxu0 0
      %1247 = vmatpush1.bf16.msra.mxu0 %v1225
      %1248 = vmatprep.subr.bf16.mxu0 0
      %1249 = vmatpush1.bf16.msra.mxu0 %v1226
      %1250 = vmatprep.subr.bf16.mxu0 0
      %1251 = vmatpush1.bf16.msra.mxu0 %v1227
      %1252 = vmatprep.subr.bf16.mxu0 0
      %1253 = vmatpush1.bf16.msra.mxu0 0
      %1254 = vmatprep.subr.bf16.mxu0 0
      %1255 = vmatpush1.bf16.msra.mxu0 0
      %1256 = vmatprep.subr.bf16.mxu0 0
      %1257 = vmatpush1.bf16.msra.mxu0 0
      %1258 = vmatprep.subr.bf16.mxu0 0
      %1259 = vmatpush1.bf16.msra.mxu0 0
      %1260 = vmatprep.subr.bf16.mxu0 0
      %1261 = vmatpush1.bf16.msra.mxu0 0
      %1262 = vmatprep.subr.bf16.mxu0 0
      %1263 = vmatpush1.bf16.msra.mxu0 0
      %1264 = vmatprep.subr.bf16.mxu0 0
      %1265 = vmatpush1.bf16.msra.mxu0 0
      %1266 = vmatprep.subr.bf16.mxu0 0
      %1267 = vmatpush1.bf16.msra.mxu0 0
      %1268 = vmatprep.mubr.bf16.mxu0 0
      %1269 = vmatmul.mubr.bf16.gmra.mrb[0].mxu0 %v1180
      %v1270 = vpop.f32.mrb[0].mxu0
      %v1271 = vadd.f32 0.0, %v1270
      %v1272 = vpop.f32.mrb[0].mxu0
      %v1273 = vpop.f32.mrb[0].mxu0
      %v1274 = vadd.f32 0.0, %v1273
      %v1275 = vpop.f32.mrb[0].mxu0
      %1276 = vmatprep.mubr.bf16.mxu0 0
      %1277 = vmatmul.mubr.bf16.gmra.mrb[0].mxu0 %v1181
      %v1278 = vpop.f32.mrb[0].mxu0
      %v1279 = vadd.f32 0.0, %v1278
      %v1280 = vpop.f32.mrb[0].mxu0
      %v1281 = vpop.f32.mrb[0].mxu0
      %v1282 = vadd.f32 0.0, %v1281
      %v1283 = vpop.f32.mrb[0].mxu0
      %1284 = vmatprep.mubr.bf16.mxu0 0
      %1285 = vmatmul.mubr.bf16.gmra.mrb[0].mxu0 %v1182
      %v1286 = vpop.f32.mrb[0].mxu0
      %v1287 = vadd.f32 0.0, %v1286
      %v1288 = vpop.f32.mrb[0].mxu0
      %v1289 = vpop.f32.mrb[0].mxu0
      %v1290 = vadd.f32 0.0, %v1289
      %v1291 = vpop.f32.mrb[0].mxu0
      %1292 = vmatprep.mubr.bf16.mxu0 0
      %1293 = vmatmul.mubr.bf16.gmra.mrb[0].mxu0 %v1183
      %v1294 = vpop.f32.mrb[0].mxu0
      %v1295 = vadd.f32 0.0, %v1294
      %v1296 = vpop.f32.mrb[0].mxu0
      %v1297 = vpop.f32.mrb[0].mxu0
      %v1298 = vadd.f32 0.0, %v1297
      %v1299 = vpop.f32.mrb[0].mxu0
      %1300 = vdwg.mxu0
      %v1301 = vadd.f32 %v1157, %v1271
      %v1302 = vadd.f32 %v1158, %v1274
      %v1303 = vadd.f32 %v1159, %v1279
      %v1304 = vadd.f32 %v1160, %v1282
      %v1305 = vadd.f32 %v1161, %v1287
      %v1306 = vadd.f32 %v1162, %v1290
      %v1307 = vadd.f32 %v1163, %v1295
      %v1308 = vadd.f32 %v1164, %v1298
      %v1310 = vrot.slane %v325, 5
      %v1311 = vrot.slane %v1310, 4
      %v1312 = vrot.slane %v326, 5
      %v1313 = vsel %vm864, %v1311, %v1312
      %v1314 = vunpack.c.l.b16 %v1313
      %v1315 = vpack.c.b16 %v899, %v898
      %v1316 = vpack.c.b16 %v901, %v900
      %v1317 = vpack.c.b16 %v903, %v902
      %v1318 = vpack.c.b16 %v1314, %v904
      %v1339 = vunpack.c.l.b16 %v409
      %v1340 = vunpack.c.l.b16 %v410
      %v1341 = vunpack.c.l.b16 %v411
      %v1342 = vunpack.c.l.b16 %v412
      %v1343 = vunpack.c.l.b16 %v413
      %v1344 = vunpack.c.l.b16 %v414
      %v1345 = vunpack.c.l.b16 %v415
      %v1346 = vunpack.c.l.b16 %v416
      %v1347 = vunpack.c.l.b16 %v417
      %v1348 = vunpack.c.l.b16 %v418
      %v1349 = vunpack.c.l.b16 %v419
      %v1350 = vunpack.c.l.b16 %v420
      %v1351 = vunpack.c.l.b16 %v421
      %v1352 = vunpack.c.l.b16 %v422
      %v1353 = vunpack.c.l.b16 %v423
      %v1354 = vunpack.c.l.b16 %v424
      %v1355 = vpack.c.b16 %v1340, %v1339
      %v1356 = vpack.c.b16 %v1342, %v1341
      %v1357 = vpack.c.b16 %v1344, %v1343
      %v1358 = vpack.c.b16 %v1346, %v1345
      %v1359 = vpack.c.b16 %v1348, %v1347
      %v1360 = vpack.c.b16 %v1350, %v1349
      %v1361 = vpack.c.b16 %v1352, %v1351
      %v1362 = vpack.c.b16 %v1354, %v1353
      %1371 = vmatprep.subr.bf16.mxu0 0
      %1372 = vmatpush1.bf16.msra.mxu0 %v1355
      %1373 = vmatprep.subr.bf16.mxu0 0
      %1374 = vmatpush1.bf16.msra.mxu0 %v1356
      %1375 = vmatprep.subr.bf16.mxu0 0
      %1376 = vmatpush1.bf16.msra.mxu0 %v1357
      %1377 = vmatprep.subr.bf16.mxu0 0
      %1378 = vmatpush1.bf16.msra.mxu0 %v1358
      %1379 = vmatprep.subr.bf16.mxu0 0
      %1380 = vmatpush1.bf16.msra.mxu0 %v1359
      %1381 = vmatprep.subr.bf16.mxu0 0
      %1382 = vmatpush1.bf16.msra.mxu0 %v1360
      %1383 = vmatprep.subr.bf16.mxu0 0
      %1384 = vmatpush1.bf16.msra.mxu0 %v1361
      %1385 = vmatprep.subr.bf16.mxu0 0
      %1386 = vmatpush1.bf16.msra.mxu0 %v1362
      %1387 = vmatprep.subr.bf16.mxu0 0
      %1388 = vmatpush1.bf16.msra.mxu0 0
      %1389 = vmatprep.subr.bf16.mxu0 0
      %1390 = vmatpush1.bf16.msra.mxu0 0
      %1391 = vmatprep.subr.bf16.mxu0 0
      %1392 = vmatpush1.bf16.msra.mxu0 0
      %1393 = vmatprep.subr.bf16.mxu0 0
      %1394 = vmatpush1.bf16.msra.mxu0 0
      %1395 = vmatprep.subr.bf16.mxu0 0
      %1396 = vmatpush1.bf16.msra.mxu0 0
      %1397 = vmatprep.subr.bf16.mxu0 0
      %1398 = vmatpush1.bf16.msra.mxu0 0
      %1399 = vmatprep.subr.bf16.mxu0 0
      %1400 = vmatpush1.bf16.msra.mxu0 0
      %1401 = vmatprep.subr.bf16.mxu0 0
      %1402 = vmatpush1.bf16.msra.mxu0 0
      %1403 = vmatprep.mubr.bf16.mxu0 0
      %1404 = vmatmul.mubr.bf16.gmra.mrb[0].mxu0 %v1315
      %v1405 = vpop.f32.mrb[0].mxu0
      %v1406 = vadd.f32 0.0, %v1405
      %v1407 = vpop.f32.mrb[0].mxu0
      %v1408 = vpop.f32.mrb[0].mxu0
      %v1409 = vadd.f32 0.0, %v1408
      %v1410 = vpop.f32.mrb[0].mxu0
      %1411 = vmatprep.mubr.bf16.mxu0 0
      %1412 = vmatmul.mubr.bf16.gmra.mrb[0].mxu0 %v1316
      %v1413 = vpop.f32.mrb[0].mxu0
      %v1414 = vadd.f32 0.0, %v1413
      %v1415 = vpop.f32.mrb[0].mxu0
      %v1416 = vpop.f32.mrb[0].mxu0
      %v1417 = vadd.f32 0.0, %v1416
      %v1418 = vpop.f32.mrb[0].mxu0
      %1419 = vmatprep.mubr.bf16.mxu0 0
      %1420 = vmatmul.mubr.bf16.gmra.mrb[0].mxu0 %v1317
      %v1421 = vpop.f32.mrb[0].mxu0
      %v1422 = vadd.f32 0.0, %v1421
      %v1423 = vpop.f32.mrb[0].mxu0
      %v1424 = vpop.f32.mrb[0].mxu0
      %v1425 = vadd.f32 0.0, %v1424
      %v1426 = vpop.f32.mrb[0].mxu0
      %1427 = vmatprep.mubr.bf16.mxu0 0
      %1428 = vmatmul.mubr.bf16.gmra.mrb[0].mxu0 %v1318
      %v1429 = vpop.f32.mrb[0].mxu0
      %v1430 = vadd.f32 0.0, %v1429
      %v1431 = vpop.f32.mrb[0].mxu0
      %v1432 = vpop.f32.mrb[0].mxu0
      %v1433 = vadd.f32 0.0, %v1432
      %v1434 = vpop.f32.mrb[0].mxu0
      %1435 = vdwg.mxu0
      %v1436 = vadd.f32 %v1301, %v1406
      %v1437 = vadd.f32 %v1302, %v1409
      %v1438 = vadd.f32 %v1303, %v1414
      %v1439 = vadd.f32 %v1304, %v1417
      %v1440 = vadd.f32 %v1305, %v1422
      %v1441 = vadd.f32 %v1306, %v1425
      %v1442 = vadd.f32 %v1307, %v1430
      %v1443 = vadd.f32 %v1308, %v1433
      %v1445 = vunpack.c.l.b16 %v327
      %v1446 = vpack.c.b16 %v1445, %v1035
      %v1464 = vunpack.c.l.b16 %v425
      %v1465 = vunpack.c.l.b16 %v426
      %v1466 = vunpack.c.l.b16 %v427
      %v1467 = vunpack.c.l.b16 %v428
      %v1468 = vunpack.c.l.b16 %v429
      %v1469 = vunpack.c.l.b16 %v430
      %v1470 = vunpack.c.l.b16 %v431
      %v1471 = vunpack.c.l.b16 %v432
      %v1472 = vunpack.c.l.b16 %v433
      %v1473 = vunpack.c.l.b16 %v434
      %v1474 = vunpack.c.l.b16 %v435
      %v1475 = vunpack.c.l.b16 %v436
      %v1476 = vunpack.c.l.b16 %v437
      %v1477 = vunpack.c.l.b16 %v438
      %v1478 = vunpack.c.l.b16 %v439
      %v1479 = vunpack.c.l.b16 %v440
      %v1480 = vpack.c.b16 %v1465, %v1464
      %v1481 = vpack.c.b16 %v1467, %v1466
      %v1482 = vpack.c.b16 %v1469, %v1468
      %v1483 = vpack.c.b16 %v1471, %v1470
      %v1484 = vpack.c.b16 %v1473, %v1472
      %v1485 = vpack.c.b16 %v1475, %v1474
      %v1486 = vpack.c.b16 %v1477, %v1476
      %v1487 = vpack.c.b16 %v1479, %v1478
      %1496 = vmatprep.subr.bf16.mxu0 0
      %1497 = vmatpush1.bf16.msra.mxu0 %v1480
      %1498 = vmatprep.subr.bf16.mxu0 0
      %1499 = vmatpush1.bf16.msra.mxu0 %v1481
      %1500 = vmatprep.subr.bf16.mxu0 0
      %1501 = vmatpush1.bf16.msra.mxu0 %v1482
      %1502 = vmatprep.subr.bf16.mxu0 0
      %1503 = vmatpush1.bf16.msra.mxu0 %v1483
      %1504 = vmatprep.subr.bf16.mxu0 0
      %1505 = vmatpush1.bf16.msra.mxu0 %v1484
      %1506 = vmatprep.subr.bf16.mxu0 0
      %1507 = vmatpush1.bf16.msra.mxu0 %v1485
      %1508 = vmatprep.subr.bf16.mxu0 0
      %1509 = vmatpush1.bf16.msra.mxu0 %v1486
      %1510 = vmatprep.subr.bf16.mxu0 0
      %1511 = vmatpush1.bf16.msra.mxu0 %v1487
      %1512 = vmatprep.subr.bf16.mxu0 0
      %1513 = vmatpush1.bf16.msra.mxu0 0
      %1514 = vmatprep.subr.bf16.mxu0 0
      %1515 = vmatpush1.bf16.msra.mxu0 0
      %1516 = vmatprep.subr.bf16.mxu0 0
      %1517 = vmatpush1.bf16.msra.mxu0 0
      %1518 = vmatprep.subr.bf16.mxu0 0
      %1519 = vmatpush1.bf16.msra.mxu0 0
      %1520 = vmatprep.subr.bf16.mxu0 0
      %1521 = vmatpush1.bf16.msra.mxu0 0
      %1522 = vmatprep.subr.bf16.mxu0 0
      %1523 = vmatpush1.bf16.msra.mxu0 0
      %1524 = vmatprep.subr.bf16.mxu0 0
      %1525 = vmatpush1.bf16.msra.mxu0 0
      %1526 = vmatprep.subr.bf16.mxu0 0
      %1527 = vmatpush1.bf16.msra.mxu0 0
      %1528 = vmatprep.mubr.bf16.mxu0 0
      %1529 = vmatmul.mubr.bf16.gmra.mrb[0].mxu0 %v734
      %v1530 = vpop.f32.mrb[0].mxu0
      %v1531 = vadd.f32 0.0, %v1530
      %v1532 = vpop.f32.mrb[0].mxu0
      %v1533 = vpop.f32.mrb[0].mxu0
      %v1534 = vadd.f32 0.0, %v1533
      %v1535 = vpop.f32.mrb[0].mxu0
      %1536 = vmatprep.mubr.bf16.mxu0 0
      %1537 = vmatmul.mubr.bf16.gmra.mrb[0].mxu0 %v735
      %v1538 = vpop.f32.mrb[0].mxu0
      %v1539 = vadd.f32 0.0, %v1538
      %v1540 = vpop.f32.mrb[0].mxu0
      %v1541 = vpop.f32.mrb[0].mxu0
      %v1542 = vadd.f32 0.0, %v1541
      %v1543 = vpop.f32.mrb[0].mxu0
      %1544 = vmatprep.mubr.bf16.mxu0 0
      %1545 = vmatmul.mubr.bf16.gmra.mrb[0].mxu0 %v736
      %v1546 = vpop.f32.mrb[0].mxu0
      %v1547 = vadd.f32 0.0, %v1546
      %v1548 = vpop.f32.mrb[0].mxu0
      %v1549 = vpop.f32.mrb[0].mxu0
      %v1550 = vadd.f32 0.0, %v1549
      %v1551 = vpop.f32.mrb[0].mxu0
      %1552 = vmatprep.mubr.bf16.mxu0 0
      %1553 = vmatmul.mubr.bf16.gmra.mrb[0].mxu0 %v1446
      %v1554 = vpop.f32.mrb[0].mxu0
      %v1555 = vadd.f32 0.0, %v1554
      %v1556 = vpop.f32.mrb[0].mxu0
      %v1557 = vpop.f32.mrb[0].mxu0
      %v1558 = vadd.f32 0.0, %v1557
      %v1559 = vpop.f32.mrb[0].mxu0
      %1560 = vdwg.mxu0
      %v1561 = vadd.f32 %v1436, %v1531
      %v1562 = vadd.f32 %v1437, %v1534
      %v1563 = vadd.f32 %v1438, %v1539
      %v1564 = vadd.f32 %v1439, %v1542
      %v1565 = vadd.f32 %v1440, %v1547
      %v1566 = vadd.f32 %v1441, %v1550
      %v1567 = vadd.f32 %v1442, %v1555
      %v1568 = vadd.f32 %v1443, %v1558
      %v1570 = vshrl.u32 %v327, 16
      %v1572 = vrot.slane %v1570, 4
      %v1573 = vshll.u32 %v327, 16
      %v1575 = vrot.slane %v1573, 5
      %v1576 = vor.u32 %v1572, %v1575
      %v1577 = vrot.slane %v1576, 4
      %v1579 = vshll.u32 %v328, 16
      %v1581 = vrot.slane %v1579, 5
      %v1582 = vsel %vm475, %v1577, %v1581
      %v1583 = vunpack.c.l.b16 %v1582
      %v1584 = vpack.c.b16 %v1583, %v1179
      %v1602 = vunpack.c.l.b16 %v441
      %v1603 = vunpack.c.l.b16 %v442
      %v1604 = vunpack.c.l.b16 %v443
      %v1605 = vunpack.c.l.b16 %v444
      %v1606 = vunpack.c.l.b16 %v445
      %v1607 = vunpack.c.l.b16 %v446
      %v1608 = vunpack.c.l.b16 %v447
      %v1609 = vunpack.c.l.b16 %v448
      %v1610 = vunpack.c.l.b16 %v449
      %v1611 = vunpack.c.l.b16 %v450
      %v1612 = vunpack.c.l.b16 %v451
      %v1613 = vunpack.c.l.b16 %v452
      %v1614 = vunpack.c.l.b16 %v453
      %v1615 = vunpack.c.l.b16 %v454
      %v1616 = vunpack.c.l.b16 %v455
      %v1617 = vunpack.c.l.b16 %v456
      %v1618 = vpack.c.b16 %v1603, %v1602
      %v1619 = vpack.c.b16 %v1605, %v1604
      %v1620 = vpack.c.b16 %v1607, %v1606
      %v1621 = vpack.c.b16 %v1609, %v1608
      %v1622 = vpack.c.b16 %v1611, %v1610
      %v1623 = vpack.c.b16 %v1613, %v1612
      %v1624 = vpack.c.b16 %v1615, %v1614
      %v1625 = vpack.c.b16 %v1617, %v1616
      %1634 = vmatprep.subr.bf16.mxu0 0
      %1635 = vmatpush1.bf16.msra.mxu0 %v1618
      %1636 = vmatprep.subr.bf16.mxu0 0
      %1637 = vmatpush1.bf16.msra.mxu0 %v1619
      %1638 = vmatprep.subr.bf16.mxu0 0
      %1639 = vmatpush1.bf16.msra.mxu0 %v1620
      %1640 = vmatprep.subr.bf16.mxu0 0
      %1641 = vmatpush1.bf16.msra.mxu0 %v1621
      %1642 = vmatprep.subr.bf16.mxu0 0
      %1643 = vmatpush1.bf16.msra.mxu0 %v1622
      %1644 = vmatprep.subr.bf16.mxu0 0
      %1645 = vmatpush1.bf16.msra.mxu0 %v1623
      %1646 = vmatprep.subr.bf16.mxu0 0
      %1647 = vmatpush1.bf16.msra.mxu0 %v1624
      %1648 = vmatprep.subr.bf16.mxu0 0
      %1649 = vmatpush1.bf16.msra.mxu0 %v1625
      %1650 = vmatprep.subr.bf16.mxu0 0
      %1651 = vmatpush1.bf16.msra.mxu0 0
      %1652 = vmatprep.subr.bf16.mxu0 0
      %1653 = vmatpush1.bf16.msra.mxu0 0
      %1654 = vmatprep.subr.bf16.mxu0 0
      %1655 = vmatpush1.bf16.msra.mxu0 0
      %1656 = vmatprep.subr.bf16.mxu0 0
      %1657 = vmatpush1.bf16.msra.mxu0 0
      %1658 = vmatprep.subr.bf16.mxu0 0
      %1659 = vmatpush1.bf16.msra.mxu0 0
      %1660 = vmatprep.subr.bf16.mxu0 0
      %1661 = vmatpush1.bf16.msra.mxu0 0
      %1662 = vmatprep.subr.bf16.mxu0 0
      %1663 = vmatpush1.bf16.msra.mxu0 0
      %1664 = vmatprep.subr.bf16.mxu0 0
      %1665 = vmatpush1.bf16.msra.mxu0 0
      %1666 = vmatprep.mubr.bf16.mxu0 0
      %1667 = vmatmul.mubr.bf16.gmra.mrb[0].mxu0 %v597
      %v1668 = vpop.f32.mrb[0].mxu0
      %v1669 = vadd.f32 0.0, %v1668
      %v1670 = vpop.f32.mrb[0].mxu0
      %v1671 = vpop.f32.mrb[0].mxu0
      %v1672 = vadd.f32 0.0, %v1671
      %v1673 = vpop.f32.mrb[0].mxu0
      %1674 = vmatprep.mubr.bf16.mxu0 0
      %1675 = vmatmul.mubr.bf16.gmra.mrb[0].mxu0 %v598
      %v1676 = vpop.f32.mrb[0].mxu0
      %v1677 = vadd.f32 0.0, %v1676
      %v1678 = vpop.f32.mrb[0].mxu0
      %v1679 = vpop.f32.mrb[0].mxu0
      %v1680 = vadd.f32 0.0, %v1679
      %v1681 = vpop.f32.mrb[0].mxu0
      %1682 = vmatprep.mubr.bf16.mxu0 0
      %1683 = vmatmul.mubr.bf16.gmra.mrb[0].mxu0 %v599
      %v1684 = vpop.f32.mrb[0].mxu0
      %v1685 = vadd.f32 0.0, %v1684
      %v1686 = vpop.f32.mrb[0].mxu0
      %v1687 = vpop.f32.mrb[0].mxu0
      %v1688 = vadd.f32 0.0, %v1687
      %v1689 = vpop.f32.mrb[0].mxu0
      %1690 = vmatprep.mubr.bf16.mxu0 0
      %1691 = vmatmul.mubr.bf16.gmra.mrb[0].mxu0 %v1584
      %v1692 = vpop.f32.mrb[0].mxu0
      %v1693 = vadd.f32 0.0, %v1692
      %v1694 = vpop.f32.mrb[0].mxu0
      %v1695 = vpop.f32.mrb[0].mxu0
      %v1696 = vadd.f32 0.0, %v1695
      %v1697 = vpop.f32.mrb[0].mxu0
      %1698 = vdwg.mxu0
      %v1699 = vadd.f32 %v1561, %v1669
      %v1700 = vadd.f32 %v1562, %v1672
      %v1701 = vadd.f32 %v1563, %v1677
      %v1702 = vadd.f32 %v1564, %v1680
      %v1703 = vadd.f32 %v1565, %v1685
      %v1704 = vadd.f32 %v1566, %v1688
      %v1705 = vadd.f32 %v1567, %v1693
      %v1706 = vadd.f32 %v1568, %v1696
      %v1708 = vrot.slane %v327, 5
      %v1709 = vrot.slane %v1708, 4
      %v1710 = vrot.slane %v328, 5
      %v1711 = vsel %vm864, %v1709, %v1710
      %v1712 = vunpack.c.l.b16 %v1711
      %v1713 = vpack.c.b16 %v1712, %v1314
      %v1731 = vunpack.c.l.b16 %v457
      %v1732 = vunpack.c.l.b16 %v458
      %v1733 = vunpack.c.l.b16 %v459
      %v1734 = vunpack.c.l.b16 %v460
      %v1735 = vunpack.c.l.b16 %v461
      %v1736 = vunpack.c.l.b16 %v462
      %v1737 = vunpack.c.l.b16 %v463
      %v1738 = vunpack.c.l.b16 %v464
      %v1739 = vunpack.c.l.b16 %v465
      %v1740 = vunpack.c.l.b16 %v466
      %v1741 = vunpack.c.l.b16 %v467
      %v1742 = vunpack.c.l.b16 %v468
      %v1743 = vunpack.c.l.b16 %v469
      %v1744 = vunpack.c.l.b16 %v470
      %v1745 = vunpack.c.l.b16 %v471
      %v1746 = vunpack.c.l.b16 %v472
      %v1747 = vpack.c.b16 %v1732, %v1731
      %v1748 = vpack.c.b16 %v1734, %v1733
      %v1749 = vpack.c.b16 %v1736, %v1735
      %v1750 = vpack.c.b16 %v1738, %v1737
      %v1751 = vpack.c.b16 %v1740, %v1739
      %v1752 = vpack.c.b16 %v1742, %v1741
      %v1753 = vpack.c.b16 %v1744, %v1743
      %v1754 = vpack.c.b16 %v1746, %v1745
      %1763 = vmatprep.subr.bf16.mxu0 0
      %1764 = vmatpush1.bf16.msra.mxu0 %v1747
      %1765 = vmatprep.subr.bf16.mxu0 0
      %1766 = vmatpush1.bf16.msra.mxu0 %v1748
      %1767 = vmatprep.subr.bf16.mxu0 0
      %1768 = vmatpush1.bf16.msra.mxu0 %v1749
      %1769 = vmatprep.subr.bf16.mxu0 0
      %1770 = vmatpush1.bf16.msra.mxu0 %v1750
      %1771 = vmatprep.subr.bf16.mxu0 0
      %1772 = vmatpush1.bf16.msra.mxu0 %v1751
      %1773 = vmatprep.subr.bf16.mxu0 0
      %1774 = vmatpush1.bf16.msra.mxu0 %v1752
      %1775 = vmatprep.subr.bf16.mxu0 0
      %1776 = vmatpush1.bf16.msra.mxu0 %v1753
      %1777 = vmatprep.subr.bf16.mxu0 0
      %1778 = vmatpush1.bf16.msra.mxu0 %v1754
      %1779 = vmatprep.subr.bf16.mxu0 0
      %1780 = vmatpush1.bf16.msra.mxu0 0
      %1781 = vmatprep.subr.bf16.mxu0 0
      %1782 = vmatpush1.bf16.msra.mxu0 0
      %1783 = vmatprep.subr.bf16.mxu0 0
      %1784 = vmatpush1.bf16.msra.mxu0 0
      %1785 = vmatprep.subr.bf16.mxu0 0
      %1786 = vmatpush1.bf16.msra.mxu0 0
      %1787 = vmatprep.subr.bf16.mxu0 0
      %1788 = vmatpush1.bf16.msra.mxu0 0
      %1789 = vmatprep.subr.bf16.mxu0 0
      %1790 = vmatpush1.bf16.msra.mxu0 0
      %1791 = vmatprep.subr.bf16.mxu0 0
      %1792 = vmatpush1.bf16.msra.mxu0 0
      %1793 = vmatprep.subr.bf16.mxu0 0
      %1794 = vmatpush1.bf16.msra.mxu0 0
      %1795 = vmatprep.mubr.bf16.mxu0 0
      %1796 = vmatmul.mubr.bf16.gmra.mrb[0].mxu0 %v906
      %v1797 = vpop.f32.mrb[0].mxu0
      %v1798 = vadd.f32 0.0, %v1797
      %v1799 = vpop.f32.mrb[0].mxu0
      %v1800 = vpop.f32.mrb[0].mxu0
      %v1801 = vadd.f32 0.0, %v1800
      %v1802 = vpop.f32.mrb[0].mxu0
      %1803 = vmatprep.mubr.bf16.mxu0 0
      %1804 = vmatmul.mubr.bf16.gmra.mrb[0].mxu0 %v907
      %v1805 = vpop.f32.mrb[0].mxu0
      %v1806 = vadd.f32 0.0, %v1805
      %v1807 = vpop.f32.mrb[0].mxu0
      %v1808 = vpop.f32.mrb[0].mxu0
      %v1809 = vadd.f32 0.0, %v1808
      %v1810 = vpop.f32.mrb[0].mxu0
      %1811 = vmatprep.mubr.bf16.mxu0 0
      %1812 = vmatmul.mubr.bf16.gmra.mrb[0].mxu0 %v908
      %v1813 = vpop.f32.mrb[0].mxu0
      %v1814 = vadd.f32 0.0, %v1813
      %v1815 = vpop.f32.mrb[0].mxu0
      %v1816 = vpop.f32.mrb[0].mxu0
      %v1817 = vadd.f32 0.0, %v1816
      %v1818 = vpop.f32.mrb[0].mxu0
      %1819 = vmatprep.mubr.bf16.mxu0 0
      %1820 = vmatmul.mubr.bf16.gmra.mrb[0].mxu0 %v1713
      %v1821 = vpop.f32.mrb[0].mxu0
      %v1822 = vadd.f32 0.0, %v1821
      %v1823 = vpop.f32.mrb[0].mxu0
      %v1824 = vpop.f32.mrb[0].mxu0
      %v1825 = vadd.f32 0.0, %v1824
      %v1826 = vpop.f32.mrb[0].mxu0
      %1827 = vdwg.mxu0
      %v1828 = vadd.f32 %v1699, %v1798
      %v1829 = vadd.f32 %v1700, %v1801
      %v1830 = vadd.f32 %v1701, %v1806
      %v1831 = vadd.f32 %v1702, %v1809
      %v1832 = vadd.f32 %v1703, %v1814
      %v1833 = vadd.f32 %v1704, %v1817
      %v1834 = vadd.f32 %v1705, %v1822
      %v1835 = vadd.f32 %v1706, %v1825
      %v1836 = vld [vmem:[%s3] sm:$0x1]
      %v1838 = vlaneseq
      %v1839 = vshrl.u32 %v1838, 7
      %v1840 = vsub.s32 0, %v1839
      %v1841 = vrot.slane %v1836, %v1840
      %v1843 = vadd.f32 %v1828, %v1841
      %v1844 = vadd.f32 %v1829, %v1841
      %v1845 = vadd.f32 %v1830, %v1841
      %v1846 = vadd.f32 %v1831, %v1841
      %v1847 = vadd.f32 %v1832, %v1841
      %v1848 = vadd.f32 %v1833, %v1841
      %v1849 = vadd.f32 %v1834, %v1841
      %v1850 = vadd.f32 %v1835, %v1841
      %v1851 = vmax.f32 %v1843, 0.0
      %v1852 = vmax.f32 %v1844, 0.0
      %v1853 = vmax.f32 %v1845, 0.0
      %v1854 = vmax.f32 %v1846, 0.0
      %v1855 = vmax.f32 %v1847, 0.0
      %v1856 = vmax.f32 %v1848, 0.0
      %v1857 = vmax.f32 %v1849, 0.0
      %v1858 = vmax.f32 %v1850, 0.0
      %vm1859 = vcmask 523264
      %1860 = vst.msk [vmem:[%s267] sm:$0xff] %vm1859, %v1851
      %1861 = vst.msk [vmem:[%s267 + $0x8] sm:$0xff] %vm1859, %v1852
      %1862 = vst.msk [vmem:[%s267 + $0x10] sm:$0xff] %vm1859, %v1853
      %1863 = vst.msk [vmem:[%s267 + $0x18] sm:$0xff] %vm1859, %v1854
      %1864 = vst.msk [vmem:[%s267 + $0x20] sm:$0xff] %vm1859, %v1855
      %1865 = vst.msk [vmem:[%s267 + $0x28] sm:$0xff] %vm1859, %v1856
      %1866 = vst.msk [vmem:[%s267 + $0x30] sm:$0xff] %vm1859, %v1857
      %1867 = vst.msk [vmem:[%s267 + $0x38] sm:$0xff] %vm1859, %v1858
      %p1868 = scmp.lt.s32.totalorder %s19, 1
      %s1869 = scalar_select %p1868, %s19, 1
      %p1870 = scmp.lt.s32.totalorder %s20, 0
      %s1871 = scalar_select %p1870, %s20, 0
      %s1872 = smul.addr %s1871, 8
      %s1873 = smul.addr %s1869, 8
      %s1874 = sadd.s32 %s1872, %s1873
      %s1875 = smul.addr %s1874, 8
      %s1876 = scalar_lea.vmem %s4, %s1875
      // Predicated region
      $region37: #{easpp_decoder5_forward.8} parent=35 // pred_check
        %p1877 = pneg %p145
      $region38: #{easpp_decoder5_forward.8} parent=35 // pred_check_branch
        %1879 = sbr.rel (%p1877) target = $region40
      $region39: #{easpp_decoder5_forward.8} parent=35 // pred_region
        _
      $region40: #{easpp_decoder5_forward.8} parent=35 // pred_fallthru
        _
    $region36: #{easpp_decoder5_forward.8} parent=5 // pred_fallthru
      _
    %p1880 = scmp.le.s32.totalorder 2, %s10
    // Predicated region
    $region41: #{easpp_decoder5_forward.8} parent=5 // pred_check
      %p1881 = pneg %p1880
    $region42: #{easpp_decoder5_forward.8} parent=5 // pred_check_branch
      %1883 = sbr.rel (%p1881) target = $region44
    $region43: #{easpp_decoder5_forward.8} parent=5 // pred_region
      %s1884 = ssub.s32 %s10, 2
      // Predicated region
      $region45: #{easpp_decoder5_forward.8} parent=43 // pred_check
        %p1885 = pneg %p151
      $region46: #{easpp_decoder5_forward.8} parent=43 // pred_check_branch
        %1887 = sbr.rel (%p1885) target = $region48
      $region47: #{easpp_decoder5_forward.8} parent=43 // pred_region
        %p1888 = scmp.lt.s32.totalorder %s21, 1
        %s1889 = scalar_select %p1888, %s21, 1
        %p1890 = scmp.lt.s32.totalorder %s22, 0
        %s1891 = scalar_select %p1890, %s22, 0
        %s1892 = smul.addr %s1891, 8
        %s1893 = smul.addr %s1889, 8
        %s1894 = sadd.s32 %s1892, %s1893
        %s1895 = smul.addr %s1894, 8
        %s1896 = scalar_lea.vmem %s4, %s1895
      $region48: #{easpp_decoder5_forward.8} parent=43 // pred_fallthru
        _
    $region44: #{easpp_decoder5_forward.8} parent=5 // pred_fallthru
      _
  $region6: #{easpp_decoder5_forward.8} parent=0 // loop_footer
    %s14 = sadd.s32 1, %s10
  $region7: #{easpp_decoder5_forward.8} parent=0 // loop_footer_branch
    %9 = sbr.rel target = $region3
  $region8: #{easpp_decoder5_forward.8} parent=0 // loop_exit
    _

// kernel: easpp_decoder5_forward.7
$region0: #{easpp_decoder5_forward.7}
  #allocation0 [shape = 'u32[]', space=smem, size = 0x4, offset = 0x4, fixed_abs, tag = 'smem constant byte address 0x4 - core index']
  #allocation1 [shape = 'u32[144,128]{1,0:T(1,128)}', space=vmem, size = 0x12000, scoped, tag = 'internal scratch']
  %s0 = inlined_call_operand.vmem [shape: bf16[512,32], index: 0, kind: input, shape index: {}]
  %s1 = inlined_call_operand.vmem [shape: bf16[32,16], index: 1, kind: input, shape index: {}]
  %s2 = inlined_call_operand.vmem [shape: f32[1,16], index: 2, kind: input, shape index: {}]
  %s3 = inlined_call_operand.vmem [shape: f32[512,16], index: 3, kind: output, shape index: {}]
  %s4 = sld [smem:[#allocation0]]
  $region22: #{easpp_decoder5_forward.7} parent=0
    _
  %s6 = ssub.s32 1, %s4
  %s7 = scalar_select 0, %s6, %s4
  // Predicated region
  $region2: #{easpp_decoder5_forward.7} parent=0 // pred_check
    _
  $region3: #{easpp_decoder5_forward.7} parent=0 // pred_check_branch
    %9 = sbr.rel (0) target = $region5
  $region4: #{easpp_decoder5_forward.7} parent=0 // pred_region
    _
  $region5: #{easpp_decoder5_forward.7} parent=0 // pred_fallthru
    _
  // Predicated region
  $region6: #{easpp_decoder5_forward.7} parent=0 // pred_check
    _
  $region7: #{easpp_decoder5_forward.7} parent=0 // pred_check_branch
    %11 = sbr.rel (0) target = $region9
  $region8: #{easpp_decoder5_forward.7} parent=0 // pred_region
    _
  $region9: #{easpp_decoder5_forward.7} parent=0 // pred_fallthru
    _
  // Predicated region
  $region10: #{easpp_decoder5_forward.7} parent=0 // pred_check
    _
  $region11: #{easpp_decoder5_forward.7} parent=0 // pred_check_branch
    %13 = sbr.rel (0) target = $region13
  $region12: #{easpp_decoder5_forward.7} parent=0 // pred_region
    _
  $region13: #{easpp_decoder5_forward.7} parent=0 // pred_fallthru
    _
  %v15 = vld [vmem:[%s0] sm:$0xf]
  %v16 = vld [vmem:[%s0 + $0x4] sm:$0xf]
  %v17 = vld [vmem:[%s0 + $0x8] sm:$0xf]
  %v18 = vld [vmem:[%s0 + $0xc] sm:$0xf]
  %v19 = vld [vmem:[%s0 + $0x10] sm:$0xf]
  %v20 = vld [vmem:[%s0 + $0x14] sm:$0xf]
  %v21 = vld [vmem:[%s0 + $0x18] sm:$0xf]
  %v22 = vld [vmem:[%s0 + $0x1c] sm:$0xf]
  %v23 = vld [vmem:[%s0 + $0x20] sm:$0xf]
  %v24 = vld [vmem:[%s0 + $0x24] sm:$0xf]
  %v25 = vld [vmem:[%s0 + $0x28] sm:$0xf]
  %v26 = vld [vmem:[%s0 + $0x2c] sm:$0xf]
  %v27 = vld [vmem:[%s0 + $0x30] sm:$0xf]
  %v28 = vld [vmem:[%s0 + $0x34] sm:$0xf]
  %v29 = vld [vmem:[%s0 + $0x38] sm:$0xf]
  %v30 = vld [vmem:[%s0 + $0x3c] sm:$0xf]
  %v31 = vld [vmem:[%s0 + $0x40] sm:$0xf]
  %v32 = vld [vmem:[%s0 + $0x44] sm:$0xf]
  %v33 = vld [vmem:[%s0 + $0x48] sm:$0xf]
  %v34 = vld [vmem:[%s0 + $0x4c] sm:$0xf]
  %v35 = vld [vmem:[%s0 + $0x50] sm:$0xf]
  %v36 = vld [vmem:[%s0 + $0x54] sm:$0xf]
  %v37 = vld [vmem:[%s0 + $0x58] sm:$0xf]
  %v38 = vld [vmem:[%s0 + $0x5c] sm:$0xf]
  %v39 = vld [vmem:[%s0 + $0x60] sm:$0xf]
  %v40 = vld [vmem:[%s0 + $0x64] sm:$0xf]
  %v41 = vld [vmem:[%s0 + $0x68] sm:$0xf]
  %v42 = vld [vmem:[%s0 + $0x6c] sm:$0xf]
  %v43 = vld [vmem:[%s0 + $0x70] sm:$0xf]
  %v44 = vld [vmem:[%s0 + $0x74] sm:$0xf]
  %v45 = vld [vmem:[%s0 + $0x78] sm:$0xf]
  %v46 = vld [vmem:[%s0 + $0x7c] sm:$0xf]
  %v47 = vld [vmem:[%s0 + $0x80] sm:$0xf]
  %v48 = vld [vmem:[%s0 + $0x84] sm:$0xf]
  %v49 = vld [vmem:[%s0 + $0x88] sm:$0xf]
  %v50 = vld [vmem:[%s0 + $0x8c] sm:$0xf]
  %v51 = vld [vmem:[%s0 + $0x90] sm:$0xf]
  %v52 = vld [vmem:[%s0 + $0x94] sm:$0xf]
  %v53 = vld [vmem:[%s0 + $0x98] sm:$0xf]
  %v54 = vld [vmem:[%s0 + $0x9c] sm:$0xf]
  %v55 = vld [vmem:[%s0 + $0xa0] sm:$0xf]
  %v56 = vld [vmem:[%s0 + $0xa4] sm:$0xf]
  %v57 = vld [vmem:[%s0 + $0xa8] sm:$0xf]
  %v58 = vld [vmem:[%s0 + $0xac] sm:$0xf]
  %v59 = vld [vmem:[%s0 + $0xb0] sm:$0xf]
  %v60 = vld [vmem:[%s0 + $0xb4] sm:$0xf]
  %v61 = vld [vmem:[%s0 + $0xb8] sm:$0xf]
  %v62 = vld [vmem:[%s0 + $0xbc] sm:$0xf]
  %v63 = vld [vmem:[%s0 + $0xc0] sm:$0xf]
  %v64 = vld [vmem:[%s0 + $0xc4] sm:$0xf]
  %v65 = vld [vmem:[%s0 + $0xc8] sm:$0xf]
  %v66 = vld [vmem:[%s0 + $0xcc] sm:$0xf]
  %v67 = vld [vmem:[%s0 + $0xd0] sm:$0xf]
  %v68 = vld [vmem:[%s0 + $0xd4] sm:$0xf]
  %v69 = vld [vmem:[%s0 + $0xd8] sm:$0xf]
  %v70 = vld [vmem:[%s0 + $0xdc] sm:$0xf]
  %v71 = vld [vmem:[%s0 + $0xe0] sm:$0xf]
  %v72 = vld [vmem:[%s0 + $0xe4] sm:$0xf]
  %v73 = vld [vmem:[%s0 + $0xe8] sm:$0xf]
  %v74 = vld [vmem:[%s0 + $0xec] sm:$0xf]
  %v75 = vld [vmem:[%s0 + $0xf0] sm:$0xf]
  %v76 = vld [vmem:[%s0 + $0xf4] sm:$0xf]
  %v77 = vld [vmem:[%s0 + $0xf8] sm:$0xf]
  %v78 = vld [vmem:[%s0 + $0xfc] sm:$0xf]
  %v79 = vld [vmem:[%s1] sm:$0xf]
  %v80 = vld [vmem:[%s1 + $0x4] sm:$0xf]
  %v81 = vld [vmem:[%s1 + $0x8] sm:$0xf]
  %v82 = vld [vmem:[%s1 + $0xc] sm:$0xf]
  %v83 = vld [vmem:[%s2] sm:$0x1]
  %v85 = vlaneseq
  %v86 = vshrl.u32 %v85, 7
  %v87 = vsub.s32 0, %v86
  %v88 = vrot.slane %v83, %v87
  %v154 = vunpack.c.l.b16 %v15
  %v155 = vunpack.c.l.b16 %v16
  %v156 = vunpack.c.l.b16 %v17
  %v157 = vunpack.c.l.b16 %v18
  %v158 = vunpack.c.l.b16 %v19
  %v159 = vunpack.c.l.b16 %v20
  %v160 = vunpack.c.l.b16 %v21
  %v161 = vunpack.c.l.b16 %v22
  %v162 = vunpack.c.l.b16 %v23
  %v163 = vunpack.c.l.b16 %v24
  %v164 = vunpack.c.l.b16 %v25
  %v165 = vunpack.c.l.b16 %v26
  %v166 = vunpack.c.l.b16 %v27
  %v167 = vunpack.c.l.b16 %v28
  %v168 = vunpack.c.l.b16 %v29
  %v169 = vunpack.c.l.b16 %v30
  %v170 = vunpack.c.l.b16 %v31
  %v171 = vunpack.c.l.b16 %v32
  %v172 = vunpack.c.l.b16 %v33
  %v173 = vunpack.c.l.b16 %v34
  %v174 = vunpack.c.l.b16 %v35
  %v175 = vunpack.c.l.b16 %v36
  %v176 = vunpack.c.l.b16 %v37
  %v177 = vunpack.c.l.b16 %v38
  %v178 = vunpack.c.l.b16 %v39
  %v179 = vunpack.c.l.b16 %v40
  %v180 = vunpack.c.l.b16 %v41
  %v181 = vunpack.c.l.b16 %v42
  %v182 = vunpack.c.l.b16 %v43
  %v183 = vunpack.c.l.b16 %v44
  %v184 = vunpack.c.l.b16 %v45
  %v185 = vunpack.c.l.b16 %v46
  %v186 = vunpack.c.l.b16 %v47
  %v187 = vunpack.c.l.b16 %v48
  %v188 = vunpack.c.l.b16 %v49
  %v189 = vunpack.c.l.b16 %v50
  %v190 = vunpack.c.l.b16 %v51
  %v191 = vunpack.c.l.b16 %v52
  %v192 = vunpack.c.l.b16 %v53
  %v193 = vunpack.c.l.b16 %v54
  %v194 = vunpack.c.l.b16 %v55
  %v195 = vunpack.c.l.b16 %v56
  %v196 = vunpack.c.l.b16 %v57
  %v197 = vunpack.c.l.b16 %v58
  %v198 = vunpack.c.l.b16 %v59
  %v199 = vunpack.c.l.b16 %v60
  %v200 = vunpack.c.l.b16 %v61
  %v201 = vunpack.c.l.b16 %v62
  %v202 = vunpack.c.l.b16 %v63
  %v203 = vunpack.c.l.b16 %v64
  %v204 = vunpack.c.l.b16 %v65
  %v205 = vunpack.c.l.b16 %v66
  %v206 = vunpack.c.l.b16 %v67
  %v207 = vunpack.c.l.b16 %v68
  %v208 = vunpack.c.l.b16 %v69
  %v209 = vunpack.c.l.b16 %v70
  %v210 = vunpack.c.l.b16 %v71
  %v211 = vunpack.c.l.b16 %v72
  %v212 = vunpack.c.l.b16 %v73
  %v213 = vunpack.c.l.b16 %v74
  %v214 = vunpack.c.l.b16 %v75
  %v215 = vunpack.c.l.b16 %v76
  %v216 = vunpack.c.l.b16 %v77
  %v217 = vunpack.c.l.b16 %v78
  %v218 = vpack.c.b16 %v155, %v154
  %v219 = vpack.c.b16 %v157, %v156
  %v220 = vpack.c.b16 %v159, %v158
  %v221 = vpack.c.b16 %v161, %v160
  %v222 = vpack.c.b16 %v163, %v162
  %v223 = vpack.c.b16 %v165, %v164
  %v224 = vpack.c.b16 %v167, %v166
  %v225 = vpack.c.b16 %v169, %v168
  %v226 = vpack.c.b16 %v171, %v170
  %v227 = vpack.c.b16 %v173, %v172
  %v228 = vpack.c.b16 %v175, %v174
  %v229 = vpack.c.b16 %v177, %v176
  %v230 = vpack.c.b16 %v179, %v178
  %v231 = vpack.c.b16 %v181, %v180
  %v232 = vpack.c.b16 %v183, %v182
  %v233 = vpack.c.b16 %v185, %v184
  %v234 = vpack.c.b16 %v187, %v186
  %v235 = vpack.c.b16 %v189, %v188
  %v236 = vpack.c.b16 %v191, %v190
  %v237 = vpack.c.b16 %v193, %v192
  %v238 = vpack.c.b16 %v195, %v194
  %v239 = vpack.c.b16 %v197, %v196
  %v240 = vpack.c.b16 %v199, %v198
  %v241 = vpack.c.b16 %v201, %v200
  %v242 = vpack.c.b16 %v203, %v202
  %v243 = vpack.c.b16 %v205, %v204
  %v244 = vpack.c.b16 %v207, %v206
  %v245 = vpack.c.b16 %v209, %v208
  %v246 = vpack.c.b16 %v211, %v210
  %v247 = vpack.c.b16 %v213, %v212
  %v248 = vpack.c.b16 %v215, %v214
  %v249 = vpack.c.b16 %v217, %v216
  %v254 = vunpack.c.l.b16 %v79
  %v255 = vunpack.c.l.b16 %v80
  %v256 = vunpack.c.l.b16 %v81
  %v257 = vunpack.c.l.b16 %v82
  %v258 = vpack.c.b16 %v255, %v254
  %v259 = vpack.c.b16 %v257, %v256
  %vm262 = vcmask 261120
  %v264 = vsel %vm262, %v218, 0
  %v267 = vsel %vm262, %v219, 0
  %v270 = vsel %vm262, %v220, 0
  %v273 = vsel %vm262, %v221, 0
  %v276 = vsel %vm262, %v222, 0
  %v279 = vsel %vm262, %v223, 0
  %v282 = vsel %vm262, %v224, 0
  %v285 = vsel %vm262, %v225, 0
  %v288 = vsel %vm262, %v226, 0
  %v291 = vsel %vm262, %v227, 0
  %v294 = vsel %vm262, %v228, 0
  %v297 = vsel %vm262, %v229, 0
  %v300 = vsel %vm262, %v230, 0
  %v303 = vsel %vm262, %v231, 0
  %v306 = vsel %vm262, %v232, 0
  %v309 = vsel %vm262, %v233, 0
  %v312 = vsel %vm262, %v234, 0
  %v315 = vsel %vm262, %v235, 0
  %v318 = vsel %vm262, %v236, 0
  %v321 = vsel %vm262, %v237, 0
  %v324 = vsel %vm262, %v238, 0
  %v327 = vsel %vm262, %v239, 0
  %v330 = vsel %vm262, %v240, 0
  %v333 = vsel %vm262, %v241, 0
  %v336 = vsel %vm262, %v242, 0
  %v339 = vsel %vm262, %v243, 0
  %v342 = vsel %vm262, %v244, 0
  %v345 = vsel %vm262, %v245, 0
  %v348 = vsel %vm262, %v246, 0
  %v351 = vsel %vm262, %v247, 0
  %v354 = vsel %vm262, %v248, 0
  %v357 = vsel %vm262, %v249, 0
  %359 = vmatprep.subr.bf16.mxu0 0
  %360 = vmatpush1.bf16.msra.mxu0 %v258
  %361 = vmatprep.subr.bf16.mxu0 0
  %362 = vmatpush1.bf16.msra.mxu0 %v259
  %363 = vmatprep.subr.bf16.mxu0 0
  %364 = vmatpush1.bf16.msra.mxu0 0
  %365 = vmatprep.subr.bf16.mxu0 0
  %366 = vmatpush1.bf16.msra.mxu0 0
  %367 = vmatprep.subr.bf16.mxu0 0
  %368 = vmatpush1.bf16.msra.mxu0 0
  %369 = vmatprep.subr.bf16.mxu0 0
  %370 = vmatpush1.bf16.msra.mxu0 0
  %371 = vmatprep.subr.bf16.mxu0 0
  %372 = vmatpush1.bf16.msra.mxu0 0
  %373 = vmatprep.subr.bf16.mxu0 0
  %374 = vmatpush1.bf16.msra.mxu0 0
  %375 = vmatprep.subr.bf16.mxu0 0
  %376 = vmatpush1.bf16.msra.mxu0 0
  %377 = vmatprep.subr.bf16.mxu0 0
  %378 = vmatpush1.bf16.msra.mxu0 0
  %379 = vmatprep.subr.bf16.mxu0 0
  %380 = vmatpush1.bf16.msra.mxu0 0
  %381 = vmatprep.subr.bf16.mxu0 0
  %382 = vmatpush1.bf16.msra.mxu0 0
  %383 = vmatprep.subr.bf16.mxu0 0
  %384 = vmatpush1.bf16.msra.mxu0 0
  %385 = vmatprep.subr.bf16.mxu0 0
  %386 = vmatpush1.bf16.msra.mxu0 0
  %387 = vmatprep.subr.bf16.mxu0 0
  %388 = vmatpush1.bf16.msra.mxu0 0
  %389 = vmatprep.subr.bf16.mxu0 0
  %390 = vmatpush1.bf16.msra.mxu0 0
  %391 = vmatprep.mubr.bf16.mxu0 0
  %392 = vmatmul.mubr.bf16.gmra.mrb[0].mxu0 %v264
  %v393 = vpop.f32.mrb[0].mxu0
  %v394 = vadd.f32 %v88, %v393
  %v395 = vpop.f32.mrb[0].mxu0
  %v396 = vpop.f32.mrb[0].mxu0
  %v397 = vadd.f32 %v88, %v396
  %v398 = vpop.f32.mrb[0].mxu0
  %399 = vmatprep.mubr.bf16.mxu0 0
  %400 = vmatmul.mubr.bf16.gmra.mrb[0].mxu0 %v267
  %v401 = vpop.f32.mrb[0].mxu0
  %v402 = vadd.f32 %v88, %v401
  %v403 = vpop.f32.mrb[0].mxu0
  %v404 = vpop.f32.mrb[0].mxu0
  %v405 = vadd.f32 %v88, %v404
  %v406 = vpop.f32.mrb[0].mxu0
  %407 = vmatprep.mubr.bf16.mxu0 0
  %408 = vmatmul.mubr.bf16.gmra.mrb[0].mxu0 %v270
  %v409 = vpop.f32.mrb[0].mxu0
  %v410 = vadd.f32 %v88, %v409
  %v411 = vpop.f32.mrb[0].mxu0
  %v412 = vpop.f32.mrb[0].mxu0
  %v413 = vadd.f32 %v88, %v412
  %v414 = vpop.f32.mrb[0].mxu0
  %415 = vmatprep.mubr.bf16.mxu0 0
  %416 = vmatmul.mubr.bf16.gmra.mrb[0].mxu0 %v273
  %v417 = vpop.f32.mrb[0].mxu0
  %v418 = vadd.f32 %v88, %v417
  %v419 = vpop.f32.mrb[0].mxu0
  %v420 = vpop.f32.mrb[0].mxu0
  %v421 = vadd.f32 %v88, %v420
  %v422 = vpop.f32.mrb[0].mxu0
  %423 = vmatprep.mubr.bf16.mxu0 0
  %424 = vmatmul.mubr.bf16.gmra.mrb[0].mxu0 %v276
  %v425 = vpop.f32.mrb[0].mxu0
  %v426 = vadd.f32 %v88, %v425
  %v427 = vpop.f32.mrb[0].mxu0
  %v428 = vpop.f32.mrb[0].mxu0
  %v429 = vadd.f32 %v88, %v428
  %v430 = vpop.f32.mrb[0].mxu0
  %431 = vmatprep.mubr.bf16.mxu0 0
  %432 = vmatmul.mubr.bf16.gmra.mrb[0].mxu0 %v279
  %v433 = vpop.f32.mrb[0].mxu0
  %v434 = vadd.f32 %v88, %v433
  %v435 = vpop.f32.mrb[0].mxu0
  %v436 = vpop.f32.mrb[0].mxu0
  %v437 = vadd.f32 %v88, %v436
  %v438 = vpop.f32.mrb[0].mxu0
  %439 = vmatprep.mubr.bf16.mxu0 0
  %440 = vmatmul.mubr.bf16.gmra.mrb[0].mxu0 %v282
  %v441 = vpop.f32.mrb[0].mxu0
  %v442 = vadd.f32 %v88, %v441
  %v443 = vpop.f32.mrb[0].mxu0
  %v444 = vpop.f32.mrb[0].mxu0
  %v445 = vadd.f32 %v88, %v444
  %v446 = vpop.f32.mrb[0].mxu0
  %447 = vmatprep.mubr.bf16.mxu0 0
  %448 = vmatmul.mubr.bf16.gmra.mrb[0].mxu0 %v285
  %v449 = vpop.f32.mrb[0].mxu0
  %v450 = vadd.f32 %v88, %v449
  %v451 = vpop.f32.mrb[0].mxu0
  %v452 = vpop.f32.mrb[0].mxu0
  %v453 = vadd.f32 %v88, %v452
  %v454 = vpop.f32.mrb[0].mxu0
  %455 = vmatprep.mubr.bf16.mxu0 0
  %456 = vmatmul.mubr.bf16.gmra.mrb[0].mxu0 %v288
  %v457 = vpop.f32.mrb[0].mxu0
  %v458 = vadd.f32 %v88, %v457
  %v459 = vpop.f32.mrb[0].mxu0
  %v460 = vpop.f32.mrb[0].mxu0
  %v461 = vadd.f32 %v88, %v460
  %v462 = vpop.f32.mrb[0].mxu0
  %463 = vmatprep.mubr.bf16.mxu0 0
  %464 = vmatmul.mubr.bf16.gmra.mrb[0].mxu0 %v291
  %v465 = vpop.f32.mrb[0].mxu0
  %v466 = vadd.f32 %v88, %v465
  %v467 = vpop.f32.mrb[0].mxu0
  %v468 = vpop.f32.mrb[0].mxu0
  %v469 = vadd.f32 %v88, %v468
  %v470 = vpop.f32.mrb[0].mxu0
  %471 = vmatprep.mubr.bf16.mxu0 0
  %472 = vmatmul.mubr.bf16.gmra.mrb[0].mxu0 %v294
  %v473 = vpop.f32.mrb[0].mxu0
  %v474 = vadd.f32 %v88, %v473
  %v475 = vpop.f32.mrb[0].mxu0
  %v476 = vpop.f32.mrb[0].mxu0
  %v477 = vadd.f32 %v88, %v476
  %v478 = vpop.f32.mrb[0].mxu0
  %479 = vmatprep.mubr.bf16.mxu0 0
  %480 = vmatmul.mubr.bf16.gmra.mrb[0].mxu0 %v297
  %v481 = vpop.f32.mrb[0].mxu0
  %v482 = vadd.f32 %v88, %v481
  %v483 = vpop.f32.mrb[0].mxu0
  %v484 = vpop.f32.mrb[0].mxu0
  %v485 = vadd.f32 %v88, %v484
  %v486 = vpop.f32.mrb[0].mxu0
  %487 = vmatprep.mubr.bf16.mxu0 0
  %488 = vmatmul.mubr.bf16.gmra.mrb[0].mxu0 %v300
  %v489 = vpop.f32.mrb[0].mxu0
  %v490 = vadd.f32 %v88, %v489
  %v491 = vpop.f32.mrb[0].mxu0
  %v492 = vpop.f32.mrb[0].mxu0
  %v493 = vadd.f32 %v88, %v492
  %v494 = vpop.f32.mrb[0].mxu0
  %495 = vmatprep.mubr.bf16.mxu0 0
  %496 = vmatmul.mubr.bf16.gmra.mrb[0].mxu0 %v303
  %v497 = vpop.f32.mrb[0].mxu0
  %v498 = vadd.f32 %v88, %v497
  %v499 = vpop.f32.mrb[0].mxu0
  %v500 = vpop.f32.mrb[0].mxu0
  %v501 = vadd.f32 %v88, %v500
  %v502 = vpop.f32.mrb[0].mxu0
  %503 = vmatprep.mubr.bf16.mxu0 0
  %504 = vmatmul.mubr.bf16.gmra.mrb[0].mxu0 %v306
  %v505 = vpop.f32.mrb[0].mxu0
  %v506 = vadd.f32 %v88, %v505
  %v507 = vpop.f32.mrb[0].mxu0
  %v508 = vpop.f32.mrb[0].mxu0
  %v509 = vadd.f32 %v88, %v508
  %v510 = vpop.f32.mrb[0].mxu0
  %511 = vmatprep.mubr.bf16.mxu0 0
  %512 = vmatmul.mubr.bf16.gmra.mrb[0].mxu0 %v309
  %v513 = vpop.f32.mrb[0].mxu0
  %v514 = vadd.f32 %v88, %v513
  %v515 = vpop.f32.mrb[0].mxu0
  %v516 = vpop.f32.mrb[0].mxu0
  %v517 = vadd.f32 %v88, %v516
  %v518 = vpop.f32.mrb[0].mxu0
  %519 = vmatprep.mubr.bf16.mxu0 0
  %520 = vmatmul.mubr.bf16.gmra.mrb[0].mxu0 %v312
  %v521 = vpop.f32.mrb[0].mxu0
  %v522 = vadd.f32 %v88, %v521
  %v523 = vpop.f32.mrb[0].mxu0
  %v524 = vpop.f32.mrb[0].mxu0
  %v525 = vadd.f32 %v88, %v524
  %v526 = vpop.f32.mrb[0].mxu0
  %527 = vmatprep.mubr.bf16.mxu0 0
  %528 = vmatmul.mubr.bf16.gmra.mrb[0].mxu0 %v315
  %v529 = vpop.f32.mrb[0].mxu0
  %v530 = vadd.f32 %v88, %v529
  %v531 = vpop.f32.mrb[0].mxu0
  %v532 = vpop.f32.mrb[0].mxu0
  %v533 = vadd.f32 %v88, %v532
  %v534 = vpop.f32.mrb[0].mxu0
  %535 = vmatprep.mubr.bf16.mxu0 0
  %536 = vmatmul.mubr.bf16.gmra.mrb[0].mxu0 %v318
  %v537 = vpop.f32.mrb[0].mxu0
  %v538 = vadd.f32 %v88, %v537
  %v539 = vpop.f32.mrb[0].mxu0
  %v540 = vpop.f32.mrb[0].mxu0
  %v541 = vadd.f32 %v88, %v540
  %v542 = vpop.f32.mrb[0].mxu0
  %543 = vmatprep.mubr.bf16.mxu0 0
  %544 = vmatmul.mubr.bf16.gmra.mrb[0].mxu0 %v321
  %v545 = vpop.f32.mrb[0].mxu0
  %v546 = vadd.f32 %v88, %v545
  %v547 = vpop.f32.mrb[0].mxu0
  %v548 = vpop.f32.mrb[0].mxu0
  %v549 = vadd.f32 %v88, %v548
  %v550 = vpop.f32.mrb[0].mxu0
  %551 = vmatprep.mubr.bf16.mxu0 0
  %552 = vmatmul.mubr.bf16.gmra.mrb[0].mxu0 %v324
  %v553 = vpop.f32.mrb[0].mxu0
  %v554 = vadd.f32 %v88, %v553
  %v555 = vpop.f32.mrb[0].mxu0
  %v556 = vpop.f32.mrb[0].mxu0
  %v557 = vadd.f32 %v88, %v556
  %v558 = vpop.f32.mrb[0].mxu0
  %559 = vmatprep.mubr.bf16.mxu0 0
  %560 = vmatmul.mubr.bf16.gmra.mrb[0].mxu0 %v327
  %v561 = vpop.f32.mrb[0].mxu0
  %v562 = vadd.f32 %v88, %v561
  %v563 = vpop.f32.mrb[0].mxu0
  %v564 = vpop.f32.mrb[0].mxu0
  %v565 = vadd.f32 %v88, %v564
  %v566 = vpop.f32.mrb[0].mxu0
  %567 = vmatprep.mubr.bf16.mxu0 0
  %568 = vmatmul.mubr.bf16.gmra.mrb[0].mxu0 %v330
  %v569 = vpop.f32.mrb[0].mxu0
  %v570 = vadd.f32 %v88, %v569
  %v571 = vpop.f32.mrb[0].mxu0
  %v572 = vpop.f32.mrb[0].mxu0
  %v573 = vadd.f32 %v88, %v572
  %v574 = vpop.f32.mrb[0].mxu0
  %575 = vmatprep.mubr.bf16.mxu0 0
  %576 = vmatmul.mubr.bf16.gmra.mrb[0].mxu0 %v333
  %v577 = vpop.f32.mrb[0].mxu0
  %v578 = vadd.f32 %v88, %v577
  %v579 = vpop.f32.mrb[0].mxu0
  %v580 = vpop.f32.mrb[0].mxu0
  %v581 = vadd.f32 %v88, %v580
  %v582 = vpop.f32.mrb[0].mxu0
  %583 = vmatprep.mubr.bf16.mxu0 0
  %584 = vmatmul.mubr.bf16.gmra.mrb[0].mxu0 %v336
  %v585 = vpop.f32.mrb[0].mxu0
  %v586 = vadd.f32 %v88, %v585
  %v587 = vpop.f32.mrb[0].mxu0
  %v588 = vpop.f32.mrb[0].mxu0
  %v589 = vadd.f32 %v88, %v588
  %v590 = vpop.f32.mrb[0].mxu0
  %591 = vmatprep.mubr.bf16.mxu0 0
  %592 = vmatmul.mubr.bf16.gmra.mrb[0].mxu0 %v339
  %v593 = vpop.f32.mrb[0].mxu0
  %v594 = vadd.f32 %v88, %v593
  %v595 = vpop.f32.mrb[0].mxu0
  %v596 = vpop.f32.mrb[0].mxu0
  %v597 = vadd.f32 %v88, %v596
  %v598 = vpop.f32.mrb[0].mxu0
  %599 = vmatprep.mubr.bf16.mxu0 0
  %600 = vmatmul.mubr.bf16.gmra.mrb[0].mxu0 %v342
  %v601 = vpop.f32.mrb[0].mxu0
  %v602 = vadd.f32 %v88, %v601
  %v603 = vpop.f32.mrb[0].mxu0
  %v604 = vpop.f32.mrb[0].mxu0
  %v605 = vadd.f32 %v88, %v604
  %v606 = vpop.f32.mrb[0].mxu0
  %607 = vmatprep.mubr.bf16.mxu0 0
  %608 = vmatmul.mubr.bf16.gmra.mrb[0].mxu0 %v345
  %v609 = vpop.f32.mrb[0].mxu0
  %v610 = vadd.f32 %v88, %v609
  %v611 = vpop.f32.mrb[0].mxu0
  %v612 = vpop.f32.mrb[0].mxu0
  %v613 = vadd.f32 %v88, %v612
  %v614 = vpop.f32.mrb[0].mxu0
  %615 = vmatprep.mubr.bf16.mxu0 0
  %616 = vmatmul.mubr.bf16.gmra.mrb[0].mxu0 %v348
  %v617 = vpop.f32.mrb[0].mxu0
  %v618 = vadd.f32 %v88, %v617
  %v619 = vpop.f32.mrb[0].mxu0
  %v620 = vpop.f32.mrb[0].mxu0
  %v621 = vadd.f32 %v88, %v620
  %v622 = vpop.f32.mrb[0].mxu0
  %623 = vmatprep.mubr.bf16.mxu0 0
  %624 = vmatmul.mubr.bf16.gmra.mrb[0].mxu0 %v351
  %v625 = vpop.f32.mrb[0].mxu0
  %v626 = vadd.f32 %v88, %v625
  %v627 = vpop.f32.mrb[0].mxu0
  %v628 = vpop.f32.mrb[0].mxu0
  %v629 = vadd.f32 %v88, %v628
  %v630 = vpop.f32.mrb[0].mxu0
  %631 = vmatprep.mubr.bf16.mxu0 0
  %632 = vmatmul.mubr.bf16.gmra.mrb[0].mxu0 %v354
  %v633 = vpop.f32.mrb[0].mxu0
  %v634 = vadd.f32 %v88, %v633
  %v635 = vpop.f32.mrb[0].mxu0
  %v636 = vpop.f32.mrb[0].mxu0
  %v637 = vadd.f32 %v88, %v636
  %v638 = vpop.f32.mrb[0].mxu0
  %639 = vmatprep.mubr.bf16.mxu0 0
  %640 = vmatmul.mubr.bf16.gmra.mrb[0].mxu0 %v357
  %v641 = vpop.f32.mrb[0].mxu0
  %v642 = vadd.f32 %v88, %v641
  %v643 = vpop.f32.mrb[0].mxu0
  %v644 = vpop.f32.mrb[0].mxu0
  %v645 = vadd.f32 %v88, %v644
  %v646 = vpop.f32.mrb[0].mxu0
  %647 = vdwg.mxu0
  %v648 = vmax.f32 %v394, 0.0
  %v649 = vmax.f32 %v397, 0.0
  %v650 = vmax.f32 %v402, 0.0
  %v651 = vmax.f32 %v405, 0.0
  %v652 = vmax.f32 %v410, 0.0
  %v653 = vmax.f32 %v413, 0.0
  %v654 = vmax.f32 %v418, 0.0
  %v655 = vmax.f32 %v421, 0.0
  %v656 = vmax.f32 %v426, 0.0
  %v657 = vmax.f32 %v429, 0.0
  %v658 = vmax.f32 %v434, 0.0
  %v659 = vmax.f32 %v437, 0.0
  %v660 = vmax.f32 %v442, 0.0
  %v661 = vmax.f32 %v445, 0.0
  %v662 = vmax.f32 %v450, 0.0
  %v663 = vmax.f32 %v453, 0.0
  %v664 = vmax.f32 %v458, 0.0
  %v665 = vmax.f32 %v461, 0.0
  %v666 = vmax.f32 %v466, 0.0
  %v667 = vmax.f32 %v469, 0.0
  %v668 = vmax.f32 %v474, 0.0
  %v669 = vmax.f32 %v477, 0.0
  %v670 = vmax.f32 %v482, 0.0
  %v671 = vmax.f32 %v485, 0.0
  %v672 = vmax.f32 %v490, 0.0
  %v673 = vmax.f32 %v493, 0.0
  %v674 = vmax.f32 %v498, 0.0
  %v675 = vmax.f32 %v501, 0.0
  %v676 = vmax.f32 %v506, 0.0
  %v677 = vmax.f32 %v509, 0.0
  %v678 = vmax.f32 %v514, 0.0
  %v679 = vmax.f32 %v517, 0.0
  %v680 = vmax.f32 %v522, 0.0
  %v681 = vmax.f32 %v525, 0.0
  %v682 = vmax.f32 %v530, 0.0
  %v683 = vmax.f32 %v533, 0.0
  %v684 = vmax.f32 %v538, 0.0
  %v685 = vmax.f32 %v541, 0.0
  %v686 = vmax.f32 %v546, 0.0
  %v687 = vmax.f32 %v549, 0.0
  %v688 = vmax.f32 %v554, 0.0
  %v689 = vmax.f32 %v557, 0.0
  %v690 = vmax.f32 %v562, 0.0
  %v691 = vmax.f32 %v565, 0.0
  %v692 = vmax.f32 %v570, 0.0
  %v693 = vmax.f32 %v573, 0.0
  %v694 = vmax.f32 %v578, 0.0
  %v695 = vmax.f32 %v581, 0.0
  %v696 = vmax.f32 %v586, 0.0
  %v697 = vmax.f32 %v589, 0.0
  %v698 = vmax.f32 %v594, 0.0
  %v699 = vmax.f32 %v597, 0.0
  %v700 = vmax.f32 %v602, 0.0
  %v701 = vmax.f32 %v605, 0.0
  %v702 = vmax.f32 %v610, 0.0
  %v703 = vmax.f32 %v613, 0.0
  %v704 = vmax.f32 %v618, 0.0
  %v705 = vmax.f32 %v621, 0.0
  %v706 = vmax.f32 %v626, 0.0
  %v707 = vmax.f32 %v629, 0.0
  %v708 = vmax.f32 %v634, 0.0
  %v709 = vmax.f32 %v637, 0.0
  %v710 = vmax.f32 %v642, 0.0
  %v711 = vmax.f32 %v645, 0.0
  %vm712 = vcmask 130048
  %713 = vst.msk [vmem:[%s3] sm:$0xff] %vm712, %v648
  %714 = vst.msk [vmem:[%s3 + $0x8] sm:$0xff] %vm712, %v649
  %715 = vst.msk [vmem:[%s3 + $0x10] sm:$0xff] %vm712, %v650
  %716 = vst.msk [vmem:[%s3 + $0x18] sm:$0xff] %vm712, %v651
  %717 = vst.msk [vmem:[%s3 + $0x20] sm:$0xff] %vm712, %v652
  %718 = vst.msk [vmem:[%s3 + $0x28] sm:$0xff] %vm712, %v653
  %719 = vst.msk [vmem:[%s3 + $0x30] sm:$0xff] %vm712, %v654
  %720 = vst.msk [vmem:[%s3 + $0x38] sm:$0xff] %vm712, %v655
  %721 = vst.msk [vmem:[%s3 + $0x40] sm:$0xff] %vm712, %v656
  %722 = vst.msk [vmem:[%s3 + $0x48] sm:$0xff] %vm712, %v657
  %723 = vst.msk [vmem:[%s3 + $0x50] sm:$0xff] %vm712, %v658
  %724 = vst.msk [vmem:[%s3 + $0x58] sm:$0xff] %vm712, %v659
  %725 = vst.msk [vmem:[%s3 + $0x60] sm:$0xff] %vm712, %v660
  %726 = vst.msk [vmem:[%s3 + $0x68] sm:$0xff] %vm712, %v661
  %727 = vst.msk [vmem:[%s3 + $0x70] sm:$0xff] %vm712, %v662
  %728 = vst.msk [vmem:[%s3 + $0x78] sm:$0xff] %vm712, %v663
  %729 = vst.msk [vmem:[%s3 + $0x80] sm:$0xff] %vm712, %v664
  %730 = vst.msk [vmem:[%s3 + $0x88] sm:$0xff] %vm712, %v665
  %731 = vst.msk [vmem:[%s3 + $0x90] sm:$0xff] %vm712, %v666
  %732 = vst.msk [vmem:[%s3 + $0x98] sm:$0xff] %vm712, %v667
  %733 = vst.msk [vmem:[%s3 + $0xa0] sm:$0xff] %vm712, %v668
  %734 = vst.msk [vmem:[%s3 + $0xa8] sm:$0xff] %vm712, %v669
  %735 = vst.msk [vmem:[%s3 + $0xb0] sm:$0xff] %vm712, %v670
  %736 = vst.msk [vmem:[%s3 + $0xb8] sm:$0xff] %vm712, %v671
  %737 = vst.msk [vmem:[%s3 + $0xc0] sm:$0xff] %vm712, %v672
  %738 = vst.msk [vmem:[%s3 + $0xc8] sm:$0xff] %vm712, %v673
  %739 = vst.msk [vmem:[%s3 + $0xd0] sm:$0xff] %vm712, %v674
  %740 = vst.msk [vmem:[%s3 + $0xd8] sm:$0xff] %vm712, %v675
  %741 = vst.msk [vmem:[%s3 + $0xe0] sm:$0xff] %vm712, %v676
  %742 = vst.msk [vmem:[%s3 + $0xe8] sm:$0xff] %vm712, %v677
  %743 = vst.msk [vmem:[%s3 + $0xf0] sm:$0xff] %vm712, %v678
  %744 = vst.msk [vmem:[%s3 + $0xf8] sm:$0xff] %vm712, %v679
  %745 = vst.msk [vmem:[%s3 + $0x100] sm:$0xff] %vm712, %v680
  %746 = vst.msk [vmem:[%s3 + $0x108] sm:$0xff] %vm712, %v681
  %747 = vst.msk [vmem:[%s3 + $0x110] sm:$0xff] %vm712, %v682
  %748 = vst.msk [vmem:[%s3 + $0x118] sm:$0xff] %vm712, %v683
  %749 = vst.msk [vmem:[%s3 + $0x120] sm:$0xff] %vm712, %v684
  %750 = vst.msk [vmem:[%s3 + $0x128] sm:$0xff] %vm712, %v685
  %751 = vst.msk [vmem:[%s3 + $0x130] sm:$0xff] %vm712, %v686
  %752 = vst.msk [vmem:[%s3 + $0x138] sm:$0xff] %vm712, %v687
  %753 = vst.msk [vmem:[%s3 + $0x140] sm:$0xff] %vm712, %v688
  %754 = vst.msk [vmem:[%s3 + $0x148] sm:$0xff] %vm712, %v689
  %755 = vst.msk [vmem:[%s3 + $0x150] sm:$0xff] %vm712, %v690
  %756 = vst.msk [vmem:[%s3 + $0x158] sm:$0xff] %vm712, %v691
  %757 = vst.msk [vmem:[%s3 + $0x160] sm:$0xff] %vm712, %v692
  %758 = vst.msk [vmem:[%s3 + $0x168] sm:$0xff] %vm712, %v693
  %759 = vst.msk [vmem:[%s3 + $0x170] sm:$0xff] %vm712, %v694
  %760 = vst.msk [vmem:[%s3 + $0x178] sm:$0xff] %vm712, %v695
  %761 = vst.msk [vmem:[%s3 + $0x180] sm:$0xff] %vm712, %v696
  %762 = vst.msk [vmem:[%s3 + $0x188] sm:$0xff] %vm712, %v697
  %763 = vst.msk [vmem:[%s3 + $0x190] sm:$0xff] %vm712, %v698
  %764 = vst.msk [vmem:[%s3 + $0x198] sm:$0xff] %vm712, %v699
  %765 = vst.msk [vmem:[%s3 + $0x1a0] sm:$0xff] %vm712, %v700
  %766 = vst.msk [vmem:[%s3 + $0x1a8] sm:$0xff] %vm712, %v701
  %767 = vst.msk [vmem:[%s3 + $0x1b0] sm:$0xff] %vm712, %v702
  %768 = vst.msk [vmem:[%s3 + $0x1b8] sm:$0xff] %vm712, %v703
  %769 = vst.msk [vmem:[%s3 + $0x1c0] sm:$0xff] %vm712, %v704
  %770 = vst.msk [vmem:[%s3 + $0x1c8] sm:$0xff] %vm712, %v705
  %771 = vst.msk [vmem:[%s3 + $0x1d0] sm:$0xff] %vm712, %v706
  %772 = vst.msk [vmem:[%s3 + $0x1d8] sm:$0xff] %vm712, %v707
  %773 = vst.msk [vmem:[%s3 + $0x1e0] sm:$0xff] %vm712, %v708
  %774 = vst.msk [vmem:[%s3 + $0x1e8] sm:$0xff] %vm712, %v709
  %775 = vst.msk [vmem:[%s3 + $0x1f0] sm:$0xff] %vm712, %v710
  %776 = vst.msk [vmem:[%s3 + $0x1f8] sm:$0xff] %vm712, %v711
  // Predicated region
  $region14: #{easpp_decoder5_forward.7} parent=0 // pred_check
    _
  $region15: #{easpp_decoder5_forward.7} parent=0 // pred_check_branch
    %778 = sbr.rel (0) target = $region17
  $region16: #{easpp_decoder5_forward.7} parent=0 // pred_region
    _
  $region17: #{easpp_decoder5_forward.7} parent=0 // pred_fallthru
    _
  // Predicated region
  $region18: #{easpp_decoder5_forward.7} parent=0 // pred_check
    _
  $region19: #{easpp_decoder5_forward.7} parent=0 // pred_check_branch
    %780 = sbr.rel (0) target = $region21
  $region20: #{easpp_decoder5_forward.7} parent=0 // pred_region
    _
  $region21: #{easpp_decoder5_forward.7} parent=0 // pred_fallthru
    _

// kernel: easpp_decoder5_forward.9
$region0: #{easpp_decoder5_forward.9}
  #allocation0 [shape = 'u32[]', space=smem, size = 0x4, offset = 0x4, fixed_abs, tag = 'smem constant byte address 0x4 - core index']
  #allocation1 [shape = 'u32[144,128]{1,0:T(1,128)}', space=vmem, size = 0x12000, scoped, tag = 'internal scratch']
  %s0 = inlined_call_operand.vmem [shape: bf16[2,1,18,18,64], index: 0, kind: input, shape index: {}]
  %s1 = inlined_call_operand.vmem [shape: bf16[2,1,18,18,16], index: 1, kind: input, shape index: {}]
  %s2 = inlined_call_operand.vmem [shape: bf16[9,64,64], index: 2, kind: input, shape index: {}]
  %s3 = inlined_call_operand.vmem [shape: bf16[9,16,64], index: 3, kind: input, shape index: {}]
  %s4 = inlined_call_operand.vmem [shape: f32[1,64], index: 4, kind: input, shape index: {}]
  %s5 = inlined_call_operand.vmem [shape: bf16[64,5], index: 5, kind: input, shape index: {}]
  %s6 = inlined_call_operand.vmem [shape: f32[1,5], index: 6, kind: input, shape index: {}]
  %s7 = inlined_call_operand.vmem [shape: f32[2,1,16,16,5], index: 7, kind: output, shape index: {}]
  %s8 = sld [smem:[#allocation0]]
  $region61: #{easpp_decoder5_forward.9} parent=0
    _
  %s10 = ssub.s32 1, %s8
  %s11 = scalar_select 0, %s10, %s8
  loop: start=0, step=1, limit=4
  $region2: #{easpp_decoder5_forward.9} parent=0 // loop_pre_header
    _
  $region3: #{easpp_decoder5_forward.9} parent=0 // loop_header
    %s13 = sphi 0, %s17
    %p14 = scmp.ge.s32.totalorder %s13, 4
    %s20 = sphi 0, %s32
    %s21 = sphi 0, %s28
    %s22 = sphi 0, %s20
    %s23 = sphi 0, %s21
    %s24 = sphi 0, %s22
    %s25 = sphi 0, %s23
    %s37 = sphi 0, %s39
    %s40 = sphi 0, %s37
    %s41 = sphi 0, %s40
    %s57 = sphi 0, %s41
    %s65 = sphi 0, %s67
    %s68 = sphi 0, %s65
    %s69 = sphi 0, %s68
    %s85 = sphi 0, %s69
    %s89 = sphi 0, %s89
    %s91 = sphi 0, %s89
    %s92 = sphi 0, %s91
    %s106 = sphi 0, %s92
    %s110 = sphi 0, %s110
    %s112 = sphi 0, %s110
    %s113 = sphi 0, %s112
    %s127 = sphi 0, %s113
    %s131 = sphi 0, %s131
    %s133 = sphi 0, %s131
    %s134 = sphi 0, %s133
    %s148 = sphi 0, %s134
    %s152 = sphi 0, %s152
    %s154 = sphi 0, %s152
    %s155 = sphi 0, %s154
    %s169 = sphi 0, %s155
    %s173 = sphi 0, %s173
    %s175 = sphi 0, %s173
    %s176 = sphi 0, %s175
    %s190 = sphi 0, %s176
    %s198 = sphi 0, %s200
    %s201 = sphi 0, %s198
    %s202 = sphi 0, %s201
    %s218 = sphi 0, %s202
  $region4: #{easpp_decoder5_forward.9} parent=0 // loop_header_branch
    %16 = sbr.rel (%p14) target = $region8
  $region5: #{easpp_decoder5_forward.9} parent=0 // loop_body
    %s18 = ssub.s32 %s13, 1
    %s19 = ssub.s32 %s13, 2
    %s26 = sadd.s32 1, %s21
    %p27 = scmp.ge.s32.totalorder %s26, 1
    %s28 = scalar_select %p27, 0, %s26
    %s29 = sadd.s32 1, %s20
    %s30 = scalar_select %p27, %s29, %s20
    %p31 = scmp.ge.s32.totalorder %s30, 2
    %s32 = scalar_select %p31, 0, %s30
    %s33 = ssub.s32 %s20, %s32
    %s34 = ssub.s32 %s21, %s28
    %s35 = sor.u32 %s33, %s34
    %p36 = scmp.eq.s32.totalorder %s35, 0
    %s38 = sadd.s32 %s37, 1
    %s39 = scalar_select %p36, %s37, %s38
    %p42 = pneg %p36
    %p43 = scmp.eq.s32.totalorder %s13, 1
    %p44 = por %p42, %p43
    %p45 = scmp.ne.s32.totalorder %s37, %s40
    %p46 = scmp.eq.s32.totalorder %s13, 0
    %p47 = por %p45, %p46
    %p48 = scmp.ne.s32.totalorder %s37, %s40
    %p49 = scmp.eq.s32.totalorder %s18, 1
    %p50 = por %p48, %p49
    %p51 = scmp.ne.s32.totalorder %s40, %s41
    %p52 = scmp.eq.s32.totalorder %s18, 0
    %p53 = por %p51, %p52
    %p54 = scmp.ne.s32.totalorder %s40, %s41
    %p55 = scmp.eq.s32.totalorder %s19, 1
    %p56 = por %p54, %p55
    %p58 = scmp.ne.s32.totalorder %s41, %s57
    %p59 = scmp.eq.s32.totalorder %s19, 0
    %p60 = por %p58, %p59
    %s61 = ssub.s32 %s20, %s32
    %s62 = ssub.s32 %s21, %s28
    %s63 = sor.u32 %s61, %s62
    %p64 = scmp.eq.s32.totalorder %s63, 0
    %s66 = sadd.s32 %s65, 1
    %s67 = scalar_select %p64, %s65, %s66
    %p70 = pneg %p64
    %p71 = scmp.eq.s32.totalorder %s13, 1
    %p72 = por %p70, %p71
    %p73 = scmp.ne.s32.totalorder %s65, %s68
    %p74 = scmp.eq.s32.totalorder %s13, 0
    %p75 = por %p73, %p74
    %p76 = scmp.ne.s32.totalorder %s65, %s68
    %p77 = scmp.eq.s32.totalorder %s18, 1
    %p78 = por %p76, %p77
    %p79 = scmp.ne.s32.totalorder %s68, %s69
    %p80 = scmp.eq.s32.totalorder %s18, 0
    %p81 = por %p79, %p80
    %p82 = scmp.ne.s32.totalorder %s68, %s69
    %p83 = scmp.eq.s32.totalorder %s19, 1
    %p84 = por %p82, %p83
    %p86 = scmp.ne.s32.totalorder %s69, %s85
    %p87 = scmp.eq.s32.totalorder %s19, 0
    %p88 = por %p86, %p87
    %s90 = sadd.s32 %s89, 1
    %p93 = scmp.eq.s32.totalorder %s13, 1
    %p94 = scmp.ne.s32.totalorder %s89, %s91
    %p95 = scmp.eq.s32.totalorder %s13, 0
    %p96 = por %p94, %p95
    %p97 = scmp.ne.s32.totalorder %s89, %s91
    %p98 = scmp.eq.s32.totalorder %s18, 1
    %p99 = por %p97, %p98
    %p100 = scmp.ne.s32.totalorder %s91, %s92
    %p101 = scmp.eq.s32.totalorder %s18, 0
    %p102 = por %p100, %p101
    %p103 = scmp.ne.s32.totalorder %s91, %s92
    %p104 = scmp.eq.s32.totalorder %s19, 1
    %p105 = por %p103, %p104
    %p107 = scmp.ne.s32.totalorder %s92, %s106
    %p108 = scmp.eq.s32.totalorder %s19, 0
    %p109 = por %p107, %p108
    %s111 = sadd.s32 %s110, 1
    %p114 = scmp.eq.s32.totalorder %s13, 1
    %p115 = scmp.ne.s32.totalorder %s110, %s112
    %p116 = scmp.eq.s32.totalorder %s13, 0
    %p117 = por %p115, %p116
    %p118 = scmp.ne.s32.totalorder %s110, %s112
    %p119 = scmp.eq.s32.totalorder %s18, 1
    %p120 = por %p118, %p119
    %p121 = scmp.ne.s32.totalorder %s112, %s113
    %p122 = scmp.eq.s32.totalorder %s18, 0
    %p123 = por %p121, %p122
    %p124 = scmp.ne.s32.totalorder %s112, %s113
    %p125 = scmp.eq.s32.totalorder %s19, 1
    %p126 = por %p124, %p125
    %p128 = scmp.ne.s32.totalorder %s113, %s127
    %p129 = scmp.eq.s32.totalorder %s19, 0
    %p130 = por %p128, %p129
    %s132 = sadd.s32 %s131, 1
    %p135 = scmp.eq.s32.totalorder %s13, 1
    %p136 = scmp.ne.s32.totalorder %s131, %s133
    %p137 = scmp.eq.s32.totalorder %s13, 0
    %p138 = por %p136, %p137
    %p139 = scmp.ne.s32.totalorder %s131, %s133
    %p140 = scmp.eq.s32.totalorder %s18, 1
    %p141 = por %p139, %p140
    %p142 = scmp.ne.s32.totalorder %s133, %s134
    %p143 = scmp.eq.s32.totalorder %s18, 0
    %p144 = por %p142, %p143
    %p145 = scmp.ne.s32.totalorder %s133, %s134
    %p146 = scmp.eq.s32.totalorder %s19, 1
    %p147 = por %p145, %p146
    %p149 = scmp.ne.s32.totalorder %s134, %s148
    %p150 = scmp.eq.s32.totalorder %s19, 0
    %p151 = por %p149, %p150
    %s153 = sadd.s32 %s152, 1
    %p156 = scmp.eq.s32.totalorder %s13, 1
    %p157 = scmp.ne.s32.totalorder %s152, %s154
    %p158 = scmp.eq.s32.totalorder %s13, 0
    %p159 = por %p157, %p158
    %p160 = scmp.ne.s32.totalorder %s152, %s154
    %p161 = scmp.eq.s32.totalorder %s18, 1
    %p162 = por %p160, %p161
    %p163 = scmp.ne.s32.totalorder %s154, %s155
    %p164 = scmp.eq.s32.totalorder %s18, 0
    %p165 = por %p163, %p164
    %p166 = scmp.ne.s32.totalorder %s154, %s155
    %p167 = scmp.eq.s32.totalorder %s19, 1
    %p168 = por %p166, %p167
    %p170 = scmp.ne.s32.totalorder %s155, %s169
    %p171 = scmp.eq.s32.totalorder %s19, 0
    %p172 = por %p170, %p171
    %s174 = sadd.s32 %s173, 1
    %p177 = scmp.eq.s32.totalorder %s13, 1
    %p178 = scmp.ne.s32.totalorder %s173, %s175
    %p179 = scmp.eq.s32.totalorder %s13, 0
    %p180 = por %p178, %p179
    %p181 = scmp.ne.s32.totalorder %s173, %s175
    %p182 = scmp.eq.s32.totalorder %s18, 1
    %p183 = por %p181, %p182
    %p184 = scmp.ne.s32.totalorder %s175, %s176
    %p185 = scmp.eq.s32.totalorder %s18, 0
    %p186 = por %p184, %p185
    %p187 = scmp.ne.s32.totalorder %s175, %s176
    %p188 = scmp.eq.s32.totalorder %s19, 1
    %p189 = por %p187, %p188
    %p191 = scmp.ne.s32.totalorder %s176, %s190
    %p192 = scmp.eq.s32.totalorder %s19, 0
    %p193 = por %p191, %p192
    %s194 = ssub.s32 %s20, %s32
    %s195 = ssub.s32 %s21, %s28
    %s196 = sor.u32 %s194, %s195
    %p197 = scmp.eq.s32.totalorder %s196, 0
    %s199 = sadd.s32 %s198, 1
    %s200 = scalar_select %p197, %s198, %s199
    %p203 = pneg %p197
    %p204 = scmp.eq.s32.totalorder %s13, 1
    %p205 = por %p203, %p204
    %p206 = scmp.ne.s32.totalorder %s198, %s201
    %p207 = scmp.eq.s32.totalorder %s13, 0
    %p208 = por %p206, %p207
    %p209 = scmp.ne.s32.totalorder %s198, %s201
    %p210 = scmp.eq.s32.totalorder %s18, 1
    %p211 = por %p209, %p210
    %p212 = scmp.ne.s32.totalorder %s201, %s202
    %p213 = scmp.eq.s32.totalorder %s18, 0
    %p214 = por %p212, %p213
    %p215 = scmp.ne.s32.totalorder %s201, %s202
    %p216 = scmp.eq.s32.totalorder %s19, 1
    %p217 = por %p215, %p216
    %p219 = scmp.ne.s32.totalorder %s202, %s218
    %p220 = scmp.eq.s32.totalorder %s19, 0
    %p221 = por %p219, %p220
    %p222 = scmp.le.s32.totalorder 1, %s13
    %p223 = scmp.lt.s32.totalorder %s13, 3
    %p224 = pnand %p222, %p223
    %p225 = pneg %p224
    // Predicated region
    $region9: #{easpp_decoder5_forward.9} parent=5 // pred_check
      _
    $region10: #{easpp_decoder5_forward.9} parent=5 // pred_check_branch
      %227 = sbr.rel (%p224) target = $region12
    $region11: #{easpp_decoder5_forward.9} parent=5 // pred_region
      %s228 = ssub.s32 %s13, 1
      // Predicated region
      $region13: #{easpp_decoder5_forward.9} parent=11 // pred_check
        %p229 = pneg %p102
      $region14: #{easpp_decoder5_forward.9} parent=11 // pred_check_branch
        %231 = sbr.rel (%p229) target = $region16
      $region15: #{easpp_decoder5_forward.9} parent=11 // pred_region
        _
      $region16: #{easpp_decoder5_forward.9} parent=11 // pred_fallthru
        _
      // Predicated region
      $region17: #{easpp_decoder5_forward.9} parent=11 // pred_check
        %p232 = pneg %p123
      $region18: #{easpp_decoder5_forward.9} parent=11 // pred_check_branch
        %234 = sbr.rel (%p232) target = $region20
      $region19: #{easpp_decoder5_forward.9} parent=11 // pred_region
        _
      $region20: #{easpp_decoder5_forward.9} parent=11 // pred_fallthru
        _
      // Predicated region
      $region21: #{easpp_decoder5_forward.9} parent=11 // pred_check
        %p235 = pneg %p144
      $region22: #{easpp_decoder5_forward.9} parent=11 // pred_check_branch
        %237 = sbr.rel (%p235) target = $region24
      $region23: #{easpp_decoder5_forward.9} parent=11 // pred_region
        _
      $region24: #{easpp_decoder5_forward.9} parent=11 // pred_fallthru
        _
      // Predicated region
      $region25: #{easpp_decoder5_forward.9} parent=11 // pred_check
        %p238 = pneg %p165
      $region26: #{easpp_decoder5_forward.9} parent=11 // pred_check_branch
        %240 = sbr.rel (%p238) target = $region28
      $region27: #{easpp_decoder5_forward.9} parent=11 // pred_region
        _
      $region28: #{easpp_decoder5_forward.9} parent=11 // pred_fallthru
        _
      // Predicated region
      $region29: #{easpp_decoder5_forward.9} parent=11 // pred_check
        %p241 = pneg %p186
      $region30: #{easpp_decoder5_forward.9} parent=11 // pred_check_branch
        %243 = sbr.rel (%p241) target = $region32
      $region31: #{easpp_decoder5_forward.9} parent=11 // pred_region
        _
      $region32: #{easpp_decoder5_forward.9} parent=11 // pred_fallthru
        _
    $region12: #{easpp_decoder5_forward.9} parent=5 // pred_fallthru
      _
    %p244 = scmp.lt.s32.totalorder %s13, 2
    // Predicated region
    $region33: #{easpp_decoder5_forward.9} parent=5 // pred_check
      %p245 = pneg %p244
    $region34: #{easpp_decoder5_forward.9} parent=5 // pred_check_branch
      %247 = sbr.rel (%p245) target = $region36
    $region35: #{easpp_decoder5_forward.9} parent=5 // pred_region
      // Predicated region
      $region37: #{easpp_decoder5_forward.9} parent=35 // pred_check
        %p248 = pneg %p47
      $region38: #{easpp_decoder5_forward.9} parent=35 // pred_check_branch
        %250 = sbr.rel (%p248) target = $region40
      $region39: #{easpp_decoder5_forward.9} parent=35 // pred_region
        %p251 = scmp.lt.s32.totalorder %s20, 1
        %s252 = scalar_select %p251, %s20, 1
        %p253 = scmp.lt.s32.totalorder %s21, 0
        %s254 = scalar_select %p253, %s21, 0
        %s255 = smul.addr %s254, 54
        %s256 = smul.addr %s252, 54
        %s257 = sadd.s32 %s255, %s256
        %s258 = smul.addr %s257, 4
        %s259 = scalar_lea.vmem %s0, %s258
      $region40: #{easpp_decoder5_forward.9} parent=35 // pred_fallthru
        _
      // Predicated region
      $region41: #{easpp_decoder5_forward.9} parent=35 // pred_check
        %p260 = pneg %p75
      $region42: #{easpp_decoder5_forward.9} parent=35 // pred_check_branch
        %262 = sbr.rel (%p260) target = $region44
      $region43: #{easpp_decoder5_forward.9} parent=35 // pred_region
        %p263 = scmp.lt.s32.totalorder %s20, 1
        %s264 = scalar_select %p263, %s20, 1
        %p265 = scmp.lt.s32.totalorder %s21, 0
        %s266 = scalar_select %p265, %s21, 0
        %s267 = smul.addr %s266, 54
        %s268 = smul.addr %s264, 54
        %s269 = sadd.s32 %s267, %s268
        %s270 = smul.addr %s269, 4
        %s271 = scalar_lea.vmem %s1, %s270
      $region44: #{easpp_decoder5_forward.9} parent=35 // pred_fallthru
        _
    $region36: #{easpp_decoder5_forward.9} parent=5 // pred_fallthru
      _
    %p272 = scmp.le.s32.totalorder 1, %s13
    %p273 = scmp.lt.s32.totalorder %s13, 3
    %p274 = pnand %p272, %p273
    %p275 = pneg %p274
    // Predicated region
    $region45: #{easpp_decoder5_forward.9} parent=5 // pred_check
      _
    $region46: #{easpp_decoder5_forward.9} parent=5 // pred_check_branch
      %277 = sbr.rel (%p274) target = $region48
    $region47: #{easpp_decoder5_forward.9} parent=5 // pred_region
      %s278 = ssub.s32 %s13, 1
      %p279 = scmp.lt.s32.totalorder %s22, 1
      %s280 = scalar_select %p279, %s22, 1
      %p281 = scmp.lt.s32.totalorder %s23, 0
      %s282 = scalar_select %p281, %s23, 0
      %s283 = smul.addr %s282, 54
      %s284 = smul.addr %s280, 54
      %s285 = sadd.s32 %s283, %s284
      %s286 = smul.addr %s285, 4
      %s287 = scalar_lea.vmem %s0, %s286
      %p288 = pneg %p53
      %p289 = pneg %p50
      %p290 = scmp.lt.s32.totalorder %s22, 1
      %s291 = scalar_select %p290, %s22, 1
      %p292 = scmp.lt.s32.totalorder %s23, 0
      %s293 = scalar_select %p292, %s23, 0
      %s294 = smul.addr %s293, 54
      %s295 = smul.addr %s291, 54
      %s296 = sadd.s32 %s294, %s295
      %s297 = smul.addr %s296, 4
      %s298 = scalar_lea.vmem %s1, %s297
      %p299 = pneg %p81
      %p300 = pneg %p78
      %p301 = pneg %p102
      %p302 = pneg %p99
      %p303 = pneg %p123
      %p304 = pneg %p120
      %p305 = pneg %p144
      %p306 = pneg %p141
      %p307 = pneg %p165
      %p308 = pneg %p162
      %p309 = pneg %p186
      %p310 = pneg %p183
      %p311 = pneg %p214
      %p312 = pneg %p211
      %p313 = scmp.lt.s32.totalorder %s22, 1
      %s314 = scalar_select %p313, %s22, 1
      %p315 = scmp.lt.s32.totalorder %s23, 0
      %s316 = scalar_select %p315, %s23, 0
      %s317 = smul.addr %s316, 32
      %s318 = smul.addr %s314, 32
      %s319 = sadd.s32 %s317, %s318
      %s320 = smul.addr %s319, 8
      %s321 = scalar_lea.vmem %s7, %s320
      %p322 = scmp.lt.s32.totalorder %s22, 1
      %s323 = scalar_select %p322, %s22, 1
      %p324 = scmp.lt.s32.totalorder %s23, 0
      %s325 = scalar_select %p324, %s23, 0
      %s326 = smul.addr %s325, 54
      %s327 = smul.addr %s323, 54
      %s328 = sadd.s32 %s326, %s327
      %s329 = smul.addr %s328, 4
      %s330 = scalar_lea.vmem %s0, %s329
      %p331 = scmp.lt.s32.totalorder %s22, 1
      %s332 = scalar_select %p331, %s22, 1
      %p333 = scmp.lt.s32.totalorder %s23, 0
      %s334 = scalar_select %p333, %s23, 0
      %s335 = smul.addr %s334, 54
      %s336 = smul.addr %s332, 54
      %s337 = sadd.s32 %s335, %s336
      %s338 = smul.addr %s337, 4
      %s339 = scalar_lea.vmem %s1, %s338
      %p340 = scmp.lt.s32.totalorder %s22, 1
      %s341 = scalar_select %p340, %s22, 1
      %p342 = scmp.lt.s32.totalorder %s23, 0
      %s343 = scalar_select %p342, %s23, 0
      %s344 = smul.addr %s343, 32
      %s345 = smul.addr %s341, 32
      %s346 = sadd.s32 %s344, %s345
      %s347 = smul.addr %s346, 8
      %s348 = scalar_lea.vmem %s7, %s347
      %v350 = vld [vmem:[%s330] sm:$0xf]
      %v351 = vld [vmem:[%s330 + $0x4] sm:$0xf]
      %v352 = vld [vmem:[%s330 + $0x8] sm:$0x1]
      %v353 = vld [vmem:[%s330 + $0xc] sm:$0xf]
      %v354 = vld [vmem:[%s330 + $0x10] sm:$0xf]
      %v355 = vld [vmem:[%s330 + $0x14] sm:$0x1]
      %v356 = vld [vmem:[%s330 + $0x18] sm:$0xf]
      %v357 = vld [vmem:[%s330 + $0x1c] sm:$0xf]
      %v358 = vld [vmem:[%s330 + $0x20] sm:$0x1]
      %v359 = vld [vmem:[%s330 + $0x24] sm:$0xf]
      %v360 = vld [vmem:[%s330 + $0x28] sm:$0xf]
      %v361 = vld [vmem:[%s330 + $0x2c] sm:$0x1]
      %v362 = vld [vmem:[%s330 + $0x30] sm:$0xf]
      %v363 = vld [vmem:[%s330 + $0x34] sm:$0xf]
      %v364 = vld [vmem:[%s330 + $0x38] sm:$0x1]
      %v365 = vld [vmem:[%s330 + $0x3c] sm:$0xf]
      %v366 = vld [vmem:[%s330 + $0x40] sm:$0xf]
      %v367 = vld [vmem:[%s330 + $0x44] sm:$0x1]
      %v368 = vld [vmem:[%s330 + $0x48] sm:$0xf]
      %v369 = vld [vmem:[%s330 + $0x4c] sm:$0xf]
      %v370 = vld [vmem:[%s330 + $0x50] sm:$0x1]
      %v371 = vld [vmem:[%s330 + $0x54] sm:$0xf]
      %v372 = vld [vmem:[%s330 + $0x58] sm:$0xf]
      %v373 = vld [vmem:[%s330 + $0x5c] sm:$0x1]
      %v374 = vld [vmem:[%s330 + $0x60] sm:$0xf]
      %v375 = vld [vmem:[%s330 + $0x64] sm:$0xf]
      %v376 = vld [vmem:[%s330 + $0x68] sm:$0x1]
      %v377 = vld [vmem:[%s330 + $0x6c] sm:$0xf]
      %v378 = vld [vmem:[%s330 + $0x70] sm:$0xf]
      %v379 = vld [vmem:[%s330 + $0x74] sm:$0x1]
      %v380 = vld [vmem:[%s330 + $0x78] sm:$0xf]
      %v381 = vld [vmem:[%s330 + $0x7c] sm:$0xf]
      %v382 = vld [vmem:[%s330 + $0x80] sm:$0x1]
      %v383 = vld [vmem:[%s330 + $0x84] sm:$0xf]
      %v384 = vld [vmem:[%s330 + $0x88] sm:$0xf]
      %v385 = vld [vmem:[%s330 + $0x8c] sm:$0x1]
      %v386 = vld [vmem:[%s330 + $0x90] sm:$0xf]
      %v387 = vld [vmem:[%s330 + $0x94] sm:$0xf]
      %v388 = vld [vmem:[%s330 + $0x98] sm:$0x1]
      %v389 = vld [vmem:[%s330 + $0x9c] sm:$0xf]
      %v390 = vld [vmem:[%s330 + $0xa0] sm:$0xf]
      %v391 = vld [vmem:[%s330 + $0xa4] sm:$0x1]
      %v392 = vld [vmem:[%s330 + $0xa8] sm:$0xf]
      %v393 = vld [vmem:[%s330 + $0xac] sm:$0xf]
      %v394 = vld [vmem:[%s330 + $0xb0] sm:$0x1]
      %v395 = vld [vmem:[%s330 + $0xb4] sm:$0xf]
      %v396 = vld [vmem:[%s330 + $0xb8] sm:$0xf]
      %v397 = vld [vmem:[%s330 + $0xbc] sm:$0x1]
      %v398 = vld [vmem:[%s330 + $0xc0] sm:$0xf]
      %v399 = vld [vmem:[%s330 + $0xc4] sm:$0xf]
      %v400 = vld [vmem:[%s330 + $0xc8] sm:$0x1]
      %v401 = vld [vmem:[%s330 + $0xcc] sm:$0xf]
      %v402 = vld [vmem:[%s330 + $0xd0] sm:$0xf]
      %v403 = vld [vmem:[%s330 + $0xd4] sm:$0x1]
      %v404 = vld [vmem:[%s339] sm:$0xf]
      %v405 = vld [vmem:[%s339 + $0x4] sm:$0xf]
      %v406 = vld [vmem:[%s339 + $0x8] sm:$0x1]
      %v407 = vld [vmem:[%s339 + $0xc] sm:$0xf]
      %v408 = vld [vmem:[%s339 + $0x10] sm:$0xf]
      %v409 = vld [vmem:[%s339 + $0x14] sm:$0x1]
      %v410 = vld [vmem:[%s339 + $0x18] sm:$0xf]
      %v411 = vld [vmem:[%s339 + $0x1c] sm:$0xf]
      %v412 = vld [vmem:[%s339 + $0x20] sm:$0x1]
      %v413 = vld [vmem:[%s339 + $0x24] sm:$0xf]
      %v414 = vld [vmem:[%s339 + $0x28] sm:$0xf]
      %v415 = vld [vmem:[%s339 + $0x2c] sm:$0x1]
      %v416 = vld [vmem:[%s339 + $0x30] sm:$0xf]
      %v417 = vld [vmem:[%s339 + $0x34] sm:$0xf]
      %v418 = vld [vmem:[%s339 + $0x38] sm:$0x1]
      %v419 = vld [vmem:[%s339 + $0x3c] sm:$0xf]
      %v420 = vld [vmem:[%s339 + $0x40] sm:$0xf]
      %v421 = vld [vmem:[%s339 + $0x44] sm:$0x1]
      %v422 = vld [vmem:[%s339 + $0x48] sm:$0xf]
      %v423 = vld [vmem:[%s339 + $0x4c] sm:$0xf]
      %v424 = vld [vmem:[%s339 + $0x50] sm:$0x1]
      %v425 = vld [vmem:[%s339 + $0x54] sm:$0xf]
      %v426 = vld [vmem:[%s339 + $0x58] sm:$0xf]
      %v427 = vld [vmem:[%s339 + $0x5c] sm:$0x1]
      %v428 = vld [vmem:[%s339 + $0x60] sm:$0xf]
      %v429 = vld [vmem:[%s339 + $0x64] sm:$0xf]
      %v430 = vld [vmem:[%s339 + $0x68] sm:$0x1]
      %v431 = vld [vmem:[%s339 + $0x6c] sm:$0xf]
      %v432 = vld [vmem:[%s339 + $0x70] sm:$0xf]
      %v433 = vld [vmem:[%s339 + $0x74] sm:$0x1]
      %v434 = vld [vmem:[%s339 + $0x78] sm:$0xf]
      %v435 = vld [vmem:[%s339 + $0x7c] sm:$0xf]
      %v436 = vld [vmem:[%s339 + $0x80] sm:$0x1]
      %v437 = vld [vmem:[%s339 + $0x84] sm:$0xf]
      %v438 = vld [vmem:[%s339 + $0x88] sm:$0xf]
      %v439 = vld [vmem:[%s339 + $0x8c] sm:$0x1]
      %v440 = vld [vmem:[%s339 + $0x90] sm:$0xf]
      %v441 = vld [vmem:[%s339 + $0x94] sm:$0xf]
      %v442 = vld [vmem:[%s339 + $0x98] sm:$0x1]
      %v443 = vld [vmem:[%s339 + $0x9c] sm:$0xf]
      %v444 = vld [vmem:[%s339 + $0xa0] sm:$0xf]
      %v445 = vld [vmem:[%s339 + $0xa4] sm:$0x1]
      %v446 = vld [vmem:[%s339 + $0xa8] sm:$0xf]
      %v447 = vld [vmem:[%s339 + $0xac] sm:$0xf]
      %v448 = vld [vmem:[%s339 + $0xb0] sm:$0x1]
      %v449 = vld [vmem:[%s339 + $0xb4] sm:$0xf]
      %v450 = vld [vmem:[%s339 + $0xb8] sm:$0xf]
      %v451 = vld [vmem:[%s339 + $0xbc] sm:$0x1]
      %v452 = vld [vmem:[%s339 + $0xc0] sm:$0xf]
      %v453 = vld [vmem:[%s339 + $0xc4] sm:$0xf]
      %v454 = vld [vmem:[%s339 + $0xc8] sm:$0x1]
      %v455 = vld [vmem:[%s339 + $0xcc] sm:$0xf]
      %v456 = vld [vmem:[%s339 + $0xd0] sm:$0xf]
      %v457 = vld [vmem:[%s339 + $0xd4] sm:$0x1]
      %v458 = vld [vmem:[%s2] sm:$0xf]
      %v459 = vld [vmem:[%s2 + $0x4] sm:$0xf]
      %v460 = vld [vmem:[%s2 + $0x8] sm:$0xf]
      %v461 = vld [vmem:[%s2 + $0xc] sm:$0xf]
      %v462 = vld [vmem:[%s2 + $0x10] sm:$0xf]
      %v463 = vld [vmem:[%s2 + $0x14] sm:$0xf]
      %v464 = vld [vmem:[%s2 + $0x18] sm:$0xf]
      %v465 = vld [vmem:[%s2 + $0x1c] sm:$0xf]
      %v466 = vld [vmem:[%s2 + $0x20] sm:$0xf]
      %v467 = vld [vmem:[%s2 + $0x24] sm:$0xf]
      %v468 = vld [vmem:[%s2 + $0x28] sm:$0xf]
      %v469 = vld [vmem:[%s2 + $0x2c] sm:$0xf]
      %v470 = vld [vmem:[%s2 + $0x30] sm:$0xf]
      %v471 = vld [vmem:[%s2 + $0x34] sm:$0xf]
      %v472 = vld [vmem:[%s2 + $0x38] sm:$0xf]
      %v473 = vld [vmem:[%s2 + $0x3c] sm:$0xf]
      %v474 = vld [vmem:[%s2 + $0x40] sm:$0xf]
      %v475 = vld [vmem:[%s2 + $0x44] sm:$0xf]
      %v476 = vld [vmem:[%s2 + $0x48] sm:$0xf]
      %v477 = vld [vmem:[%s2 + $0x4c] sm:$0xf]
      %v478 = vld [vmem:[%s2 + $0x50] sm:$0xf]
      %v479 = vld [vmem:[%s2 + $0x54] sm:$0xf]
      %v480 = vld [vmem:[%s2 + $0x58] sm:$0xf]
      %v481 = vld [vmem:[%s2 + $0x5c] sm:$0xf]
      %v482 = vld [vmem:[%s2 + $0x60] sm:$0xf]
      %v483 = vld [vmem:[%s2 + $0x64] sm:$0xf]
      %v484 = vld [vmem:[%s2 + $0x68] sm:$0xf]
      %v485 = vld [vmem:[%s2 + $0x6c] sm:$0xf]
      %v486 = vld [vmem:[%s2 + $0x70] sm:$0xf]
      %v487 = vld [vmem:[%s2 + $0x74] sm:$0xf]
      %v488 = vld [vmem:[%s2 + $0x78] sm:$0xf]
      %v489 = vld [vmem:[%s2 + $0x7c] sm:$0xf]
      %v490 = vld [vmem:[%s2 + $0x80] sm:$0xf]
      %v491 = vld [vmem:[%s2 + $0x84] sm:$0xf]
      %v492 = vld [vmem:[%s2 + $0x88] sm:$0xf]
      %v493 = vld [vmem:[%s2 + $0x8c] sm:$0xf]
      %v494 = vld [vmem:[%s2 + $0x90] sm:$0xf]
      %v495 = vld [vmem:[%s2 + $0x94] sm:$0xf]
      %v496 = vld [vmem:[%s2 + $0x98] sm:$0xf]
      %v497 = vld [vmem:[%s2 + $0x9c] sm:$0xf]
      %v498 = vld [vmem:[%s2 + $0xa0] sm:$0xf]
      %v499 = vld [vmem:[%s2 + $0xa4] sm:$0xf]
      %v500 = vld [vmem:[%s2 + $0xa8] sm:$0xf]
      %v501 = vld [vmem:[%s2 + $0xac] sm:$0xf]
      %v502 = vld [vmem:[%s2 + $0xb0] sm:$0xf]
      %v503 = vld [vmem:[%s2 + $0xb4] sm:$0xf]
      %v504 = vld [vmem:[%s2 + $0xb8] sm:$0xf]
      %v505 = vld [vmem:[%s2 + $0xbc] sm:$0xf]
      %v506 = vld [vmem:[%s2 + $0xc0] sm:$0xf]
      %v507 = vld [vmem:[%s2 + $0xc4] sm:$0xf]
      %v508 = vld [vmem:[%s2 + $0xc8] sm:$0xf]
      %v509 = vld [vmem:[%s2 + $0xcc] sm:$0xf]
      %v510 = vld [vmem:[%s2 + $0xd0] sm:$0xf]
      %v511 = vld [vmem:[%s2 + $0xd4] sm:$0xf]
      %v512 = vld [vmem:[%s2 + $0xd8] sm:$0xf]
      %v513 = vld [vmem:[%s2 + $0xdc] sm:$0xf]
      %v514 = vld [vmem:[%s2 + $0xe0] sm:$0xf]
      %v515 = vld [vmem:[%s2 + $0xe4] sm:$0xf]
      %v516 = vld [vmem:[%s2 + $0xe8] sm:$0xf]
      %v517 = vld [vmem:[%s2 + $0xec] sm:$0xf]
      %v518 = vld [vmem:[%s2 + $0xf0] sm:$0xf]
      %v519 = vld [vmem:[%s2 + $0xf4] sm:$0xf]
      %v520 = vld [vmem:[%s2 + $0xf8] sm:$0xf]
      %v521 = vld [vmem:[%s2 + $0xfc] sm:$0xf]
      %v522 = vld [vmem:[%s2 + $0x100] sm:$0xf]
      %v523 = vld [vmem:[%s2 + $0x104] sm:$0xf]
      %v524 = vld [vmem:[%s2 + $0x108] sm:$0xf]
      %v525 = vld [vmem:[%s2 + $0x10c] sm:$0xf]
      %v526 = vld [vmem:[%s2 + $0x110] sm:$0xf]
      %v527 = vld [vmem:[%s2 + $0x114] sm:$0xf]
      %v528 = vld [vmem:[%s2 + $0x118] sm:$0xf]
      %v529 = vld [vmem:[%s2 + $0x11c] sm:$0xf]
      %v530 = vld [vmem:[%s3] sm:$0xf]
      %v531 = vld [vmem:[%s3 + $0x4] sm:$0xf]
      %v532 = vld [vmem:[%s3 + $0x8] sm:$0xf]
      %v533 = vld [vmem:[%s3 + $0xc] sm:$0xf]
      %v534 = vld [vmem:[%s3 + $0x10] sm:$0xf]
      %v535 = vld [vmem:[%s3 + $0x14] sm:$0xf]
      %v536 = vld [vmem:[%s3 + $0x18] sm:$0xf]
      %v537 = vld [vmem:[%s3 + $0x1c] sm:$0xf]
      %v538 = vld [vmem:[%s3 + $0x20] sm:$0xf]
      %v539 = vld [vmem:[%s3 + $0x24] sm:$0xf]
      %v540 = vld [vmem:[%s3 + $0x28] sm:$0xf]
      %v541 = vld [vmem:[%s3 + $0x2c] sm:$0xf]
      %v542 = vld [vmem:[%s3 + $0x30] sm:$0xf]
      %v543 = vld [vmem:[%s3 + $0x34] sm:$0xf]
      %v544 = vld [vmem:[%s3 + $0x38] sm:$0xf]
      %v545 = vld [vmem:[%s3 + $0x3c] sm:$0xf]
      %v546 = vld [vmem:[%s3 + $0x40] sm:$0xf]
      %v547 = vld [vmem:[%s3 + $0x44] sm:$0xf]
      %v580 = vunpack.c.l.b16 %v404
      %v581 = vunpack.c.l.b16 %v405
      %v582 = vunpack.c.l.b16 %v407
      %v583 = vunpack.c.l.b16 %v408
      %v584 = vunpack.c.l.b16 %v410
      %v585 = vunpack.c.l.b16 %v411
      %v586 = vunpack.c.l.b16 %v413
      %v587 = vunpack.c.l.b16 %v414
      %v588 = vunpack.c.l.b16 %v416
      %v589 = vunpack.c.l.b16 %v417
      %v590 = vunpack.c.l.b16 %v419
      %v591 = vunpack.c.l.b16 %v420
      %v592 = vunpack.c.l.b16 %v422
      %v593 = vunpack.c.l.b16 %v423
      %v594 = vunpack.c.l.b16 %v425
      %v595 = vunpack.c.l.b16 %v426
      %v596 = vunpack.c.l.b16 %v428
      %v597 = vunpack.c.l.b16 %v429
      %v598 = vunpack.c.l.b16 %v431
      %v599 = vunpack.c.l.b16 %v432
      %v600 = vunpack.c.l.b16 %v434
      %v601 = vunpack.c.l.b16 %v435
      %v602 = vunpack.c.l.b16 %v437
      %v603 = vunpack.c.l.b16 %v438
      %v604 = vunpack.c.l.b16 %v440
      %v605 = vunpack.c.l.b16 %v441
      %v606 = vunpack.c.l.b16 %v443
      %v607 = vunpack.c.l.b16 %v444
      %v608 = vunpack.c.l.b16 %v446
      %v609 = vunpack.c.l.b16 %v447
      %v610 = vunpack.c.l.b16 %v449
      %v611 = vunpack.c.l.b16 %v450
      %v612 = vpack.c.b16 %v581, %v580
      %v613 = vpack.c.b16 %v583, %v582
      %v614 = vpack.c.b16 %v585, %v584
      %v615 = vpack.c.b16 %v587, %v586
      %v616 = vpack.c.b16 %v589, %v588
      %v617 = vpack.c.b16 %v591, %v590
      %v618 = vpack.c.b16 %v593, %v592
      %v619 = vpack.c.b16 %v595, %v594
      %v620 = vpack.c.b16 %v597, %v596
      %v621 = vpack.c.b16 %v599, %v598
      %v622 = vpack.c.b16 %v601, %v600
      %v623 = vpack.c.b16 %v603, %v602
      %v624 = vpack.c.b16 %v605, %v604
      %v625 = vpack.c.b16 %v607, %v606
      %v626 = vpack.c.b16 %v609, %v608
      %v627 = vpack.c.b16 %v611, %v610
      %v630 = vunpack.c.l.b16 %v530
      %v631 = vunpack.c.l.b16 %v531
      %v632 = vpack.c.b16 %v631, %v630
      %vm634 = vcmask 130048
      %v636 = vsel %vm634, %v612, 0
      %v639 = vsel %vm634, %v613, 0
      %v642 = vsel %vm634, %v614, 0
      %v645 = vsel %vm634, %v615, 0
      %v648 = vsel %vm634, %v616, 0
      %v651 = vsel %vm634, %v617, 0
      %v654 = vsel %vm634, %v618, 0
      %v657 = vsel %vm634, %v619, 0
      %v660 = vsel %vm634, %v620, 0
      %v663 = vsel %vm634, %v621, 0
      %v666 = vsel %vm634, %v622, 0
      %v669 = vsel %vm634, %v623, 0
      %v672 = vsel %vm634, %v624, 0
      %v675 = vsel %vm634, %v625, 0
      %v678 = vsel %vm634, %v626, 0
      %v681 = vsel %vm634, %v627, 0
      %683 = vmatprep.subr.bf16.mxu0 0
      %684 = vmatpush1.bf16.msra.mxu0 %v632
      %685 = vmatprep.subr.bf16.mxu0 0
      %686 = vmatpush1.bf16.msra.mxu0 0
      %687 = vmatprep.subr.bf16.mxu0 0
      %688 = vmatpush1.bf16.msra.mxu0 0
      %689 = vmatprep.subr.bf16.mxu0 0
      %690 = vmatpush1.bf16.msra.mxu0 0
      %691 = vmatprep.subr.bf16.mxu0 0
      %692 = vmatpush1.bf16.msra.mxu0 0
      %693 = vmatprep.subr.bf16.mxu0 0
      %694 = vmatpush1.bf16.msra.mxu0 0
      %695 = vmatprep.subr.bf16.mxu0 0
      %696 = vmatpush1.bf16.msra.mxu0 0
      %697 = vmatprep.subr.bf16.mxu0 0
      %698 = vmatpush1.bf16.msra.mxu0 0
      %699 = vmatprep.subr.bf16.mxu0 0
      %700 = vmatpush1.bf16.msra.mxu0 0
      %701 = vmatprep.subr.bf16.mxu0 0
      %702 = vmatpush1.bf16.msra.mxu0 0
      %703 = vmatprep.subr.bf16.mxu0 0
      %704 = vmatpush1.bf16.msra.mxu0 0
      %705 = vmatprep.subr.bf16.mxu0 0
      %706 = vmatpush1.bf16.msra.mxu0 0
      %707 = vmatprep.subr.bf16.mxu0 0
      %708 = vmatpush1.bf16.msra.mxu0 0
      %709 = vmatprep.subr.bf16.mxu0 0
      %710 = vmatpush1.bf16.msra.mxu0 0
      %711 = vmatprep.subr.bf16.mxu0 0
      %712 = vmatpush1.bf16.msra.mxu0 0
      %713 = vmatprep.subr.bf16.mxu0 0
      %714 = vmatpush1.bf16.msra.mxu0 0
      %715 = vmatprep.mubr.bf16.mxu0 0
      %716 = vmatmul.mubr.bf16.gmra.mrb[0].mxu0 %v636
      %v717 = vpop.f32.mrb[0].mxu0
      %v718 = vadd.f32 0.0, %v717
      %v719 = vpop.f32.mrb[0].mxu0
      %v720 = vpop.f32.mrb[0].mxu0
      %v721 = vadd.f32 0.0, %v720
      %v722 = vpop.f32.mrb[0].mxu0
      %723 = vmatprep.mubr.bf16.mxu0 0
      %724 = vmatmul.mubr.bf16.gmra.mrb[0].mxu0 %v639
      %v725 = vpop.f32.mrb[0].mxu0
      %v726 = vadd.f32 0.0, %v725
      %v727 = vpop.f32.mrb[0].mxu0
      %v728 = vpop.f32.mrb[0].mxu0
      %v729 = vadd.f32 0.0, %v728
      %v730 = vpop.f32.mrb[0].mxu0
      %731 = vmatprep.mubr.bf16.mxu0 0
      %732 = vmatmul.mubr.bf16.gmra.mrb[0].mxu0 %v642
      %v733 = vpop.f32.mrb[0].mxu0
      %v734 = vadd.f32 0.0, %v733
      %v735 = vpop.f32.mrb[0].mxu0
      %v736 = vpop.f32.mrb[0].mxu0
      %v737 = vadd.f32 0.0, %v736
      %v738 = vpop.f32.mrb[0].mxu0
      %739 = vmatprep.mubr.bf16.mxu0 0
      %740 = vmatmul.mubr.bf16.gmra.mrb[0].mxu0 %v645
      %v741 = vpop.f32.mrb[0].mxu0
      %v742 = vadd.f32 0.0, %v741
      %v743 = vpop.f32.mrb[0].mxu0
      %v744 = vpop.f32.mrb[0].mxu0
      %v745 = vadd.f32 0.0, %v744
      %v746 = vpop.f32.mrb[0].mxu0
      %747 = vmatprep.mubr.bf16.mxu0 0
      %748 = vmatmul.mubr.bf16.gmra.mrb[0].mxu0 %v648
      %v749 = vpop.f32.mrb[0].mxu0
      %v750 = vadd.f32 0.0, %v749
      %v751 = vpop.f32.mrb[0].mxu0
      %v752 = vpop.f32.mrb[0].mxu0
      %v753 = vadd.f32 0.0, %v752
      %v754 = vpop.f32.mrb[0].mxu0
      %755 = vmatprep.mubr.bf16.mxu0 0
      %756 = vmatmul.mubr.bf16.gmra.mrb[0].mxu0 %v651
      %v757 = vpop.f32.mrb[0].mxu0
      %v758 = vadd.f32 0.0, %v757
      %v759 = vpop.f32.mrb[0].mxu0
      %v760 = vpop.f32.mrb[0].mxu0
      %v761 = vadd.f32 0.0, %v760
      %v762 = vpop.f32.mrb[0].mxu0
      %763 = vmatprep.mubr.bf16.mxu0 0
      %764 = vmatmul.mubr.bf16.gmra.mrb[0].mxu0 %v654
      %v765 = vpop.f32.mrb[0].mxu0
      %v766 = vadd.f32 0.0, %v765
      %v767 = vpop.f32.mrb[0].mxu0
      %v768 = vpop.f32.mrb[0].mxu0
      %v769 = vadd.f32 0.0, %v768
      %v770 = vpop.f32.mrb[0].mxu0
      %771 = vmatprep.mubr.bf16.mxu0 0
      %772 = vmatmul.mubr.bf16.gmra.mrb[0].mxu0 %v657
      %v773 = vpop.f32.mrb[0].mxu0
      %v774 = vadd.f32 0.0, %v773
      %v775 = vpop.f32.mrb[0].mxu0
      %v776 = vpop.f32.mrb[0].mxu0
      %v777 = vadd.f32 0.0, %v776
      %v778 = vpop.f32.mrb[0].mxu0
      %779 = vmatprep.mubr.bf16.mxu0 0
      %780 = vmatmul.mubr.bf16.gmra.mrb[0].mxu0 %v660
      %v781 = vpop.f32.mrb[0].mxu0
      %v782 = vadd.f32 0.0, %v781
      %v783 = vpop.f32.mrb[0].mxu0
      %v784 = vpop.f32.mrb[0].mxu0
      %v785 = vadd.f32 0.0, %v784
      %v786 = vpop.f32.mrb[0].mxu0
      %787 = vmatprep.mubr.bf16.mxu0 0
      %788 = vmatmul.mubr.bf16.gmra.mrb[0].mxu0 %v663
      %v789 = vpop.f32.mrb[0].mxu0
      %v790 = vadd.f32 0.0, %v789
      %v791 = vpop.f32.mrb[0].mxu0
      %v792 = vpop.f32.mrb[0].mxu0
      %v793 = vadd.f32 0.0, %v792
      %v794 = vpop.f32.mrb[0].mxu0
      %795 = vmatprep.mubr.bf16.mxu0 0
      %796 = vmatmul.mubr.bf16.gmra.mrb[0].mxu0 %v666
      %v797 = vpop.f32.mrb[0].mxu0
      %v798 = vadd.f32 0.0, %v797
      %v799 = vpop.f32.mrb[0].mxu0
      %v800 = vpop.f32.mrb[0].mxu0
      %v801 = vadd.f32 0.0, %v800
      %v802 = vpop.f32.mrb[0].mxu0
      %803 = vmatprep.mubr.bf16.mxu0 0
      %804 = vmatmul.mubr.bf16.gmra.mrb[0].mxu0 %v669
      %v805 = vpop.f32.mrb[0].mxu0
      %v806 = vadd.f32 0.0, %v805
      %v807 = vpop.f32.mrb[0].mxu0
      %v808 = vpop.f32.mrb[0].mxu0
      %v809 = vadd.f32 0.0, %v808
      %v810 = vpop.f32.mrb[0].mxu0
      %811 = vmatprep.mubr.bf16.mxu0 0
      %812 = vmatmul.mubr.bf16.gmra.mrb[0].mxu0 %v672
      %v813 = vpop.f32.mrb[0].mxu0
      %v814 = vadd.f32 0.0, %v813
      %v815 = vpop.f32.mrb[0].mxu0
      %v816 = vpop.f32.mrb[0].mxu0
      %v817 = vadd.f32 0.0, %v816
      %v818 = vpop.f32.mrb[0].mxu0
      %819 = vmatprep.mubr.bf16.mxu0 0
      %820 = vmatmul.mubr.bf16.gmra.mrb[0].mxu0 %v675
      %v821 = vpop.f32.mrb[0].mxu0
      %v822 = vadd.f32 0.0, %v821
      %v823 = vpop.f32.mrb[0].mxu0
      %v824 = vpop.f32.mrb[0].mxu0
      %v825 = vadd.f32 0.0, %v824
      %v826 = vpop.f32.mrb[0].mxu0
      %827 = vmatprep.mubr.bf16.mxu0 0
      %828 = vmatmul.mubr.bf16.gmra.mrb[0].mxu0 %v678
      %v829 = vpop.f32.mrb[0].mxu0
      %v830 = vadd.f32 0.0, %v829
      %v831 = vpop.f32.mrb[0].mxu0
      %v832 = vpop.f32.mrb[0].mxu0
      %v833 = vadd.f32 0.0, %v832
      %v834 = vpop.f32.mrb[0].mxu0
      %835 = vmatprep.mubr.bf16.mxu0 0
      %836 = vmatmul.mubr.bf16.gmra.mrb[0].mxu0 %v681
      %v837 = vpop.f32.mrb[0].mxu0
      %v838 = vadd.f32 0.0, %v837
      %v839 = vpop.f32.mrb[0].mxu0
      %v840 = vpop.f32.mrb[0].mxu0
      %v841 = vadd.f32 0.0, %v840
      %v842 = vpop.f32.mrb[0].mxu0
      %843 = vdwg.mxu0
      %v876 = vunpack.c.l.b16 %v350
      %v877 = vunpack.c.l.b16 %v351
      %v878 = vunpack.c.l.b16 %v353
      %v879 = vunpack.c.l.b16 %v354
      %v880 = vunpack.c.l.b16 %v356
      %v881 = vunpack.c.l.b16 %v357
      %v882 = vunpack.c.l.b16 %v359
      %v883 = vunpack.c.l.b16 %v360
      %v884 = vunpack.c.l.b16 %v362
      %v885 = vunpack.c.l.b16 %v363
      %v886 = vunpack.c.l.b16 %v365
      %v887 = vunpack.c.l.b16 %v366
      %v888 = vunpack.c.l.b16 %v368
      %v889 = vunpack.c.l.b16 %v369
      %v890 = vunpack.c.l.b16 %v371
      %v891 = vunpack.c.l.b16 %v372
      %v892 = vunpack.c.l.b16 %v374
      %v893 = vunpack.c.l.b16 %v375
      %v894 = vunpack.c.l.b16 %v377
      %v895 = vunpack.c.l.b16 %v378
      %v896 = vunpack.c.l.b16 %v380
      %v897 = vunpack.c.l.b16 %v381
      %v898 = vunpack.c.l.b16 %v383
      %v899 = vunpack.c.l.b16 %v384
      %v900 = vunpack.c.l.b16 %v386
      %v901 = vunpack.c.l.b16 %v387
      %v902 = vunpack.c.l.b16 %v389
      %v903 = vunpack.c.l.b16 %v390
      %v904 = vunpack.c.l.b16 %v392
      %v905 = vunpack.c.l.b16 %v393
      %v906 = vunpack.c.l.b16 %v395
      %v907 = vunpack.c.l.b16 %v396
      %v908 = vpack.c.b16 %v877, %v876
      %v909 = vpack.c.b16 %v879, %v878
      %v910 = vpack.c.b16 %v881, %v880
      %v911 = vpack.c.b16 %v883, %v882
      %v912 = vpack.c.b16 %v885, %v884
      %v913 = vpack.c.b16 %v887, %v886
      %v914 = vpack.c.b16 %v889, %v888
      %v915 = vpack.c.b16 %v891, %v890
      %v916 = vpack.c.b16 %v893, %v892
      %v917 = vpack.c.b16 %v895, %v894
      %v918 = vpack.c.b16 %v897, %v896
      %v919 = vpack.c.b16 %v899, %v898
      %v920 = vpack.c.b16 %v901, %v900
      %v921 = vpack.c.b16 %v903, %v902
      %v922 = vpack.c.b16 %v905, %v904
      %v923 = vpack.c.b16 %v907, %v906
      %v932 = vunpack.c.l.b16 %v458
      %v933 = vunpack.c.l.b16 %v459
      %v934 = vunpack.c.l.b16 %v460
      %v935 = vunpack.c.l.b16 %v461
      %v936 = vunpack.c.l.b16 %v462
      %v937 = vunpack.c.l.b16 %v463
      %v938 = vunpack.c.l.b16 %v464
      %v939 = vunpack.c.l.b16 %v465
      %v940 = vpack.c.b16 %v933, %v932
      %v941 = vpack.c.b16 %v935, %v934
      %v942 = vpack.c.b16 %v937, %v936
      %v943 = vpack.c.b16 %v939, %v938
      %vm948 = vcmask 523264
      %v950 = vsel %vm948, %v908, 0
      %v953 = vsel %vm948, %v909, 0
      %v956 = vsel %vm948, %v910, 0
      %v959 = vsel %vm948, %v911, 0
      %v962 = vsel %vm948, %v912, 0
      %v965 = vsel %vm948, %v913, 0
      %v968 = vsel %vm948, %v914, 0
      %v971 = vsel %vm948, %v915, 0
      %v974 = vsel %vm948, %v916, 0
      %v977 = vsel %vm948, %v917, 0
      %v980 = vsel %vm948, %v918, 0
      %v983 = vsel %vm948, %v919, 0
      %v986 = vsel %vm948, %v920, 0
      %v989 = vsel %vm948, %v921, 0
      %v992 = vsel %vm948, %v922, 0
      %v995 = vsel %vm948, %v923, 0
      %997 = vmatprep.subr.bf16.mxu0 0
      %998 = vmatpush1.bf16.msra.mxu0 %v940
      %999 = vmatprep.subr.bf16.mxu0 0
      %1000 = vmatpush1.bf16.msra.mxu0 %v941
      %1001 = vmatprep.subr.bf16.mxu0 0
      %1002 = vmatpush1.bf16.msra.mxu0 %v942
      %1003 = vmatprep.subr.bf16.mxu0 0
      %1004 = vmatpush1.bf16.msra.mxu0 %v943
      %1005 = vmatprep.subr.bf16.mxu0 0
      %1006 = vmatpush1.bf16.msra.mxu0 0
      %1007 = vmatprep.subr.bf16.mxu0 0
      %1008 = vmatpush1.bf16.msra.mxu0 0
      %1009 = vmatprep.subr.bf16.mxu0 0
      %1010 = vmatpush1.bf16.msra.mxu0 0
      %1011 = vmatprep.subr.bf16.mxu0 0
      %1012 = vmatpush1.bf16.msra.mxu0 0
      %1013 = vmatprep.subr.bf16.mxu0 0
      %1014 = vmatpush1.bf16.msra.mxu0 0
      %1015 = vmatprep.subr.bf16.mxu0 0
      %1016 = vmatpush1.bf16.msra.mxu0 0
      %1017 = vmatprep.subr.bf16.mxu0 0
      %1018 = vmatpush1.bf16.msra.mxu0 0
      %1019 = vmatprep.subr.bf16.mxu0 0
      %1020 = vmatpush1.bf16.msra.mxu0 0
      %1021 = vmatprep.subr.bf16.mxu0 0
      %1022 = vmatpush1.bf16.msra.mxu0 0
      %1023 = vmatprep.subr.bf16.mxu0 0
      %1024 = vmatpush1.bf16.msra.mxu0 0
      %1025 = vmatprep.subr.bf16.mxu0 0
      %1026 = vmatpush1.bf16.msra.mxu0 0
      %1027 = vmatprep.subr.bf16.mxu0 0
      %1028 = vmatpush1.bf16.msra.mxu0 0
      %1029 = vmatprep.mubr.bf16.mxu0 0
      %1030 = vmatmul.mubr.bf16.gmra.mrb[0].mxu0 %v950
      %v1031 = vpop.f32.mrb[0].mxu0
      %v1032 = vadd.f32 %v718, %v1031
      %v1033 = vpop.f32.mrb[0].mxu0
      %v1034 = vpop.f32.mrb[0].mxu0
      %v1035 = vadd.f32 %v721, %v1034
      %v1036 = vpop.f32.mrb[0].mxu0
      %1037 = vmatprep.mubr.bf16.mxu0 0
      %1038 = vmatmul.mubr.bf16.gmra.mrb[0].mxu0 %v953
      %v1039 = vpop.f32.mrb[0].mxu0
      %v1040 = vadd.f32 %v726, %v1039
      %v1041 = vpop.f32.mrb[0].mxu0
      %v1042 = vpop.f32.mrb[0].mxu0
      %v1043 = vadd.f32 %v729, %v1042
      %v1044 = vpop.f32.mrb[0].mxu0
      %1045 = vmatprep.mubr.bf16.mxu0 0
      %1046 = vmatmul.mubr.bf16.gmra.mrb[0].mxu0 %v956
      %v1047 = vpop.f32.mrb[0].mxu0
      %v1048 = vadd.f32 %v734, %v1047
      %v1049 = vpop.f32.mrb[0].mxu0
      %v1050 = vpop.f32.mrb[0].mxu0
      %v1051 = vadd.f32 %v737, %v1050
      %v1052 = vpop.f32.mrb[0].mxu0
      %1053 = vmatprep.mubr.bf16.mxu0 0
      %1054 = vmatmul.mubr.bf16.gmra.mrb[0].mxu0 %v959
      %v1055 = vpop.f32.mrb[0].mxu0
      %v1056 = vadd.f32 %v742, %v1055
      %v1057 = vpop.f32.mrb[0].mxu0
      %v1058 = vpop.f32.mrb[0].mxu0
      %v1059 = vadd.f32 %v745, %v1058
      %v1060 = vpop.f32.mrb[0].mxu0
      %1061 = vmatprep.mubr.bf16.mxu0 0
      %1062 = vmatmul.mubr.bf16.gmra.mrb[0].mxu0 %v962
      %v1063 = vpop.f32.mrb[0].mxu0
      %v1064 = vadd.f32 %v750, %v1063
      %v1065 = vpop.f32.mrb[0].mxu0
      %v1066 = vpop.f32.mrb[0].mxu0
      %v1067 = vadd.f32 %v753, %v1066
      %v1068 = vpop.f32.mrb[0].mxu0
      %1069 = vmatprep.mubr.bf16.mxu0 0
      %1070 = vmatmul.mubr.bf16.gmra.mrb[0].mxu0 %v965
      %v1071 = vpop.f32.mrb[0].mxu0
      %v1072 = vadd.f32 %v758, %v1071
      %v1073 = vpop.f32.mrb[0].mxu0
      %v1074 = vpop.f32.mrb[0].mxu0
      %v1075 = vadd.f32 %v761, %v1074
      %v1076 = vpop.f32.mrb[0].mxu0
      %1077 = vmatprep.mubr.bf16.mxu0 0
      %1078 = vmatmul.mubr.bf16.gmra.mrb[0].mxu0 %v968
      %v1079 = vpop.f32.mrb[0].mxu0
      %v1080 = vadd.f32 %v766, %v1079
      %v1081 = vpop.f32.mrb[0].mxu0
      %v1082 = vpop.f32.mrb[0].mxu0
      %v1083 = vadd.f32 %v769, %v1082
      %v1084 = vpop.f32.mrb[0].mxu0
      %1085 = vmatprep.mubr.bf16.mxu0 0
      %1086 = vmatmul.mubr.bf16.gmra.mrb[0].mxu0 %v971
      %v1087 = vpop.f32.mrb[0].mxu0
      %v1088 = vadd.f32 %v774, %v1087
      %v1089 = vpop.f32.mrb[0].mxu0
      %v1090 = vpop.f32.mrb[0].mxu0
      %v1091 = vadd.f32 %v777, %v1090
      %v1092 = vpop.f32.mrb[0].mxu0
      %1093 = vmatprep.mubr.bf16.mxu0 0
      %1094 = vmatmul.mubr.bf16.gmra.mrb[0].mxu0 %v974
      %v1095 = vpop.f32.mrb[0].mxu0
      %v1096 = vadd.f32 %v782, %v1095
      %v1097 = vpop.f32.mrb[0].mxu0
      %v1098 = vpop.f32.mrb[0].mxu0
      %v1099 = vadd.f32 %v785, %v1098
      %v1100 = vpop.f32.mrb[0].mxu0
      %1101 = vmatprep.mubr.bf16.mxu0 0
      %1102 = vmatmul.mubr.bf16.gmra.mrb[0].mxu0 %v977
      %v1103 = vpop.f32.mrb[0].mxu0
      %v1104 = vadd.f32 %v790, %v1103
      %v1105 = vpop.f32.mrb[0].mxu0
      %v1106 = vpop.f32.mrb[0].mxu0
      %v1107 = vadd.f32 %v793, %v1106
      %v1108 = vpop.f32.mrb[0].mxu0
      %1109 = vmatprep.mubr.bf16.mxu0 0
      %1110 = vmatmul.mubr.bf16.gmra.mrb[0].mxu0 %v980
      %v1111 = vpop.f32.mrb[0].mxu0
      %v1112 = vadd.f32 %v798, %v1111
      %v1113 = vpop.f32.mrb[0].mxu0
      %v1114 = vpop.f32.mrb[0].mxu0
      %v1115 = vadd.f32 %v801, %v1114
      %v1116 = vpop.f32.mrb[0].mxu0
      %1117 = vmatprep.mubr.bf16.mxu0 0
      %1118 = vmatmul.mubr.bf16.gmra.mrb[0].mxu0 %v983
      %v1119 = vpop.f32.mrb[0].mxu0
      %v1120 = vadd.f32 %v806, %v1119
      %v1121 = vpop.f32.mrb[0].mxu0
      %v1122 = vpop.f32.mrb[0].mxu0
      %v1123 = vadd.f32 %v809, %v1122
      %v1124 = vpop.f32.mrb[0].mxu0
      %1125 = vmatprep.mubr.bf16.mxu0 0
      %1126 = vmatmul.mubr.bf16.gmra.mrb[0].mxu0 %v986
      %v1127 = vpop.f32.mrb[0].mxu0
      %v1128 = vadd.f32 %v814, %v1127
      %v1129 = vpop.f32.mrb[0].mxu0
      %v1130 = vpop.f32.mrb[0].mxu0
      %v1131 = vadd.f32 %v817, %v1130
      %v1132 = vpop.f32.mrb[0].mxu0
      %1133 = vmatprep.mubr.bf16.mxu0 0
      %1134 = vmatmul.mubr.bf16.gmra.mrb[0].mxu0 %v989
      %v1135 = vpop.f32.mrb[0].mxu0
      %v1136 = vadd.f32 %v822, %v1135
      %v1137 = vpop.f32.mrb[0].mxu0
      %v1138 = vpop.f32.mrb[0].mxu0
      %v1139 = vadd.f32 %v825, %v1138
      %v1140 = vpop.f32.mrb[0].mxu0
      %1141 = vmatprep.mubr.bf16.mxu0 0
      %1142 = vmatmul.mubr.bf16.gmra.mrb[0].mxu0 %v992
      %v1143 = vpop.f32.mrb[0].mxu0
      %v1144 = vadd.f32 %v830, %v1143
      %v1145 = vpop.f32.mrb[0].mxu0
      %v1146 = vpop.f32.mrb[0].mxu0
      %v1147 = vadd.f32 %v833, %v1146
      %v1148 = vpop.f32.mrb[0].mxu0
      %1149 = vmatprep.mubr.bf16.mxu0 0
      %1150 = vmatmul.mubr.bf16.gmra.mrb[0].mxu0 %v995
      %v1151 = vpop.f32.mrb[0].mxu0
      %v1152 = vadd.f32 %v838, %v1151
      %v1153 = vpop.f32.mrb[0].mxu0
      %v1154 = vpop.f32.mrb[0].mxu0
      %v1155 = vadd.f32 %v841, %v1154
      %v1156 = vpop.f32.mrb[0].mxu0
      %1157 = vdwg.mxu0
      %vm1158 = vsmask.f32 3328
      %vm1159 = vsmask.f32 7440
      %vm1160 = vmor %vm1158, %vm1159
      %v1162 = vshrl.u32 %v350, 16
      %v1164 = vrot.slane %v1162, 4
      %v1165 = vshll.u32 %v350, 16
      %v1167 = vrot.slane %v1165, 5
      %v1168 = vor.u32 %v1164, %v1167
      %v1169 = vrot.slane %v1168, 4
      %v1171 = vshll.u32 %v351, 16
      %v1173 = vrot.slane %v1171, 5
      %v1174 = vsel %vm1160, %v1169, %v1173
      %v1175 = vshrl.u32 %v351, 16
      %v1177 = vrot.slane %v1175, 4
      %v1178 = vor.u32 %v1177, %v1173
      %v1179 = vrot.slane %v1178, 4
      %v1181 = vshll.u32 %v352, 16
      %v1183 = vrot.slane %v1181, 5
      %v1184 = vsel %vm1160, %v1179, %v1183
      %v1186 = vshrl.u32 %v353, 16
      %v1188 = vrot.slane %v1186, 4
      %v1189 = vshll.u32 %v353, 16
      %v1191 = vrot.slane %v1189, 5
      %v1192 = vor.u32 %v1188, %v1191
      %v1193 = vrot.slane %v1192, 4
      %v1195 = vshll.u32 %v354, 16
      %v1197 = vrot.slane %v1195, 5
      %v1198 = vsel %vm1160, %v1193, %v1197
      %v1199 = vshrl.u32 %v354, 16
      %v1201 = vrot.slane %v1199, 4
      %v1202 = vor.u32 %v1201, %v1197
      %v1203 = vrot.slane %v1202, 4
      %v1205 = vshll.u32 %v355, 16
      %v1207 = vrot.slane %v1205, 5
      %v1208 = vsel %vm1160, %v1203, %v1207
      %v1210 = vshrl.u32 %v356, 16
      %v1212 = vrot.slane %v1210, 4
      %v1213 = vshll.u32 %v356, 16
      %v1215 = vrot.slane %v1213, 5
      %v1216 = vor.u32 %v1212, %v1215
      %v1217 = vrot.slane %v1216, 4
      %v1219 = vshll.u32 %v357, 16
      %v1221 = vrot.slane %v1219, 5
      %v1222 = vsel %vm1160, %v1217, %v1221
      %v1223 = vshrl.u32 %v357, 16
      %v1225 = vrot.slane %v1223, 4
      %v1226 = vor.u32 %v1225, %v1221
      %v1227 = vrot.slane %v1226, 4
      %v1229 = vshll.u32 %v358, 16
      %v1231 = vrot.slane %v1229, 5
      %v1232 = vsel %vm1160, %v1227, %v1231
      %v1234 = vshrl.u32 %v359, 16
      %v1236 = vrot.slane %v1234, 4
      %v1237 = vshll.u32 %v359, 16
      %v1239 = vrot.slane %v1237, 5
      %v1240 = vor.u32 %v1236, %v1239
      %v1241 = vrot.slane %v1240, 4
      %v1243 = vshll.u32 %v360, 16
      %v1245 = vrot.slane %v1243, 5
      %v1246 = vsel %vm1160, %v1241, %v1245
      %v1247 = vshrl.u32 %v360, 16
      %v1249 = vrot.slane %v1247, 4
      %v1250 = vor.u32 %v1249, %v1245
      %v1251 = vrot.slane %v1250, 4
      %v1253 = vshll.u32 %v361, 16
      %v1255 = vrot.slane %v1253, 5
      %v1256 = vsel %vm1160, %v1251, %v1255
      %v1258 = vshrl.u32 %v362, 16
      %v1260 = vrot.slane %v1258, 4
      %v1261 = vshll.u32 %v362, 16
      %v1263 = vrot.slane %v1261, 5
      %v1264 = vor.u32 %v1260, %v1263
      %v1265 = vrot.slane %v1264, 4
      %v1267 = vshll.u32 %v363, 16
      %v1269 = vrot.slane %v1267, 5
      %v1270 = vsel %vm1160, %v1265, %v1269
      %v1271 = vshrl.u32 %v363, 16
      %v1273 = vrot.slane %v1271, 4
      %v1274 = vor.u32 %v1273, %v1269
      %v1275 = vrot.slane %v1274, 4
      %v1277 = vshll.u32 %v364, 16
      %v1279 = vrot.slane %v1277, 5
      %v1280 = vsel %vm1160, %v1275, %v1279
      %v1282 = vshrl.u32 %v365, 16
      %v1284 = vrot.slane %v1282, 4
      %v1285 = vshll.u32 %v365, 16
      %v1287 = vrot.slane %v1285, 5
      %v1288 = vor.u32 %v1284, %v1287
      %v1289 = vrot.slane %v1288, 4
      %v1291 = vshll.u32 %v366, 16
      %v1293 = vrot.slane %v1291, 5
      %v1294 = vsel %vm1160, %v1289, %v1293
      %v1295 = vshrl.u32 %v366, 16
      %v1297 = vrot.slane %v1295, 4
      %v1298 = vor.u32 %v1297, %v1293
      %v1299 = vrot.slane %v1298, 4
      %v1301 = vshll.u32 %v367, 16
      %v1303 = vrot.slane %v1301, 5
      %v1304 = vsel %vm1160, %v1299, %v1303
      %v1306 = vshrl.u32 %v368, 16
      %v1308 = vrot.slane %v1306, 4
      %v1309 = vshll.u32 %v368, 16
      %v1311 = vrot.slane %v1309, 5
      %v1312 = vor.u32 %v1308, %v1311
      %v1313 = vrot.slane %v1312, 4
      %v1315 = vshll.u32 %v369, 16
      %v1317 = vrot.slane %v1315, 5
      %v1318 = vsel %vm1160, %v1313, %v1317
      %v1319 = vshrl.u32 %v369, 16
      %v1321 = vrot.slane %v1319, 4
      %v1322 = vor.u32 %v1321, %v1317
      %v1323 = vrot.slane %v1322, 4
      %v1325 = vshll.u32 %v370, 16
      %v1327 = vrot.slane %v1325, 5
      %v1328 = vsel %vm1160, %v1323, %v1327
      %v1330 = vshrl.u32 %v371, 16
      %v1332 = vrot.slane %v1330, 4
      %v1333 = vshll.u32 %v371, 16
      %v1335 = vrot.slane %v1333, 5
      %v1336 = vor.u32 %v1332, %v1335
      %v1337 = vrot.slane %v1336, 4
      %v1339 = vshll.u32 %v372, 16
      %v1341 = vrot.slane %v1339, 5
      %v1342 = vsel %vm1160, %v1337, %v1341
      %v1343 = vshrl.u32 %v372, 16
      %v1345 = vrot.slane %v1343, 4
      %v1346 = vor.u32 %v1345, %v1341
      %v1347 = vrot.slane %v1346, 4
      %v1349 = vshll.u32 %v373, 16
      %v1351 = vrot.slane %v1349, 5
      %v1352 = vsel %vm1160, %v1347, %v1351
      %v1354 = vshrl.u32 %v374, 16
      %v1356 = vrot.slane %v1354, 4
      %v1357 = vshll.u32 %v374, 16
      %v1359 = vrot.slane %v1357, 5
      %v1360 = vor.u32 %v1356, %v1359
      %v1361 = vrot.slane %v1360, 4
      %v1363 = vshll.u32 %v375, 16
      %v1365 = vrot.slane %v1363, 5
      %v1366 = vsel %vm1160, %v1361, %v1365
      %v1367 = vshrl.u32 %v375, 16
      %v1369 = vrot.slane %v1367, 4
      %v1370 = vor.u32 %v1369, %v1365
      %v1371 = vrot.slane %v1370, 4
      %v1373 = vshll.u32 %v376, 16
      %v1375 = vrot.slane %v1373, 5
      %v1376 = vsel %vm1160, %v1371, %v1375
      %v1378 = vshrl.u32 %v377, 16
      %v1380 = vrot.slane %v1378, 4
      %v1381 = vshll.u32 %v377, 16
      %v1383 = vrot.slane %v1381, 5
      %v1384 = vor.u32 %v1380, %v1383
      %v1385 = vrot.slane %v1384, 4
      %v1387 = vshll.u32 %v378, 16
      %v1389 = vrot.slane %v1387, 5
      %v1390 = vsel %vm1160, %v1385, %v1389
      %v1391 = vshrl.u32 %v378, 16
      %v1393 = vrot.slane %v1391, 4
      %v1394 = vor.u32 %v1393, %v1389
      %v1395 = vrot.slane %v1394, 4
      %v1397 = vshll.u32 %v379, 16
      %v1399 = vrot.slane %v1397, 5
      %v1400 = vsel %vm1160, %v1395, %v1399
      %v1402 = vshrl.u32 %v380, 16
      %v1404 = vrot.slane %v1402, 4
      %v1405 = vshll.u32 %v380, 16
      %v1407 = vrot.slane %v1405, 5
      %v1408 = vor.u32 %v1404, %v1407
      %v1409 = vrot.slane %v1408, 4
      %v1411 = vshll.u32 %v381, 16
      %v1413 = vrot.slane %v1411, 5
      %v1414 = vsel %vm1160, %v1409, %v1413
      %v1415 = vshrl.u32 %v381, 16
      %v1417 = vrot.slane %v1415, 4
      %v1418 = vor.u32 %v1417, %v1413
      %v1419 = vrot.slane %v1418, 4
      %v1421 = vshll.u32 %v382, 16
      %v1423 = vrot.slane %v1421, 5
      %v1424 = vsel %vm1160, %v1419, %v1423
      %v1426 = vshrl.u32 %v383, 16
      %v1428 = vrot.slane %v1426, 4
      %v1429 = vshll.u32 %v383, 16
      %v1431 = vrot.slane %v1429, 5
      %v1432 = vor.u32 %v1428, %v1431
      %v1433 = vrot.slane %v1432, 4
      %v1435 = vshll.u32 %v384, 16
      %v1437 = vrot.slane %v1435, 5
      %v1438 = vsel %vm1160, %v1433, %v1437
      %v1439 = vshrl.u32 %v384, 16
      %v1441 = vrot.slane %v1439, 4
      %v1442 = vor.u32 %v1441, %v1437
      %v1443 = vrot.slane %v1442, 4
      %v1445 = vshll.u32 %v385, 16
      %v1447 = vrot.slane %v1445, 5
      %v1448 = vsel %vm1160, %v1443, %v1447
      %v1450 = vshrl.u32 %v386, 16
      %v1452 = vrot.slane %v1450, 4
      %v1453 = vshll.u32 %v386, 16
      %v1455 = vrot.slane %v1453, 5
      %v1456 = vor.u32 %v1452, %v1455
      %v1457 = vrot.slane %v1456, 4
      %v1459 = vshll.u32 %v387, 16
      %v1461 = vrot.slane %v1459, 5
      %v1462 = vsel %vm1160, %v1457, %v1461
      %v1463 = vshrl.u32 %v387, 16
      %v1465 = vrot.slane %v1463, 4
      %v1466 = vor.u32 %v1465, %v1461
      %v1467 = vrot.slane %v1466, 4
      %v1469 = vshll.u32 %v388, 16
      %v1471 = vrot.slane %v1469, 5
      %v1472 = vsel %vm1160, %v1467, %v1471
      %v1474 = vshrl.u32 %v389, 16
      %v1476 = vrot.slane %v1474, 4
      %v1477 = vshll.u32 %v389, 16
      %v1479 = vrot.slane %v1477, 5
      %v1480 = vor.u32 %v1476, %v1479
      %v1481 = vrot.slane %v1480, 4
      %v1483 = vshll.u32 %v390, 16
      %v1485 = vrot.slane %v1483, 5
      %v1486 = vsel %vm1160, %v1481, %v1485
      %v1487 = vshrl.u32 %v390, 16
      %v1489 = vrot.slane %v1487, 4
      %v1490 = vor.u32 %v1489, %v1485
      %v1491 = vrot.slane %v1490, 4
      %v1493 = vshll.u32 %v391, 16
      %v1495 = vrot.slane %v1493, 5
      %v1496 = vsel %vm1160, %v1491, %v1495
      %v1498 = vshrl.u32 %v392, 16
      %v1500 = vrot.slane %v1498, 4
      %v1501 = vshll.u32 %v392, 16
      %v1503 = vrot.slane %v1501, 5
      %v1504 = vor.u32 %v1500, %v1503
      %v1505 = vrot.slane %v1504, 4
      %v1507 = vshll.u32 %v393, 16
      %v1509 = vrot.slane %v1507, 5
      %v1510 = vsel %vm1160, %v1505, %v1509
      %v1511 = vshrl.u32 %v393, 16
      %v1513 = vrot.slane %v1511, 4
      %v1514 = vor.u32 %v1513, %v1509
      %v1515 = vrot.slane %v1514, 4
      %v1517 = vshll.u32 %v394, 16
      %v1519 = vrot.slane %v1517, 5
      %v1520 = vsel %vm1160, %v1515, %v1519
      %v1522 = vshrl.u32 %v395, 16
      %v1524 = vrot.slane %v1522, 4
      %v1525 = vshll.u32 %v395, 16
      %v1527 = vrot.slane %v1525, 5
      %v1528 = vor.u32 %v1524, %v1527
      %v1529 = vrot.slane %v1528, 4
      %v1531 = vshll.u32 %v396, 16
      %v1533 = vrot.slane %v1531, 5
      %v1534 = vsel %vm1160, %v1529, %v1533
      %v1535 = vshrl.u32 %v396, 16
      %v1537 = vrot.slane %v1535, 4
      %v1538 = vor.u32 %v1537, %v1533
      %v1539 = vrot.slane %v1538, 4
      %v1541 = vshll.u32 %v397, 16
      %v1543 = vrot.slane %v1541, 5
      %v1544 = vsel %vm1160, %v1539, %v1543
      %v1546 = vshrl.u32 %v404, 16
      %v1548 = vrot.slane %v1546, 4
      %v1549 = vshll.u32 %v404, 16
      %v1551 = vrot.slane %v1549, 5
      %v1552 = vor.u32 %v1548, %v1551
      %v1553 = vrot.slane %v1552, 4
      %v1555 = vshll.u32 %v405, 16
      %v1557 = vrot.slane %v1555, 5
      %v1558 = vsel %vm1160, %v1553, %v1557
      %v1559 = vshrl.u32 %v405, 16
      %v1561 = vrot.slane %v1559, 4
      %v1562 = vor.u32 %v1561, %v1557
      %v1563 = vrot.slane %v1562, 4
      %v1565 = vshll.u32 %v406, 16
      %v1567 = vrot.slane %v1565, 5
      %v1568 = vsel %vm1160, %v1563, %v1567
      %v1570 = vshrl.u32 %v407, 16
      %v1572 = vrot.slane %v1570, 4
      %v1573 = vshll.u32 %v407, 16
      %v1575 = vrot.slane %v1573, 5
      %v1576 = vor.u32 %v1572, %v1575
      %v1577 = vrot.slane %v1576, 4
      %v1579 = vshll.u32 %v408, 16
      %v1581 = vrot.slane %v1579, 5
      %v1582 = vsel %vm1160, %v1577, %v1581
      %v1583 = vshrl.u32 %v408, 16
      %v1585 = vrot.slane %v1583, 4
      %v1586 = vor.u32 %v1585, %v1581
      %v1587 = vrot.slane %v1586, 4
      %v1589 = vshll.u32 %v409, 16
      %v1591 = vrot.slane %v1589, 5
      %v1592 = vsel %vm1160, %v1587, %v1591
      %v1594 = vshrl.u32 %v410, 16
      %v1596 = vrot.slane %v1594, 4
      %v1597 = vshll.u32 %v410, 16
      %v1599 = vrot.slane %v1597, 5
      %v1600 = vor.u32 %v1596, %v1599
      %v1601 = vrot.slane %v1600, 4
      %v1603 = vshll.u32 %v411, 16
      %v1605 = vrot.slane %v1603, 5
      %v1606 = vsel %vm1160, %v1601, %v1605
      %v1607 = vshrl.u32 %v411, 16
      %v1609 = vrot.slane %v1607, 4
      %v1610 = vor.u32 %v1609, %v1605
      %v1611 = vrot.slane %v1610, 4
      %v1613 = vshll.u32 %v412, 16
      %v1615 = vrot.slane %v1613, 5
      %v1616 = vsel %vm1160, %v1611, %v1615
      %v1618 = vshrl.u32 %v413, 16
      %v1620 = vrot.slane %v1618, 4
      %v1621 = vshll.u32 %v413, 16
      %v1623 = vrot.slane %v1621, 5
      %v1624 = vor.u32 %v1620, %v1623
      %v1625 = vrot.slane %v1624, 4
      %v1627 = vshll.u32 %v414, 16
      %v1629 = vrot.slane %v1627, 5
      %v1630 = vsel %vm1160, %v1625, %v1629
      %v1631 = vshrl.u32 %v414, 16
      %v1633 = vrot.slane %v1631, 4
      %v1634 = vor.u32 %v1633, %v1629
      %v1635 = vrot.slane %v1634, 4
      %v1637 = vshll.u32 %v415, 16
      %v1639 = vrot.slane %v1637, 5
      %v1640 = vsel %vm1160, %v1635, %v1639
      %v1642 = vshrl.u32 %v416, 16
      %v1644 = vrot.slane %v1642, 4
      %v1645 = vshll.u32 %v416, 16
      %v1647 = vrot.slane %v1645, 5
      %v1648 = vor.u32 %v1644, %v1647
      %v1649 = vrot.slane %v1648, 4
      %v1651 = vshll.u32 %v417, 16
      %v1653 = vrot.slane %v1651, 5
      %v1654 = vsel %vm1160, %v1649, %v1653
      %v1655 = vshrl.u32 %v417, 16
      %v1657 = vrot.slane %v1655, 4
      %v1658 = vor.u32 %v1657, %v1653
      %v1659 = vrot.slane %v1658, 4
      %v1661 = vshll.u32 %v418, 16
      %v1663 = vrot.slane %v1661, 5
      %v1664 = vsel %vm1160, %v1659, %v1663
      %v1666 = vshrl.u32 %v419, 16
      %v1668 = vrot.slane %v1666, 4
      %v1669 = vshll.u32 %v419, 16
      %v1671 = vrot.slane %v1669, 5
      %v1672 = vor.u32 %v1668, %v1671
      %v1673 = vrot.slane %v1672, 4
      %v1675 = vshll.u32 %v420, 16
      %v1677 = vrot.slane %v1675, 5
      %v1678 = vsel %vm1160, %v1673, %v1677
      %v1679 = vshrl.u32 %v420, 16
      %v1681 = vrot.slane %v1679, 4
      %v1682 = vor.u32 %v1681, %v1677
      %v1683 = vrot.slane %v1682, 4
      %v1685 = vshll.u32 %v421, 16
      %v1687 = vrot.slane %v1685, 5
      %v1688 = vsel %vm1160, %v1683, %v1687
      %v1690 = vshrl.u32 %v422, 16
      %v1692 = vrot.slane %v1690, 4
      %v1693 = vshll.u32 %v422, 16
      %v1695 = vrot.slane %v1693, 5
      %v1696 = vor.u32 %v1692, %v1695
      %v1697 = vrot.slane %v1696, 4
      %v1699 = vshll.u32 %v423, 16
      %v1701 = vrot.slane %v1699, 5
      %v1702 = vsel %vm1160, %v1697, %v1701
      %v1703 = vshrl.u32 %v423, 16
      %v1705 = vrot.slane %v1703, 4
      %v1706 = vor.u32 %v1705, %v1701
      %v1707 = vrot.slane %v1706, 4
      %v1709 = vshll.u32 %v424, 16
      %v1711 = vrot.slane %v1709, 5
      %v1712 = vsel %vm1160, %v1707, %v1711
      %v1714 = vshrl.u32 %v425, 16
      %v1716 = vrot.slane %v1714, 4
      %v1717 = vshll.u32 %v425, 16
      %v1719 = vrot.slane %v1717, 5
      %v1720 = vor.u32 %v1716, %v1719
      %v1721 = vrot.slane %v1720, 4
      %v1723 = vshll.u32 %v426, 16
      %v1725 = vrot.slane %v1723, 5
      %v1726 = vsel %vm1160, %v1721, %v1725
      %v1727 = vshrl.u32 %v426, 16
      %v1729 = vrot.slane %v1727, 4
      %v1730 = vor.u32 %v1729, %v1725
      %v1731 = vrot.slane %v1730, 4
      %v1733 = vshll.u32 %v427, 16
      %v1735 = vrot.slane %v1733, 5
      %v1736 = vsel %vm1160, %v1731, %v1735
      %v1738 = vshrl.u32 %v428, 16
      %v1740 = vrot.slane %v1738, 4
      %v1741 = vshll.u32 %v428, 16
      %v1743 = vrot.slane %v1741, 5
      %v1744 = vor.u32 %v1740, %v1743
      %v1745 = vrot.slane %v1744, 4
      %v1747 = vshll.u32 %v429, 16
      %v1749 = vrot.slane %v1747, 5
      %v1750 = vsel %vm1160, %v1745, %v1749
      %v1751 = vshrl.u32 %v429, 16
      %v1753 = vrot.slane %v1751, 4
      %v1754 = vor.u32 %v1753, %v1749
      %v1755 = vrot.slane %v1754, 4
      %v1757 = vshll.u32 %v430, 16
      %v1759 = vrot.slane %v1757, 5
      %v1760 = vsel %vm1160, %v1755, %v1759
      %v1762 = vshrl.u32 %v431, 16
      %v1764 = vrot.slane %v1762, 4
      %v1765 = vshll.u32 %v431, 16
      %v1767 = vrot.slane %v1765, 5
      %v1768 = vor.u32 %v1764, %v1767
      %v1769 = vrot.slane %v1768, 4
      %v1771 = vshll.u32 %v432, 16
      %v1773 = vrot.slane %v1771, 5
      %v1774 = vsel %vm1160, %v1769, %v1773
      %v1775 = vshrl.u32 %v432, 16
      %v1777 = vrot.slane %v1775, 4
      %v1778 = vor.u32 %v1777, %v1773
      %v1779 = vrot.slane %v1778, 4
      %v1781 = vshll.u32 %v433, 16
      %v1783 = vrot.slane %v1781, 5
      %v1784 = vsel %vm1160, %v1779, %v1783
      %v1786 = vshrl.u32 %v434, 16
      %v1788 = vrot.slane %v1786, 4
      %v1789 = vshll.u32 %v434, 16
      %v1791 = vrot.slane %v1789, 5
      %v1792 = vor.u32 %v1788, %v1791
      %v1793 = vrot.slane %v1792, 4
      %v1795 = vshll.u32 %v435, 16
      %v1797 = vrot.slane %v1795, 5
      %v1798 = vsel %vm1160, %v1793, %v1797
      %v1799 = vshrl.u32 %v435, 16
      %v1801 = vrot.slane %v1799, 4
      %v1802 = vor.u32 %v1801, %v1797
      %v1803 = vrot.slane %v1802, 4
      %v1805 = vshll.u32 %v436, 16
      %v1807 = vrot.slane %v1805, 5
      %v1808 = vsel %vm1160, %v1803, %v1807
      %v1810 = vshrl.u32 %v437, 16
      %v1812 = vrot.slane %v1810, 4
      %v1813 = vshll.u32 %v437, 16
      %v1815 = vrot.slane %v1813, 5
      %v1816 = vor.u32 %v1812, %v1815
      %v1817 = vrot.slane %v1816, 4
      %v1819 = vshll.u32 %v438, 16
      %v1821 = vrot.slane %v1819, 5
      %v1822 = vsel %vm1160, %v1817, %v1821
      %v1823 = vshrl.u32 %v438, 16
      %v1825 = vrot.slane %v1823, 4
      %v1826 = vor.u32 %v1825, %v1821
      %v1827 = vrot.slane %v1826, 4
      %v1829 = vshll.u32 %v439, 16
      %v1831 = vrot.slane %v1829, 5
      %v1832 = vsel %vm1160, %v1827, %v1831
      %v1834 = vshrl.u32 %v440, 16
      %v1836 = vrot.slane %v1834, 4
      %v1837 = vshll.u32 %v440, 16
      %v1839 = vrot.slane %v1837, 5
      %v1840 = vor.u32 %v1836, %v1839
      %v1841 = vrot.slane %v1840, 4
      %v1843 = vshll.u32 %v441, 16
      %v1845 = vrot.slane %v1843, 5
      %v1846 = vsel %vm1160, %v1841, %v1845
      %v1847 = vshrl.u32 %v441, 16
      %v1849 = vrot.slane %v1847, 4
      %v1850 = vor.u32 %v1849, %v1845
      %v1851 = vrot.slane %v1850, 4
      %v1853 = vshll.u32 %v442, 16
      %v1855 = vrot.slane %v1853, 5
      %v1856 = vsel %vm1160, %v1851, %v1855
      %v1858 = vshrl.u32 %v443, 16
      %v1860 = vrot.slane %v1858, 4
      %v1861 = vshll.u32 %v443, 16
      %v1863 = vrot.slane %v1861, 5
      %v1864 = vor.u32 %v1860, %v1863
      %v1865 = vrot.slane %v1864, 4
      %v1867 = vshll.u32 %v444, 16
      %v1869 = vrot.slane %v1867, 5
      %v1870 = vsel %vm1160, %v1865, %v1869
      %v1871 = vshrl.u32 %v444, 16
      %v1873 = vrot.slane %v1871, 4
      %v1874 = vor.u32 %v1873, %v1869
      %v1875 = vrot.slane %v1874, 4
      %v1877 = vshll.u32 %v445, 16
      %v1879 = vrot.slane %v1877, 5
      %v1880 = vsel %vm1160, %v1875, %v1879
      %v1882 = vshrl.u32 %v446, 16
      %v1884 = vrot.slane %v1882, 4
      %v1885 = vshll.u32 %v446, 16
      %v1887 = vrot.slane %v1885, 5
      %v1888 = vor.u32 %v1884, %v1887
      %v1889 = vrot.slane %v1888, 4
      %v1891 = vshll.u32 %v447, 16
      %v1893 = vrot.slane %v1891, 5
      %v1894 = vsel %vm1160, %v1889, %v1893
      %v1895 = vshrl.u32 %v447, 16
      %v1897 = vrot.slane %v1895, 4
      %v1898 = vor.u32 %v1897, %v1893
      %v1899 = vrot.slane %v1898, 4
      %v1901 = vshll.u32 %v448, 16
      %v1903 = vrot.slane %v1901, 5
      %v1904 = vsel %vm1160, %v1899, %v1903
      %v1906 = vshrl.u32 %v449, 16
      %v1908 = vrot.slane %v1906, 4
      %v1909 = vshll.u32 %v449, 16
      %v1911 = vrot.slane %v1909, 5
      %v1912 = vor.u32 %v1908, %v1911
      %v1913 = vrot.slane %v1912, 4
      %v1915 = vshll.u32 %v450, 16
      %v1917 = vrot.slane %v1915, 5
      %v1918 = vsel %vm1160, %v1913, %v1917
      %v1919 = vshrl.u32 %v450, 16
      %v1921 = vrot.slane %v1919, 4
      %v1922 = vor.u32 %v1921, %v1917
      %v1923 = vrot.slane %v1922, 4
      %v1925 = vshll.u32 %v451, 16
      %v1927 = vrot.slane %v1925, 5
      %v1928 = vsel %vm1160, %v1923, %v1927
      %v1929 = vunpack.c.l.b16 %v1174
      %v1930 = vunpack.c.l.b16 %v1184
      %v1931 = vunpack.c.l.b16 %v1198
      %v1932 = vunpack.c.l.b16 %v1208
      %v1933 = vunpack.c.l.b16 %v1222
      %v1934 = vunpack.c.l.b16 %v1232
      %v1935 = vunpack.c.l.b16 %v1246
      %v1936 = vunpack.c.l.b16 %v1256
      %v1937 = vunpack.c.l.b16 %v1270
      %v1938 = vunpack.c.l.b16 %v1280
      %v1939 = vunpack.c.l.b16 %v1294
      %v1940 = vunpack.c.l.b16 %v1304
      %v1941 = vunpack.c.l.b16 %v1318
      %v1942 = vunpack.c.l.b16 %v1328
      %v1943 = vunpack.c.l.b16 %v1342
      %v1944 = vunpack.c.l.b16 %v1352
      %v1945 = vunpack.c.l.b16 %v1366
      %v1946 = vunpack.c.l.b16 %v1376
      %v1947 = vunpack.c.l.b16 %v1390
      %v1948 = vunpack.c.l.b16 %v1400
      %v1949 = vunpack.c.l.b16 %v1414
      %v1950 = vunpack.c.l.b16 %v1424
      %v1951 = vunpack.c.l.b16 %v1438
      %v1952 = vunpack.c.l.b16 %v1448
      %v1953 = vunpack.c.l.b16 %v1462
      %v1954 = vunpack.c.l.b16 %v1472
      %v1955 = vunpack.c.l.b16 %v1486
      %v1956 = vunpack.c.l.b16 %v1496
      %v1957 = vunpack.c.l.b16 %v1510
      %v1958 = vunpack.c.l.b16 %v1520
      %v1959 = vunpack.c.l.b16 %v1534
      %v1960 = vunpack.c.l.b16 %v1544
      %v1961 = vpack.c.b16 %v1930, %v1929
      %v1962 = vpack.c.b16 %v1932, %v1931
      %v1963 = vpack.c.b16 %v1934, %v1933
      %v1964 = vpack.c.b16 %v1936, %v1935
      %v1965 = vpack.c.b16 %v1938, %v1937
      %v1966 = vpack.c.b16 %v1940, %v1939
      %v1967 = vpack.c.b16 %v1942, %v1941
      %v1968 = vpack.c.b16 %v1944, %v1943
      %v1969 = vpack.c.b16 %v1946, %v1945
      %v1970 = vpack.c.b16 %v1948, %v1947
      %v1971 = vpack.c.b16 %v1950, %v1949
      %v1972 = vpack.c.b16 %v1952, %v1951
      %v1973 = vpack.c.b16 %v1954, %v1953
      %v1974 = vpack.c.b16 %v1956, %v1955
      %v1975 = vpack.c.b16 %v1958, %v1957
      %v1976 = vpack.c.b16 %v1960, %v1959
      %v1985 = vunpack.c.l.b16 %v466
      %v1986 = vunpack.c.l.b16 %v467
      %v1987 = vunpack.c.l.b16 %v468
      %v1988 = vunpack.c.l.b16 %v469
      %v1989 = vunpack.c.l.b16 %v470
      %v1990 = vunpack.c.l.b16 %v471
      %v1991 = vunpack.c.l.b16 %v472
      %v1992 = vunpack.c.l.b16 %v473
      %v1993 = vpack.c.b16 %v1986, %v1985
      %v1994 = vpack.c.b16 %v1988, %v1987
      %v1995 = vpack.c.b16 %v1990, %v1989
      %v1996 = vpack.c.b16 %v1992, %v1991
      %v2002 = vsel %vm948, %v1961, 0
      %v2005 = vsel %vm948, %v1962, 0
      %v2008 = vsel %vm948, %v1963, 0
      %v2011 = vsel %vm948, %v1964, 0
      %v2014 = vsel %vm948, %v1965, 0
      %v2017 = vsel %vm948, %v1966, 0
      %v2020 = vsel %vm948, %v1967, 0
      %v2023 = vsel %vm948, %v1968, 0
      %v2026 = vsel %vm948, %v1969, 0
      %v2029 = vsel %vm948, %v1970, 0
      %v2032 = vsel %vm948, %v1971, 0
      %v2035 = vsel %vm948, %v1972, 0
      %v2038 = vsel %vm948, %v1973, 0
      %v2041 = vsel %vm948, %v1974, 0
      %v2044 = vsel %vm948, %v1975, 0
      %v2047 = vsel %vm948, %v1976, 0
      %2049 = vmatprep.subr.bf16.mxu0 0
      %2050 = vmatpush1.bf16.msra.mxu0 %v1993
      %2051 = vmatprep.subr.bf16.mxu0 0
      %2052 = vmatpush1.bf16.msra.mxu0 %v1994
      %2053 = vmatprep.subr.bf16.mxu0 0
      %2054 = vmatpush1.bf16.msra.mxu0 %v1995
      %2055 = vmatprep.subr.bf16.mxu0 0
      %2056 = vmatpush1.bf16.msra.mxu0 %v1996
      %2057 = vmatprep.subr.bf16.mxu0 0
      %2058 = vmatpush1.bf16.msra.mxu0 0
      %2059 = vmatprep.subr.bf16.mxu0 0
      %2060 = vmatpush1.bf16.msra.mxu0 0
      %2061 = vmatprep.subr.bf16.mxu0 0
      %2062 = vmatpush1.bf16.msra.mxu0 0
      %2063 = vmatprep.subr.bf16.mxu0 0
      %2064 = vmatpush1.bf16.msra.mxu0 0
      %2065 = vmatprep.subr.bf16.mxu0 0
      %2066 = vmatpush1.bf16.msra.mxu0 0
      %2067 = vmatprep.subr.bf16.mxu0 0
      %2068 = vmatpush1.bf16.msra.mxu0 0
      %2069 = vmatprep.subr.bf16.mxu0 0
      %2070 = vmatpush1.bf16.msra.mxu0 0
      %2071 = vmatprep.subr.bf16.mxu0 0
      %2072 = vmatpush1.bf16.msra.mxu0 0
      %2073 = vmatprep.subr.bf16.mxu0 0
      %2074 = vmatpush1.bf16.msra.mxu0 0
      %2075 = vmatprep.subr.bf16.mxu0 0
      %2076 = vmatpush1.bf16.msra.mxu0 0
      %2077 = vmatprep.subr.bf16.mxu0 0
      %2078 = vmatpush1.bf16.msra.mxu0 0
      %2079 = vmatprep.subr.bf16.mxu0 0
      %2080 = vmatpush1.bf16.msra.mxu0 0
      %2081 = vmatprep.mubr.bf16.mxu0 0
      %2082 = vmatmul.mubr.bf16.gmra.mrb[0].mxu0 %v2002
      %v2083 = vpop.f32.mrb[0].mxu0
      %v2084 = vadd.f32 0.0, %v2083
      %v2085 = vpop.f32.mrb[0].mxu0
      %v2086 = vpop.f32.mrb[0].mxu0
      %v2087 = vadd.f32 0.0, %v2086
      %v2088 = vpop.f32.mrb[0].mxu0
      %2089 = vmatprep.mubr.bf16.mxu0 0
      %2090 = vmatmul.mubr.bf16.gmra.mrb[0].mxu0 %v2005
      %v2091 = vpop.f32.mrb[0].mxu0
      %v2092 = vadd.f32 0.0, %v2091
      %v2093 = vpop.f32.mrb[0].mxu0
      %v2094 = vpop.f32.mrb[0].mxu0
      %v2095 = vadd.f32 0.0, %v2094
      %v2096 = vpop.f32.mrb[0].mxu0
      %2097 = vmatprep.mubr.bf16.mxu0 0
      %2098 = vmatmul.mubr.bf16.gmra.mrb[0].mxu0 %v2008
      %v2099 = vpop.f32.mrb[0].mxu0
      %v2100 = vadd.f32 0.0, %v2099
      %v2101 = vpop.f32.mrb[0].mxu0
      %v2102 = vpop.f32.mrb[0].mxu0
      %v2103 = vadd.f32 0.0, %v2102
      %v2104 = vpop.f32.mrb[0].mxu0
      %2105 = vmatprep.mubr.bf16.mxu0 0
      %2106 = vmatmul.mubr.bf16.gmra.mrb[0].mxu0 %v2011
      %v2107 = vpop.f32.mrb[0].mxu0
      %v2108 = vadd.f32 0.0, %v2107
      %v2109 = vpop.f32.mrb[0].mxu0
      %v2110 = vpop.f32.mrb[0].mxu0
      %v2111 = vadd.f32 0.0, %v2110
      %v2112 = vpop.f32.mrb[0].mxu0
      %2113 = vmatprep.mubr.bf16.mxu0 0
      %2114 = vmatmul.mubr.bf16.gmra.mrb[0].mxu0 %v2014
      %v2115 = vpop.f32.mrb[0].mxu0
      %v2116 = vadd.f32 0.0, %v2115
      %v2117 = vpop.f32.mrb[0].mxu0
      %v2118 = vpop.f32.mrb[0].mxu0
      %v2119 = vadd.f32 0.0, %v2118
      %v2120 = vpop.f32.mrb[0].mxu0
      %2121 = vmatprep.mubr.bf16.mxu0 0
      %2122 = vmatmul.mubr.bf16.gmra.mrb[0].mxu0 %v2017
      %v2123 = vpop.f32.mrb[0].mxu0
      %v2124 = vadd.f32 0.0, %v2123
      %v2125 = vpop.f32.mrb[0].mxu0
      %v2126 = vpop.f32.mrb[0].mxu0
      %v2127 = vadd.f32 0.0, %v2126
      %v2128 = vpop.f32.mrb[0].mxu0
      %2129 = vmatprep.mubr.bf16.mxu0 0
      %2130 = vmatmul.mubr.bf16.gmra.mrb[0].mxu0 %v2020
      %v2131 = vpop.f32.mrb[0].mxu0
      %v2132 = vadd.f32 0.0, %v2131
      %v2133 = vpop.f32.mrb[0].mxu0
      %v2134 = vpop.f32.mrb[0].mxu0
      %v2135 = vadd.f32 0.0, %v2134
      %v2136 = vpop.f32.mrb[0].mxu0
      %2137 = vmatprep.mubr.bf16.mxu0 0
      %2138 = vmatmul.mubr.bf16.gmra.mrb[0].mxu0 %v2023
      %v2139 = vpop.f32.mrb[0].mxu0
      %v2140 = vadd.f32 0.0, %v2139
      %v2141 = vpop.f32.mrb[0].mxu0
      %v2142 = vpop.f32.mrb[0].mxu0
      %v2143 = vadd.f32 0.0, %v2142
      %v2144 = vpop.f32.mrb[0].mxu0
      %2145 = vmatprep.mubr.bf16.mxu0 0
      %2146 = vmatmul.mubr.bf16.gmra.mrb[0].mxu0 %v2026
      %v2147 = vpop.f32.mrb[0].mxu0
      %v2148 = vadd.f32 0.0, %v2147
      %v2149 = vpop.f32.mrb[0].mxu0
      %v2150 = vpop.f32.mrb[0].mxu0
      %v2151 = vadd.f32 0.0, %v2150
      %v2152 = vpop.f32.mrb[0].mxu0
      %2153 = vmatprep.mubr.bf16.mxu0 0
      %2154 = vmatmul.mubr.bf16.gmra.mrb[0].mxu0 %v2029
      %v2155 = vpop.f32.mrb[0].mxu0
      %v2156 = vadd.f32 0.0, %v2155
      %v2157 = vpop.f32.mrb[0].mxu0
      %v2158 = vpop.f32.mrb[0].mxu0
      %v2159 = vadd.f32 0.0, %v2158
      %v2160 = vpop.f32.mrb[0].mxu0
      %2161 = vmatprep.mubr.bf16.mxu0 0
      %2162 = vmatmul.mubr.bf16.gmra.mrb[0].mxu0 %v2032
      %v2163 = vpop.f32.mrb[0].mxu0
      %v2164 = vadd.f32 0.0, %v2163
      %v2165 = vpop.f32.mrb[0].mxu0
      %v2166 = vpop.f32.mrb[0].mxu0
      %v2167 = vadd.f32 0.0, %v2166
      %v2168 = vpop.f32.mrb[0].mxu0
      %2169 = vmatprep.mubr.bf16.mxu0 0
      %2170 = vmatmul.mubr.bf16.gmra.mrb[0].mxu0 %v2035
      %v2171 = vpop.f32.mrb[0].mxu0
      %v2172 = vadd.f32 0.0, %v2171
      %v2173 = vpop.f32.mrb[0].mxu0
      %v2174 = vpop.f32.mrb[0].mxu0
      %v2175 = vadd.f32 0.0, %v2174
      %v2176 = vpop.f32.mrb[0].mxu0
      %2177 = vmatprep.mubr.bf16.mxu0 0
      %2178 = vmatmul.mubr.bf16.gmra.mrb[0].mxu0 %v2038
      %v2179 = vpop.f32.mrb[0].mxu0
      %v2180 = vadd.f32 0.0, %v2179
      %v2181 = vpop.f32.mrb[0].mxu0
      %v2182 = vpop.f32.mrb[0].mxu0
      %v2183 = vadd.f32 0.0, %v2182
      %v2184 = vpop.f32.mrb[0].mxu0
      %2185 = vmatprep.mubr.bf16.mxu0 0
      %2186 = vmatmul.mubr.bf16.gmra.mrb[0].mxu0 %v2041
      %v2187 = vpop.f32.mrb[0].mxu0
      %v2188 = vadd.f32 0.0, %v2187
      %v2189 = vpop.f32.mrb[0].mxu0
      %v2190 = vpop.f32.mrb[0].mxu0
      %v2191 = vadd.f32 0.0, %v2190
      %v2192 = vpop.f32.mrb[0].mxu0
      %2193 = vmatprep.mubr.bf16.mxu0 0
      %2194 = vmatmul.mubr.bf16.gmra.mrb[0].mxu0 %v2044
      %v2195 = vpop.f32.mrb[0].mxu0
      %v2196 = vadd.f32 0.0, %v2195
      %v2197 = vpop.f32.mrb[0].mxu0
      %v2198 = vpop.f32.mrb[0].mxu0
      %v2199 = vadd.f32 0.0, %v2198
      %v2200 = vpop.f32.mrb[0].mxu0
      %2201 = vmatprep.mubr.bf16.mxu0 0
      %2202 = vmatmul.mubr.bf16.gmra.mrb[0].mxu0 %v2047
      %v2203 = vpop.f32.mrb[0].mxu0
      %v2204 = vadd.f32 0.0, %v2203
      %v2205 = vpop.f32.mrb[0].mxu0
      %v2206 = vpop.f32.mrb[0].mxu0
      %v2207 = vadd.f32 0.0, %v2206
      %v2208 = vpop.f32.mrb[0].mxu0
      %2209 = vdwg.mxu0
      %v2210 = vadd.f32 %v1032, %v2084
      %v2211 = vadd.f32 %v1035, %v2087
      %v2212 = vadd.f32 %v1040, %v2092
      %v2213 = vadd.f32 %v1043, %v2095
      %v2214 = vadd.f32 %v1048, %v2100
      %v2215 = vadd.f32 %v1051, %v2103
      %v2216 = vadd.f32 %v1056, %v2108
      %v2217 = vadd.f32 %v1059, %v2111
      %v2218 = vadd.f32 %v1064, %v2116
      %v2219 = vadd.f32 %v1067, %v2119
      %v2220 = vadd.f32 %v1072, %v2124
      %v2221 = vadd.f32 %v1075, %v2127
      %v2222 = vadd.f32 %v1080, %v2132
      %v2223 = vadd.f32 %v1083, %v2135
      %v2224 = vadd.f32 %v1088, %v2140
      %v2225 = vadd.f32 %v1091, %v2143
      %v2226 = vadd.f32 %v1096, %v2148
      %v2227 = vadd.f32 %v1099, %v2151
      %v2228 = vadd.f32 %v1104, %v2156
      %v2229 = vadd.f32 %v1107, %v2159
      %v2230 = vadd.f32 %v1112, %v2164
      %v2231 = vadd.f32 %v1115, %v2167
      %v2232 = vadd.f32 %v1120, %v2172
      %v2233 = vadd.f32 %v1123, %v2175
      %v2234 = vadd.f32 %v1128, %v2180
      %v2235 = vadd.f32 %v1131, %v2183
      %v2236 = vadd.f32 %v1136, %v2188
      %v2237 = vadd.f32 %v1139, %v2191
      %v2238 = vadd.f32 %v1144, %v2196
      %v2239 = vadd.f32 %v1147, %v2199
      %v2240 = vadd.f32 %v1152, %v2204
      %v2241 = vadd.f32 %v1155, %v2207
      %v2242 = vunpack.c.l.b16 %v1558
      %v2243 = vunpack.c.l.b16 %v1568
      %v2244 = vunpack.c.l.b16 %v1582
      %v2245 = vunpack.c.l.b16 %v1592
      %v2246 = vunpack.c.l.b16 %v1606
      %v2247 = vunpack.c.l.b16 %v1616
      %v2248 = vunpack.c.l.b16 %v1630
      %v2249 = vunpack.c.l.b16 %v1640
      %v2250 = vunpack.c.l.b16 %v1654
      %v2251 = vunpack.c.l.b16 %v1664
      %v2252 = vunpack.c.l.b16 %v1678
      %v2253 = vunpack.c.l.b16 %v1688
      %v2254 = vunpack.c.l.b16 %v1702
      %v2255 = vunpack.c.l.b16 %v1712
      %v2256 = vunpack.c.l.b16 %v1726
      %v2257 = vunpack.c.l.b16 %v1736
      %v2258 = vunpack.c.l.b16 %v1750
      %v2259 = vunpack.c.l.b16 %v1760
      %v2260 = vunpack.c.l.b16 %v1774
      %v2261 = vunpack.c.l.b16 %v1784
      %v2262 = vunpack.c.l.b16 %v1798
      %v2263 = vunpack.c.l.b16 %v1808
      %v2264 = vunpack.c.l.b16 %v1822
      %v2265 = vunpack.c.l.b16 %v1832
      %v2266 = vunpack.c.l.b16 %v1846
      %v2267 = vunpack.c.l.b16 %v1856
      %v2268 = vunpack.c.l.b16 %v1870
      %v2269 = vunpack.c.l.b16 %v1880
      %v2270 = vunpack.c.l.b16 %v1894
      %v2271 = vunpack.c.l.b16 %v1904
      %v2272 = vunpack.c.l.b16 %v1918
      %v2273 = vunpack.c.l.b16 %v1928
      %v2274 = vpack.c.b16 %v2243, %v2242
      %v2275 = vpack.c.b16 %v2245, %v2244
      %v2276 = vpack.c.b16 %v2247, %v2246
      %v2277 = vpack.c.b16 %v2249, %v2248
      %v2278 = vpack.c.b16 %v2251, %v2250
      %v2279 = vpack.c.b16 %v2253, %v2252
      %v2280 = vpack.c.b16 %v2255, %v2254
      %v2281 = vpack.c.b16 %v2257, %v2256
      %v2282 = vpack.c.b16 %v2259, %v2258
      %v2283 = vpack.c.b16 %v2261, %v2260
      %v2284 = vpack.c.b16 %v2263, %v2262
      %v2285 = vpack.c.b16 %v2265, %v2264
      %v2286 = vpack.c.b16 %v2267, %v2266
      %v2287 = vpack.c.b16 %v2269, %v2268
      %v2288 = vpack.c.b16 %v2271, %v2270
      %v2289 = vpack.c.b16 %v2273, %v2272
      %v2292 = vunpack.c.l.b16 %v532
      %v2293 = vunpack.c.l.b16 %v533
      %v2294 = vpack.c.b16 %v2293, %v2292
      %v2297 = vsel %vm634, %v2274, 0
      %v2300 = vsel %vm634, %v2275, 0
      %v2303 = vsel %vm634, %v2276, 0
      %v2306 = vsel %vm634, %v2277, 0
      %v2309 = vsel %vm634, %v2278, 0
      %v2312 = vsel %vm634, %v2279, 0
      %v2315 = vsel %vm634, %v2280, 0
      %v2318 = vsel %vm634, %v2281, 0
      %v2321 = vsel %vm634, %v2282, 0
      %v2324 = vsel %vm634, %v2283, 0
      %v2327 = vsel %vm634, %v2284, 0
      %v2330 = vsel %vm634, %v2285, 0
      %v2333 = vsel %vm634, %v2286, 0
      %v2336 = vsel %vm634, %v2287, 0
      %v2339 = vsel %vm634, %v2288, 0
      %v2342 = vsel %vm634, %v2289, 0
      %2344 = vmatprep.subr.bf16.mxu0 0
      %2345 = vmatpush1.bf16.msra.mxu0 %v2294
      %2346 = vmatprep.subr.bf16.mxu0 0
      %2347 = vmatpush1.bf16.msra.mxu0 0
      %2348 = vmatprep.subr.bf16.mxu0 0
      %2349 = vmatpush1.bf16.msra.mxu0 0
      %2350 = vmatprep.subr.bf16.mxu0 0
      %2351 = vmatpush1.bf16.msra.mxu0 0
      %2352 = vmatprep.subr.bf16.mxu0 0
      %2353 = vmatpush1.bf16.msra.mxu0 0
      %2354 = vmatprep.subr.bf16.mxu0 0
      %2355 = vmatpush1.bf16.msra.mxu0 0
      %2356 = vmatprep.subr.bf16.mxu0 0
      %2357 = vmatpush1.bf16.msra.mxu0 0
      %2358 = vmatprep.subr.bf16.mxu0 0
      %2359 = vmatpush1.bf16.msra.mxu0 0
      %2360 = vmatprep.subr.bf16.mxu0 0
      %2361 = vmatpush1.bf16.msra.mxu0 0
      %2362 = vmatprep.subr.bf16.mxu0 0
      %2363 = vmatpush1.bf16.msra.mxu0 0
      %2364 = vmatprep.subr.bf16.mxu0 0
      %2365 = vmatpush1.bf16.msra.mxu0 0
      %2366 = vmatprep.subr.bf16.mxu0 0
      %2367 = vmatpush1.bf16.msra.mxu0 0
      %2368 = vmatprep.subr.bf16.mxu0 0
      %2369 = vmatpush1.bf16.msra.mxu0 0
      %2370 = vmatprep.subr.bf16.mxu0 0
      %2371 = vmatpush1.bf16.msra.mxu0 0
      %2372 = vmatprep.subr.bf16.mxu0 0
      %2373 = vmatpush1.bf16.msra.mxu0 0
      %2374 = vmatprep.subr.bf16.mxu0 0
      %2375 = vmatpush1.bf16.msra.mxu0 0
      %2376 = vmatprep.mubr.bf16.mxu0 0
      %2377 = vmatmul.mubr.bf16.gmra.mrb[0].mxu0 %v2297
      %v2378 = vpop.f32.mrb[0].mxu0
      %v2379 = vadd.f32 0.0, %v2378
      %v2380 = vpop.f32.mrb[0].mxu0
      %v2381 = vpop.f32.mrb[0].mxu0
      %v2382 = vadd.f32 0.0, %v2381
      %v2383 = vpop.f32.mrb[0].mxu0
      %2384 = vmatprep.mubr.bf16.mxu0 0
      %2385 = vmatmul.mubr.bf16.gmra.mrb[0].mxu0 %v2300
      %v2386 = vpop.f32.mrb[0].mxu0
      %v2387 = vadd.f32 0.0, %v2386
      %v2388 = vpop.f32.mrb[0].mxu0
      %v2389 = vpop.f32.mrb[0].mxu0
      %v2390 = vadd.f32 0.0, %v2389
      %v2391 = vpop.f32.mrb[0].mxu0
      %2392 = vmatprep.mubr.bf16.mxu0 0
      %2393 = vmatmul.mubr.bf16.gmra.mrb[0].mxu0 %v2303
      %v2394 = vpop.f32.mrb[0].mxu0
      %v2395 = vadd.f32 0.0, %v2394
      %v2396 = vpop.f32.mrb[0].mxu0
      %v2397 = vpop.f32.mrb[0].mxu0
      %v2398 = vadd.f32 0.0, %v2397
      %v2399 = vpop.f32.mrb[0].mxu0
      %2400 = vmatprep.mubr.bf16.mxu0 0
      %2401 = vmatmul.mubr.bf16.gmra.mrb[0].mxu0 %v2306
      %v2402 = vpop.f32.mrb[0].mxu0
      %v2403 = vadd.f32 0.0, %v2402
      %v2404 = vpop.f32.mrb[0].mxu0
      %v2405 = vpop.f32.mrb[0].mxu0
      %v2406 = vadd.f32 0.0, %v2405
      %v2407 = vpop.f32.mrb[0].mxu0
      %2408 = vmatprep.mubr.bf16.mxu0 0
      %2409 = vmatmul.mubr.bf16.gmra.mrb[0].mxu0 %v2309
      %v2410 = vpop.f32.mrb[0].mxu0
      %v2411 = vadd.f32 0.0, %v2410
      %v2412 = vpop.f32.mrb[0].mxu0
      %v2413 = vpop.f32.mrb[0].mxu0
      %v2414 = vadd.f32 0.0, %v2413
      %v2415 = vpop.f32.mrb[0].mxu0
      %2416 = vmatprep.mubr.bf16.mxu0 0
      %2417 = vmatmul.mubr.bf16.gmra.mrb[0].mxu0 %v2312
      %v2418 = vpop.f32.mrb[0].mxu0
      %v2419 = vadd.f32 0.0, %v2418
      %v2420 = vpop.f32.mrb[0].mxu0
      %v2421 = vpop.f32.mrb[0].mxu0
      %v2422 = vadd.f32 0.0, %v2421
      %v2423 = vpop.f32.mrb[0].mxu0
      %2424 = vmatprep.mubr.bf16.mxu0 0
      %2425 = vmatmul.mubr.bf16.gmra.mrb[0].mxu0 %v2315
      %v2426 = vpop.f32.mrb[0].mxu0
      %v2427 = vadd.f32 0.0, %v2426
      %v2428 = vpop.f32.mrb[0].mxu0
      %v2429 = vpop.f32.mrb[0].mxu0
      %v2430 = vadd.f32 0.0, %v2429
      %v2431 = vpop.f32.mrb[0].mxu0
      %2432 = vmatprep.mubr.bf16.mxu0 0
      %2433 = vmatmul.mubr.bf16.gmra.mrb[0].mxu0 %v2318
      %v2434 = vpop.f32.mrb[0].mxu0
      %v2435 = vadd.f32 0.0, %v2434
      %v2436 = vpop.f32.mrb[0].mxu0
      %v2437 = vpop.f32.mrb[0].mxu0
      %v2438 = vadd.f32 0.0, %v2437
      %v2439 = vpop.f32.mrb[0].mxu0
      %2440 = vmatprep.mubr.bf16.mxu0 0
      %2441 = vmatmul.mubr.bf16.gmra.mrb[0].mxu0 %v2321
      %v2442 = vpop.f32.mrb[0].mxu0
      %v2443 = vadd.f32 0.0, %v2442
      %v2444 = vpop.f32.mrb[0].mxu0
      %v2445 = vpop.f32.mrb[0].mxu0
      %v2446 = vadd.f32 0.0, %v2445
      %v2447 = vpop.f32.mrb[0].mxu0
      %2448 = vmatprep.mubr.bf16.mxu0 0
      %2449 = vmatmul.mubr.bf16.gmra.mrb[0].mxu0 %v2324
      %v2450 = vpop.f32.mrb[0].mxu0
      %v2451 = vadd.f32 0.0, %v2450
      %v2452 = vpop.f32.mrb[0].mxu0
      %v2453 = vpop.f32.mrb[0].mxu0
      %v2454 = vadd.f32 0.0, %v2453
      %v2455 = vpop.f32.mrb[0].mxu0
      %2456 = vmatprep.mubr.bf16.mxu0 0
      %2457 = vmatmul.mubr.bf16.gmra.mrb[0].mxu0 %v2327
      %v2458 = vpop.f32.mrb[0].mxu0
      %v2459 = vadd.f32 0.0, %v2458
      %v2460 = vpop.f32.mrb[0].mxu0
      %v2461 = vpop.f32.mrb[0].mxu0
      %v2462 = vadd.f32 0.0, %v2461
      %v2463 = vpop.f32.mrb[0].mxu0
      %2464 = vmatprep.mubr.bf16.mxu0 0
      %2465 = vmatmul.mubr.bf16.gmra.mrb[0].mxu0 %v2330
      %v2466 = vpop.f32.mrb[0].mxu0
      %v2467 = vadd.f32 0.0, %v2466
      %v2468 = vpop.f32.mrb[0].mxu0
      %v2469 = vpop.f32.mrb[0].mxu0
      %v2470 = vadd.f32 0.0, %v2469
      %v2471 = vpop.f32.mrb[0].mxu0
      %2472 = vmatprep.mubr.bf16.mxu0 0
      %2473 = vmatmul.mubr.bf16.gmra.mrb[0].mxu0 %v2333
      %v2474 = vpop.f32.mrb[0].mxu0
      %v2475 = vadd.f32 0.0, %v2474
      %v2476 = vpop.f32.mrb[0].mxu0
      %v2477 = vpop.f32.mrb[0].mxu0
      %v2478 = vadd.f32 0.0, %v2477
      %v2479 = vpop.f32.mrb[0].mxu0
      %2480 = vmatprep.mubr.bf16.mxu0 0
      %2481 = vmatmul.mubr.bf16.gmra.mrb[0].mxu0 %v2336
      %v2482 = vpop.f32.mrb[0].mxu0
      %v2483 = vadd.f32 0.0, %v2482
      %v2484 = vpop.f32.mrb[0].mxu0
      %v2485 = vpop.f32.mrb[0].mxu0
      %v2486 = vadd.f32 0.0, %v2485
      %v2487 = vpop.f32.mrb[0].mxu0
      %2488 = vmatprep.mubr.bf16.mxu0 0
      %2489 = vmatmul.mubr.bf16.gmra.mrb[0].mxu0 %v2339
      %v2490 = vpop.f32.mrb[0].mxu0
      %v2491 = vadd.f32 0.0, %v2490
      %v2492 = vpop.f32.mrb[0].mxu0
      %v2493 = vpop.f32.mrb[0].mxu0
      %v2494 = vadd.f32 0.0, %v2493
      %v2495 = vpop.f32.mrb[0].mxu0
      %2496 = vmatprep.mubr.bf16.mxu0 0
      %2497 = vmatmul.mubr.bf16.gmra.mrb[0].mxu0 %v2342
      %v2498 = vpop.f32.mrb[0].mxu0
      %v2499 = vadd.f32 0.0, %v2498
      %v2500 = vpop.f32.mrb[0].mxu0
      %v2501 = vpop.f32.mrb[0].mxu0
      %v2502 = vadd.f32 0.0, %v2501
      %v2503 = vpop.f32.mrb[0].mxu0
      %2504 = vdwg.mxu0
      %v2505 = vadd.f32 %v2210, %v2379
      %v2506 = vadd.f32 %v2211, %v2382
      %v2507 = vadd.f32 %v2212, %v2387
      %v2508 = vadd.f32 %v2213, %v2390
      %v2509 = vadd.f32 %v2214, %v2395
      %v2510 = vadd.f32 %v2215, %v2398
      %v2511 = vadd.f32 %v2216, %v2403
      %v2512 = vadd.f32 %v2217, %v2406
      %v2513 = vadd.f32 %v2218, %v2411
      %v2514 = vadd.f32 %v2219, %v2414
      %v2515 = vadd.f32 %v2220, %v2419
      %v2516 = vadd.f32 %v2221, %v2422
      %v2517 = vadd.f32 %v2222, %v2427
      %v2518 = vadd.f32 %v2223, %v2430
      %v2519 = vadd.f32 %v2224, %v2435
      %v2520 = vadd.f32 %v2225, %v2438
      %v2521 = vadd.f32 %v2226, %v2443
      %v2522 = vadd.f32 %v2227, %v2446
      %v2523 = vadd.f32 %v2228, %v2451
      %v2524 = vadd.f32 %v2229, %v2454
      %v2525 = vadd.f32 %v2230, %v2459
      %v2526 = vadd.f32 %v2231, %v2462
      %v2527 = vadd.f32 %v2232, %v2467
      %v2528 = vadd.f32 %v2233, %v2470
      %v2529 = vadd.f32 %v2234, %v2475
      %v2530 = vadd.f32 %v2235, %v2478
      %v2531 = vadd.f32 %v2236, %v2483
      %v2532 = vadd.f32 %v2237, %v2486
      %v2533 = vadd.f32 %v2238, %v2491
      %v2534 = vadd.f32 %v2239, %v2494
      %v2535 = vadd.f32 %v2240, %v2499
      %v2536 = vadd.f32 %v2241, %v2502
      %vm2553 = vcmask 1042432
      %vm2554 = vcmask 1046532
      %vm2555 = vmor %vm2553, %vm2554
      %v2556 = vrot.slane %v350, 5
      %v2557 = vrot.slane %v2556, 4
      %v2558 = vrot.slane %v351, 5
      %v2559 = vsel %vm2555, %v2557, %v2558
      %v2560 = vrot.slane %v2558, 4
      %v2561 = vrot.slane %v352, 5
      %v2562 = vsel %vm2555, %v2560, %v2561
      %v2563 = vrot.slane %v353, 5
      %v2564 = vrot.slane %v2563, 4
      %v2565 = vrot.slane %v354, 5
      %v2566 = vsel %vm2555, %v2564, %v2565
      %v2567 = vrot.slane %v2565, 4
      %v2568 = vrot.slane %v355, 5
      %v2569 = vsel %vm2555, %v2567, %v2568
      %v2570 = vrot.slane %v356, 5
      %v2571 = vrot.slane %v2570, 4
      %v2572 = vrot.slane %v357, 5
      %v2573 = vsel %vm2555, %v2571, %v2572
      %v2574 = vrot.slane %v2572, 4
      %v2575 = vrot.slane %v358, 5
      %v2576 = vsel %vm2555, %v2574, %v2575
      %v2577 = vrot.slane %v359, 5
      %v2578 = vrot.slane %v2577, 4
      %v2579 = vrot.slane %v360, 5
      %v2580 = vsel %vm2555, %v2578, %v2579
      %v2581 = vrot.slane %v2579, 4
      %v2582 = vrot.slane %v361, 5
      %v2583 = vsel %vm2555, %v2581, %v2582
      %v2584 = vrot.slane %v362, 5
      %v2585 = vrot.slane %v2584, 4
      %v2586 = vrot.slane %v363, 5
      %v2587 = vsel %vm2555, %v2585, %v2586
      %v2588 = vrot.slane %v2586, 4
      %v2589 = vrot.slane %v364, 5
      %v2590 = vsel %vm2555, %v2588, %v2589
      %v2591 = vrot.slane %v365, 5
      %v2592 = vrot.slane %v2591, 4
      %v2593 = vrot.slane %v366, 5
      %v2594 = vsel %vm2555, %v2592, %v2593
      %v2595 = vrot.slane %v2593, 4
      %v2596 = vrot.slane %v367, 5
      %v2597 = vsel %vm2555, %v2595, %v2596
      %v2598 = vrot.slane %v368, 5
      %v2599 = vrot.slane %v2598, 4
      %v2600 = vrot.slane %v369, 5
      %v2601 = vsel %vm2555, %v2599, %v2600
      %v2602 = vrot.slane %v2600, 4
      %v2603 = vrot.slane %v370, 5
      %v2604 = vsel %vm2555, %v2602, %v2603
      %v2605 = vrot.slane %v371, 5
      %v2606 = vrot.slane %v2605, 4
      %v2607 = vrot.slane %v372, 5
      %v2608 = vsel %vm2555, %v2606, %v2607
      %v2609 = vrot.slane %v2607, 4
      %v2610 = vrot.slane %v373, 5
      %v2611 = vsel %vm2555, %v2609, %v2610
      %v2612 = vrot.slane %v374, 5
      %v2613 = vrot.slane %v2612, 4
      %v2614 = vrot.slane %v375, 5
      %v2615 = vsel %vm2555, %v2613, %v2614
      %v2616 = vrot.slane %v2614, 4
      %v2617 = vrot.slane %v376, 5
      %v2618 = vsel %vm2555, %v2616, %v2617
      %v2619 = vrot.slane %v377, 5
      %v2620 = vrot.slane %v2619, 4
      %v2621 = vrot.slane %v378, 5
      %v2622 = vsel %vm2555, %v2620, %v2621
      %v2623 = vrot.slane %v2621, 4
      %v2624 = vrot.slane %v379, 5
      %v2625 = vsel %vm2555, %v2623, %v2624
      %v2626 = vrot.slane %v380, 5
      %v2627 = vrot.slane %v2626, 4
      %v2628 = vrot.slane %v381, 5
      %v2629 = vsel %vm2555, %v2627, %v2628
      %v2630 = vrot.slane %v2628, 4
      %v2631 = vrot.slane %v382, 5
      %v2632 = vsel %vm2555, %v2630, %v2631
      %v2633 = vrot.slane %v383, 5
      %v2634 = vrot.slane %v2633, 4
      %v2635 = vrot.slane %v384, 5
      %v2636 = vsel %vm2555, %v2634, %v2635
      %v2637 = vrot.slane %v2635, 4
      %v2638 = vrot.slane %v385, 5
      %v2639 = vsel %vm2555, %v2637, %v2638
      %v2640 = vrot.slane %v386, 5
      %v2641 = vrot.slane %v2640, 4
      %v2642 = vrot.slane %v387, 5
      %v2643 = vsel %vm2555, %v2641, %v2642
      %v2644 = vrot.slane %v2642, 4
      %v2645 = vrot.slane %v388, 5
      %v2646 = vsel %vm2555, %v2644, %v2645
      %v2647 = vrot.slane %v389, 5
      %v2648 = vrot.slane %v2647, 4
      %v2649 = vrot.slane %v390, 5
      %v2650 = vsel %vm2555, %v2648, %v2649
      %v2651 = vrot.slane %v2649, 4
      %v2652 = vrot.slane %v391, 5
      %v2653 = vsel %vm2555, %v2651, %v2652
      %v2654 = vrot.slane %v392, 5
      %v2655 = vrot.slane %v2654, 4
      %v2656 = vrot.slane %v393, 5
      %v2657 = vsel %vm2555, %v2655, %v2656
      %v2658 = vrot.slane %v2656, 4
      %v2659 = vrot.slane %v394, 5
      %v2660 = vsel %vm2555, %v2658, %v2659
      %v2661 = vrot.slane %v395, 5
      %v2662 = vrot.slane %v2661, 4
      %v2663 = vrot.slane %v396, 5
      %v2664 = vsel %vm2555, %v2662, %v2663
      %v2665 = vrot.slane %v2663, 4
      %v2666 = vrot.slane %v397, 5
      %v2667 = vsel %vm2555, %v2665, %v2666
      %v2684 = vrot.slane %v404, 5
      %v2685 = vrot.slane %v2684, 4
      %v2686 = vrot.slane %v405, 5
      %v2687 = vsel %vm2555, %v2685, %v2686
      %v2688 = vrot.slane %v2686, 4
      %v2689 = vrot.slane %v406, 5
      %v2690 = vsel %vm2555, %v2688, %v2689
      %v2691 = vrot.slane %v407, 5
      %v2692 = vrot.slane %v2691, 4
      %v2693 = vrot.slane %v408, 5
      %v2694 = vsel %vm2555, %v2692, %v2693
      %v2695 = vrot.slane %v2693, 4
      %v2696 = vrot.slane %v409, 5
      %v2697 = vsel %vm2555, %v2695, %v2696
      %v2698 = vrot.slane %v410, 5
      %v2699 = vrot.slane %v2698, 4
      %v2700 = vrot.slane %v411, 5
      %v2701 = vsel %vm2555, %v2699, %v2700
      %v2702 = vrot.slane %v2700, 4
      %v2703 = vrot.slane %v412, 5
      %v2704 = vsel %vm2555, %v2702, %v2703
      %v2705 = vrot.slane %v413, 5
      %v2706 = vrot.slane %v2705, 4
      %v2707 = vrot.slane %v414, 5
      %v2708 = vsel %vm2555, %v2706, %v2707
      %v2709 = vrot.slane %v2707, 4
      %v2710 = vrot.slane %v415, 5
      %v2711 = vsel %vm2555, %v2709, %v2710
      %v2712 = vrot.slane %v416, 5
      %v2713 = vrot.slane %v2712, 4
      %v2714 = vrot.slane %v417, 5
      %v2715 = vsel %vm2555, %v2713, %v2714
      %v2716 = vrot.slane %v2714, 4
      %v2717 = vrot.slane %v418, 5
      %v2718 = vsel %vm2555, %v2716, %v2717
      %v2719 = vrot.slane %v419, 5
      %v2720 = vrot.slane %v2719, 4
      %v2721 = vrot.slane %v420, 5
      %v2722 = vsel %vm2555, %v2720, %v2721
      %v2723 = vrot.slane %v2721, 4
      %v2724 = vrot.slane %v421, 5
      %v2725 = vsel %vm2555, %v2723, %v2724
      %v2726 = vrot.slane %v422, 5
      %v2727 = vrot.slane %v2726, 4
      %v2728 = vrot.slane %v423, 5
      %v2729 = vsel %vm2555, %v2727, %v2728
      %v2730 = vrot.slane %v2728, 4
      %v2731 = vrot.slane %v424, 5
      %v2732 = vsel %vm2555, %v2730, %v2731
      %v2733 = vrot.slane %v425, 5
      %v2734 = vrot.slane %v2733, 4
      %v2735 = vrot.slane %v426, 5
      %v2736 = vsel %vm2555, %v2734, %v2735
      %v2737 = vrot.slane %v2735, 4
      %v2738 = vrot.slane %v427, 5
      %v2739 = vsel %vm2555, %v2737, %v2738
      %v2740 = vrot.slane %v428, 5
      %v2741 = vrot.slane %v2740, 4
      %v2742 = vrot.slane %v429, 5
      %v2743 = vsel %vm2555, %v2741, %v2742
      %v2744 = vrot.slane %v2742, 4
      %v2745 = vrot.slane %v430, 5
      %v2746 = vsel %vm2555, %v2744, %v2745
      %v2747 = vrot.slane %v431, 5
      %v2748 = vrot.slane %v2747, 4
      %v2749 = vrot.slane %v432, 5
      %v2750 = vsel %vm2555, %v2748, %v2749
      %v2751 = vrot.slane %v2749, 4
      %v2752 = vrot.slane %v433, 5
      %v2753 = vsel %vm2555, %v2751, %v2752
      %v2754 = vrot.slane %v434, 5
      %v2755 = vrot.slane %v2754, 4
      %v2756 = vrot.slane %v435, 5
      %v2757 = vsel %vm2555, %v2755, %v2756
      %v2758 = vrot.slane %v2756, 4
      %v2759 = vrot.slane %v436, 5
      %v2760 = vsel %vm2555, %v2758, %v2759
      %v2761 = vrot.slane %v437, 5
      %v2762 = vrot.slane %v2761, 4
      %v2763 = vrot.slane %v438, 5
      %v2764 = vsel %vm2555, %v2762, %v2763
      %v2765 = vrot.slane %v2763, 4
      %v2766 = vrot.slane %v439, 5
      %v2767 = vsel %vm2555, %v2765, %v2766
      %v2768 = vrot.slane %v440, 5
      %v2769 = vrot.slane %v2768, 4
      %v2770 = vrot.slane %v441, 5
      %v2771 = vsel %vm2555, %v2769, %v2770
      %v2772 = vrot.slane %v2770, 4
      %v2773 = vrot.slane %v442, 5
      %v2774 = vsel %vm2555, %v2772, %v2773
      %v2775 = vrot.slane %v443, 5
      %v2776 = vrot.slane %v2775, 4
      %v2777 = vrot.slane %v444, 5
      %v2778 = vsel %vm2555, %v2776, %v2777
      %v2779 = vrot.slane %v2777, 4
      %v2780 = vrot.slane %v445, 5
      %v2781 = vsel %vm2555, %v2779, %v2780
      %v2782 = vrot.slane %v446, 5
      %v2783 = vrot.slane %v2782, 4
      %v2784 = vrot.slane %v447, 5
      %v2785 = vsel %vm2555, %v2783, %v2784
      %v2786 = vrot.slane %v2784, 4
      %v2787 = vrot.slane %v448, 5
      %v2788 = vsel %vm2555, %v2786, %v2787
      %v2789 = vrot.slane %v449, 5
      %v2790 = vrot.slane %v2789, 4
      %v2791 = vrot.slane %v450, 5
      %v2792 = vsel %vm2555, %v2790, %v2791
      %v2793 = vrot.slane %v2791, 4
      %v2794 = vrot.slane %v451, 5
      %v2795 = vsel %vm2555, %v2793, %v2794
      %v2796 = vunpack.c.l.b16 %v2559
      %v2797 = vunpack.c.l.b16 %v2562
      %v2798 = vunpack.c.l.b16 %v2566
      %v2799 = vunpack.c.l.b16 %v2569
      %v2800 = vunpack.c.l.b16 %v2573
      %v2801 = vunpack.c.l.b16 %v2576
      %v2802 = vunpack.c.l.b16 %v2580
      %v2803 = vunpack.c.l.b16 %v2583
      %v2804 = vunpack.c.l.b16 %v2587
      %v2805 = vunpack.c.l.b16 %v2590
      %v2806 = vunpack.c.l.b16 %v2594
      %v2807 = vunpack.c.l.b16 %v2597
      %v2808 = vunpack.c.l.b16 %v2601
      %v2809 = vunpack.c.l.b16 %v2604
      %v2810 = vunpack.c.l.b16 %v2608
      %v2811 = vunpack.c.l.b16 %v2611
      %v2812 = vunpack.c.l.b16 %v2615
      %v2813 = vunpack.c.l.b16 %v2618
      %v2814 = vunpack.c.l.b16 %v2622
      %v2815 = vunpack.c.l.b16 %v2625
      %v2816 = vunpack.c.l.b16 %v2629
      %v2817 = vunpack.c.l.b16 %v2632
      %v2818 = vunpack.c.l.b16 %v2636
      %v2819 = vunpack.c.l.b16 %v2639
      %v2820 = vunpack.c.l.b16 %v2643
      %v2821 = vunpack.c.l.b16 %v2646
      %v2822 = vunpack.c.l.b16 %v2650
      %v2823 = vunpack.c.l.b16 %v2653
      %v2824 = vunpack.c.l.b16 %v2657
      %v2825 = vunpack.c.l.b16 %v2660
      %v2826 = vunpack.c.l.b16 %v2664
      %v2827 = vunpack.c.l.b16 %v2667
      %v2828 = vpack.c.b16 %v2797, %v2796
      %v2829 = vpack.c.b16 %v2799, %v2798
      %v2830 = vpack.c.b16 %v2801, %v2800
      %v2831 = vpack.c.b16 %v2803, %v2802
      %v2832 = vpack.c.b16 %v2805, %v2804
      %v2833 = vpack.c.b16 %v2807, %v2806
      %v2834 = vpack.c.b16 %v2809, %v2808
      %v2835 = vpack.c.b16 %v2811, %v2810
      %v2836 = vpack.c.b16 %v2813, %v2812
      %v2837 = vpack.c.b16 %v2815, %v2814
      %v2838 = vpack.c.b16 %v2817, %v2816
      %v2839 = vpack.c.b16 %v2819, %v2818
      %v2840 = vpack.c.b16 %v2821, %v2820
      %v2841 = vpack.c.b16 %v2823, %v2822
      %v2842 = vpack.c.b16 %v2825, %v2824
      %v2843 = vpack.c.b16 %v2827, %v2826
      %v2852 = vunpack.c.l.b16 %v474
      %v2853 = vunpack.c.l.b16 %v475
      %v2854 = vunpack.c.l.b16 %v476
      %v2855 = vunpack.c.l.b16 %v477
      %v2856 = vunpack.c.l.b16 %v478
      %v2857 = vunpack.c.l.b16 %v479
      %v2858 = vunpack.c.l.b16 %v480
      %v2859 = vunpack.c.l.b16 %v481
      %v2860 = vpack.c.b16 %v2853, %v2852
      %v2861 = vpack.c.b16 %v2855, %v2854
      %v2862 = vpack.c.b16 %v2857, %v2856
      %v2863 = vpack.c.b16 %v2859, %v2858
      %v2869 = vsel %vm948, %v2828, 0
      %v2872 = vsel %vm948, %v2829, 0
      %v2875 = vsel %vm948, %v2830, 0
      %v2878 = vsel %vm948, %v2831, 0
      %v2881 = vsel %vm948, %v2832, 0
      %v2884 = vsel %vm948, %v2833, 0
      %v2887 = vsel %vm948, %v2834, 0
      %v2890 = vsel %vm948, %v2835, 0
      %v2893 = vsel %vm948, %v2836, 0
      %v2896 = vsel %vm948, %v2837, 0
      %v2899 = vsel %vm948, %v2838, 0
      %v2902 = vsel %vm948, %v2839, 0
      %v2905 = vsel %vm948, %v2840, 0
      %v2908 = vsel %vm948, %v2841, 0
      %v2911 = vsel %vm948, %v2842, 0
      %v2914 = vsel %vm948, %v2843, 0
      %2916 = vmatprep.subr.bf16.mxu0 0
      %2917 = vmatpush1.bf16.msra.mxu0 %v2860
      %2918 = vmatprep.subr.bf16.mxu0 0
      %2919 = vmatpush1.bf16.msra.mxu0 %v2861
      %2920 = vmatprep.subr.bf16.mxu0 0
      %2921 = vmatpush1.bf16.msra.mxu0 %v2862
      %2922 = vmatprep.subr.bf16.mxu0 0
      %2923 = vmatpush1.bf16.msra.mxu0 %v2863
      %2924 = vmatprep.subr.bf16.mxu0 0
      %2925 = vmatpush1.bf16.msra.mxu0 0
      %2926 = vmatprep.subr.bf16.mxu0 0
      %2927 = vmatpush1.bf16.msra.mxu0 0
      %2928 = vmatprep.subr.bf16.mxu0 0
      %2929 = vmatpush1.bf16.msra.mxu0 0
      %2930 = vmatprep.subr.bf16.mxu0 0
      %2931 = vmatpush1.bf16.msra.mxu0 0
      %2932 = vmatprep.subr.bf16.mxu0 0
      %2933 = vmatpush1.bf16.msra.mxu0 0
      %2934 = vmatprep.subr.bf16.mxu0 0
      %2935 = vmatpush1.bf16.msra.mxu0 0
      %2936 = vmatprep.subr.bf16.mxu0 0
      %2937 = vmatpush1.bf16.msra.mxu0 0
      %2938 = vmatprep.subr.bf16.mxu0 0
      %2939 = vmatpush1.bf16.msra.mxu0 0
      %2940 = vmatprep.subr.bf16.mxu0 0
      %2941 = vmatpush1.bf16.msra.mxu0 0
      %2942 = vmatprep.subr.bf16.mxu0 0
      %2943 = vmatpush1.bf16.msra.mxu0 0
      %2944 = vmatprep.subr.bf16.mxu0 0
      %2945 = vmatpush1.bf16.msra.mxu0 0
      %2946 = vmatprep.subr.bf16.mxu0 0
      %2947 = vmatpush1.bf16.msra.mxu0 0
      %2948 = vmatprep.mubr.bf16.mxu0 0
      %2949 = vmatmul.mubr.bf16.gmra.mrb[0].mxu0 %v2869
      %v2950 = vpop.f32.mrb[0].mxu0
      %v2951 = vadd.f32 0.0, %v2950
      %v2952 = vpop.f32.mrb[0].mxu0
      %v2953 = vpop.f32.mrb[0].mxu0
      %v2954 = vadd.f32 0.0, %v2953
      %v2955 = vpop.f32.mrb[0].mxu0
      %2956 = vmatprep.mubr.bf16.mxu0 0
      %2957 = vmatmul.mubr.bf16.gmra.mrb[0].mxu0 %v2872
      %v2958 = vpop.f32.mrb[0].mxu0
      %v2959 = vadd.f32 0.0, %v2958
      %v2960 = vpop.f32.mrb[0].mxu0
      %v2961 = vpop.f32.mrb[0].mxu0
      %v2962 = vadd.f32 0.0, %v2961
      %v2963 = vpop.f32.mrb[0].mxu0
      %2964 = vmatprep.mubr.bf16.mxu0 0
      %2965 = vmatmul.mubr.bf16.gmra.mrb[0].mxu0 %v2875
      %v2966 = vpop.f32.mrb[0].mxu0
      %v2967 = vadd.f32 0.0, %v2966
      %v2968 = vpop.f32.mrb[0].mxu0
      %v2969 = vpop.f32.mrb[0].mxu0
      %v2970 = vadd.f32 0.0, %v2969
      %v2971 = vpop.f32.mrb[0].mxu0
      %2972 = vmatprep.mubr.bf16.mxu0 0
      %2973 = vmatmul.mubr.bf16.gmra.mrb[0].mxu0 %v2878
      %v2974 = vpop.f32.mrb[0].mxu0
      %v2975 = vadd.f32 0.0, %v2974
      %v2976 = vpop.f32.mrb[0].mxu0
      %v2977 = vpop.f32.mrb[0].mxu0
      %v2978 = vadd.f32 0.0, %v2977
      %v2979 = vpop.f32.mrb[0].mxu0
      %2980 = vmatprep.mubr.bf16.mxu0 0
      %2981 = vmatmul.mubr.bf16.gmra.mrb[0].mxu0 %v2881
      %v2982 = vpop.f32.mrb[0].mxu0
      %v2983 = vadd.f32 0.0, %v2982
      %v2984 = vpop.f32.mrb[0].mxu0
      %v2985 = vpop.f32.mrb[0].mxu0
      %v2986 = vadd.f32 0.0, %v2985
      %v2987 = vpop.f32.mrb[0].mxu0
      %2988 = vmatprep.mubr.bf16.mxu0 0
      %2989 = vmatmul.mubr.bf16.gmra.mrb[0].mxu0 %v2884
      %v2990 = vpop.f32.mrb[0].mxu0
      %v2991 = vadd.f32 0.0, %v2990
      %v2992 = vpop.f32.mrb[0].mxu0
      %v2993 = vpop.f32.mrb[0].mxu0
      %v2994 = vadd.f32 0.0, %v2993
      %v2995 = vpop.f32.mrb[0].mxu0
      %2996 = vmatprep.mubr.bf16.mxu0 0
      %2997 = vmatmul.mubr.bf16.gmra.mrb[0].mxu0 %v2887
      %v2998 = vpop.f32.mrb[0].mxu0
      %v2999 = vadd.f32 0.0, %v2998
      %v3000 = vpop.f32.mrb[0].mxu0
      %v3001 = vpop.f32.mrb[0].mxu0
      %v3002 = vadd.f32 0.0, %v3001
      %v3003 = vpop.f32.mrb[0].mxu0
      %3004 = vmatprep.mubr.bf16.mxu0 0
      %3005 = vmatmul.mubr.bf16.gmra.mrb[0].mxu0 %v2890
      %v3006 = vpop.f32.mrb[0].mxu0
      %v3007 = vadd.f32 0.0, %v3006
      %v3008 = vpop.f32.mrb[0].mxu0
      %v3009 = vpop.f32.mrb[0].mxu0
      %v3010 = vadd.f32 0.0, %v3009
      %v3011 = vpop.f32.mrb[0].mxu0
      %3012 = vmatprep.mubr.bf16.mxu0 0
      %3013 = vmatmul.mubr.bf16.gmra.mrb[0].mxu0 %v2893
      %v3014 = vpop.f32.mrb[0].mxu0
      %v3015 = vadd.f32 0.0, %v3014
      %v3016 = vpop.f32.mrb[0].mxu0
      %v3017 = vpop.f32.mrb[0].mxu0
      %v3018 = vadd.f32 0.0, %v3017
      %v3019 = vpop.f32.mrb[0].mxu0
      %3020 = vmatprep.mubr.bf16.mxu0 0
      %3021 = vmatmul.mubr.bf16.gmra.mrb[0].mxu0 %v2896
      %v3022 = vpop.f32.mrb[0].mxu0
      %v3023 = vadd.f32 0.0, %v3022
      %v3024 = vpop.f32.mrb[0].mxu0
      %v3025 = vpop.f32.mrb[0].mxu0
      %v3026 = vadd.f32 0.0, %v3025
      %v3027 = vpop.f32.mrb[0].mxu0
      %3028 = vmatprep.mubr.bf16.mxu0 0
      %3029 = vmatmul.mubr.bf16.gmra.mrb[0].mxu0 %v2899
      %v3030 = vpop.f32.mrb[0].mxu0
      %v3031 = vadd.f32 0.0, %v3030
      %v3032 = vpop.f32.mrb[0].mxu0
      %v3033 = vpop.f32.mrb[0].mxu0
      %v3034 = vadd.f32 0.0, %v3033
      %v3035 = vpop.f32.mrb[0].mxu0
      %3036 = vmatprep.mubr.bf16.mxu0 0
      %3037 = vmatmul.mubr.bf16.gmra.mrb[0].mxu0 %v2902
      %v3038 = vpop.f32.mrb[0].mxu0
      %v3039 = vadd.f32 0.0, %v3038
      %v3040 = vpop.f32.mrb[0].mxu0
      %v3041 = vpop.f32.mrb[0].mxu0
      %v3042 = vadd.f32 0.0, %v3041
      %v3043 = vpop.f32.mrb[0].mxu0
      %3044 = vmatprep.mubr.bf16.mxu0 0
      %3045 = vmatmul.mubr.bf16.gmra.mrb[0].mxu0 %v2905
      %v3046 = vpop.f32.mrb[0].mxu0
      %v3047 = vadd.f32 0.0, %v3046
      %v3048 = vpop.f32.mrb[0].mxu0
      %v3049 = vpop.f32.mrb[0].mxu0
      %v3050 = vadd.f32 0.0, %v3049
      %v3051 = vpop.f32.mrb[0].mxu0
      %3052 = vmatprep.mubr.bf16.mxu0 0
      %3053 = vmatmul.mubr.bf16.gmra.mrb[0].mxu0 %v2908
      %v3054 = vpop.f32.mrb[0].mxu0
      %v3055 = vadd.f32 0.0, %v3054
      %v3056 = vpop.f32.mrb[0].mxu0
      %v3057 = vpop.f32.mrb[0].mxu0
      %v3058 = vadd.f32 0.0, %v3057
      %v3059 = vpop.f32.mrb[0].mxu0
      %3060 = vmatprep.mubr.bf16.mxu0 0
      %3061 = vmatmul.mubr.bf16.gmra.mrb[0].mxu0 %v2911
      %v3062 = vpop.f32.mrb[0].mxu0
      %v3063 = vadd.f32 0.0, %v3062
      %v3064 = vpop.f32.mrb[0].mxu0
      %v3065 = vpop.f32.mrb[0].mxu0
      %v3066 = vadd.f32 0.0, %v3065
      %v3067 = vpop.f32.mrb[0].mxu0
      %3068 = vmatprep.mubr.bf16.mxu0 0
      %3069 = vmatmul.mubr.bf16.gmra.mrb[0].mxu0 %v2914
      %v3070 = vpop.f32.mrb[0].mxu0
      %v3071 = vadd.f32 0.0, %v3070
      %v3072 = vpop.f32.mrb[0].mxu0
      %v3073 = vpop.f32.mrb[0].mxu0
      %v3074 = vadd.f32 0.0, %v3073
      %v3075 = vpop.f32.mrb[0].mxu0
      %3076 = vdwg.mxu0
      %v3077 = vadd.f32 %v2505, %v2951
      %v3078 = vadd.f32 %v2506, %v2954
      %v3079 = vadd.f32 %v2507, %v2959
      %v3080 = vadd.f32 %v2508, %v2962
      %v3081 = vadd.f32 %v2509, %v2967
      %v3082 = vadd.f32 %v2510, %v2970
      %v3083 = vadd.f32 %v2511, %v2975
      %v3084 = vadd.f32 %v2512, %v2978
      %v3085 = vadd.f32 %v2513, %v2983
      %v3086 = vadd.f32 %v2514, %v2986
      %v3087 = vadd.f32 %v2515, %v2991
      %v3088 = vadd.f32 %v2516, %v2994
      %v3089 = vadd.f32 %v2517, %v2999
      %v3090 = vadd.f32 %v2518, %v3002
      %v3091 = vadd.f32 %v2519, %v3007
      %v3092 = vadd.f32 %v2520, %v3010
      %v3093 = vadd.f32 %v2521, %v3015
      %v3094 = vadd.f32 %v2522, %v3018
      %v3095 = vadd.f32 %v2523, %v3023
      %v3096 = vadd.f32 %v2524, %v3026
      %v3097 = vadd.f32 %v2525, %v3031
      %v3098 = vadd.f32 %v2526, %v3034
      %v3099 = vadd.f32 %v2527, %v3039
      %v3100 = vadd.f32 %v2528, %v3042
      %v3101 = vadd.f32 %v2529, %v3047
      %v3102 = vadd.f32 %v2530, %v3050
      %v3103 = vadd.f32 %v2531, %v3055
      %v3104 = vadd.f32 %v2532, %v3058
      %v3105 = vadd.f32 %v2533, %v3063
      %v3106 = vadd.f32 %v2534, %v3066
      %v3107 = vadd.f32 %v2535, %v3071
      %v3108 = vadd.f32 %v2536, %v3074
      %v3109 = vunpack.c.l.b16 %v2687
      %v3110 = vunpack.c.l.b16 %v2690
      %v3111 = vunpack.c.l.b16 %v2694
      %v3112 = vunpack.c.l.b16 %v2697
      %v3113 = vunpack.c.l.b16 %v2701
      %v3114 = vunpack.c.l.b16 %v2704
      %v3115 = vunpack.c.l.b16 %v2708
      %v3116 = vunpack.c.l.b16 %v2711
      %v3117 = vunpack.c.l.b16 %v2715
      %v3118 = vunpack.c.l.b16 %v2718
      %v3119 = vunpack.c.l.b16 %v2722
      %v3120 = vunpack.c.l.b16 %v2725
      %v3121 = vunpack.c.l.b16 %v2729
      %v3122 = vunpack.c.l.b16 %v2732
      %v3123 = vunpack.c.l.b16 %v2736
      %v3124 = vunpack.c.l.b16 %v2739
      %v3125 = vunpack.c.l.b16 %v2743
      %v3126 = vunpack.c.l.b16 %v2746
      %v3127 = vunpack.c.l.b16 %v2750
      %v3128 = vunpack.c.l.b16 %v2753
      %v3129 = vunpack.c.l.b16 %v2757
      %v3130 = vunpack.c.l.b16 %v2760
      %v3131 = vunpack.c.l.b16 %v2764
      %v3132 = vunpack.c.l.b16 %v2767
      %v3133 = vunpack.c.l.b16 %v2771
      %v3134 = vunpack.c.l.b16 %v2774
      %v3135 = vunpack.c.l.b16 %v2778
      %v3136 = vunpack.c.l.b16 %v2781
      %v3137 = vunpack.c.l.b16 %v2785
      %v3138 = vunpack.c.l.b16 %v2788
      %v3139 = vunpack.c.l.b16 %v2792
      %v3140 = vunpack.c.l.b16 %v2795
      %v3141 = vpack.c.b16 %v3110, %v3109
      %v3142 = vpack.c.b16 %v3112, %v3111
      %v3143 = vpack.c.b16 %v3114, %v3113
      %v3144 = vpack.c.b16 %v3116, %v3115
      %v3145 = vpack.c.b16 %v3118, %v3117
      %v3146 = vpack.c.b16 %v3120, %v3119
      %v3147 = vpack.c.b16 %v3122, %v3121
      %v3148 = vpack.c.b16 %v3124, %v3123
      %v3149 = vpack.c.b16 %v3126, %v3125
      %v3150 = vpack.c.b16 %v3128, %v3127
      %v3151 = vpack.c.b16 %v3130, %v3129
      %v3152 = vpack.c.b16 %v3132, %v3131
      %v3153 = vpack.c.b16 %v3134, %v3133
      %v3154 = vpack.c.b16 %v3136, %v3135
      %v3155 = vpack.c.b16 %v3138, %v3137
      %v3156 = vpack.c.b16 %v3140, %v3139
      %v3159 = vunpack.c.l.b16 %v534
      %v3160 = vunpack.c.l.b16 %v535
      %v3161 = vpack.c.b16 %v3160, %v3159
      %v3164 = vsel %vm634, %v3141, 0
      %v3167 = vsel %vm634, %v3142, 0
      %v3170 = vsel %vm634, %v3143, 0
      %v3173 = vsel %vm634, %v3144, 0
      %v3176 = vsel %vm634, %v3145, 0
      %v3179 = vsel %vm634, %v3146, 0
      %v3182 = vsel %vm634, %v3147, 0
      %v3185 = vsel %vm634, %v3148, 0
      %v3188 = vsel %vm634, %v3149, 0
      %v3191 = vsel %vm634, %v3150, 0
      %v3194 = vsel %vm634, %v3151, 0
      %v3197 = vsel %vm634, %v3152, 0
      %v3200 = vsel %vm634, %v3153, 0
      %v3203 = vsel %vm634, %v3154, 0
      %v3206 = vsel %vm634, %v3155, 0
      %v3209 = vsel %vm634, %v3156, 0
      %3211 = vmatprep.subr.bf16.mxu0 0
      %3212 = vmatpush1.bf16.msra.mxu0 %v3161
      %3213 = vmatprep.subr.bf16.mxu0 0
      %3214 = vmatpush1.bf16.msra.mxu0 0
      %3215 = vmatprep.subr.bf16.mxu0 0
      %3216 = vmatpush1.bf16.msra.mxu0 0
      %3217 = vmatprep.subr.bf16.mxu0 0
      %3218 = vmatpush1.bf16.msra.mxu0 0
      %3219 = vmatprep.subr.bf16.mxu0 0
      %3220 = vmatpush1.bf16.msra.mxu0 0
      %3221 = vmatprep.subr.bf16.mxu0 0
      %3222 = vmatpush1.bf16.msra.mxu0 0
      %3223 = vmatprep.subr.bf16.mxu0 0
      %3224 = vmatpush1.bf16.msra.mxu0 0
      %3225 = vmatprep.subr.bf16.mxu0 0
      %3226 = vmatpush1.bf16.msra.mxu0 0
      %3227 = vmatprep.subr.bf16.mxu0 0
      %3228 = vmatpush1.bf16.msra.mxu0 0
      %3229 = vmatprep.subr.bf16.mxu0 0
      %3230 = vmatpush1.bf16.msra.mxu0 0
      %3231 = vmatprep.subr.bf16.mxu0 0
      %3232 = vmatpush1.bf16.msra.mxu0 0
      %3233 = vmatprep.subr.bf16.mxu0 0
      %3234 = vmatpush1.bf16.msra.mxu0 0
      %3235 = vmatprep.subr.bf16.mxu0 0
      %3236 = vmatpush1.bf16.msra.mxu0 0
      %3237 = vmatprep.subr.bf16.mxu0 0
      %3238 = vmatpush1.bf16.msra.mxu0 0
      %3239 = vmatprep.subr.bf16.mxu0 0
      %3240 = vmatpush1.bf16.msra.mxu0 0
      %3241 = vmatprep.subr.bf16.mxu0 0
      %3242 = vmatpush1.bf16.msra.mxu0 0
      %3243 = vmatprep.mubr.bf16.mxu0 0
      %3244 = vmatmul.mubr.bf16.gmra.mrb[0].mxu0 %v3164
      %v3245 = vpop.f32.mrb[0].mxu0
      %v3246 = vadd.f32 0.0, %v3245
      %v3247 = vpop.f32.mrb[0].mxu0
      %v3248 = vpop.f32.mrb[0].mxu0
      %v3249 = vadd.f32 0.0, %v3248
      %v3250 = vpop.f32.mrb[0].mxu0
      %3251 = vmatprep.mubr.bf16.mxu0 0
      %3252 = vmatmul.mubr.bf16.gmra.mrb[0].mxu0 %v3167
      %v3253 = vpop.f32.mrb[0].mxu0
      %v3254 = vadd.f32 0.0, %v3253
      %v3255 = vpop.f32.mrb[0].mxu0
      %v3256 = vpop.f32.mrb[0].mxu0
      %v3257 = vadd.f32 0.0, %v3256
      %v3258 = vpop.f32.mrb[0].mxu0
      %3259 = vmatprep.mubr.bf16.mxu0 0
      %3260 = vmatmul.mubr.bf16.gmra.mrb[0].mxu0 %v3170
      %v3261 = vpop.f32.mrb[0].mxu0
      %v3262 = vadd.f32 0.0, %v3261
      %v3263 = vpop.f32.mrb[0].mxu0
      %v3264 = vpop.f32.mrb[0].mxu0
      %v3265 = vadd.f32 0.0, %v3264
      %v3266 = vpop.f32.mrb[0].mxu0
      %3267 = vmatprep.mubr.bf16.mxu0 0
      %3268 = vmatmul.mubr.bf16.gmra.mrb[0].mxu0 %v3173
      %v3269 = vpop.f32.mrb[0].mxu0
      %v3270 = vadd.f32 0.0, %v3269
      %v3271 = vpop.f32.mrb[0].mxu0
      %v3272 = vpop.f32.mrb[0].mxu0
      %v3273 = vadd.f32 0.0, %v3272
      %v3274 = vpop.f32.mrb[0].mxu0
      %3275 = vmatprep.mubr.bf16.mxu0 0
      %3276 = vmatmul.mubr.bf16.gmra.mrb[0].mxu0 %v3176
      %v3277 = vpop.f32.mrb[0].mxu0
      %v3278 = vadd.f32 0.0, %v3277
      %v3279 = vpop.f32.mrb[0].mxu0
      %v3280 = vpop.f32.mrb[0].mxu0
      %v3281 = vadd.f32 0.0, %v3280
      %v3282 = vpop.f32.mrb[0].mxu0
      %3283 = vmatprep.mubr.bf16.mxu0 0
      %3284 = vmatmul.mubr.bf16.gmra.mrb[0].mxu0 %v3179
      %v3285 = vpop.f32.mrb[0].mxu0
      %v3286 = vadd.f32 0.0, %v3285
      %v3287 = vpop.f32.mrb[0].mxu0
      %v3288 = vpop.f32.mrb[0].mxu0
      %v3289 = vadd.f32 0.0, %v3288
      %v3290 = vpop.f32.mrb[0].mxu0
      %3291 = vmatprep.mubr.bf16.mxu0 0
      %3292 = vmatmul.mubr.bf16.gmra.mrb[0].mxu0 %v3182
      %v3293 = vpop.f32.mrb[0].mxu0
      %v3294 = vadd.f32 0.0, %v3293
      %v3295 = vpop.f32.mrb[0].mxu0
      %v3296 = vpop.f32.mrb[0].mxu0
      %v3297 = vadd.f32 0.0, %v3296
      %v3298 = vpop.f32.mrb[0].mxu0
      %3299 = vmatprep.mubr.bf16.mxu0 0
      %3300 = vmatmul.mubr.bf16.gmra.mrb[0].mxu0 %v3185
      %v3301 = vpop.f32.mrb[0].mxu0
      %v3302 = vadd.f32 0.0, %v3301
      %v3303 = vpop.f32.mrb[0].mxu0
      %v3304 = vpop.f32.mrb[0].mxu0
      %v3305 = vadd.f32 0.0, %v3304
      %v3306 = vpop.f32.mrb[0].mxu0
      %3307 = vmatprep.mubr.bf16.mxu0 0
      %3308 = vmatmul.mubr.bf16.gmra.mrb[0].mxu0 %v3188
      %v3309 = vpop.f32.mrb[0].mxu0
      %v3310 = vadd.f32 0.0, %v3309
      %v3311 = vpop.f32.mrb[0].mxu0
      %v3312 = vpop.f32.mrb[0].mxu0
      %v3313 = vadd.f32 0.0, %v3312
      %v3314 = vpop.f32.mrb[0].mxu0
      %3315 = vmatprep.mubr.bf16.mxu0 0
      %3316 = vmatmul.mubr.bf16.gmra.mrb[0].mxu0 %v3191
      %v3317 = vpop.f32.mrb[0].mxu0
      %v3318 = vadd.f32 0.0, %v3317
      %v3319 = vpop.f32.mrb[0].mxu0
      %v3320 = vpop.f32.mrb[0].mxu0
      %v3321 = vadd.f32 0.0, %v3320
      %v3322 = vpop.f32.mrb[0].mxu0
      %3323 = vmatprep.mubr.bf16.mxu0 0
      %3324 = vmatmul.mubr.bf16.gmra.mrb[0].mxu0 %v3194
      %v3325 = vpop.f32.mrb[0].mxu0
      %v3326 = vadd.f32 0.0, %v3325
      %v3327 = vpop.f32.mrb[0].mxu0
      %v3328 = vpop.f32.mrb[0].mxu0
      %v3329 = vadd.f32 0.0, %v3328
      %v3330 = vpop.f32.mrb[0].mxu0
      %3331 = vmatprep.mubr.bf16.mxu0 0
      %3332 = vmatmul.mubr.bf16.gmra.mrb[0].mxu0 %v3197
      %v3333 = vpop.f32.mrb[0].mxu0
      %v3334 = vadd.f32 0.0, %v3333
      %v3335 = vpop.f32.mrb[0].mxu0
      %v3336 = vpop.f32.mrb[0].mxu0
      %v3337 = vadd.f32 0.0, %v3336
      %v3338 = vpop.f32.mrb[0].mxu0
      %3339 = vmatprep.mubr.bf16.mxu0 0
      %3340 = vmatmul.mubr.bf16.gmra.mrb[0].mxu0 %v3200
      %v3341 = vpop.f32.mrb[0].mxu0
      %v3342 = vadd.f32 0.0, %v3341
      %v3343 = vpop.f32.mrb[0].mxu0
      %v3344 = vpop.f32.mrb[0].mxu0
      %v3345 = vadd.f32 0.0, %v3344
      %v3346 = vpop.f32.mrb[0].mxu0
      %3347 = vmatprep.mubr.bf16.mxu0 0
      %3348 = vmatmul.mubr.bf16.gmra.mrb[0].mxu0 %v3203
      %v3349 = vpop.f32.mrb[0].mxu0
      %v3350 = vadd.f32 0.0, %v3349
      %v3351 = vpop.f32.mrb[0].mxu0
      %v3352 = vpop.f32.mrb[0].mxu0
      %v3353 = vadd.f32 0.0, %v3352
      %v3354 = vpop.f32.mrb[0].mxu0
      %3355 = vmatprep.mubr.bf16.mxu0 0
      %3356 = vmatmul.mubr.bf16.gmra.mrb[0].mxu0 %v3206
      %v3357 = vpop.f32.mrb[0].mxu0
      %v3358 = vadd.f32 0.0, %v3357
      %v3359 = vpop.f32.mrb[0].mxu0
      %v3360 = vpop.f32.mrb[0].mxu0
      %v3361 = vadd.f32 0.0, %v3360
      %v3362 = vpop.f32.mrb[0].mxu0
      %3363 = vmatprep.mubr.bf16.mxu0 0
      %3364 = vmatmul.mubr.bf16.gmra.mrb[0].mxu0 %v3209
      %v3365 = vpop.f32.mrb[0].mxu0
      %v3366 = vadd.f32 0.0, %v3365
      %v3367 = vpop.f32.mrb[0].mxu0
      %v3368 = vpop.f32.mrb[0].mxu0
      %v3369 = vadd.f32 0.0, %v3368
      %v3370 = vpop.f32.mrb[0].mxu0
      %3371 = vdwg.mxu0
      %v3372 = vadd.f32 %v3077, %v3246
      %v3373 = vadd.f32 %v3078, %v3249
      %v3374 = vadd.f32 %v3079, %v3254
      %v3375 = vadd.f32 %v3080, %v3257
      %v3376 = vadd.f32 %v3081, %v3262
      %v3377 = vadd.f32 %v3082, %v3265
      %v3378 = vadd.f32 %v3083, %v3270
      %v3379 = vadd.f32 %v3084, %v3273
      %v3380 = vadd.f32 %v3085, %v3278
      %v3381 = vadd.f32 %v3086, %v3281
      %v3382 = vadd.f32 %v3087, %v3286
      %v3383 = vadd.f32 %v3088, %v3289
      %v3384 = vadd.f32 %v3089, %v3294
      %v3385 = vadd.f32 %v3090, %v3297
      %v3386 = vadd.f32 %v3091, %v3302
      %v3387 = vadd.f32 %v3092, %v3305
      %v3388 = vadd.f32 %v3093, %v3310
      %v3389 = vadd.f32 %v3094, %v3313
      %v3390 = vadd.f32 %v3095, %v3318
      %v3391 = vadd.f32 %v3096, %v3321
      %v3392 = vadd.f32 %v3097, %v3326
      %v3393 = vadd.f32 %v3098, %v3329
      %v3394 = vadd.f32 %v3099, %v3334
      %v3395 = vadd.f32 %v3100, %v3337
      %v3396 = vadd.f32 %v3101, %v3342
      %v3397 = vadd.f32 %v3102, %v3345
      %v3398 = vadd.f32 %v3103, %v3350
      %v3399 = vadd.f32 %v3104, %v3353
      %v3400 = vadd.f32 %v3105, %v3358
      %v3401 = vadd.f32 %v3106, %v3361
      %v3402 = vadd.f32 %v3107, %v3366
      %v3403 = vadd.f32 %v3108, %v3369
      %v3406 = vunpack.c.l.b16 %v398
      %v3407 = vunpack.c.l.b16 %v399
      %v3408 = vpack.c.b16 %v3407, %v3406
      %v3417 = vunpack.c.l.b16 %v482
      %v3418 = vunpack.c.l.b16 %v483
      %v3419 = vunpack.c.l.b16 %v484
      %v3420 = vunpack.c.l.b16 %v485
      %v3421 = vunpack.c.l.b16 %v486
      %v3422 = vunpack.c.l.b16 %v487
      %v3423 = vunpack.c.l.b16 %v488
      %v3424 = vunpack.c.l.b16 %v489
      %v3425 = vpack.c.b16 %v3418, %v3417
      %v3426 = vpack.c.b16 %v3420, %v3419
      %v3427 = vpack.c.b16 %v3422, %v3421
      %v3428 = vpack.c.b16 %v3424, %v3423
      %v3434 = vsel %vm948, %v3408, 0
      %3436 = vmatprep.subr.bf16.mxu0 0
      %3437 = vmatpush1.bf16.msra.mxu0 %v3425
      %3438 = vmatprep.subr.bf16.mxu0 0
      %3439 = vmatpush1.bf16.msra.mxu0 %v3426
      %3440 = vmatprep.subr.bf16.mxu0 0
      %3441 = vmatpush1.bf16.msra.mxu0 %v3427
      %3442 = vmatprep.subr.bf16.mxu0 0
      %3443 = vmatpush1.bf16.msra.mxu0 %v3428
      %3444 = vmatprep.subr.bf16.mxu0 0
      %3445 = vmatpush1.bf16.msra.mxu0 0
      %3446 = vmatprep.subr.bf16.mxu0 0
      %3447 = vmatpush1.bf16.msra.mxu0 0
      %3448 = vmatprep.subr.bf16.mxu0 0
      %3449 = vmatpush1.bf16.msra.mxu0 0
      %3450 = vmatprep.subr.bf16.mxu0 0
      %3451 = vmatpush1.bf16.msra.mxu0 0
      %3452 = vmatprep.subr.bf16.mxu0 0
      %3453 = vmatpush1.bf16.msra.mxu0 0
      %3454 = vmatprep.subr.bf16.mxu0 0
      %3455 = vmatpush1.bf16.msra.mxu0 0
      %3456 = vmatprep.subr.bf16.mxu0 0
      %3457 = vmatpush1.bf16.msra.mxu0 0
      %3458 = vmatprep.subr.bf16.mxu0 0
      %3459 = vmatpush1.bf16.msra.mxu0 0
      %3460 = vmatprep.subr.bf16.mxu0 0
      %3461 = vmatpush1.bf16.msra.mxu0 0
      %3462 = vmatprep.subr.bf16.mxu0 0
      %3463 = vmatpush1.bf16.msra.mxu0 0
      %3464 = vmatprep.subr.bf16.mxu0 0
      %3465 = vmatpush1.bf16.msra.mxu0 0
      %3466 = vmatprep.subr.bf16.mxu0 0
      %3467 = vmatpush1.bf16.msra.mxu0 0
      %3468 = vmatprep.mubr.bf16.mxu0 0
      %3469 = vmatmul.mubr.bf16.gmra.mrb[0].mxu0 %v953
      %v3470 = vpop.f32.mrb[0].mxu0
      %v3471 = vadd.f32 0.0, %v3470
      %v3472 = vpop.f32.mrb[0].mxu0
      %v3473 = vpop.f32.mrb[0].mxu0
      %v3474 = vadd.f32 0.0, %v3473
      %v3475 = vpop.f32.mrb[0].mxu0
      %3476 = vmatprep.mubr.bf16.mxu0 0
      %3477 = vmatmul.mubr.bf16.gmra.mrb[0].mxu0 %v956
      %v3478 = vpop.f32.mrb[0].mxu0
      %v3479 = vadd.f32 0.0, %v3478
      %v3480 = vpop.f32.mrb[0].mxu0
      %v3481 = vpop.f32.mrb[0].mxu0
      %v3482 = vadd.f32 0.0, %v3481
      %v3483 = vpop.f32.mrb[0].mxu0
      %3484 = vmatprep.mubr.bf16.mxu0 0
      %3485 = vmatmul.mubr.bf16.gmra.mrb[0].mxu0 %v959
      %v3486 = vpop.f32.mrb[0].mxu0
      %v3487 = vadd.f32 0.0, %v3486
      %v3488 = vpop.f32.mrb[0].mxu0
      %v3489 = vpop.f32.mrb[0].mxu0
      %v3490 = vadd.f32 0.0, %v3489
      %v3491 = vpop.f32.mrb[0].mxu0
      %3492 = vmatprep.mubr.bf16.mxu0 0
      %3493 = vmatmul.mubr.bf16.gmra.mrb[0].mxu0 %v962
      %v3494 = vpop.f32.mrb[0].mxu0
      %v3495 = vadd.f32 0.0, %v3494
      %v3496 = vpop.f32.mrb[0].mxu0
      %v3497 = vpop.f32.mrb[0].mxu0
      %v3498 = vadd.f32 0.0, %v3497
      %v3499 = vpop.f32.mrb[0].mxu0
      %3500 = vmatprep.mubr.bf16.mxu0 0
      %3501 = vmatmul.mubr.bf16.gmra.mrb[0].mxu0 %v965
      %v3502 = vpop.f32.mrb[0].mxu0
      %v3503 = vadd.f32 0.0, %v3502
      %v3504 = vpop.f32.mrb[0].mxu0
      %v3505 = vpop.f32.mrb[0].mxu0
      %v3506 = vadd.f32 0.0, %v3505
      %v3507 = vpop.f32.mrb[0].mxu0
      %3508 = vmatprep.mubr.bf16.mxu0 0
      %3509 = vmatmul.mubr.bf16.gmra.mrb[0].mxu0 %v968
      %v3510 = vpop.f32.mrb[0].mxu0
      %v3511 = vadd.f32 0.0, %v3510
      %v3512 = vpop.f32.mrb[0].mxu0
      %v3513 = vpop.f32.mrb[0].mxu0
      %v3514 = vadd.f32 0.0, %v3513
      %v3515 = vpop.f32.mrb[0].mxu0
      %3516 = vmatprep.mubr.bf16.mxu0 0
      %3517 = vmatmul.mubr.bf16.gmra.mrb[0].mxu0 %v971
      %v3518 = vpop.f32.mrb[0].mxu0
      %v3519 = vadd.f32 0.0, %v3518
      %v3520 = vpop.f32.mrb[0].mxu0
      %v3521 = vpop.f32.mrb[0].mxu0
      %v3522 = vadd.f32 0.0, %v3521
      %v3523 = vpop.f32.mrb[0].mxu0
      %3524 = vmatprep.mubr.bf16.mxu0 0
      %3525 = vmatmul.mubr.bf16.gmra.mrb[0].mxu0 %v974
      %v3526 = vpop.f32.mrb[0].mxu0
      %v3527 = vadd.f32 0.0, %v3526
      %v3528 = vpop.f32.mrb[0].mxu0
      %v3529 = vpop.f32.mrb[0].mxu0
      %v3530 = vadd.f32 0.0, %v3529
      %v3531 = vpop.f32.mrb[0].mxu0
      %3532 = vmatprep.mubr.bf16.mxu0 0
      %3533 = vmatmul.mubr.bf16.gmra.mrb[0].mxu0 %v977
      %v3534 = vpop.f32.mrb[0].mxu0
      %v3535 = vadd.f32 0.0, %v3534
      %v3536 = vpop.f32.mrb[0].mxu0
      %v3537 = vpop.f32.mrb[0].mxu0
      %v3538 = vadd.f32 0.0, %v3537
      %v3539 = vpop.f32.mrb[0].mxu0
      %3540 = vmatprep.mubr.bf16.mxu0 0
      %3541 = vmatmul.mubr.bf16.gmra.mrb[0].mxu0 %v980
      %v3542 = vpop.f32.mrb[0].mxu0
      %v3543 = vadd.f32 0.0, %v3542
      %v3544 = vpop.f32.mrb[0].mxu0
      %v3545 = vpop.f32.mrb[0].mxu0
      %v3546 = vadd.f32 0.0, %v3545
      %v3547 = vpop.f32.mrb[0].mxu0
      %3548 = vmatprep.mubr.bf16.mxu0 0
      %3549 = vmatmul.mubr.bf16.gmra.mrb[0].mxu0 %v983
      %v3550 = vpop.f32.mrb[0].mxu0
      %v3551 = vadd.f32 0.0, %v3550
      %v3552 = vpop.f32.mrb[0].mxu0
      %v3553 = vpop.f32.mrb[0].mxu0
      %v3554 = vadd.f32 0.0, %v3553
      %v3555 = vpop.f32.mrb[0].mxu0
      %3556 = vmatprep.mubr.bf16.mxu0 0
      %3557 = vmatmul.mubr.bf16.gmra.mrb[0].mxu0 %v986
      %v3558 = vpop.f32.mrb[0].mxu0
      %v3559 = vadd.f32 0.0, %v3558
      %v3560 = vpop.f32.mrb[0].mxu0
      %v3561 = vpop.f32.mrb[0].mxu0
      %v3562 = vadd.f32 0.0, %v3561
      %v3563 = vpop.f32.mrb[0].mxu0
      %3564 = vmatprep.mubr.bf16.mxu0 0
      %3565 = vmatmul.mubr.bf16.gmra.mrb[0].mxu0 %v989
      %v3566 = vpop.f32.mrb[0].mxu0
      %v3567 = vadd.f32 0.0, %v3566
      %v3568 = vpop.f32.mrb[0].mxu0
      %v3569 = vpop.f32.mrb[0].mxu0
      %v3570 = vadd.f32 0.0, %v3569
      %v3571 = vpop.f32.mrb[0].mxu0
      %3572 = vmatprep.mubr.bf16.mxu0 0
      %3573 = vmatmul.mubr.bf16.gmra.mrb[0].mxu0 %v992
      %v3574 = vpop.f32.mrb[0].mxu0
      %v3575 = vadd.f32 0.0, %v3574
      %v3576 = vpop.f32.mrb[0].mxu0
      %v3577 = vpop.f32.mrb[0].mxu0
      %v3578 = vadd.f32 0.0, %v3577
      %v3579 = vpop.f32.mrb[0].mxu0
      %3580 = vmatprep.mubr.bf16.mxu0 0
      %3581 = vmatmul.mubr.bf16.gmra.mrb[0].mxu0 %v995
      %v3582 = vpop.f32.mrb[0].mxu0
      %v3583 = vadd.f32 0.0, %v3582
      %v3584 = vpop.f32.mrb[0].mxu0
      %v3585 = vpop.f32.mrb[0].mxu0
      %v3586 = vadd.f32 0.0, %v3585
      %v3587 = vpop.f32.mrb[0].mxu0
      %3588 = vmatprep.mubr.bf16.mxu0 0
      %3589 = vmatmul.mubr.bf16.gmra.mrb[0].mxu0 %v3434
      %v3590 = vpop.f32.mrb[0].mxu0
      %v3591 = vadd.f32 0.0, %v3590
      %v3592 = vpop.f32.mrb[0].mxu0
      %v3593 = vpop.f32.mrb[0].mxu0
      %v3594 = vadd.f32 0.0, %v3593
      %v3595 = vpop.f32.mrb[0].mxu0
      %3596 = vdwg.mxu0
      %v3597 = vadd.f32 %v3372, %v3471
      %v3598 = vadd.f32 %v3373, %v3474
      %v3599 = vadd.f32 %v3374, %v3479
      %v3600 = vadd.f32 %v3375, %v3482
      %v3601 = vadd.f32 %v3376, %v3487
      %v3602 = vadd.f32 %v3377, %v3490
      %v3603 = vadd.f32 %v3378, %v3495
      %v3604 = vadd.f32 %v3379, %v3498
      %v3605 = vadd.f32 %v3380, %v3503
      %v3606 = vadd.f32 %v3381, %v3506
      %v3607 = vadd.f32 %v3382, %v3511
      %v3608 = vadd.f32 %v3383, %v3514
      %v3609 = vadd.f32 %v3384, %v3519
      %v3610 = vadd.f32 %v3385, %v3522
      %v3611 = vadd.f32 %v3386, %v3527
      %v3612 = vadd.f32 %v3387, %v3530
      %v3613 = vadd.f32 %v3388, %v3535
      %v3614 = vadd.f32 %v3389, %v3538
      %v3615 = vadd.f32 %v3390, %v3543
      %v3616 = vadd.f32 %v3391, %v3546
      %v3617 = vadd.f32 %v3392, %v3551
      %v3618 = vadd.f32 %v3393, %v3554
      %v3619 = vadd.f32 %v3394, %v3559
      %v3620 = vadd.f32 %v3395, %v3562
      %v3621 = vadd.f32 %v3396, %v3567
      %v3622 = vadd.f32 %v3397, %v3570
      %v3623 = vadd.f32 %v3398, %v3575
      %v3624 = vadd.f32 %v3399, %v3578
      %v3625 = vadd.f32 %v3400, %v3583
      %v3626 = vadd.f32 %v3401, %v3586
      %v3627 = vadd.f32 %v3402, %v3591
      %v3628 = vadd.f32 %v3403, %v3594
      %v3631 = vunpack.c.l.b16 %v452
      %v3632 = vunpack.c.l.b16 %v453
      %v3633 = vpack.c.b16 %v3632, %v3631
      %v3636 = vunpack.c.l.b16 %v536
      %v3637 = vunpack.c.l.b16 %v537
      %v3638 = vpack.c.b16 %v3637, %v3636
      %v3641 = vsel %vm634, %v3633, 0
      %3643 = vmatprep.subr.bf16.mxu0 0
      %3644 = vmatpush1.bf16.msra.mxu0 %v3638
      %3645 = vmatprep.subr.bf16.mxu0 0
      %3646 = vmatpush1.bf16.msra.mxu0 0
      %3647 = vmatprep.subr.bf16.mxu0 0
      %3648 = vmatpush1.bf16.msra.mxu0 0
      %3649 = vmatprep.subr.bf16.mxu0 0
      %3650 = vmatpush1.bf16.msra.mxu0 0
      %3651 = vmatprep.subr.bf16.mxu0 0
      %3652 = vmatpush1.bf16.msra.mxu0 0
      %3653 = vmatprep.subr.bf16.mxu0 0
      %3654 = vmatpush1.bf16.msra.mxu0 0
      %3655 = vmatprep.subr.bf16.mxu0 0
      %3656 = vmatpush1.bf16.msra.mxu0 0
      %3657 = vmatprep.subr.bf16.mxu0 0
      %3658 = vmatpush1.bf16.msra.mxu0 0
      %3659 = vmatprep.subr.bf16.mxu0 0
      %3660 = vmatpush1.bf16.msra.mxu0 0
      %3661 = vmatprep.subr.bf16.mxu0 0
      %3662 = vmatpush1.bf16.msra.mxu0 0
      %3663 = vmatprep.subr.bf16.mxu0 0
      %3664 = vmatpush1.bf16.msra.mxu0 0
      %3665 = vmatprep.subr.bf16.mxu0 0
      %3666 = vmatpush1.bf16.msra.mxu0 0
      %3667 = vmatprep.subr.bf16.mxu0 0
      %3668 = vmatpush1.bf16.msra.mxu0 0
      %3669 = vmatprep.subr.bf16.mxu0 0
      %3670 = vmatpush1.bf16.msra.mxu0 0
      %3671 = vmatprep.subr.bf16.mxu0 0
      %3672 = vmatpush1.bf16.msra.mxu0 0
      %3673 = vmatprep.subr.bf16.mxu0 0
      %3674 = vmatpush1.bf16.msra.mxu0 0
      %3675 = vmatprep.mubr.bf16.mxu0 0
      %3676 = vmatmul.mubr.bf16.gmra.mrb[0].mxu0 %v639
      %v3677 = vpop.f32.mrb[0].mxu0
      %v3678 = vadd.f32 0.0, %v3677
      %v3679 = vpop.f32.mrb[0].mxu0
      %v3680 = vpop.f32.mrb[0].mxu0
      %v3681 = vadd.f32 0.0, %v3680
      %v3682 = vpop.f32.mrb[0].mxu0
      %3683 = vmatprep.mubr.bf16.mxu0 0
      %3684 = vmatmul.mubr.bf16.gmra.mrb[0].mxu0 %v642
      %v3685 = vpop.f32.mrb[0].mxu0
      %v3686 = vadd.f32 0.0, %v3685
      %v3687 = vpop.f32.mrb[0].mxu0
      %v3688 = vpop.f32.mrb[0].mxu0
      %v3689 = vadd.f32 0.0, %v3688
      %v3690 = vpop.f32.mrb[0].mxu0
      %3691 = vmatprep.mubr.bf16.mxu0 0
      %3692 = vmatmul.mubr.bf16.gmra.mrb[0].mxu0 %v645
      %v3693 = vpop.f32.mrb[0].mxu0
      %v3694 = vadd.f32 0.0, %v3693
      %v3695 = vpop.f32.mrb[0].mxu0
      %v3696 = vpop.f32.mrb[0].mxu0
      %v3697 = vadd.f32 0.0, %v3696
      %v3698 = vpop.f32.mrb[0].mxu0
      %3699 = vmatprep.mubr.bf16.mxu0 0
      %3700 = vmatmul.mubr.bf16.gmra.mrb[0].mxu0 %v648
      %v3701 = vpop.f32.mrb[0].mxu0
      %v3702 = vadd.f32 0.0, %v3701
      %v3703 = vpop.f32.mrb[0].mxu0
      %v3704 = vpop.f32.mrb[0].mxu0
      %v3705 = vadd.f32 0.0, %v3704
      %v3706 = vpop.f32.mrb[0].mxu0
      %3707 = vmatprep.mubr.bf16.mxu0 0
      %3708 = vmatmul.mubr.bf16.gmra.mrb[0].mxu0 %v651
      %v3709 = vpop.f32.mrb[0].mxu0
      %v3710 = vadd.f32 0.0, %v3709
      %v3711 = vpop.f32.mrb[0].mxu0
      %v3712 = vpop.f32.mrb[0].mxu0
      %v3713 = vadd.f32 0.0, %v3712
      %v3714 = vpop.f32.mrb[0].mxu0
      %3715 = vmatprep.mubr.bf16.mxu0 0
      %3716 = vmatmul.mubr.bf16.gmra.mrb[0].mxu0 %v654
      %v3717 = vpop.f32.mrb[0].mxu0
      %v3718 = vadd.f32 0.0, %v3717
      %v3719 = vpop.f32.mrb[0].mxu0
      %v3720 = vpop.f32.mrb[0].mxu0
      %v3721 = vadd.f32 0.0, %v3720
      %v3722 = vpop.f32.mrb[0].mxu0
      %3723 = vmatprep.mubr.bf16.mxu0 0
      %3724 = vmatmul.mubr.bf16.gmra.mrb[0].mxu0 %v657
      %v3725 = vpop.f32.mrb[0].mxu0
      %v3726 = vadd.f32 0.0, %v3725
      %v3727 = vpop.f32.mrb[0].mxu0
      %v3728 = vpop.f32.mrb[0].mxu0
      %v3729 = vadd.f32 0.0, %v3728
      %v3730 = vpop.f32.mrb[0].mxu0
      %3731 = vmatprep.mubr.bf16.mxu0 0
      %3732 = vmatmul.mubr.bf16.gmra.mrb[0].mxu0 %v660
      %v3733 = vpop.f32.mrb[0].mxu0
      %v3734 = vadd.f32 0.0, %v3733
      %v3735 = vpop.f32.mrb[0].mxu0
      %v3736 = vpop.f32.mrb[0].mxu0
      %v3737 = vadd.f32 0.0, %v3736
      %v3738 = vpop.f32.mrb[0].mxu0
      %3739 = vmatprep.mubr.bf16.mxu0 0
      %3740 = vmatmul.mubr.bf16.gmra.mrb[0].mxu0 %v663
      %v3741 = vpop.f32.mrb[0].mxu0
      %v3742 = vadd.f32 0.0, %v3741
      %v3743 = vpop.f32.mrb[0].mxu0
      %v3744 = vpop.f32.mrb[0].mxu0
      %v3745 = vadd.f32 0.0, %v3744
      %v3746 = vpop.f32.mrb[0].mxu0
      %3747 = vmatprep.mubr.bf16.mxu0 0
      %3748 = vmatmul.mubr.bf16.gmra.mrb[0].mxu0 %v666
      %v3749 = vpop.f32.mrb[0].mxu0
      %v3750 = vadd.f32 0.0, %v3749
      %v3751 = vpop.f32.mrb[0].mxu0
      %v3752 = vpop.f32.mrb[0].mxu0
      %v3753 = vadd.f32 0.0, %v3752
      %v3754 = vpop.f32.mrb[0].mxu0
      %3755 = vmatprep.mubr.bf16.mxu0 0
      %3756 = vmatmul.mubr.bf16.gmra.mrb[0].mxu0 %v669
      %v3757 = vpop.f32.mrb[0].mxu0
      %v3758 = vadd.f32 0.0, %v3757
      %v3759 = vpop.f32.mrb[0].mxu0
      %v3760 = vpop.f32.mrb[0].mxu0
      %v3761 = vadd.f32 0.0, %v3760
      %v3762 = vpop.f32.mrb[0].mxu0
      %3763 = vmatprep.mubr.bf16.mxu0 0
      %3764 = vmatmul.mubr.bf16.gmra.mrb[0].mxu0 %v672
      %v3765 = vpop.f32.mrb[0].mxu0
      %v3766 = vadd.f32 0.0, %v3765
      %v3767 = vpop.f32.mrb[0].mxu0
      %v3768 = vpop.f32.mrb[0].mxu0
      %v3769 = vadd.f32 0.0, %v3768
      %v3770 = vpop.f32.mrb[0].mxu0
      %3771 = vmatprep.mubr.bf16.mxu0 0
      %3772 = vmatmul.mubr.bf16.gmra.mrb[0].mxu0 %v675
      %v3773 = vpop.f32.mrb[0].mxu0
      %v3774 = vadd.f32 0.0, %v3773
      %v3775 = vpop.f32.mrb[0].mxu0
      %v3776 = vpop.f32.mrb[0].mxu0
      %v3777 = vadd.f32 0.0, %v3776
      %v3778 = vpop.f32.mrb[0].mxu0
      %3779 = vmatprep.mubr.bf16.mxu0 0
      %3780 = vmatmul.mubr.bf16.gmra.mrb[0].mxu0 %v678
      %v3781 = vpop.f32.mrb[0].mxu0
      %v3782 = vadd.f32 0.0, %v3781
      %v3783 = vpop.f32.mrb[0].mxu0
      %v3784 = vpop.f32.mrb[0].mxu0
      %v3785 = vadd.f32 0.0, %v3784
      %v3786 = vpop.f32.mrb[0].mxu0
      %3787 = vmatprep.mubr.bf16.mxu0 0
      %3788 = vmatmul.mubr.bf16.gmra.mrb[0].mxu0 %v681
      %v3789 = vpop.f32.mrb[0].mxu0
      %v3790 = vadd.f32 0.0, %v3789
      %v3791 = vpop.f32.mrb[0].mxu0
      %v3792 = vpop.f32.mrb[0].mxu0
      %v3793 = vadd.f32 0.0, %v3792
      %v3794 = vpop.f32.mrb[0].mxu0
      %3795 = vmatprep.mubr.bf16.mxu0 0
      %3796 = vmatmul.mubr.bf16.gmra.mrb[0].mxu0 %v3641
      %v3797 = vpop.f32.mrb[0].mxu0
      %v3798 = vadd.f32 0.0, %v3797
      %v3799 = vpop.f32.mrb[0].mxu0
      %v3800 = vpop.f32.mrb[0].mxu0
      %v3801 = vadd.f32 0.0, %v3800
      %v3802 = vpop.f32.mrb[0].mxu0
      %3803 = vdwg.mxu0
      %v3804 = vadd.f32 %v3597, %v3678
      %v3805 = vadd.f32 %v3598, %v3681
      %v3806 = vadd.f32 %v3599, %v3686
      %v3807 = vadd.f32 %v3600, %v3689
      %v3808 = vadd.f32 %v3601, %v3694
      %v3809 = vadd.f32 %v3602, %v3697
      %v3810 = vadd.f32 %v3603, %v3702
      %v3811 = vadd.f32 %v3604, %v3705
      %v3812 = vadd.f32 %v3605, %v3710
      %v3813 = vadd.f32 %v3606, %v3713
      %v3814 = vadd.f32 %v3607, %v3718
      %v3815 = vadd.f32 %v3608, %v3721
      %v3816 = vadd.f32 %v3609, %v3726
      %v3817 = vadd.f32 %v3610, %v3729
      %v3818 = vadd.f32 %v3611, %v3734
      %v3819 = vadd.f32 %v3612, %v3737
      %v3820 = vadd.f32 %v3613, %v3742
      %v3821 = vadd.f32 %v3614, %v3745
      %v3822 = vadd.f32 %v3615, %v3750
      %v3823 = vadd.f32 %v3616, %v3753
      %v3824 = vadd.f32 %v3617, %v3758
      %v3825 = vadd.f32 %v3618, %v3761
      %v3826 = vadd.f32 %v3619, %v3766
      %v3827 = vadd.f32 %v3620, %v3769
      %v3828 = vadd.f32 %v3621, %v3774
      %v3829 = vadd.f32 %v3622, %v3777
      %v3830 = vadd.f32 %v3623, %v3782
      %v3831 = vadd.f32 %v3624, %v3785
      %v3832 = vadd.f32 %v3625, %v3790
      %v3833 = vadd.f32 %v3626, %v3793
      %v3834 = vadd.f32 %v3627, %v3798
      %v3835 = vadd.f32 %v3628, %v3801
      %v3837 = vshrl.u32 %v398, 16
      %v3839 = vrot.slane %v3837, 4
      %v3840 = vshll.u32 %v398, 16
      %v3842 = vrot.slane %v3840, 5
      %v3843 = vor.u32 %v3839, %v3842
      %v3844 = vrot.slane %v3843, 4
      %v3846 = vshll.u32 %v399, 16
      %v3848 = vrot.slane %v3846, 5
      %v3849 = vsel %vm1160, %v3844, %v3848
      %v3850 = vshrl.u32 %v399, 16
      %v3852 = vrot.slane %v3850, 4
      %v3853 = vor.u32 %v3852, %v3848
      %v3854 = vrot.slane %v3853, 4
      %v3856 = vshll.u32 %v400, 16
      %v3858 = vrot.slane %v3856, 5
      %v3859 = vsel %vm1160, %v3854, %v3858
      %v3861 = vshrl.u32 %v452, 16
      %v3863 = vrot.slane %v3861, 4
      %v3864 = vshll.u32 %v452, 16
      %v3866 = vrot.slane %v3864, 5
      %v3867 = vor.u32 %v3863, %v3866
      %v3868 = vrot.slane %v3867, 4
      %v3870 = vshll.u32 %v453, 16
      %v3872 = vrot.slane %v3870, 5
      %v3873 = vsel %vm1160, %v3868, %v3872
      %v3874 = vshrl.u32 %v453, 16
      %v3876 = vrot.slane %v3874, 4
      %v3877 = vor.u32 %v3876, %v3872
      %v3878 = vrot.slane %v3877, 4
      %v3880 = vshll.u32 %v454, 16
      %v3882 = vrot.slane %v3880, 5
      %v3883 = vsel %vm1160, %v3878, %v3882
      %v3884 = vunpack.c.l.b16 %v3849
      %v3885 = vunpack.c.l.b16 %v3859
      %v3886 = vpack.c.b16 %v3885, %v3884
      %v3895 = vunpack.c.l.b16 %v490
      %v3896 = vunpack.c.l.b16 %v491
      %v3897 = vunpack.c.l.b16 %v492
      %v3898 = vunpack.c.l.b16 %v493
      %v3899 = vunpack.c.l.b16 %v494
      %v3900 = vunpack.c.l.b16 %v495
      %v3901 = vunpack.c.l.b16 %v496
      %v3902 = vunpack.c.l.b16 %v497
      %v3903 = vpack.c.b16 %v3896, %v3895
      %v3904 = vpack.c.b16 %v3898, %v3897
      %v3905 = vpack.c.b16 %v3900, %v3899
      %v3906 = vpack.c.b16 %v3902, %v3901
      %v3912 = vsel %vm948, %v3886, 0
      %3914 = vmatprep.subr.bf16.mxu0 0
      %3915 = vmatpush1.bf16.msra.mxu0 %v3903
      %3916 = vmatprep.subr.bf16.mxu0 0
      %3917 = vmatpush1.bf16.msra.mxu0 %v3904
      %3918 = vmatprep.subr.bf16.mxu0 0
      %3919 = vmatpush1.bf16.msra.mxu0 %v3905
      %3920 = vmatprep.subr.bf16.mxu0 0
      %3921 = vmatpush1.bf16.msra.mxu0 %v3906
      %3922 = vmatprep.subr.bf16.mxu0 0
      %3923 = vmatpush1.bf16.msra.mxu0 0
      %3924 = vmatprep.subr.bf16.mxu0 0
      %3925 = vmatpush1.bf16.msra.mxu0 0
      %3926 = vmatprep.subr.bf16.mxu0 0
      %3927 = vmatpush1.bf16.msra.mxu0 0
      %3928 = vmatprep.subr.bf16.mxu0 0
      %3929 = vmatpush1.bf16.msra.mxu0 0
      %3930 = vmatprep.subr.bf16.mxu0 0
      %3931 = vmatpush1.bf16.msra.mxu0 0
      %3932 = vmatprep.subr.bf16.mxu0 0
      %3933 = vmatpush1.bf16.msra.mxu0 0
      %3934 = vmatprep.subr.bf16.mxu0 0
      %3935 = vmatpush1.bf16.msra.mxu0 0
      %3936 = vmatprep.subr.bf16.mxu0 0
      %3937 = vmatpush1.bf16.msra.mxu0 0
      %3938 = vmatprep.subr.bf16.mxu0 0
      %3939 = vmatpush1.bf16.msra.mxu0 0
      %3940 = vmatprep.subr.bf16.mxu0 0
      %3941 = vmatpush1.bf16.msra.mxu0 0
      %3942 = vmatprep.subr.bf16.mxu0 0
      %3943 = vmatpush1.bf16.msra.mxu0 0
      %3944 = vmatprep.subr.bf16.mxu0 0
      %3945 = vmatpush1.bf16.msra.mxu0 0
      %3946 = vmatprep.mubr.bf16.mxu0 0
      %3947 = vmatmul.mubr.bf16.gmra.mrb[0].mxu0 %v2005
      %v3948 = vpop.f32.mrb[0].mxu0
      %v3949 = vadd.f32 0.0, %v3948
      %v3950 = vpop.f32.mrb[0].mxu0
      %v3951 = vpop.f32.mrb[0].mxu0
      %v3952 = vadd.f32 0.0, %v3951
      %v3953 = vpop.f32.mrb[0].mxu0
      %3954 = vmatprep.mubr.bf16.mxu0 0
      %3955 = vmatmul.mubr.bf16.gmra.mrb[0].mxu0 %v2008
      %v3956 = vpop.f32.mrb[0].mxu0
      %v3957 = vadd.f32 0.0, %v3956
      %v3958 = vpop.f32.mrb[0].mxu0
      %v3959 = vpop.f32.mrb[0].mxu0
      %v3960 = vadd.f32 0.0, %v3959
      %v3961 = vpop.f32.mrb[0].mxu0
      %3962 = vmatprep.mubr.bf16.mxu0 0
      %3963 = vmatmul.mubr.bf16.gmra.mrb[0].mxu0 %v2011
      %v3964 = vpop.f32.mrb[0].mxu0
      %v3965 = vadd.f32 0.0, %v3964
      %v3966 = vpop.f32.mrb[0].mxu0
      %v3967 = vpop.f32.mrb[0].mxu0
      %v3968 = vadd.f32 0.0, %v3967
      %v3969 = vpop.f32.mrb[0].mxu0
      %3970 = vmatprep.mubr.bf16.mxu0 0
      %3971 = vmatmul.mubr.bf16.gmra.mrb[0].mxu0 %v2014
      %v3972 = vpop.f32.mrb[0].mxu0
      %v3973 = vadd.f32 0.0, %v3972
      %v3974 = vpop.f32.mrb[0].mxu0
      %v3975 = vpop.f32.mrb[0].mxu0
      %v3976 = vadd.f32 0.0, %v3975
      %v3977 = vpop.f32.mrb[0].mxu0
      %3978 = vmatprep.mubr.bf16.mxu0 0
      %3979 = vmatmul.mubr.bf16.gmra.mrb[0].mxu0 %v2017
      %v3980 = vpop.f32.mrb[0].mxu0
      %v3981 = vadd.f32 0.0, %v3980
      %v3982 = vpop.f32.mrb[0].mxu0
      %v3983 = vpop.f32.mrb[0].mxu0
      %v3984 = vadd.f32 0.0, %v3983
      %v3985 = vpop.f32.mrb[0].mxu0
      %3986 = vmatprep.mubr.bf16.mxu0 0
      %3987 = vmatmul.mubr.bf16.gmra.mrb[0].mxu0 %v2020
      %v3988 = vpop.f32.mrb[0].mxu0
      %v3989 = vadd.f32 0.0, %v3988
      %v3990 = vpop.f32.mrb[0].mxu0
      %v3991 = vpop.f32.mrb[0].mxu0
      %v3992 = vadd.f32 0.0, %v3991
      %v3993 = vpop.f32.mrb[0].mxu0
      %3994 = vmatprep.mubr.bf16.mxu0 0
      %3995 = vmatmul.mubr.bf16.gmra.mrb[0].mxu0 %v2023
      %v3996 = vpop.f32.mrb[0].mxu0
      %v3997 = vadd.f32 0.0, %v3996
      %v3998 = vpop.f32.mrb[0].mxu0
      %v3999 = vpop.f32.mrb[0].mxu0
      %v4000 = vadd.f32 0.0, %v3999
      %v4001 = vpop.f32.mrb[0].mxu0
      %4002 = vmatprep.mubr.bf16.mxu0 0
      %4003 = vmatmul.mubr.bf16.gmra.mrb[0].mxu0 %v2026
      %v4004 = vpop.f32.mrb[0].mxu0
      %v4005 = vadd.f32 0.0, %v4004
      %v4006 = vpop.f32.mrb[0].mxu0
      %v4007 = vpop.f32.mrb[0].mxu0
      %v4008 = vadd.f32 0.0, %v4007
      %v4009 = vpop.f32.mrb[0].mxu0
      %4010 = vmatprep.mubr.bf16.mxu0 0
      %4011 = vmatmul.mubr.bf16.gmra.mrb[0].mxu0 %v2029
      %v4012 = vpop.f32.mrb[0].mxu0
      %v4013 = vadd.f32 0.0, %v4012
      %v4014 = vpop.f32.mrb[0].mxu0
      %v4015 = vpop.f32.mrb[0].mxu0
      %v4016 = vadd.f32 0.0, %v4015
      %v4017 = vpop.f32.mrb[0].mxu0
      %4018 = vmatprep.mubr.bf16.mxu0 0
      %4019 = vmatmul.mubr.bf16.gmra.mrb[0].mxu0 %v2032
      %v4020 = vpop.f32.mrb[0].mxu0
      %v4021 = vadd.f32 0.0, %v4020
      %v4022 = vpop.f32.mrb[0].mxu0
      %v4023 = vpop.f32.mrb[0].mxu0
      %v4024 = vadd.f32 0.0, %v4023
      %v4025 = vpop.f32.mrb[0].mxu0
      %4026 = vmatprep.mubr.bf16.mxu0 0
      %4027 = vmatmul.mubr.bf16.gmra.mrb[0].mxu0 %v2035
      %v4028 = vpop.f32.mrb[0].mxu0
      %v4029 = vadd.f32 0.0, %v4028
      %v4030 = vpop.f32.mrb[0].mxu0
      %v4031 = vpop.f32.mrb[0].mxu0
      %v4032 = vadd.f32 0.0, %v4031
      %v4033 = vpop.f32.mrb[0].mxu0
      %4034 = vmatprep.mubr.bf16.mxu0 0
      %4035 = vmatmul.mubr.bf16.gmra.mrb[0].mxu0 %v2038
      %v4036 = vpop.f32.mrb[0].mxu0
      %v4037 = vadd.f32 0.0, %v4036
      %v4038 = vpop.f32.mrb[0].mxu0
      %v4039 = vpop.f32.mrb[0].mxu0
      %v4040 = vadd.f32 0.0, %v4039
      %v4041 = vpop.f32.mrb[0].mxu0
      %4042 = vmatprep.mubr.bf16.mxu0 0
      %4043 = vmatmul.mubr.bf16.gmra.mrb[0].mxu0 %v2041
      %v4044 = vpop.f32.mrb[0].mxu0
      %v4045 = vadd.f32 0.0, %v4044
      %v4046 = vpop.f32.mrb[0].mxu0
      %v4047 = vpop.f32.mrb[0].mxu0
      %v4048 = vadd.f32 0.0, %v4047
      %v4049 = vpop.f32.mrb[0].mxu0
      %4050 = vmatprep.mubr.bf16.mxu0 0
      %4051 = vmatmul.mubr.bf16.gmra.mrb[0].mxu0 %v2044
      %v4052 = vpop.f32.mrb[0].mxu0
      %v4053 = vadd.f32 0.0, %v4052
      %v4054 = vpop.f32.mrb[0].mxu0
      %v4055 = vpop.f32.mrb[0].mxu0
      %v4056 = vadd.f32 0.0, %v4055
      %v4057 = vpop.f32.mrb[0].mxu0
      %4058 = vmatprep.mubr.bf16.mxu0 0
      %4059 = vmatmul.mubr.bf16.gmra.mrb[0].mxu0 %v2047
      %v4060 = vpop.f32.mrb[0].mxu0
      %v4061 = vadd.f32 0.0, %v4060
      %v4062 = vpop.f32.mrb[0].mxu0
      %v4063 = vpop.f32.mrb[0].mxu0
      %v4064 = vadd.f32 0.0, %v4063
      %v4065 = vpop.f32.mrb[0].mxu0
      %4066 = vmatprep.mubr.bf16.mxu0 0
      %4067 = vmatmul.mubr.bf16.gmra.mrb[0].mxu0 %v3912
      %v4068 = vpop.f32.mrb[0].mxu0
      %v4069 = vadd.f32 0.0, %v4068
      %v4070 = vpop.f32.mrb[0].mxu0
      %v4071 = vpop.f32.mrb[0].mxu0
      %v4072 = vadd.f32 0.0, %v4071
      %v4073 = vpop.f32.mrb[0].mxu0
      %4074 = vdwg.mxu0
      %v4075 = vadd.f32 %v3804, %v3949
      %v4076 = vadd.f32 %v3805, %v3952
      %v4077 = vadd.f32 %v3806, %v3957
      %v4078 = vadd.f32 %v3807, %v3960
      %v4079 = vadd.f32 %v3808, %v3965
      %v4080 = vadd.f32 %v3809, %v3968
      %v4081 = vadd.f32 %v3810, %v3973
      %v4082 = vadd.f32 %v3811, %v3976
      %v4083 = vadd.f32 %v3812, %v3981
      %v4084 = vadd.f32 %v3813, %v3984
      %v4085 = vadd.f32 %v3814, %v3989
      %v4086 = vadd.f32 %v3815, %v3992
      %v4087 = vadd.f32 %v3816, %v3997
      %v4088 = vadd.f32 %v3817, %v4000
      %v4089 = vadd.f32 %v3818, %v4005
      %v4090 = vadd.f32 %v3819, %v4008
      %v4091 = vadd.f32 %v3820, %v4013
      %v4092 = vadd.f32 %v3821, %v4016
      %v4093 = vadd.f32 %v3822, %v4021
      %v4094 = vadd.f32 %v3823, %v4024
      %v4095 = vadd.f32 %v3824, %v4029
      %v4096 = vadd.f32 %v3825, %v4032
      %v4097 = vadd.f32 %v3826, %v4037
      %v4098 = vadd.f32 %v3827, %v4040
      %v4099 = vadd.f32 %v3828, %v4045
      %v4100 = vadd.f32 %v3829, %v4048
      %v4101 = vadd.f32 %v3830, %v4053
      %v4102 = vadd.f32 %v3831, %v4056
      %v4103 = vadd.f32 %v3832, %v4061
      %v4104 = vadd.f32 %v3833, %v4064
      %v4105 = vadd.f32 %v3834, %v4069
      %v4106 = vadd.f32 %v3835, %v4072
      %v4107 = vunpack.c.l.b16 %v3873
      %v4108 = vunpack.c.l.b16 %v3883
      %v4109 = vpack.c.b16 %v4108, %v4107
      %v4112 = vunpack.c.l.b16 %v538
      %v4113 = vunpack.c.l.b16 %v539
      %v4114 = vpack.c.b16 %v4113, %v4112
      %v4117 = vsel %vm634, %v4109, 0
      %4119 = vmatprep.subr.bf16.mxu0 0
      %4120 = vmatpush1.bf16.msra.mxu0 %v4114
      %4121 = vmatprep.subr.bf16.mxu0 0
      %4122 = vmatpush1.bf16.msra.mxu0 0
      %4123 = vmatprep.subr.bf16.mxu0 0
      %4124 = vmatpush1.bf16.msra.mxu0 0
      %4125 = vmatprep.subr.bf16.mxu0 0
      %4126 = vmatpush1.bf16.msra.mxu0 0
      %4127 = vmatprep.subr.bf16.mxu0 0
      %4128 = vmatpush1.bf16.msra.mxu0 0
      %4129 = vmatprep.subr.bf16.mxu0 0
      %4130 = vmatpush1.bf16.msra.mxu0 0
      %4131 = vmatprep.subr.bf16.mxu0 0
      %4132 = vmatpush1.bf16.msra.mxu0 0
      %4133 = vmatprep.subr.bf16.mxu0 0
      %4134 = vmatpush1.bf16.msra.mxu0 0
      %4135 = vmatprep.subr.bf16.mxu0 0
      %4136 = vmatpush1.bf16.msra.mxu0 0
      %4137 = vmatprep.subr.bf16.mxu0 0
      %4138 = vmatpush1.bf16.msra.mxu0 0
      %4139 = vmatprep.subr.bf16.mxu0 0
      %4140 = vmatpush1.bf16.msra.mxu0 0
      %4141 = vmatprep.subr.bf16.mxu0 0
      %4142 = vmatpush1.bf16.msra.mxu0 0
      %4143 = vmatprep.subr.bf16.mxu0 0
      %4144 = vmatpush1.bf16.msra.mxu0 0
      %4145 = vmatprep.subr.bf16.mxu0 0
      %4146 = vmatpush1.bf16.msra.mxu0 0
      %4147 = vmatprep.subr.bf16.mxu0 0
      %4148 = vmatpush1.bf16.msra.mxu0 0
      %4149 = vmatprep.subr.bf16.mxu0 0
      %4150 = vmatpush1.bf16.msra.mxu0 0
      %4151 = vmatprep.mubr.bf16.mxu0 0
      %4152 = vmatmul.mubr.bf16.gmra.mrb[0].mxu0 %v2300
      %v4153 = vpop.f32.mrb[0].mxu0
      %v4154 = vadd.f32 0.0, %v4153
      %v4155 = vpop.f32.mrb[0].mxu0
      %v4156 = vpop.f32.mrb[0].mxu0
      %v4157 = vadd.f32 0.0, %v4156
      %v4158 = vpop.f32.mrb[0].mxu0
      %4159 = vmatprep.mubr.bf16.mxu0 0
      %4160 = vmatmul.mubr.bf16.gmra.mrb[0].mxu0 %v2303
      %v4161 = vpop.f32.mrb[0].mxu0
      %v4162 = vadd.f32 0.0, %v4161
      %v4163 = vpop.f32.mrb[0].mxu0
      %v4164 = vpop.f32.mrb[0].mxu0
      %v4165 = vadd.f32 0.0, %v4164
      %v4166 = vpop.f32.mrb[0].mxu0
      %4167 = vmatprep.mubr.bf16.mxu0 0
      %4168 = vmatmul.mubr.bf16.gmra.mrb[0].mxu0 %v2306
      %v4169 = vpop.f32.mrb[0].mxu0
      %v4170 = vadd.f32 0.0, %v4169
      %v4171 = vpop.f32.mrb[0].mxu0
      %v4172 = vpop.f32.mrb[0].mxu0
      %v4173 = vadd.f32 0.0, %v4172
      %v4174 = vpop.f32.mrb[0].mxu0
      %4175 = vmatprep.mubr.bf16.mxu0 0
      %4176 = vmatmul.mubr.bf16.gmra.mrb[0].mxu0 %v2309
      %v4177 = vpop.f32.mrb[0].mxu0
      %v4178 = vadd.f32 0.0, %v4177
      %v4179 = vpop.f32.mrb[0].mxu0
      %v4180 = vpop.f32.mrb[0].mxu0
      %v4181 = vadd.f32 0.0, %v4180
      %v4182 = vpop.f32.mrb[0].mxu0
      %4183 = vmatprep.mubr.bf16.mxu0 0
      %4184 = vmatmul.mubr.bf16.gmra.mrb[0].mxu0 %v2312
      %v4185 = vpop.f32.mrb[0].mxu0
      %v4186 = vadd.f32 0.0, %v4185
      %v4187 = vpop.f32.mrb[0].mxu0
      %v4188 = vpop.f32.mrb[0].mxu0
      %v4189 = vadd.f32 0.0, %v4188
      %v4190 = vpop.f32.mrb[0].mxu0
      %4191 = vmatprep.mubr.bf16.mxu0 0
      %4192 = vmatmul.mubr.bf16.gmra.mrb[0].mxu0 %v2315
      %v4193 = vpop.f32.mrb[0].mxu0
      %v4194 = vadd.f32 0.0, %v4193
      %v4195 = vpop.f32.mrb[0].mxu0
      %v4196 = vpop.f32.mrb[0].mxu0
      %v4197 = vadd.f32 0.0, %v4196
      %v4198 = vpop.f32.mrb[0].mxu0
      %4199 = vmatprep.mubr.bf16.mxu0 0
      %4200 = vmatmul.mubr.bf16.gmra.mrb[0].mxu0 %v2318
      %v4201 = vpop.f32.mrb[0].mxu0
      %v4202 = vadd.f32 0.0, %v4201
      %v4203 = vpop.f32.mrb[0].mxu0
      %v4204 = vpop.f32.mrb[0].mxu0
      %v4205 = vadd.f32 0.0, %v4204
      %v4206 = vpop.f32.mrb[0].mxu0
      %4207 = vmatprep.mubr.bf16.mxu0 0
      %4208 = vmatmul.mubr.bf16.gmra.mrb[0].mxu0 %v2321
      %v4209 = vpop.f32.mrb[0].mxu0
      %v4210 = vadd.f32 0.0, %v4209
      %v4211 = vpop.f32.mrb[0].mxu0
      %v4212 = vpop.f32.mrb[0].mxu0
      %v4213 = vadd.f32 0.0, %v4212
      %v4214 = vpop.f32.mrb[0].mxu0
      %4215 = vmatprep.mubr.bf16.mxu0 0
      %4216 = vmatmul.mubr.bf16.gmra.mrb[0].mxu0 %v2324
      %v4217 = vpop.f32.mrb[0].mxu0
      %v4218 = vadd.f32 0.0, %v4217
      %v4219 = vpop.f32.mrb[0].mxu0
      %v4220 = vpop.f32.mrb[0].mxu0
      %v4221 = vadd.f32 0.0, %v4220
      %v4222 = vpop.f32.mrb[0].mxu0
      %4223 = vmatprep.mubr.bf16.mxu0 0
      %4224 = vmatmul.mubr.bf16.gmra.mrb[0].mxu0 %v2327
      %v4225 = vpop.f32.mrb[0].mxu0
      %v4226 = vadd.f32 0.0, %v4225
      %v4227 = vpop.f32.mrb[0].mxu0
      %v4228 = vpop.f32.mrb[0].mxu0
      %v4229 = vadd.f32 0.0, %v4228
      %v4230 = vpop.f32.mrb[0].mxu0
      %4231 = vmatprep.mubr.bf16.mxu0 0
      %4232 = vmatmul.mubr.bf16.gmra.mrb[0].mxu0 %v2330
      %v4233 = vpop.f32.mrb[0].mxu0
      %v4234 = vadd.f32 0.0, %v4233
      %v4235 = vpop.f32.mrb[0].mxu0
      %v4236 = vpop.f32.mrb[0].mxu0
      %v4237 = vadd.f32 0.0, %v4236
      %v4238 = vpop.f32.mrb[0].mxu0
      %4239 = vmatprep.mubr.bf16.mxu0 0
      %4240 = vmatmul.mubr.bf16.gmra.mrb[0].mxu0 %v2333
      %v4241 = vpop.f32.mrb[0].mxu0
      %v4242 = vadd.f32 0.0, %v4241
      %v4243 = vpop.f32.mrb[0].mxu0
      %v4244 = vpop.f32.mrb[0].mxu0
      %v4245 = vadd.f32 0.0, %v4244
      %v4246 = vpop.f32.mrb[0].mxu0
      %4247 = vmatprep.mubr.bf16.mxu0 0
      %4248 = vmatmul.mubr.bf16.gmra.mrb[0].mxu0 %v2336
      %v4249 = vpop.f32.mrb[0].mxu0
      %v4250 = vadd.f32 0.0, %v4249
      %v4251 = vpop.f32.mrb[0].mxu0
      %v4252 = vpop.f32.mrb[0].mxu0
      %v4253 = vadd.f32 0.0, %v4252
      %v4254 = vpop.f32.mrb[0].mxu0
      %4255 = vmatprep.mubr.bf16.mxu0 0
      %4256 = vmatmul.mubr.bf16.gmra.mrb[0].mxu0 %v2339
      %v4257 = vpop.f32.mrb[0].mxu0
      %v4258 = vadd.f32 0.0, %v4257
      %v4259 = vpop.f32.mrb[0].mxu0
      %v4260 = vpop.f32.mrb[0].mxu0
      %v4261 = vadd.f32 0.0, %v4260
      %v4262 = vpop.f32.mrb[0].mxu0
      %4263 = vmatprep.mubr.bf16.mxu0 0
      %4264 = vmatmul.mubr.bf16.gmra.mrb[0].mxu0 %v2342
      %v4265 = vpop.f32.mrb[0].mxu0
      %v4266 = vadd.f32 0.0, %v4265
      %v4267 = vpop.f32.mrb[0].mxu0
      %v4268 = vpop.f32.mrb[0].mxu0
      %v4269 = vadd.f32 0.0, %v4268
      %v4270 = vpop.f32.mrb[0].mxu0
      %4271 = vmatprep.mubr.bf16.mxu0 0
      %4272 = vmatmul.mubr.bf16.gmra.mrb[0].mxu0 %v4117
      %v4273 = vpop.f32.mrb[0].mxu0
      %v4274 = vadd.f32 0.0, %v4273
      %v4275 = vpop.f32.mrb[0].mxu0
      %v4276 = vpop.f32.mrb[0].mxu0
      %v4277 = vadd.f32 0.0, %v4276
      %v4278 = vpop.f32.mrb[0].mxu0
      %4279 = vdwg.mxu0
      %v4280 = vadd.f32 %v4075, %v4154
      %v4281 = vadd.f32 %v4076, %v4157
      %v4282 = vadd.f32 %v4077, %v4162
      %v4283 = vadd.f32 %v4078, %v4165
      %v4284 = vadd.f32 %v4079, %v4170
      %v4285 = vadd.f32 %v4080, %v4173
      %v4286 = vadd.f32 %v4081, %v4178
      %v4287 = vadd.f32 %v4082, %v4181
      %v4288 = vadd.f32 %v4083, %v4186
      %v4289 = vadd.f32 %v4084, %v4189
      %v4290 = vadd.f32 %v4085, %v4194
      %v4291 = vadd.f32 %v4086, %v4197
      %v4292 = vadd.f32 %v4087, %v4202
      %v4293 = vadd.f32 %v4088, %v4205
      %v4294 = vadd.f32 %v4089, %v4210
      %v4295 = vadd.f32 %v4090, %v4213
      %v4296 = vadd.f32 %v4091, %v4218
      %v4297 = vadd.f32 %v4092, %v4221
      %v4298 = vadd.f32 %v4093, %v4226
      %v4299 = vadd.f32 %v4094, %v4229
      %v4300 = vadd.f32 %v4095, %v4234
      %v4301 = vadd.f32 %v4096, %v4237
      %v4302 = vadd.f32 %v4097, %v4242
      %v4303 = vadd.f32 %v4098, %v4245
      %v4304 = vadd.f32 %v4099, %v4250
      %v4305 = vadd.f32 %v4100, %v4253
      %v4306 = vadd.f32 %v4101, %v4258
      %v4307 = vadd.f32 %v4102, %v4261
      %v4308 = vadd.f32 %v4103, %v4266
      %v4309 = vadd.f32 %v4104, %v4269
      %v4310 = vadd.f32 %v4105, %v4274
      %v4311 = vadd.f32 %v4106, %v4277
      %v4313 = vrot.slane %v398, 5
      %v4314 = vrot.slane %v4313, 4
      %v4315 = vrot.slane %v399, 5
      %v4316 = vsel %vm2555, %v4314, %v4315
      %v4317 = vrot.slane %v4315, 4
      %v4318 = vrot.slane %v400, 5
      %v4319 = vsel %vm2555, %v4317, %v4318
      %v4321 = vrot.slane %v452, 5
      %v4322 = vrot.slane %v4321, 4
      %v4323 = vrot.slane %v453, 5
      %v4324 = vsel %vm2555, %v4322, %v4323
      %v4325 = vrot.slane %v4323, 4
      %v4326 = vrot.slane %v454, 5
      %v4327 = vsel %vm2555, %v4325, %v4326
      %v4328 = vunpack.c.l.b16 %v4316
      %v4329 = vunpack.c.l.b16 %v4319
      %v4330 = vpack.c.b16 %v4329, %v4328
      %v4339 = vunpack.c.l.b16 %v498
      %v4340 = vunpack.c.l.b16 %v499
      %v4341 = vunpack.c.l.b16 %v500
      %v4342 = vunpack.c.l.b16 %v501
      %v4343 = vunpack.c.l.b16 %v502
      %v4344 = vunpack.c.l.b16 %v503
      %v4345 = vunpack.c.l.b16 %v504
      %v4346 = vunpack.c.l.b16 %v505
      %v4347 = vpack.c.b16 %v4340, %v4339
      %v4348 = vpack.c.b16 %v4342, %v4341
      %v4349 = vpack.c.b16 %v4344, %v4343
      %v4350 = vpack.c.b16 %v4346, %v4345
      %v4356 = vsel %vm948, %v4330, 0
      %4358 = vmatprep.subr.bf16.mxu0 0
      %4359 = vmatpush1.bf16.msra.mxu0 %v4347
      %4360 = vmatprep.subr.bf16.mxu0 0
      %4361 = vmatpush1.bf16.msra.mxu0 %v4348
      %4362 = vmatprep.subr.bf16.mxu0 0
      %4363 = vmatpush1.bf16.msra.mxu0 %v4349
      %4364 = vmatprep.subr.bf16.mxu0 0
      %4365 = vmatpush1.bf16.msra.mxu0 %v4350
      %4366 = vmatprep.subr.bf16.mxu0 0
      %4367 = vmatpush1.bf16.msra.mxu0 0
      %4368 = vmatprep.subr.bf16.mxu0 0
      %4369 = vmatpush1.bf16.msra.mxu0 0
      %4370 = vmatprep.subr.bf16.mxu0 0
      %4371 = vmatpush1.bf16.msra.mxu0 0
      %4372 = vmatprep.subr.bf16.mxu0 0
      %4373 = vmatpush1.bf16.msra.mxu0 0
      %4374 = vmatprep.subr.bf16.mxu0 0
      %4375 = vmatpush1.bf16.msra.mxu0 0
      %4376 = vmatprep.subr.bf16.mxu0 0
      %4377 = vmatpush1.bf16.msra.mxu0 0
      %4378 = vmatprep.subr.bf16.mxu0 0
      %4379 = vmatpush1.bf16.msra.mxu0 0
      %4380 = vmatprep.subr.bf16.mxu0 0
      %4381 = vmatpush1.bf16.msra.mxu0 0
      %4382 = vmatprep.subr.bf16.mxu0 0
      %4383 = vmatpush1.bf16.msra.mxu0 0
      %4384 = vmatprep.subr.bf16.mxu0 0
      %4385 = vmatpush1.bf16.msra.mxu0 0
      %4386 = vmatprep.subr.bf16.mxu0 0
      %4387 = vmatpush1.bf16.msra.mxu0 0
      %4388 = vmatprep.subr.bf16.mxu0 0
      %4389 = vmatpush1.bf16.msra.mxu0 0
      %4390 = vmatprep.mubr.bf16.mxu0 0
      %4391 = vmatmul.mubr.bf16.gmra.mrb[0].mxu0 %v2872
      %v4392 = vpop.f32.mrb[0].mxu0
      %v4393 = vadd.f32 0.0, %v4392
      %v4394 = vpop.f32.mrb[0].mxu0
      %v4395 = vpop.f32.mrb[0].mxu0
      %v4396 = vadd.f32 0.0, %v4395
      %v4397 = vpop.f32.mrb[0].mxu0
      %4398 = vmatprep.mubr.bf16.mxu0 0
      %4399 = vmatmul.mubr.bf16.gmra.mrb[0].mxu0 %v2875
      %v4400 = vpop.f32.mrb[0].mxu0
      %v4401 = vadd.f32 0.0, %v4400
      %v4402 = vpop.f32.mrb[0].mxu0
      %v4403 = vpop.f32.mrb[0].mxu0
      %v4404 = vadd.f32 0.0, %v4403
      %v4405 = vpop.f32.mrb[0].mxu0
      %4406 = vmatprep.mubr.bf16.mxu0 0
      %4407 = vmatmul.mubr.bf16.gmra.mrb[0].mxu0 %v2878
      %v4408 = vpop.f32.mrb[0].mxu0
      %v4409 = vadd.f32 0.0, %v4408
      %v4410 = vpop.f32.mrb[0].mxu0
      %v4411 = vpop.f32.mrb[0].mxu0
      %v4412 = vadd.f32 0.0, %v4411
      %v4413 = vpop.f32.mrb[0].mxu0
      %4414 = vmatprep.mubr.bf16.mxu0 0
      %4415 = vmatmul.mubr.bf16.gmra.mrb[0].mxu0 %v2881
      %v4416 = vpop.f32.mrb[0].mxu0
      %v4417 = vadd.f32 0.0, %v4416
      %v4418 = vpop.f32.mrb[0].mxu0
      %v4419 = vpop.f32.mrb[0].mxu0
      %v4420 = vadd.f32 0.0, %v4419
      %v4421 = vpop.f32.mrb[0].mxu0
      %4422 = vmatprep.mubr.bf16.mxu0 0
      %4423 = vmatmul.mubr.bf16.gmra.mrb[0].mxu0 %v2884
      %v4424 = vpop.f32.mrb[0].mxu0
      %v4425 = vadd.f32 0.0, %v4424
      %v4426 = vpop.f32.mrb[0].mxu0
      %v4427 = vpop.f32.mrb[0].mxu0
      %v4428 = vadd.f32 0.0, %v4427
      %v4429 = vpop.f32.mrb[0].mxu0
      %4430 = vmatprep.mubr.bf16.mxu0 0
      %4431 = vmatmul.mubr.bf16.gmra.mrb[0].mxu0 %v2887
      %v4432 = vpop.f32.mrb[0].mxu0
      %v4433 = vadd.f32 0.0, %v4432
      %v4434 = vpop.f32.mrb[0].mxu0
      %v4435 = vpop.f32.mrb[0].mxu0
      %v4436 = vadd.f32 0.0, %v4435
      %v4437 = vpop.f32.mrb[0].mxu0
      %4438 = vmatprep.mubr.bf16.mxu0 0
      %4439 = vmatmul.mubr.bf16.gmra.mrb[0].mxu0 %v2890
      %v4440 = vpop.f32.mrb[0].mxu0
      %v4441 = vadd.f32 0.0, %v4440
      %v4442 = vpop.f32.mrb[0].mxu0
      %v4443 = vpop.f32.mrb[0].mxu0
      %v4444 = vadd.f32 0.0, %v4443
      %v4445 = vpop.f32.mrb[0].mxu0
      %4446 = vmatprep.mubr.bf16.mxu0 0
      %4447 = vmatmul.mubr.bf16.gmra.mrb[0].mxu0 %v2893
      %v4448 = vpop.f32.mrb[0].mxu0
      %v4449 = vadd.f32 0.0, %v4448
      %v4450 = vpop.f32.mrb[0].mxu0
      %v4451 = vpop.f32.mrb[0].mxu0
      %v4452 = vadd.f32 0.0, %v4451
      %v4453 = vpop.f32.mrb[0].mxu0
      %4454 = vmatprep.mubr.bf16.mxu0 0
      %4455 = vmatmul.mubr.bf16.gmra.mrb[0].mxu0 %v2896
      %v4456 = vpop.f32.mrb[0].mxu0
      %v4457 = vadd.f32 0.0, %v4456
      %v4458 = vpop.f32.mrb[0].mxu0
      %v4459 = vpop.f32.mrb[0].mxu0
      %v4460 = vadd.f32 0.0, %v4459
      %v4461 = vpop.f32.mrb[0].mxu0
      %4462 = vmatprep.mubr.bf16.mxu0 0
      %4463 = vmatmul.mubr.bf16.gmra.mrb[0].mxu0 %v2899
      %v4464 = vpop.f32.mrb[0].mxu0
      %v4465 = vadd.f32 0.0, %v4464
      %v4466 = vpop.f32.mrb[0].mxu0
      %v4467 = vpop.f32.mrb[0].mxu0
      %v4468 = vadd.f32 0.0, %v4467
      %v4469 = vpop.f32.mrb[0].mxu0
      %4470 = vmatprep.mubr.bf16.mxu0 0
      %4471 = vmatmul.mubr.bf16.gmra.mrb[0].mxu0 %v2902
      %v4472 = vpop.f32.mrb[0].mxu0
      %v4473 = vadd.f32 0.0, %v4472
      %v4474 = vpop.f32.mrb[0].mxu0
      %v4475 = vpop.f32.mrb[0].mxu0
      %v4476 = vadd.f32 0.0, %v4475
      %v4477 = vpop.f32.mrb[0].mxu0
      %4478 = vmatprep.mubr.bf16.mxu0 0
      %4479 = vmatmul.mubr.bf16.gmra.mrb[0].mxu0 %v2905
      %v4480 = vpop.f32.mrb[0].mxu0
      %v4481 = vadd.f32 0.0, %v4480
      %v4482 = vpop.f32.mrb[0].mxu0
      %v4483 = vpop.f32.mrb[0].mxu0
      %v4484 = vadd.f32 0.0, %v4483
      %v4485 = vpop.f32.mrb[0].mxu0
      %4486 = vmatprep.mubr.bf16.mxu0 0
      %4487 = vmatmul.mubr.bf16.gmra.mrb[0].mxu0 %v2908
      %v4488 = vpop.f32.mrb[0].mxu0
      %v4489 = vadd.f32 0.0, %v4488
      %v4490 = vpop.f32.mrb[0].mxu0
      %v4491 = vpop.f32.mrb[0].mxu0
      %v4492 = vadd.f32 0.0, %v4491
      %v4493 = vpop.f32.mrb[0].mxu0
      %4494 = vmatprep.mubr.bf16.mxu0 0
      %4495 = vmatmul.mubr.bf16.gmra.mrb[0].mxu0 %v2911
      %v4496 = vpop.f32.mrb[0].mxu0
      %v4497 = vadd.f32 0.0, %v4496
      %v4498 = vpop.f32.mrb[0].mxu0
      %v4499 = vpop.f32.mrb[0].mxu0
      %v4500 = vadd.f32 0.0, %v4499
      %v4501 = vpop.f32.mrb[0].mxu0
      %4502 = vmatprep.mubr.bf16.mxu0 0
      %4503 = vmatmul.mubr.bf16.gmra.mrb[0].mxu0 %v2914
      %v4504 = vpop.f32.mrb[0].mxu0
      %v4505 = vadd.f32 0.0, %v4504
      %v4506 = vpop.f32.mrb[0].mxu0
      %v4507 = vpop.f32.mrb[0].mxu0
      %v4508 = vadd.f32 0.0, %v4507
      %v4509 = vpop.f32.mrb[0].mxu0
      %4510 = vmatprep.mubr.bf16.mxu0 0
      %4511 = vmatmul.mubr.bf16.gmra.mrb[0].mxu0 %v4356
      %v4512 = vpop.f32.mrb[0].mxu0
      %v4513 = vadd.f32 0.0, %v4512
      %v4514 = vpop.f32.mrb[0].mxu0
      %v4515 = vpop.f32.mrb[0].mxu0
      %v4516 = vadd.f32 0.0, %v4515
      %v4517 = vpop.f32.mrb[0].mxu0
      %4518 = vdwg.mxu0
      %v4519 = vadd.f32 %v4280, %v4393
      %v4520 = vadd.f32 %v4281, %v4396
      %v4521 = vadd.f32 %v4282, %v4401
      %v4522 = vadd.f32 %v4283, %v4404
      %v4523 = vadd.f32 %v4284, %v4409
      %v4524 = vadd.f32 %v4285, %v4412
      %v4525 = vadd.f32 %v4286, %v4417
      %v4526 = vadd.f32 %v4287, %v4420
      %v4527 = vadd.f32 %v4288, %v4425
      %v4528 = vadd.f32 %v4289, %v4428
      %v4529 = vadd.f32 %v4290, %v4433
      %v4530 = vadd.f32 %v4291, %v4436
      %v4531 = vadd.f32 %v4292, %v4441
      %v4532 = vadd.f32 %v4293, %v4444
      %v4533 = vadd.f32 %v4294, %v4449
      %v4534 = vadd.f32 %v4295, %v4452
      %v4535 = vadd.f32 %v4296, %v4457
      %v4536 = vadd.f32 %v4297, %v4460
      %v4537 = vadd.f32 %v4298, %v4465
      %v4538 = vadd.f32 %v4299, %v4468
      %v4539 = vadd.f32 %v4300, %v4473
      %v4540 = vadd.f32 %v4301, %v4476
      %v4541 = vadd.f32 %v4302, %v4481
      %v4542 = vadd.f32 %v4303, %v4484
      %v4543 = vadd.f32 %v4304, %v4489
      %v4544 = vadd.f32 %v4305, %v4492
      %v4545 = vadd.f32 %v4306, %v4497
      %v4546 = vadd.f32 %v4307, %v4500
      %v4547 = vadd.f32 %v4308, %v4505
      %v4548 = vadd.f32 %v4309, %v4508
      %v4549 = vadd.f32 %v4310, %v4513
      %v4550 = vadd.f32 %v4311, %v4516
      %v4551 = vunpack.c.l.b16 %v4324
      %v4552 = vunpack.c.l.b16 %v4327
      %v4553 = vpack.c.b16 %v4552, %v4551
      %v4556 = vunpack.c.l.b16 %v540
      %v4557 = vunpack.c.l.b16 %v541
      %v4558 = vpack.c.b16 %v4557, %v4556
      %v4561 = vsel %vm634, %v4553, 0
      %4563 = vmatprep.subr.bf16.mxu0 0
      %4564 = vmatpush1.bf16.msra.mxu0 %v4558
      %4565 = vmatprep.subr.bf16.mxu0 0
      %4566 = vmatpush1.bf16.msra.mxu0 0
      %4567 = vmatprep.subr.bf16.mxu0 0
      %4568 = vmatpush1.bf16.msra.mxu0 0
      %4569 = vmatprep.subr.bf16.mxu0 0
      %4570 = vmatpush1.bf16.msra.mxu0 0
      %4571 = vmatprep.subr.bf16.mxu0 0
      %4572 = vmatpush1.bf16.msra.mxu0 0
      %4573 = vmatprep.subr.bf16.mxu0 0
      %4574 = vmatpush1.bf16.msra.mxu0 0
      %4575 = vmatprep.subr.bf16.mxu0 0
      %4576 = vmatpush1.bf16.msra.mxu0 0
      %4577 = vmatprep.subr.bf16.mxu0 0
      %4578 = vmatpush1.bf16.msra.mxu0 0
      %4579 = vmatprep.subr.bf16.mxu0 0
      %4580 = vmatpush1.bf16.msra.mxu0 0
      %4581 = vmatprep.subr.bf16.mxu0 0
      %4582 = vmatpush1.bf16.msra.mxu0 0
      %4583 = vmatprep.subr.bf16.mxu0 0
      %4584 = vmatpush1.bf16.msra.mxu0 0
      %4585 = vmatprep.subr.bf16.mxu0 0
      %4586 = vmatpush1.bf16.msra.mxu0 0
      %4587 = vmatprep.subr.bf16.mxu0 0
      %4588 = vmatpush1.bf16.msra.mxu0 0
      %4589 = vmatprep.subr.bf16.mxu0 0
      %4590 = vmatpush1.bf16.msra.mxu0 0
      %4591 = vmatprep.subr.bf16.mxu0 0
      %4592 = vmatpush1.bf16.msra.mxu0 0
      %4593 = vmatprep.subr.bf16.mxu0 0
      %4594 = vmatpush1.bf16.msra.mxu0 0
      %4595 = vmatprep.mubr.bf16.mxu0 0
      %4596 = vmatmul.mubr.bf16.gmra.mrb[0].mxu0 %v3167
      %v4597 = vpop.f32.mrb[0].mxu0
      %v4598 = vadd.f32 0.0, %v4597
      %v4599 = vpop.f32.mrb[0].mxu0
      %v4600 = vpop.f32.mrb[0].mxu0
      %v4601 = vadd.f32 0.0, %v4600
      %v4602 = vpop.f32.mrb[0].mxu0
      %4603 = vmatprep.mubr.bf16.mxu0 0
      %4604 = vmatmul.mubr.bf16.gmra.mrb[0].mxu0 %v3170
      %v4605 = vpop.f32.mrb[0].mxu0
      %v4606 = vadd.f32 0.0, %v4605
      %v4607 = vpop.f32.mrb[0].mxu0
      %v4608 = vpop.f32.mrb[0].mxu0
      %v4609 = vadd.f32 0.0, %v4608
      %v4610 = vpop.f32.mrb[0].mxu0
      %4611 = vmatprep.mubr.bf16.mxu0 0
      %4612 = vmatmul.mubr.bf16.gmra.mrb[0].mxu0 %v3173
      %v4613 = vpop.f32.mrb[0].mxu0
      %v4614 = vadd.f32 0.0, %v4613
      %v4615 = vpop.f32.mrb[0].mxu0
      %v4616 = vpop.f32.mrb[0].mxu0
      %v4617 = vadd.f32 0.0, %v4616
      %v4618 = vpop.f32.mrb[0].mxu0
      %4619 = vmatprep.mubr.bf16.mxu0 0
      %4620 = vmatmul.mubr.bf16.gmra.mrb[0].mxu0 %v3176
      %v4621 = vpop.f32.mrb[0].mxu0
      %v4622 = vadd.f32 0.0, %v4621
      %v4623 = vpop.f32.mrb[0].mxu0
      %v4624 = vpop.f32.mrb[0].mxu0
      %v4625 = vadd.f32 0.0, %v4624
      %v4626 = vpop.f32.mrb[0].mxu0
      %4627 = vmatprep.mubr.bf16.mxu0 0
      %4628 = vmatmul.mubr.bf16.gmra.mrb[0].mxu0 %v3179
      %v4629 = vpop.f32.mrb[0].mxu0
      %v4630 = vadd.f32 0.0, %v4629
      %v4631 = vpop.f32.mrb[0].mxu0
      %v4632 = vpop.f32.mrb[0].mxu0
      %v4633 = vadd.f32 0.0, %v4632
      %v4634 = vpop.f32.mrb[0].mxu0
      %4635 = vmatprep.mubr.bf16.mxu0 0
      %4636 = vmatmul.mubr.bf16.gmra.mrb[0].mxu0 %v3182
      %v4637 = vpop.f32.mrb[0].mxu0
      %v4638 = vadd.f32 0.0, %v4637
      %v4639 = vpop.f32.mrb[0].mxu0
      %v4640 = vpop.f32.mrb[0].mxu0
      %v4641 = vadd.f32 0.0, %v4640
      %v4642 = vpop.f32.mrb[0].mxu0
      %4643 = vmatprep.mubr.bf16.mxu0 0
      %4644 = vmatmul.mubr.bf16.gmra.mrb[0].mxu0 %v3185
      %v4645 = vpop.f32.mrb[0].mxu0
      %v4646 = vadd.f32 0.0, %v4645
      %v4647 = vpop.f32.mrb[0].mxu0
      %v4648 = vpop.f32.mrb[0].mxu0
      %v4649 = vadd.f32 0.0, %v4648
      %v4650 = vpop.f32.mrb[0].mxu0
      %4651 = vmatprep.mubr.bf16.mxu0 0
      %4652 = vmatmul.mubr.bf16.gmra.mrb[0].mxu0 %v3188
      %v4653 = vpop.f32.mrb[0].mxu0
      %v4654 = vadd.f32 0.0, %v4653
      %v4655 = vpop.f32.mrb[0].mxu0
      %v4656 = vpop.f32.mrb[0].mxu0
      %v4657 = vadd.f32 0.0, %v4656
      %v4658 = vpop.f32.mrb[0].mxu0
      %4659 = vmatprep.mubr.bf16.mxu0 0
      %4660 = vmatmul.mubr.bf16.gmra.mrb[0].mxu0 %v3191
      %v4661 = vpop.f32.mrb[0].mxu0
      %v4662 = vadd.f32 0.0, %v4661
      %v4663 = vpop.f32.mrb[0].mxu0
      %v4664 = vpop.f32.mrb[0].mxu0
      %v4665 = vadd.f32 0.0, %v4664
      %v4666 = vpop.f32.mrb[0].mxu0
      %4667 = vmatprep.mubr.bf16.mxu0 0
      %4668 = vmatmul.mubr.bf16.gmra.mrb[0].mxu0 %v3194
      %v4669 = vpop.f32.mrb[0].mxu0
      %v4670 = vadd.f32 0.0, %v4669
      %v4671 = vpop.f32.mrb[0].mxu0
      %v4672 = vpop.f32.mrb[0].mxu0
      %v4673 = vadd.f32 0.0, %v4672
      %v4674 = vpop.f32.mrb[0].mxu0
      %4675 = vmatprep.mubr.bf16.mxu0 0
      %4676 = vmatmul.mubr.bf16.gmra.mrb[0].mxu0 %v3197
      %v4677 = vpop.f32.mrb[0].mxu0
      %v4678 = vadd.f32 0.0, %v4677
      %v4679 = vpop.f32.mrb[0].mxu0
      %v4680 = vpop.f32.mrb[0].mxu0
      %v4681 = vadd.f32 0.0, %v4680
      %v4682 = vpop.f32.mrb[0].mxu0
      %4683 = vmatprep.mubr.bf16.mxu0 0
      %4684 = vmatmul.mubr.bf16.gmra.mrb[0].mxu0 %v3200
      %v4685 = vpop.f32.mrb[0].mxu0
      %v4686 = vadd.f32 0.0, %v4685
      %v4687 = vpop.f32.mrb[0].mxu0
      %v4688 = vpop.f32.mrb[0].mxu0
      %v4689 = vadd.f32 0.0, %v4688
      %v4690 = vpop.f32.mrb[0].mxu0
      %4691 = vmatprep.mubr.bf16.mxu0 0
      %4692 = vmatmul.mubr.bf16.gmra.mrb[0].mxu0 %v3203
      %v4693 = vpop.f32.mrb[0].mxu0
      %v4694 = vadd.f32 0.0, %v4693
      %v4695 = vpop.f32.mrb[0].mxu0
      %v4696 = vpop.f32.mrb[0].mxu0
      %v4697 = vadd.f32 0.0, %v4696
      %v4698 = vpop.f32.mrb[0].mxu0
      %4699 = vmatprep.mubr.bf16.mxu0 0
      %4700 = vmatmul.mubr.bf16.gmra.mrb[0].mxu0 %v3206
      %v4701 = vpop.f32.mrb[0].mxu0
      %v4702 = vadd.f32 0.0, %v4701
      %v4703 = vpop.f32.mrb[0].mxu0
      %v4704 = vpop.f32.mrb[0].mxu0
      %v4705 = vadd.f32 0.0, %v4704
      %v4706 = vpop.f32.mrb[0].mxu0
      %4707 = vmatprep.mubr.bf16.mxu0 0
      %4708 = vmatmul.mubr.bf16.gmra.mrb[0].mxu0 %v3209
      %v4709 = vpop.f32.mrb[0].mxu0
      %v4710 = vadd.f32 0.0, %v4709
      %v4711 = vpop.f32.mrb[0].mxu0
      %v4712 = vpop.f32.mrb[0].mxu0
      %v4713 = vadd.f32 0.0, %v4712
      %v4714 = vpop.f32.mrb[0].mxu0
      %4715 = vmatprep.mubr.bf16.mxu0 0
      %4716 = vmatmul.mubr.bf16.gmra.mrb[0].mxu0 %v4561
      %v4717 = vpop.f32.mrb[0].mxu0
      %v4718 = vadd.f32 0.0, %v4717
      %v4719 = vpop.f32.mrb[0].mxu0
      %v4720 = vpop.f32.mrb[0].mxu0
      %v4721 = vadd.f32 0.0, %v4720
      %v4722 = vpop.f32.mrb[0].mxu0
      %4723 = vdwg.mxu0
      %v4724 = vadd.f32 %v4519, %v4598
      %v4725 = vadd.f32 %v4520, %v4601
      %v4726 = vadd.f32 %v4521, %v4606
      %v4727 = vadd.f32 %v4522, %v4609
      %v4728 = vadd.f32 %v4523, %v4614
      %v4729 = vadd.f32 %v4524, %v4617
      %v4730 = vadd.f32 %v4525, %v4622
      %v4731 = vadd.f32 %v4526, %v4625
      %v4732 = vadd.f32 %v4527, %v4630
      %v4733 = vadd.f32 %v4528, %v4633
      %v4734 = vadd.f32 %v4529, %v4638
      %v4735 = vadd.f32 %v4530, %v4641
      %v4736 = vadd.f32 %v4531, %v4646
      %v4737 = vadd.f32 %v4532, %v4649
      %v4738 = vadd.f32 %v4533, %v4654
      %v4739 = vadd.f32 %v4534, %v4657
      %v4740 = vadd.f32 %v4535, %v4662
      %v4741 = vadd.f32 %v4536, %v4665
      %v4742 = vadd.f32 %v4537, %v4670
      %v4743 = vadd.f32 %v4538, %v4673
      %v4744 = vadd.f32 %v4539, %v4678
      %v4745 = vadd.f32 %v4540, %v4681
      %v4746 = vadd.f32 %v4541, %v4686
      %v4747 = vadd.f32 %v4542, %v4689
      %v4748 = vadd.f32 %v4543, %v4694
      %v4749 = vadd.f32 %v4544, %v4697
      %v4750 = vadd.f32 %v4545, %v4702
      %v4751 = vadd.f32 %v4546, %v4705
      %v4752 = vadd.f32 %v4547, %v4710
      %v4753 = vadd.f32 %v4548, %v4713
      %v4754 = vadd.f32 %v4549, %v4718
      %v4755 = vadd.f32 %v4550, %v4721
      %v4758 = vunpack.c.l.b16 %v401
      %v4759 = vunpack.c.l.b16 %v402
      %v4760 = vpack.c.b16 %v4759, %v4758
      %v4769 = vunpack.c.l.b16 %v506
      %v4770 = vunpack.c.l.b16 %v507
      %v4771 = vunpack.c.l.b16 %v508
      %v4772 = vunpack.c.l.b16 %v509
      %v4773 = vunpack.c.l.b16 %v510
      %v4774 = vunpack.c.l.b16 %v511
      %v4775 = vunpack.c.l.b16 %v512
      %v4776 = vunpack.c.l.b16 %v513
      %v4777 = vpack.c.b16 %v4770, %v4769
      %v4778 = vpack.c.b16 %v4772, %v4771
      %v4779 = vpack.c.b16 %v4774, %v4773
      %v4780 = vpack.c.b16 %v4776, %v4775
      %v4786 = vsel %vm948, %v4760, 0
      %4788 = vmatprep.subr.bf16.mxu0 0
      %4789 = vmatpush1.bf16.msra.mxu0 %v4777
      %4790 = vmatprep.subr.bf16.mxu0 0
      %4791 = vmatpush1.bf16.msra.mxu0 %v4778
      %4792 = vmatprep.subr.bf16.mxu0 0
      %4793 = vmatpush1.bf16.msra.mxu0 %v4779
      %4794 = vmatprep.subr.bf16.mxu0 0
      %4795 = vmatpush1.bf16.msra.mxu0 %v4780
      %4796 = vmatprep.subr.bf16.mxu0 0
      %4797 = vmatpush1.bf16.msra.mxu0 0
      %4798 = vmatprep.subr.bf16.mxu0 0
      %4799 = vmatpush1.bf16.msra.mxu0 0
      %4800 = vmatprep.subr.bf16.mxu0 0
      %4801 = vmatpush1.bf16.msra.mxu0 0
      %4802 = vmatprep.subr.bf16.mxu0 0
      %4803 = vmatpush1.bf16.msra.mxu0 0
      %4804 = vmatprep.subr.bf16.mxu0 0
      %4805 = vmatpush1.bf16.msra.mxu0 0
      %4806 = vmatprep.subr.bf16.mxu0 0
      %4807 = vmatpush1.bf16.msra.mxu0 0
      %4808 = vmatprep.subr.bf16.mxu0 0
      %4809 = vmatpush1.bf16.msra.mxu0 0
      %4810 = vmatprep.subr.bf16.mxu0 0
      %4811 = vmatpush1.bf16.msra.mxu0 0
      %4812 = vmatprep.subr.bf16.mxu0 0
      %4813 = vmatpush1.bf16.msra.mxu0 0
      %4814 = vmatprep.subr.bf16.mxu0 0
      %4815 = vmatpush1.bf16.msra.mxu0 0
      %4816 = vmatprep.subr.bf16.mxu0 0
      %4817 = vmatpush1.bf16.msra.mxu0 0
      %4818 = vmatprep.subr.bf16.mxu0 0
      %4819 = vmatpush1.bf16.msra.mxu0 0
      %4820 = vmatprep.mubr.bf16.mxu0 0
      %4821 = vmatmul.mubr.bf16.gmra.mrb[0].mxu0 %v956
      %v4822 = vpop.f32.mrb[0].mxu0
      %v4823 = vadd.f32 0.0, %v4822
      %v4824 = vpop.f32.mrb[0].mxu0
      %v4825 = vpop.f32.mrb[0].mxu0
      %v4826 = vadd.f32 0.0, %v4825
      %v4827 = vpop.f32.mrb[0].mxu0
      %4828 = vmatprep.mubr.bf16.mxu0 0
      %4829 = vmatmul.mubr.bf16.gmra.mrb[0].mxu0 %v959
      %v4830 = vpop.f32.mrb[0].mxu0
      %v4831 = vadd.f32 0.0, %v4830
      %v4832 = vpop.f32.mrb[0].mxu0
      %v4833 = vpop.f32.mrb[0].mxu0
      %v4834 = vadd.f32 0.0, %v4833
      %v4835 = vpop.f32.mrb[0].mxu0
      %4836 = vmatprep.mubr.bf16.mxu0 0
      %4837 = vmatmul.mubr.bf16.gmra.mrb[0].mxu0 %v962
      %v4838 = vpop.f32.mrb[0].mxu0
      %v4839 = vadd.f32 0.0, %v4838
      %v4840 = vpop.f32.mrb[0].mxu0
      %v4841 = vpop.f32.mrb[0].mxu0
      %v4842 = vadd.f32 0.0, %v4841
      %v4843 = vpop.f32.mrb[0].mxu0
      %4844 = vmatprep.mubr.bf16.mxu0 0
      %4845 = vmatmul.mubr.bf16.gmra.mrb[0].mxu0 %v965
      %v4846 = vpop.f32.mrb[0].mxu0
      %v4847 = vadd.f32 0.0, %v4846
      %v4848 = vpop.f32.mrb[0].mxu0
      %v4849 = vpop.f32.mrb[0].mxu0
      %v4850 = vadd.f32 0.0, %v4849
      %v4851 = vpop.f32.mrb[0].mxu0
      %4852 = vmatprep.mubr.bf16.mxu0 0
      %4853 = vmatmul.mubr.bf16.gmra.mrb[0].mxu0 %v968
      %v4854 = vpop.f32.mrb[0].mxu0
      %v4855 = vadd.f32 0.0, %v4854
      %v4856 = vpop.f32.mrb[0].mxu0
      %v4857 = vpop.f32.mrb[0].mxu0
      %v4858 = vadd.f32 0.0, %v4857
      %v4859 = vpop.f32.mrb[0].mxu0
      %4860 = vmatprep.mubr.bf16.mxu0 0
      %4861 = vmatmul.mubr.bf16.gmra.mrb[0].mxu0 %v971
      %v4862 = vpop.f32.mrb[0].mxu0
      %v4863 = vadd.f32 0.0, %v4862
      %v4864 = vpop.f32.mrb[0].mxu0
      %v4865 = vpop.f32.mrb[0].mxu0
      %v4866 = vadd.f32 0.0, %v4865
      %v4867 = vpop.f32.mrb[0].mxu0
      %4868 = vmatprep.mubr.bf16.mxu0 0
      %4869 = vmatmul.mubr.bf16.gmra.mrb[0].mxu0 %v974
      %v4870 = vpop.f32.mrb[0].mxu0
      %v4871 = vadd.f32 0.0, %v4870
      %v4872 = vpop.f32.mrb[0].mxu0
      %v4873 = vpop.f32.mrb[0].mxu0
      %v4874 = vadd.f32 0.0, %v4873
      %v4875 = vpop.f32.mrb[0].mxu0
      %4876 = vmatprep.mubr.bf16.mxu0 0
      %4877 = vmatmul.mubr.bf16.gmra.mrb[0].mxu0 %v977
      %v4878 = vpop.f32.mrb[0].mxu0
      %v4879 = vadd.f32 0.0, %v4878
      %v4880 = vpop.f32.mrb[0].mxu0
      %v4881 = vpop.f32.mrb[0].mxu0
      %v4882 = vadd.f32 0.0, %v4881
      %v4883 = vpop.f32.mrb[0].mxu0
      %4884 = vmatprep.mubr.bf16.mxu0 0
      %4885 = vmatmul.mubr.bf16.gmra.mrb[0].mxu0 %v980
      %v4886 = vpop.f32.mrb[0].mxu0
      %v4887 = vadd.f32 0.0, %v4886
      %v4888 = vpop.f32.mrb[0].mxu0
      %v4889 = vpop.f32.mrb[0].mxu0
      %v4890 = vadd.f32 0.0, %v4889
      %v4891 = vpop.f32.mrb[0].mxu0
      %4892 = vmatprep.mubr.bf16.mxu0 0
      %4893 = vmatmul.mubr.bf16.gmra.mrb[0].mxu0 %v983
      %v4894 = vpop.f32.mrb[0].mxu0
      %v4895 = vadd.f32 0.0, %v4894
      %v4896 = vpop.f32.mrb[0].mxu0
      %v4897 = vpop.f32.mrb[0].mxu0
      %v4898 = vadd.f32 0.0, %v4897
      %v4899 = vpop.f32.mrb[0].mxu0
      %4900 = vmatprep.mubr.bf16.mxu0 0
      %4901 = vmatmul.mubr.bf16.gmra.mrb[0].mxu0 %v986
      %v4902 = vpop.f32.mrb[0].mxu0
      %v4903 = vadd.f32 0.0, %v4902
      %v4904 = vpop.f32.mrb[0].mxu0
      %v4905 = vpop.f32.mrb[0].mxu0
      %v4906 = vadd.f32 0.0, %v4905
      %v4907 = vpop.f32.mrb[0].mxu0
      %4908 = vmatprep.mubr.bf16.mxu0 0
      %4909 = vmatmul.mubr.bf16.gmra.mrb[0].mxu0 %v989
      %v4910 = vpop.f32.mrb[0].mxu0
      %v4911 = vadd.f32 0.0, %v4910
      %v4912 = vpop.f32.mrb[0].mxu0
      %v4913 = vpop.f32.mrb[0].mxu0
      %v4914 = vadd.f32 0.0, %v4913
      %v4915 = vpop.f32.mrb[0].mxu0
      %4916 = vmatprep.mubr.bf16.mxu0 0
      %4917 = vmatmul.mubr.bf16.gmra.mrb[0].mxu0 %v992
      %v4918 = vpop.f32.mrb[0].mxu0
      %v4919 = vadd.f32 0.0, %v4918
      %v4920 = vpop.f32.mrb[0].mxu0
      %v4921 = vpop.f32.mrb[0].mxu0
      %v4922 = vadd.f32 0.0, %v4921
      %v4923 = vpop.f32.mrb[0].mxu0
      %4924 = vmatprep.mubr.bf16.mxu0 0
      %4925 = vmatmul.mubr.bf16.gmra.mrb[0].mxu0 %v995
      %v4926 = vpop.f32.mrb[0].mxu0
      %v4927 = vadd.f32 0.0, %v4926
      %v4928 = vpop.f32.mrb[0].mxu0
      %v4929 = vpop.f32.mrb[0].mxu0
      %v4930 = vadd.f32 0.0, %v4929
      %v4931 = vpop.f32.mrb[0].mxu0
      %4932 = vmatprep.mubr.bf16.mxu0 0
      %4933 = vmatmul.mubr.bf16.gmra.mrb[0].mxu0 %v3434
      %v4934 = vpop.f32.mrb[0].mxu0
      %v4935 = vadd.f32 0.0, %v4934
      %v4936 = vpop.f32.mrb[0].mxu0
      %v4937 = vpop.f32.mrb[0].mxu0
      %v4938 = vadd.f32 0.0, %v4937
      %v4939 = vpop.f32.mrb[0].mxu0
      %4940 = vmatprep.mubr.bf16.mxu0 0
      %4941 = vmatmul.mubr.bf16.gmra.mrb[0].mxu0 %v4786
      %v4942 = vpop.f32.mrb[0].mxu0
      %v4943 = vadd.f32 0.0, %v4942
      %v4944 = vpop.f32.mrb[0].mxu0
      %v4945 = vpop.f32.mrb[0].mxu0
      %v4946 = vadd.f32 0.0, %v4945
      %v4947 = vpop.f32.mrb[0].mxu0
      %4948 = vdwg.mxu0
      %v4949 = vadd.f32 %v4724, %v4823
      %v4950 = vadd.f32 %v4725, %v4826
      %v4951 = vadd.f32 %v4726, %v4831
      %v4952 = vadd.f32 %v4727, %v4834
      %v4953 = vadd.f32 %v4728, %v4839
      %v4954 = vadd.f32 %v4729, %v4842
      %v4955 = vadd.f32 %v4730, %v4847
      %v4956 = vadd.f32 %v4731, %v4850
      %v4957 = vadd.f32 %v4732, %v4855
      %v4958 = vadd.f32 %v4733, %v4858
      %v4959 = vadd.f32 %v4734, %v4863
      %v4960 = vadd.f32 %v4735, %v4866
      %v4961 = vadd.f32 %v4736, %v4871
      %v4962 = vadd.f32 %v4737, %v4874
      %v4963 = vadd.f32 %v4738, %v4879
      %v4964 = vadd.f32 %v4739, %v4882
      %v4965 = vadd.f32 %v4740, %v4887
      %v4966 = vadd.f32 %v4741, %v4890
      %v4967 = vadd.f32 %v4742, %v4895
      %v4968 = vadd.f32 %v4743, %v4898
      %v4969 = vadd.f32 %v4744, %v4903
      %v4970 = vadd.f32 %v4745, %v4906
      %v4971 = vadd.f32 %v4746, %v4911
      %v4972 = vadd.f32 %v4747, %v4914
      %v4973 = vadd.f32 %v4748, %v4919
      %v4974 = vadd.f32 %v4749, %v4922
      %v4975 = vadd.f32 %v4750, %v4927
      %v4976 = vadd.f32 %v4751, %v4930
      %v4977 = vadd.f32 %v4752, %v4935
      %v4978 = vadd.f32 %v4753, %v4938
      %v4979 = vadd.f32 %v4754, %v4943
      %v4980 = vadd.f32 %v4755, %v4946
      %v4983 = vunpack.c.l.b16 %v455
      %v4984 = vunpack.c.l.b16 %v456
      %v4985 = vpack.c.b16 %v4984, %v4983
      %v4988 = vunpack.c.l.b16 %v542
      %v4989 = vunpack.c.l.b16 %v543
      %v4990 = vpack.c.b16 %v4989, %v4988
      %v4993 = vsel %vm634, %v4985, 0
      %4995 = vmatprep.subr.bf16.mxu0 0
      %4996 = vmatpush1.bf16.msra.mxu0 %v4990
      %4997 = vmatprep.subr.bf16.mxu0 0
      %4998 = vmatpush1.bf16.msra.mxu0 0
      %4999 = vmatprep.subr.bf16.mxu0 0
      %5000 = vmatpush1.bf16.msra.mxu0 0
      %5001 = vmatprep.subr.bf16.mxu0 0
      %5002 = vmatpush1.bf16.msra.mxu0 0
      %5003 = vmatprep.subr.bf16.mxu0 0
      %5004 = vmatpush1.bf16.msra.mxu0 0
      %5005 = vmatprep.subr.bf16.mxu0 0
      %5006 = vmatpush1.bf16.msra.mxu0 0
      %5007 = vmatprep.subr.bf16.mxu0 0
      %5008 = vmatpush1.bf16.msra.mxu0 0
      %5009 = vmatprep.subr.bf16.mxu0 0
      %5010 = vmatpush1.bf16.msra.mxu0 0
      %5011 = vmatprep.subr.bf16.mxu0 0
      %5012 = vmatpush1.bf16.msra.mxu0 0
      %5013 = vmatprep.subr.bf16.mxu0 0
      %5014 = vmatpush1.bf16.msra.mxu0 0
      %5015 = vmatprep.subr.bf16.mxu0 0
      %5016 = vmatpush1.bf16.msra.mxu0 0
      %5017 = vmatprep.subr.bf16.mxu0 0
      %5018 = vmatpush1.bf16.msra.mxu0 0
      %5019 = vmatprep.subr.bf16.mxu0 0
      %5020 = vmatpush1.bf16.msra.mxu0 0
      %5021 = vmatprep.subr.bf16.mxu0 0
      %5022 = vmatpush1.bf16.msra.mxu0 0
      %5023 = vmatprep.subr.bf16.mxu0 0
      %5024 = vmatpush1.bf16.msra.mxu0 0
      %5025 = vmatprep.subr.bf16.mxu0 0
      %5026 = vmatpush1.bf16.msra.mxu0 0
      %5027 = vmatprep.mubr.bf16.mxu0 0
      %5028 = vmatmul.mubr.bf16.gmra.mrb[0].mxu0 %v642
      %v5029 = vpop.f32.mrb[0].mxu0
      %v5030 = vadd.f32 0.0, %v5029
      %v5031 = vpop.f32.mrb[0].mxu0
      %v5032 = vpop.f32.mrb[0].mxu0
      %v5033 = vadd.f32 0.0, %v5032
      %v5034 = vpop.f32.mrb[0].mxu0
      %5035 = vmatprep.mubr.bf16.mxu0 0
      %5036 = vmatmul.mubr.bf16.gmra.mrb[0].mxu0 %v645
      %v5037 = vpop.f32.mrb[0].mxu0
      %v5038 = vadd.f32 0.0, %v5037
      %v5039 = vpop.f32.mrb[0].mxu0
      %v5040 = vpop.f32.mrb[0].mxu0
      %v5041 = vadd.f32 0.0, %v5040
      %v5042 = vpop.f32.mrb[0].mxu0
      %5043 = vmatprep.mubr.bf16.mxu0 0
      %5044 = vmatmul.mubr.bf16.gmra.mrb[0].mxu0 %v648
      %v5045 = vpop.f32.mrb[0].mxu0
      %v5046 = vadd.f32 0.0, %v5045
      %v5047 = vpop.f32.mrb[0].mxu0
      %v5048 = vpop.f32.mrb[0].mxu0
      %v5049 = vadd.f32 0.0, %v5048
      %v5050 = vpop.f32.mrb[0].mxu0
      %5051 = vmatprep.mubr.bf16.mxu0 0
      %5052 = vmatmul.mubr.bf16.gmra.mrb[0].mxu0 %v651
      %v5053 = vpop.f32.mrb[0].mxu0
      %v5054 = vadd.f32 0.0, %v5053
      %v5055 = vpop.f32.mrb[0].mxu0
      %v5056 = vpop.f32.mrb[0].mxu0
      %v5057 = vadd.f32 0.0, %v5056
      %v5058 = vpop.f32.mrb[0].mxu0
      %5059 = vmatprep.mubr.bf16.mxu0 0
      %5060 = vmatmul.mubr.bf16.gmra.mrb[0].mxu0 %v654
      %v5061 = vpop.f32.mrb[0].mxu0
      %v5062 = vadd.f32 0.0, %v5061
      %v5063 = vpop.f32.mrb[0].mxu0
      %v5064 = vpop.f32.mrb[0].mxu0
      %v5065 = vadd.f32 0.0, %v5064
      %v5066 = vpop.f32.mrb[0].mxu0
      %5067 = vmatprep.mubr.bf16.mxu0 0
      %5068 = vmatmul.mubr.bf16.gmra.mrb[0].mxu0 %v657
      %v5069 = vpop.f32.mrb[0].mxu0
      %v5070 = vadd.f32 0.0, %v5069
      %v5071 = vpop.f32.mrb[0].mxu0
      %v5072 = vpop.f32.mrb[0].mxu0
      %v5073 = vadd.f32 0.0, %v5072
      %v5074 = vpop.f32.mrb[0].mxu0
      %5075 = vmatprep.mubr.bf16.mxu0 0
      %5076 = vmatmul.mubr.bf16.gmra.mrb[0].mxu0 %v660
      %v5077 = vpop.f32.mrb[0].mxu0
      %v5078 = vadd.f32 0.0, %v5077
      %v5079 = vpop.f32.mrb[0].mxu0
      %v5080 = vpop.f32.mrb[0].mxu0
      %v5081 = vadd.f32 0.0, %v5080
      %v5082 = vpop.f32.mrb[0].mxu0
      %5083 = vmatprep.mubr.bf16.mxu0 0
      %5084 = vmatmul.mubr.bf16.gmra.mrb[0].mxu0 %v663
      %v5085 = vpop.f32.mrb[0].mxu0
      %v5086 = vadd.f32 0.0, %v5085
      %v5087 = vpop.f32.mrb[0].mxu0
      %v5088 = vpop.f32.mrb[0].mxu0
      %v5089 = vadd.f32 0.0, %v5088
      %v5090 = vpop.f32.mrb[0].mxu0
      %5091 = vmatprep.mubr.bf16.mxu0 0
      %5092 = vmatmul.mubr.bf16.gmra.mrb[0].mxu0 %v666
      %v5093 = vpop.f32.mrb[0].mxu0
      %v5094 = vadd.f32 0.0, %v5093
      %v5095 = vpop.f32.mrb[0].mxu0
      %v5096 = vpop.f32.mrb[0].mxu0
      %v5097 = vadd.f32 0.0, %v5096
      %v5098 = vpop.f32.mrb[0].mxu0
      %5099 = vmatprep.mubr.bf16.mxu0 0
      %5100 = vmatmul.mubr.bf16.gmra.mrb[0].mxu0 %v669
      %v5101 = vpop.f32.mrb[0].mxu0
      %v5102 = vadd.f32 0.0, %v5101
      %v5103 = vpop.f32.mrb[0].mxu0
      %v5104 = vpop.f32.mrb[0].mxu0
      %v5105 = vadd.f32 0.0, %v5104
      %v5106 = vpop.f32.mrb[0].mxu0
      %5107 = vmatprep.mubr.bf16.mxu0 0
      %5108 = vmatmul.mubr.bf16.gmra.mrb[0].mxu0 %v672
      %v5109 = vpop.f32.mrb[0].mxu0
      %v5110 = vadd.f32 0.0, %v5109
      %v5111 = vpop.f32.mrb[0].mxu0
      %v5112 = vpop.f32.mrb[0].mxu0
      %v5113 = vadd.f32 0.0, %v5112
      %v5114 = vpop.f32.mrb[0].mxu0
      %5115 = vmatprep.mubr.bf16.mxu0 0
      %5116 = vmatmul.mubr.bf16.gmra.mrb[0].mxu0 %v675
      %v5117 = vpop.f32.mrb[0].mxu0
      %v5118 = vadd.f32 0.0, %v5117
      %v5119 = vpop.f32.mrb[0].mxu0
      %v5120 = vpop.f32.mrb[0].mxu0
      %v5121 = vadd.f32 0.0, %v5120
      %v5122 = vpop.f32.mrb[0].mxu0
      %5123 = vmatprep.mubr.bf16.mxu0 0
      %5124 = vmatmul.mubr.bf16.gmra.mrb[0].mxu0 %v678
      %v5125 = vpop.f32.mrb[0].mxu0
      %v5126 = vadd.f32 0.0, %v5125
      %v5127 = vpop.f32.mrb[0].mxu0
      %v5128 = vpop.f32.mrb[0].mxu0
      %v5129 = vadd.f32 0.0, %v5128
      %v5130 = vpop.f32.mrb[0].mxu0
      %5131 = vmatprep.mubr.bf16.mxu0 0
      %5132 = vmatmul.mubr.bf16.gmra.mrb[0].mxu0 %v681
      %v5133 = vpop.f32.mrb[0].mxu0
      %v5134 = vadd.f32 0.0, %v5133
      %v5135 = vpop.f32.mrb[0].mxu0
      %v5136 = vpop.f32.mrb[0].mxu0
      %v5137 = vadd.f32 0.0, %v5136
      %v5138 = vpop.f32.mrb[0].mxu0
      %5139 = vmatprep.mubr.bf16.mxu0 0
      %5140 = vmatmul.mubr.bf16.gmra.mrb[0].mxu0 %v3641
      %v5141 = vpop.f32.mrb[0].mxu0
      %v5142 = vadd.f32 0.0, %v5141
      %v5143 = vpop.f32.mrb[0].mxu0
      %v5144 = vpop.f32.mrb[0].mxu0
      %v5145 = vadd.f32 0.0, %v5144
      %v5146 = vpop.f32.mrb[0].mxu0
      %5147 = vmatprep.mubr.bf16.mxu0 0
      %5148 = vmatmul.mubr.bf16.gmra.mrb[0].mxu0 %v4993
      %v5149 = vpop.f32.mrb[0].mxu0
      %v5150 = vadd.f32 0.0, %v5149
      %v5151 = vpop.f32.mrb[0].mxu0
      %v5152 = vpop.f32.mrb[0].mxu0
      %v5153 = vadd.f32 0.0, %v5152
      %v5154 = vpop.f32.mrb[0].mxu0
      %5155 = vdwg.mxu0
      %v5156 = vadd.f32 %v4949, %v5030
      %v5157 = vadd.f32 %v4950, %v5033
      %v5158 = vadd.f32 %v4951, %v5038
      %v5159 = vadd.f32 %v4952, %v5041
      %v5160 = vadd.f32 %v4953, %v5046
      %v5161 = vadd.f32 %v4954, %v5049
      %v5162 = vadd.f32 %v4955, %v5054
      %v5163 = vadd.f32 %v4956, %v5057
      %v5164 = vadd.f32 %v4957, %v5062
      %v5165 = vadd.f32 %v4958, %v5065
      %v5166 = vadd.f32 %v4959, %v5070
      %v5167 = vadd.f32 %v4960, %v5073
      %v5168 = vadd.f32 %v4961, %v5078
      %v5169 = vadd.f32 %v4962, %v5081
      %v5170 = vadd.f32 %v4963, %v5086
      %v5171 = vadd.f32 %v4964, %v5089
      %v5172 = vadd.f32 %v4965, %v5094
      %v5173 = vadd.f32 %v4966, %v5097
      %v5174 = vadd.f32 %v4967, %v5102
      %v5175 = vadd.f32 %v4968, %v5105
      %v5176 = vadd.f32 %v4969, %v5110
      %v5177 = vadd.f32 %v4970, %v5113
      %v5178 = vadd.f32 %v4971, %v5118
      %v5179 = vadd.f32 %v4972, %v5121
      %v5180 = vadd.f32 %v4973, %v5126
      %v5181 = vadd.f32 %v4974, %v5129
      %v5182 = vadd.f32 %v4975, %v5134
      %v5183 = vadd.f32 %v4976, %v5137
      %v5184 = vadd.f32 %v4977, %v5142
      %v5185 = vadd.f32 %v4978, %v5145
      %v5186 = vadd.f32 %v4979, %v5150
      %v5187 = vadd.f32 %v4980, %v5153
      %v5189 = vshrl.u32 %v401, 16
      %v5191 = vrot.slane %v5189, 4
      %v5192 = vshll.u32 %v401, 16
      %v5194 = vrot.slane %v5192, 5
      %v5195 = vor.u32 %v5191, %v5194
      %v5196 = vrot.slane %v5195, 4
      %v5198 = vshll.u32 %v402, 16
      %v5200 = vrot.slane %v5198, 5
      %v5201 = vsel %vm1160, %v5196, %v5200
      %v5202 = vshrl.u32 %v402, 16
      %v5204 = vrot.slane %v5202, 4
      %v5205 = vor.u32 %v5204, %v5200
      %v5206 = vrot.slane %v5205, 4
      %v5208 = vshll.u32 %v403, 16
      %v5210 = vrot.slane %v5208, 5
      %v5211 = vsel %vm1160, %v5206, %v5210
      %v5213 = vshrl.u32 %v455, 16
      %v5215 = vrot.slane %v5213, 4
      %v5216 = vshll.u32 %v455, 16
      %v5218 = vrot.slane %v5216, 5
      %v5219 = vor.u32 %v5215, %v5218
      %v5220 = vrot.slane %v5219, 4
      %v5222 = vshll.u32 %v456, 16
      %v5224 = vrot.slane %v5222, 5
      %v5225 = vsel %vm1160, %v5220, %v5224
      %v5226 = vshrl.u32 %v456, 16
      %v5228 = vrot.slane %v5226, 4
      %v5229 = vor.u32 %v5228, %v5224
      %v5230 = vrot.slane %v5229, 4
      %v5232 = vshll.u32 %v457, 16
      %v5234 = vrot.slane %v5232, 5
      %v5235 = vsel %vm1160, %v5230, %v5234
      %v5236 = vunpack.c.l.b16 %v5201
      %v5237 = vunpack.c.l.b16 %v5211
      %v5238 = vpack.c.b16 %v5237, %v5236
      %v5247 = vunpack.c.l.b16 %v514
      %v5248 = vunpack.c.l.b16 %v515
      %v5249 = vunpack.c.l.b16 %v516
      %v5250 = vunpack.c.l.b16 %v517
      %v5251 = vunpack.c.l.b16 %v518
      %v5252 = vunpack.c.l.b16 %v519
      %v5253 = vunpack.c.l.b16 %v520
      %v5254 = vunpack.c.l.b16 %v521
      %v5255 = vpack.c.b16 %v5248, %v5247
      %v5256 = vpack.c.b16 %v5250, %v5249
      %v5257 = vpack.c.b16 %v5252, %v5251
      %v5258 = vpack.c.b16 %v5254, %v5253
      %v5264 = vsel %vm948, %v5238, 0
      %5266 = vmatprep.subr.bf16.mxu0 0
      %5267 = vmatpush1.bf16.msra.mxu0 %v5255
      %5268 = vmatprep.subr.bf16.mxu0 0
      %5269 = vmatpush1.bf16.msra.mxu0 %v5256
      %5270 = vmatprep.subr.bf16.mxu0 0
      %5271 = vmatpush1.bf16.msra.mxu0 %v5257
      %5272 = vmatprep.subr.bf16.mxu0 0
      %5273 = vmatpush1.bf16.msra.mxu0 %v5258
      %5274 = vmatprep.subr.bf16.mxu0 0
      %5275 = vmatpush1.bf16.msra.mxu0 0
      %5276 = vmatprep.subr.bf16.mxu0 0
      %5277 = vmatpush1.bf16.msra.mxu0 0
      %5278 = vmatprep.subr.bf16.mxu0 0
      %5279 = vmatpush1.bf16.msra.mxu0 0
      %5280 = vmatprep.subr.bf16.mxu0 0
      %5281 = vmatpush1.bf16.msra.mxu0 0
      %5282 = vmatprep.subr.bf16.mxu0 0
      %5283 = vmatpush1.bf16.msra.mxu0 0
      %5284 = vmatprep.subr.bf16.mxu0 0
      %5285 = vmatpush1.bf16.msra.mxu0 0
      %5286 = vmatprep.subr.bf16.mxu0 0
      %5287 = vmatpush1.bf16.msra.mxu0 0
      %5288 = vmatprep.subr.bf16.mxu0 0
      %5289 = vmatpush1.bf16.msra.mxu0 0
      %5290 = vmatprep.subr.bf16.mxu0 0
      %5291 = vmatpush1.bf16.msra.mxu0 0
      %5292 = vmatprep.subr.bf16.mxu0 0
      %5293 = vmatpush1.bf16.msra.mxu0 0
      %5294 = vmatprep.subr.bf16.mxu0 0
      %5295 = vmatpush1.bf16.msra.mxu0 0
      %5296 = vmatprep.subr.bf16.mxu0 0
      %5297 = vmatpush1.bf16.msra.mxu0 0
      %5298 = vmatprep.mubr.bf16.mxu0 0
      %5299 = vmatmul.mubr.bf16.gmra.mrb[0].mxu0 %v2008
      %v5300 = vpop.f32.mrb[0].mxu0
      %v5301 = vadd.f32 0.0, %v5300
      %v5302 = vpop.f32.mrb[0].mxu0
      %v5303 = vpop.f32.mrb[0].mxu0
      %v5304 = vadd.f32 0.0, %v5303
      %v5305 = vpop.f32.mrb[0].mxu0
      %5306 = vmatprep.mubr.bf16.mxu0 0
      %5307 = vmatmul.mubr.bf16.gmra.mrb[0].mxu0 %v2011
      %v5308 = vpop.f32.mrb[0].mxu0
      %v5309 = vadd.f32 0.0, %v5308
      %v5310 = vpop.f32.mrb[0].mxu0
      %v5311 = vpop.f32.mrb[0].mxu0
      %v5312 = vadd.f32 0.0, %v5311
      %v5313 = vpop.f32.mrb[0].mxu0
      %5314 = vmatprep.mubr.bf16.mxu0 0
      %5315 = vmatmul.mubr.bf16.gmra.mrb[0].mxu0 %v2014
      %v5316 = vpop.f32.mrb[0].mxu0
      %v5317 = vadd.f32 0.0, %v5316
      %v5318 = vpop.f32.mrb[0].mxu0
      %v5319 = vpop.f32.mrb[0].mxu0
      %v5320 = vadd.f32 0.0, %v5319
      %v5321 = vpop.f32.mrb[0].mxu0
      %5322 = vmatprep.mubr.bf16.mxu0 0
      %5323 = vmatmul.mubr.bf16.gmra.mrb[0].mxu0 %v2017
      %v5324 = vpop.f32.mrb[0].mxu0
      %v5325 = vadd.f32 0.0, %v5324
      %v5326 = vpop.f32.mrb[0].mxu0
      %v5327 = vpop.f32.mrb[0].mxu0
      %v5328 = vadd.f32 0.0, %v5327
      %v5329 = vpop.f32.mrb[0].mxu0
      %5330 = vmatprep.mubr.bf16.mxu0 0
      %5331 = vmatmul.mubr.bf16.gmra.mrb[0].mxu0 %v2020
      %v5332 = vpop.f32.mrb[0].mxu0
      %v5333 = vadd.f32 0.0, %v5332
      %v5334 = vpop.f32.mrb[0].mxu0
      %v5335 = vpop.f32.mrb[0].mxu0
      %v5336 = vadd.f32 0.0, %v5335
      %v5337 = vpop.f32.mrb[0].mxu0
      %5338 = vmatprep.mubr.bf16.mxu0 0
      %5339 = vmatmul.mubr.bf16.gmra.mrb[0].mxu0 %v2023
      %v5340 = vpop.f32.mrb[0].mxu0
      %v5341 = vadd.f32 0.0, %v5340
      %v5342 = vpop.f32.mrb[0].mxu0
      %v5343 = vpop.f32.mrb[0].mxu0
      %v5344 = vadd.f32 0.0, %v5343
      %v5345 = vpop.f32.mrb[0].mxu0
      %5346 = vmatprep.mubr.bf16.mxu0 0
      %5347 = vmatmul.mubr.bf16.gmra.mrb[0].mxu0 %v2026
      %v5348 = vpop.f32.mrb[0].mxu0
      %v5349 = vadd.f32 0.0, %v5348
      %v5350 = vpop.f32.mrb[0].mxu0
      %v5351 = vpop.f32.mrb[0].mxu0
      %v5352 = vadd.f32 0.0, %v5351
      %v5353 = vpop.f32.mrb[0].mxu0
      %5354 = vmatprep.mubr.bf16.mxu0 0
      %5355 = vmatmul.mubr.bf16.gmra.mrb[0].mxu0 %v2029
      %v5356 = vpop.f32.mrb[0].mxu0
      %v5357 = vadd.f32 0.0, %v5356
      %v5358 = vpop.f32.mrb[0].mxu0
      %v5359 = vpop.f32.mrb[0].mxu0
      %v5360 = vadd.f32 0.0, %v5359
      %v5361 = vpop.f32.mrb[0].mxu0
      %5362 = vmatprep.mubr.bf16.mxu0 0
      %5363 = vmatmul.mubr.bf16.gmra.mrb[0].mxu0 %v2032
      %v5364 = vpop.f32.mrb[0].mxu0
      %v5365 = vadd.f32 0.0, %v5364
      %v5366 = vpop.f32.mrb[0].mxu0
      %v5367 = vpop.f32.mrb[0].mxu0
      %v5368 = vadd.f32 0.0, %v5367
      %v5369 = vpop.f32.mrb[0].mxu0
      %5370 = vmatprep.mubr.bf16.mxu0 0
      %5371 = vmatmul.mubr.bf16.gmra.mrb[0].mxu0 %v2035
      %v5372 = vpop.f32.mrb[0].mxu0
      %v5373 = vadd.f32 0.0, %v5372
      %v5374 = vpop.f32.mrb[0].mxu0
      %v5375 = vpop.f32.mrb[0].mxu0
      %v5376 = vadd.f32 0.0, %v5375
      %v5377 = vpop.f32.mrb[0].mxu0
      %5378 = vmatprep.mubr.bf16.mxu0 0
      %5379 = vmatmul.mubr.bf16.gmra.mrb[0].mxu0 %v2038
      %v5380 = vpop.f32.mrb[0].mxu0
      %v5381 = vadd.f32 0.0, %v5380
      %v5382 = vpop.f32.mrb[0].mxu0
      %v5383 = vpop.f32.mrb[0].mxu0
      %v5384 = vadd.f32 0.0, %v5383
      %v5385 = vpop.f32.mrb[0].mxu0
      %5386 = vmatprep.mubr.bf16.mxu0 0
      %5387 = vmatmul.mubr.bf16.gmra.mrb[0].mxu0 %v2041
      %v5388 = vpop.f32.mrb[0].mxu0
      %v5389 = vadd.f32 0.0, %v5388
      %v5390 = vpop.f32.mrb[0].mxu0
      %v5391 = vpop.f32.mrb[0].mxu0
      %v5392 = vadd.f32 0.0, %v5391
      %v5393 = vpop.f32.mrb[0].mxu0
      %5394 = vmatprep.mubr.bf16.mxu0 0
      %5395 = vmatmul.mubr.bf16.gmra.mrb[0].mxu0 %v2044
      %v5396 = vpop.f32.mrb[0].mxu0
      %v5397 = vadd.f32 0.0, %v5396
      %v5398 = vpop.f32.mrb[0].mxu0
      %v5399 = vpop.f32.mrb[0].mxu0
      %v5400 = vadd.f32 0.0, %v5399
      %v5401 = vpop.f32.mrb[0].mxu0
      %5402 = vmatprep.mubr.bf16.mxu0 0
      %5403 = vmatmul.mubr.bf16.gmra.mrb[0].mxu0 %v2047
      %v5404 = vpop.f32.mrb[0].mxu0
      %v5405 = vadd.f32 0.0, %v5404
      %v5406 = vpop.f32.mrb[0].mxu0
      %v5407 = vpop.f32.mrb[0].mxu0
      %v5408 = vadd.f32 0.0, %v5407
      %v5409 = vpop.f32.mrb[0].mxu0
      %5410 = vmatprep.mubr.bf16.mxu0 0
      %5411 = vmatmul.mubr.bf16.gmra.mrb[0].mxu0 %v3912
      %v5412 = vpop.f32.mrb[0].mxu0
      %v5413 = vadd.f32 0.0, %v5412
      %v5414 = vpop.f32.mrb[0].mxu0
      %v5415 = vpop.f32.mrb[0].mxu0
      %v5416 = vadd.f32 0.0, %v5415
      %v5417 = vpop.f32.mrb[0].mxu0
      %5418 = vmatprep.mubr.bf16.mxu0 0
      %5419 = vmatmul.mubr.bf16.gmra.mrb[0].mxu0 %v5264
      %v5420 = vpop.f32.mrb[0].mxu0
      %v5421 = vadd.f32 0.0, %v5420
      %v5422 = vpop.f32.mrb[0].mxu0
      %v5423 = vpop.f32.mrb[0].mxu0
      %v5424 = vadd.f32 0.0, %v5423
      %v5425 = vpop.f32.mrb[0].mxu0
      %5426 = vdwg.mxu0
      %v5427 = vadd.f32 %v5156, %v5301
      %v5428 = vadd.f32 %v5157, %v5304
      %v5429 = vadd.f32 %v5158, %v5309
      %v5430 = vadd.f32 %v5159, %v5312
      %v5431 = vadd.f32 %v5160, %v5317
      %v5432 = vadd.f32 %v5161, %v5320
      %v5433 = vadd.f32 %v5162, %v5325
      %v5434 = vadd.f32 %v5163, %v5328
      %v5435 = vadd.f32 %v5164, %v5333
      %v5436 = vadd.f32 %v5165, %v5336
      %v5437 = vadd.f32 %v5166, %v5341
      %v5438 = vadd.f32 %v5167, %v5344
      %v5439 = vadd.f32 %v5168, %v5349
      %v5440 = vadd.f32 %v5169, %v5352
      %v5441 = vadd.f32 %v5170, %v5357
      %v5442 = vadd.f32 %v5171, %v5360
      %v5443 = vadd.f32 %v5172, %v5365
      %v5444 = vadd.f32 %v5173, %v5368
      %v5445 = vadd.f32 %v5174, %v5373
      %v5446 = vadd.f32 %v5175, %v5376
      %v5447 = vadd.f32 %v5176, %v5381
      %v5448 = vadd.f32 %v5177, %v5384
      %v5449 = vadd.f32 %v5178, %v5389
      %v5450 = vadd.f32 %v5179, %v5392
      %v5451 = vadd.f32 %v5180, %v5397
      %v5452 = vadd.f32 %v5181, %v5400
      %v5453 = vadd.f32 %v5182, %v5405
      %v5454 = vadd.f32 %v5183, %v5408
      %v5455 = vadd.f32 %v5184, %v5413
      %v5456 = vadd.f32 %v5185, %v5416
      %v5457 = vadd.f32 %v5186, %v5421
      %v5458 = vadd.f32 %v5187, %v5424
      %v5459 = vunpack.c.l.b16 %v5225
      %v5460 = vunpack.c.l.b16 %v5235
      %v5461 = vpack.c.b16 %v5460, %v5459
      %v5464 = vunpack.c.l.b16 %v544
      %v5465 = vunpack.c.l.b16 %v545
      %v5466 = vpack.c.b16 %v5465, %v5464
      %v5469 = vsel %vm634, %v5461, 0
      %5471 = vmatprep.subr.bf16.mxu0 0
      %5472 = vmatpush1.bf16.msra.mxu0 %v5466
      %5473 = vmatprep.subr.bf16.mxu0 0
      %5474 = vmatpush1.bf16.msra.mxu0 0
      %5475 = vmatprep.subr.bf16.mxu0 0
      %5476 = vmatpush1.bf16.msra.mxu0 0
      %5477 = vmatprep.subr.bf16.mxu0 0
      %5478 = vmatpush1.bf16.msra.mxu0 0
      %5479 = vmatprep.subr.bf16.mxu0 0
      %5480 = vmatpush1.bf16.msra.mxu0 0
      %5481 = vmatprep.subr.bf16.mxu0 0
      %5482 = vmatpush1.bf16.msra.mxu0 0
      %5483 = vmatprep.subr.bf16.mxu0 0
      %5484 = vmatpush1.bf16.msra.mxu0 0
      %5485 = vmatprep.subr.bf16.mxu0 0
      %5486 = vmatpush1.bf16.msra.mxu0 0
      %5487 = vmatprep.subr.bf16.mxu0 0
      %5488 = vmatpush1.bf16.msra.mxu0 0
      %5489 = vmatprep.subr.bf16.mxu0 0
      %5490 = vmatpush1.bf16.msra.mxu0 0
      %5491 = vmatprep.subr.bf16.mxu0 0
      %5492 = vmatpush1.bf16.msra.mxu0 0
      %5493 = vmatprep.subr.bf16.mxu0 0
      %5494 = vmatpush1.bf16.msra.mxu0 0
      %5495 = vmatprep.subr.bf16.mxu0 0
      %5496 = vmatpush1.bf16.msra.mxu0 0
      %5497 = vmatprep.subr.bf16.mxu0 0
      %5498 = vmatpush1.bf16.msra.mxu0 0
      %5499 = vmatprep.subr.bf16.mxu0 0
      %5500 = vmatpush1.bf16.msra.mxu0 0
      %5501 = vmatprep.subr.bf16.mxu0 0
      %5502 = vmatpush1.bf16.msra.mxu0 0
      %5503 = vmatprep.mubr.bf16.mxu0 0
      %5504 = vmatmul.mubr.bf16.gmra.mrb[0].mxu0 %v2303
      %v5505 = vpop.f32.mrb[0].mxu0
      %v5506 = vadd.f32 0.0, %v5505
      %v5507 = vpop.f32.mrb[0].mxu0
      %v5508 = vpop.f32.mrb[0].mxu0
      %v5509 = vadd.f32 0.0, %v5508
      %v5510 = vpop.f32.mrb[0].mxu0
      %5511 = vmatprep.mubr.bf16.mxu0 0
      %5512 = vmatmul.mubr.bf16.gmra.mrb[0].mxu0 %v2306
      %v5513 = vpop.f32.mrb[0].mxu0
      %v5514 = vadd.f32 0.0, %v5513
      %v5515 = vpop.f32.mrb[0].mxu0
      %v5516 = vpop.f32.mrb[0].mxu0
      %v5517 = vadd.f32 0.0, %v5516
      %v5518 = vpop.f32.mrb[0].mxu0
      %5519 = vmatprep.mubr.bf16.mxu0 0
      %5520 = vmatmul.mubr.bf16.gmra.mrb[0].mxu0 %v2309
      %v5521 = vpop.f32.mrb[0].mxu0
      %v5522 = vadd.f32 0.0, %v5521
      %v5523 = vpop.f32.mrb[0].mxu0
      %v5524 = vpop.f32.mrb[0].mxu0
      %v5525 = vadd.f32 0.0, %v5524
      %v5526 = vpop.f32.mrb[0].mxu0
      %5527 = vmatprep.mubr.bf16.mxu0 0
      %5528 = vmatmul.mubr.bf16.gmra.mrb[0].mxu0 %v2312
      %v5529 = vpop.f32.mrb[0].mxu0
      %v5530 = vadd.f32 0.0, %v5529
      %v5531 = vpop.f32.mrb[0].mxu0
      %v5532 = vpop.f32.mrb[0].mxu0
      %v5533 = vadd.f32 0.0, %v5532
      %v5534 = vpop.f32.mrb[0].mxu0
      %5535 = vmatprep.mubr.bf16.mxu0 0
      %5536 = vmatmul.mubr.bf16.gmra.mrb[0].mxu0 %v2315
      %v5537 = vpop.f32.mrb[0].mxu0
      %v5538 = vadd.f32 0.0, %v5537
      %v5539 = vpop.f32.mrb[0].mxu0
      %v5540 = vpop.f32.mrb[0].mxu0
      %v5541 = vadd.f32 0.0, %v5540
      %v5542 = vpop.f32.mrb[0].mxu0
      %5543 = vmatprep.mubr.bf16.mxu0 0
      %5544 = vmatmul.mubr.bf16.gmra.mrb[0].mxu0 %v2318
      %v5545 = vpop.f32.mrb[0].mxu0
      %v5546 = vadd.f32 0.0, %v5545
      %v5547 = vpop.f32.mrb[0].mxu0
      %v5548 = vpop.f32.mrb[0].mxu0
      %v5549 = vadd.f32 0.0, %v5548
      %v5550 = vpop.f32.mrb[0].mxu0
      %5551 = vmatprep.mubr.bf16.mxu0 0
      %5552 = vmatmul.mubr.bf16.gmra.mrb[0].mxu0 %v2321
      %v5553 = vpop.f32.mrb[0].mxu0
      %v5554 = vadd.f32 0.0, %v5553
      %v5555 = vpop.f32.mrb[0].mxu0
      %v5556 = vpop.f32.mrb[0].mxu0
      %v5557 = vadd.f32 0.0, %v5556
      %v5558 = vpop.f32.mrb[0].mxu0
      %5559 = vmatprep.mubr.bf16.mxu0 0
      %5560 = vmatmul.mubr.bf16.gmra.mrb[0].mxu0 %v2324
      %v5561 = vpop.f32.mrb[0].mxu0
      %v5562 = vadd.f32 0.0, %v5561
      %v5563 = vpop.f32.mrb[0].mxu0
      %v5564 = vpop.f32.mrb[0].mxu0
      %v5565 = vadd.f32 0.0, %v5564
      %v5566 = vpop.f32.mrb[0].mxu0
      %5567 = vmatprep.mubr.bf16.mxu0 0
      %5568 = vmatmul.mubr.bf16.gmra.mrb[0].mxu0 %v2327
      %v5569 = vpop.f32.mrb[0].mxu0
      %v5570 = vadd.f32 0.0, %v5569
      %v5571 = vpop.f32.mrb[0].mxu0
      %v5572 = vpop.f32.mrb[0].mxu0
      %v5573 = vadd.f32 0.0, %v5572
      %v5574 = vpop.f32.mrb[0].mxu0
      %5575 = vmatprep.mubr.bf16.mxu0 0
      %5576 = vmatmul.mubr.bf16.gmra.mrb[0].mxu0 %v2330
      %v5577 = vpop.f32.mrb[0].mxu0
      %v5578 = vadd.f32 0.0, %v5577
      %v5579 = vpop.f32.mrb[0].mxu0
      %v5580 = vpop.f32.mrb[0].mxu0
      %v5581 = vadd.f32 0.0, %v5580
      %v5582 = vpop.f32.mrb[0].mxu0
      %5583 = vmatprep.mubr.bf16.mxu0 0
      %5584 = vmatmul.mubr.bf16.gmra.mrb[0].mxu0 %v2333
      %v5585 = vpop.f32.mrb[0].mxu0
      %v5586 = vadd.f32 0.0, %v5585
      %v5587 = vpop.f32.mrb[0].mxu0
      %v5588 = vpop.f32.mrb[0].mxu0
      %v5589 = vadd.f32 0.0, %v5588
      %v5590 = vpop.f32.mrb[0].mxu0
      %5591 = vmatprep.mubr.bf16.mxu0 0
      %5592 = vmatmul.mubr.bf16.gmra.mrb[0].mxu0 %v2336
      %v5593 = vpop.f32.mrb[0].mxu0
      %v5594 = vadd.f32 0.0, %v5593
      %v5595 = vpop.f32.mrb[0].mxu0
      %v5596 = vpop.f32.mrb[0].mxu0
      %v5597 = vadd.f32 0.0, %v5596
      %v5598 = vpop.f32.mrb[0].mxu0
      %5599 = vmatprep.mubr.bf16.mxu0 0
      %5600 = vmatmul.mubr.bf16.gmra.mrb[0].mxu0 %v2339
      %v5601 = vpop.f32.mrb[0].mxu0
      %v5602 = vadd.f32 0.0, %v5601
      %v5603 = vpop.f32.mrb[0].mxu0
      %v5604 = vpop.f32.mrb[0].mxu0
      %v5605 = vadd.f32 0.0, %v5604
      %v5606 = vpop.f32.mrb[0].mxu0
      %5607 = vmatprep.mubr.bf16.mxu0 0
      %5608 = vmatmul.mubr.bf16.gmra.mrb[0].mxu0 %v2342
      %v5609 = vpop.f32.mrb[0].mxu0
      %v5610 = vadd.f32 0.0, %v5609
      %v5611 = vpop.f32.mrb[0].mxu0
      %v5612 = vpop.f32.mrb[0].mxu0
      %v5613 = vadd.f32 0.0, %v5612
      %v5614 = vpop.f32.mrb[0].mxu0
      %5615 = vmatprep.mubr.bf16.mxu0 0
      %5616 = vmatmul.mubr.bf16.gmra.mrb[0].mxu0 %v4117
      %v5617 = vpop.f32.mrb[0].mxu0
      %v5618 = vadd.f32 0.0, %v5617
      %v5619 = vpop.f32.mrb[0].mxu0
      %v5620 = vpop.f32.mrb[0].mxu0
      %v5621 = vadd.f32 0.0, %v5620
      %v5622 = vpop.f32.mrb[0].mxu0
      %5623 = vmatprep.mubr.bf16.mxu0 0
      %5624 = vmatmul.mubr.bf16.gmra.mrb[0].mxu0 %v5469
      %v5625 = vpop.f32.mrb[0].mxu0
      %v5626 = vadd.f32 0.0, %v5625
      %v5627 = vpop.f32.mrb[0].mxu0
      %v5628 = vpop.f32.mrb[0].mxu0
      %v5629 = vadd.f32 0.0, %v5628
      %v5630 = vpop.f32.mrb[0].mxu0
      %5631 = vdwg.mxu0
      %v5632 = vadd.f32 %v5427, %v5506
      %v5633 = vadd.f32 %v5428, %v5509
      %v5634 = vadd.f32 %v5429, %v5514
      %v5635 = vadd.f32 %v5430, %v5517
      %v5636 = vadd.f32 %v5431, %v5522
      %v5637 = vadd.f32 %v5432, %v5525
      %v5638 = vadd.f32 %v5433, %v5530
      %v5639 = vadd.f32 %v5434, %v5533
      %v5640 = vadd.f32 %v5435, %v5538
      %v5641 = vadd.f32 %v5436, %v5541
      %v5642 = vadd.f32 %v5437, %v5546
      %v5643 = vadd.f32 %v5438, %v5549
      %v5644 = vadd.f32 %v5439, %v5554
      %v5645 = vadd.f32 %v5440, %v5557
      %v5646 = vadd.f32 %v5441, %v5562
      %v5647 = vadd.f32 %v5442, %v5565
      %v5648 = vadd.f32 %v5443, %v5570
      %v5649 = vadd.f32 %v5444, %v5573
      %v5650 = vadd.f32 %v5445, %v5578
      %v5651 = vadd.f32 %v5446, %v5581
      %v5652 = vadd.f32 %v5447, %v5586
      %v5653 = vadd.f32 %v5448, %v5589
      %v5654 = vadd.f32 %v5449, %v5594
      %v5655 = vadd.f32 %v5450, %v5597
      %v5656 = vadd.f32 %v5451, %v5602
      %v5657 = vadd.f32 %v5452, %v5605
      %v5658 = vadd.f32 %v5453, %v5610
      %v5659 = vadd.f32 %v5454, %v5613
      %v5660 = vadd.f32 %v5455, %v5618
      %v5661 = vadd.f32 %v5456, %v5621
      %v5662 = vadd.f32 %v5457, %v5626
      %v5663 = vadd.f32 %v5458, %v5629
      %v5665 = vrot.slane %v401, 5
      %v5666 = vrot.slane %v5665, 4
      %v5667 = vrot.slane %v402, 5
      %v5668 = vsel %vm2555, %v5666, %v5667
      %v5669 = vrot.slane %v5667, 4
      %v5670 = vrot.slane %v403, 5
      %v5671 = vsel %vm2555, %v5669, %v5670
      %v5673 = vrot.slane %v455, 5
      %v5674 = vrot.slane %v5673, 4
      %v5675 = vrot.slane %v456, 5
      %v5676 = vsel %vm2555, %v5674, %v5675
      %v5677 = vrot.slane %v5675, 4
      %v5678 = vrot.slane %v457, 5
      %v5679 = vsel %vm2555, %v5677, %v5678
      %v5680 = vunpack.c.l.b16 %v5668
      %v5681 = vunpack.c.l.b16 %v5671
      %v5682 = vpack.c.b16 %v5681, %v5680
      %v5691 = vunpack.c.l.b16 %v522
      %v5692 = vunpack.c.l.b16 %v523
      %v5693 = vunpack.c.l.b16 %v524
      %v5694 = vunpack.c.l.b16 %v525
      %v5695 = vunpack.c.l.b16 %v526
      %v5696 = vunpack.c.l.b16 %v527
      %v5697 = vunpack.c.l.b16 %v528
      %v5698 = vunpack.c.l.b16 %v529
      %v5699 = vpack.c.b16 %v5692, %v5691
      %v5700 = vpack.c.b16 %v5694, %v5693
      %v5701 = vpack.c.b16 %v5696, %v5695
      %v5702 = vpack.c.b16 %v5698, %v5697
      %v5708 = vsel %vm948, %v5682, 0
      %5710 = vmatprep.subr.bf16.mxu0 0
      %5711 = vmatpush1.bf16.msra.mxu0 %v5699
      %5712 = vmatprep.subr.bf16.mxu0 0
      %5713 = vmatpush1.bf16.msra.mxu0 %v5700
      %5714 = vmatprep.subr.bf16.mxu0 0
      %5715 = vmatpush1.bf16.msra.mxu0 %v5701
      %5716 = vmatprep.subr.bf16.mxu0 0
      %5717 = vmatpush1.bf16.msra.mxu0 %v5702
      %5718 = vmatprep.subr.bf16.mxu0 0
      %5719 = vmatpush1.bf16.msra.mxu0 0
      %5720 = vmatprep.subr.bf16.mxu0 0
      %5721 = vmatpush1.bf16.msra.mxu0 0
      %5722 = vmatprep.subr.bf16.mxu0 0
      %5723 = vmatpush1.bf16.msra.mxu0 0
      %5724 = vmatprep.subr.bf16.mxu0 0
      %5725 = vmatpush1.bf16.msra.mxu0 0
      %5726 = vmatprep.subr.bf16.mxu0 0
      %5727 = vmatpush1.bf16.msra.mxu0 0
      %5728 = vmatprep.subr.bf16.mxu0 0
      %5729 = vmatpush1.bf16.msra.mxu0 0
      %5730 = vmatprep.subr.bf16.mxu0 0
      %5731 = vmatpush1.bf16.msra.mxu0 0
      %5732 = vmatprep.subr.bf16.mxu0 0
      %5733 = vmatpush1.bf16.msra.mxu0 0
      %5734 = vmatprep.subr.bf16.mxu0 0
      %5735 = vmatpush1.bf16.msra.mxu0 0
      %5736 = vmatprep.subr.bf16.mxu0 0
      %5737 = vmatpush1.bf16.msra.mxu0 0
      %5738 = vmatprep.subr.bf16.mxu0 0
      %5739 = vmatpush1.bf16.msra.mxu0 0
      %5740 = vmatprep.subr.bf16.mxu0 0
      %5741 = vmatpush1.bf16.msra.mxu0 0
      %5742 = vmatprep.mubr.bf16.mxu0 0
      %5743 = vmatmul.mubr.bf16.gmra.mrb[0].mxu0 %v2875
      %v5744 = vpop.f32.mrb[0].mxu0
      %v5745 = vadd.f32 0.0, %v5744
      %v5746 = vpop.f32.mrb[0].mxu0
      %v5747 = vpop.f32.mrb[0].mxu0
      %v5748 = vadd.f32 0.0, %v5747
      %v5749 = vpop.f32.mrb[0].mxu0
      %5750 = vmatprep.mubr.bf16.mxu0 0
      %5751 = vmatmul.mubr.bf16.gmra.mrb[0].mxu0 %v2878
      %v5752 = vpop.f32.mrb[0].mxu0
      %v5753 = vadd.f32 0.0, %v5752
      %v5754 = vpop.f32.mrb[0].mxu0
      %v5755 = vpop.f32.mrb[0].mxu0
      %v5756 = vadd.f32 0.0, %v5755
      %v5757 = vpop.f32.mrb[0].mxu0
      %5758 = vmatprep.mubr.bf16.mxu0 0
      %5759 = vmatmul.mubr.bf16.gmra.mrb[0].mxu0 %v2881
      %v5760 = vpop.f32.mrb[0].mxu0
      %v5761 = vadd.f32 0.0, %v5760
      %v5762 = vpop.f32.mrb[0].mxu0
      %v5763 = vpop.f32.mrb[0].mxu0
      %v5764 = vadd.f32 0.0, %v5763
      %v5765 = vpop.f32.mrb[0].mxu0
      %5766 = vmatprep.mubr.bf16.mxu0 0
      %5767 = vmatmul.mubr.bf16.gmra.mrb[0].mxu0 %v2884
      %v5768 = vpop.f32.mrb[0].mxu0
      %v5769 = vadd.f32 0.0, %v5768
      %v5770 = vpop.f32.mrb[0].mxu0
      %v5771 = vpop.f32.mrb[0].mxu0
      %v5772 = vadd.f32 0.0, %v5771
      %v5773 = vpop.f32.mrb[0].mxu0
      %5774 = vmatprep.mubr.bf16.mxu0 0
      %5775 = vmatmul.mubr.bf16.gmra.mrb[0].mxu0 %v2887
      %v5776 = vpop.f32.mrb[0].mxu0
      %v5777 = vadd.f32 0.0, %v5776
      %v5778 = vpop.f32.mrb[0].mxu0
      %v5779 = vpop.f32.mrb[0].mxu0
      %v5780 = vadd.f32 0.0, %v5779
      %v5781 = vpop.f32.mrb[0].mxu0
      %5782 = vmatprep.mubr.bf16.mxu0 0
      %5783 = vmatmul.mubr.bf16.gmra.mrb[0].mxu0 %v2890
      %v5784 = vpop.f32.mrb[0].mxu0
      %v5785 = vadd.f32 0.0, %v5784
      %v5786 = vpop.f32.mrb[0].mxu0
      %v5787 = vpop.f32.mrb[0].mxu0
      %v5788 = vadd.f32 0.0, %v5787
      %v5789 = vpop.f32.mrb[0].mxu0
      %5790 = vmatprep.mubr.bf16.mxu0 0
      %5791 = vmatmul.mubr.bf16.gmra.mrb[0].mxu0 %v2893
      %v5792 = vpop.f32.mrb[0].mxu0
      %v5793 = vadd.f32 0.0, %v5792
      %v5794 = vpop.f32.mrb[0].mxu0
      %v5795 = vpop.f32.mrb[0].mxu0
      %v5796 = vadd.f32 0.0, %v5795
      %v5797 = vpop.f32.mrb[0].mxu0
      %5798 = vmatprep.mubr.bf16.mxu0 0
      %5799 = vmatmul.mubr.bf16.gmra.mrb[0].mxu0 %v2896
      %v5800 = vpop.f32.mrb[0].mxu0
      %v5801 = vadd.f32 0.0, %v5800
      %v5802 = vpop.f32.mrb[0].mxu0
      %v5803 = vpop.f32.mrb[0].mxu0
      %v5804 = vadd.f32 0.0, %v5803
      %v5805 = vpop.f32.mrb[0].mxu0
      %5806 = vmatprep.mubr.bf16.mxu0 0
      %5807 = vmatmul.mubr.bf16.gmra.mrb[0].mxu0 %v2899
      %v5808 = vpop.f32.mrb[0].mxu0
      %v5809 = vadd.f32 0.0, %v5808
      %v5810 = vpop.f32.mrb[0].mxu0
      %v5811 = vpop.f32.mrb[0].mxu0
      %v5812 = vadd.f32 0.0, %v5811
      %v5813 = vpop.f32.mrb[0].mxu0
      %5814 = vmatprep.mubr.bf16.mxu0 0
      %5815 = vmatmul.mubr.bf16.gmra.mrb[0].mxu0 %v2902
      %v5816 = vpop.f32.mrb[0].mxu0
      %v5817 = vadd.f32 0.0, %v5816
      %v5818 = vpop.f32.mrb[0].mxu0
      %v5819 = vpop.f32.mrb[0].mxu0
      %v5820 = vadd.f32 0.0, %v5819
      %v5821 = vpop.f32.mrb[0].mxu0
      %5822 = vmatprep.mubr.bf16.mxu0 0
      %5823 = vmatmul.mubr.bf16.gmra.mrb[0].mxu0 %v2905
      %v5824 = vpop.f32.mrb[0].mxu0
      %v5825 = vadd.f32 0.0, %v5824
      %v5826 = vpop.f32.mrb[0].mxu0
      %v5827 = vpop.f32.mrb[0].mxu0
      %v5828 = vadd.f32 0.0, %v5827
      %v5829 = vpop.f32.mrb[0].mxu0
      %5830 = vmatprep.mubr.bf16.mxu0 0
      %5831 = vmatmul.mubr.bf16.gmra.mrb[0].mxu0 %v2908
      %v5832 = vpop.f32.mrb[0].mxu0
      %v5833 = vadd.f32 0.0, %v5832
      %v5834 = vpop.f32.mrb[0].mxu0
      %v5835 = vpop.f32.mrb[0].mxu0
      %v5836 = vadd.f32 0.0, %v5835
      %v5837 = vpop.f32.mrb[0].mxu0
      %5838 = vmatprep.mubr.bf16.mxu0 0
      %5839 = vmatmul.mubr.bf16.gmra.mrb[0].mxu0 %v2911
      %v5840 = vpop.f32.mrb[0].mxu0
      %v5841 = vadd.f32 0.0, %v5840
      %v5842 = vpop.f32.mrb[0].mxu0
      %v5843 = vpop.f32.mrb[0].mxu0
      %v5844 = vadd.f32 0.0, %v5843
      %v5845 = vpop.f32.mrb[0].mxu0
      %5846 = vmatprep.mubr.bf16.mxu0 0
      %5847 = vmatmul.mubr.bf16.gmra.mrb[0].mxu0 %v2914
      %v5848 = vpop.f32.mrb[0].mxu0
      %v5849 = vadd.f32 0.0, %v5848
      %v5850 = vpop.f32.mrb[0].mxu0
      %v5851 = vpop.f32.mrb[0].mxu0
      %v5852 = vadd.f32 0.0, %v5851
      %v5853 = vpop.f32.mrb[0].mxu0
      %5854 = vmatprep.mubr.bf16.mxu0 0
      %5855 = vmatmul.mubr.bf16.gmra.mrb[0].mxu0 %v4356
      %v5856 = vpop.f32.mrb[0].mxu0
      %v5857 = vadd.f32 0.0, %v5856
      %v5858 = vpop.f32.mrb[0].mxu0
      %v5859 = vpop.f32.mrb[0].mxu0
      %v5860 = vadd.f32 0.0, %v5859
      %v5861 = vpop.f32.mrb[0].mxu0
      %5862 = vmatprep.mubr.bf16.mxu0 0
      %5863 = vmatmul.mubr.bf16.gmra.mrb[0].mxu0 %v5708
      %v5864 = vpop.f32.mrb[0].mxu0
      %v5865 = vadd.f32 0.0, %v5864
      %v5866 = vpop.f32.mrb[0].mxu0
      %v5867 = vpop.f32.mrb[0].mxu0
      %v5868 = vadd.f32 0.0, %v5867
      %v5869 = vpop.f32.mrb[0].mxu0
      %5870 = vdwg.mxu0
      %v5871 = vadd.f32 %v5632, %v5745
      %v5872 = vadd.f32 %v5633, %v5748
      %v5873 = vadd.f32 %v5634, %v5753
      %v5874 = vadd.f32 %v5635, %v5756
      %v5875 = vadd.f32 %v5636, %v5761
      %v5876 = vadd.f32 %v5637, %v5764
      %v5877 = vadd.f32 %v5638, %v5769
      %v5878 = vadd.f32 %v5639, %v5772
      %v5879 = vadd.f32 %v5640, %v5777
      %v5880 = vadd.f32 %v5641, %v5780
      %v5881 = vadd.f32 %v5642, %v5785
      %v5882 = vadd.f32 %v5643, %v5788
      %v5883 = vadd.f32 %v5644, %v5793
      %v5884 = vadd.f32 %v5645, %v5796
      %v5885 = vadd.f32 %v5646, %v5801
      %v5886 = vadd.f32 %v5647, %v5804
      %v5887 = vadd.f32 %v5648, %v5809
      %v5888 = vadd.f32 %v5649, %v5812
      %v5889 = vadd.f32 %v5650, %v5817
      %v5890 = vadd.f32 %v5651, %v5820
      %v5891 = vadd.f32 %v5652, %v5825
      %v5892 = vadd.f32 %v5653, %v5828
      %v5893 = vadd.f32 %v5654, %v5833
      %v5894 = vadd.f32 %v5655, %v5836
      %v5895 = vadd.f32 %v5656, %v5841
      %v5896 = vadd.f32 %v5657, %v5844
      %v5897 = vadd.f32 %v5658, %v5849
      %v5898 = vadd.f32 %v5659, %v5852
      %v5899 = vadd.f32 %v5660, %v5857
      %v5900 = vadd.f32 %v5661, %v5860
      %v5901 = vadd.f32 %v5662, %v5865
      %v5902 = vadd.f32 %v5663, %v5868
      %v5903 = vunpack.c.l.b16 %v5676
      %v5904 = vunpack.c.l.b16 %v5679
      %v5905 = vpack.c.b16 %v5904, %v5903
      %v5908 = vunpack.c.l.b16 %v546
      %v5909 = vunpack.c.l.b16 %v547
      %v5910 = vpack.c.b16 %v5909, %v5908
      %v5913 = vsel %vm634, %v5905, 0
      %5915 = vmatprep.subr.bf16.mxu0 0
      %5916 = vmatpush1.bf16.msra.mxu0 %v5910
      %5917 = vmatprep.subr.bf16.mxu0 0
      %5918 = vmatpush1.bf16.msra.mxu0 0
      %5919 = vmatprep.subr.bf16.mxu0 0
      %5920 = vmatpush1.bf16.msra.mxu0 0
      %5921 = vmatprep.subr.bf16.mxu0 0
      %5922 = vmatpush1.bf16.msra.mxu0 0
      %5923 = vmatprep.subr.bf16.mxu0 0
      %5924 = vmatpush1.bf16.msra.mxu0 0
      %5925 = vmatprep.subr.bf16.mxu0 0
      %5926 = vmatpush1.bf16.msra.mxu0 0
      %5927 = vmatprep.subr.bf16.mxu0 0
      %5928 = vmatpush1.bf16.msra.mxu0 0
      %5929 = vmatprep.subr.bf16.mxu0 0
      %5930 = vmatpush1.bf16.msra.mxu0 0
      %5931 = vmatprep.subr.bf16.mxu0 0
      %5932 = vmatpush1.bf16.msra.mxu0 0
      %5933 = vmatprep.subr.bf16.mxu0 0
      %5934 = vmatpush1.bf16.msra.mxu0 0
      %5935 = vmatprep.subr.bf16.mxu0 0
      %5936 = vmatpush1.bf16.msra.mxu0 0
      %5937 = vmatprep.subr.bf16.mxu0 0
      %5938 = vmatpush1.bf16.msra.mxu0 0
      %5939 = vmatprep.subr.bf16.mxu0 0
      %5940 = vmatpush1.bf16.msra.mxu0 0
      %5941 = vmatprep.subr.bf16.mxu0 0
      %5942 = vmatpush1.bf16.msra.mxu0 0
      %5943 = vmatprep.subr.bf16.mxu0 0
      %5944 = vmatpush1.bf16.msra.mxu0 0
      %5945 = vmatprep.subr.bf16.mxu0 0
      %5946 = vmatpush1.bf16.msra.mxu0 0
      %5947 = vmatprep.mubr.bf16.mxu0 0
      %5948 = vmatmul.mubr.bf16.gmra.mrb[0].mxu0 %v3170
      %v5949 = vpop.f32.mrb[0].mxu0
      %v5950 = vadd.f32 0.0, %v5949
      %v5951 = vpop.f32.mrb[0].mxu0
      %v5952 = vpop.f32.mrb[0].mxu0
      %v5953 = vadd.f32 0.0, %v5952
      %v5954 = vpop.f32.mrb[0].mxu0
      %5955 = vmatprep.mubr.bf16.mxu0 0
      %5956 = vmatmul.mubr.bf16.gmra.mrb[0].mxu0 %v3173
      %v5957 = vpop.f32.mrb[0].mxu0
      %v5958 = vadd.f32 0.0, %v5957
      %v5959 = vpop.f32.mrb[0].mxu0
      %v5960 = vpop.f32.mrb[0].mxu0
      %v5961 = vadd.f32 0.0, %v5960
      %v5962 = vpop.f32.mrb[0].mxu0
      %5963 = vmatprep.mubr.bf16.mxu0 0
      %5964 = vmatmul.mubr.bf16.gmra.mrb[0].mxu0 %v3176
      %v5965 = vpop.f32.mrb[0].mxu0
      %v5966 = vadd.f32 0.0, %v5965
      %v5967 = vpop.f32.mrb[0].mxu0
      %v5968 = vpop.f32.mrb[0].mxu0
      %v5969 = vadd.f32 0.0, %v5968
      %v5970 = vpop.f32.mrb[0].mxu0
      %5971 = vmatprep.mubr.bf16.mxu0 0
      %5972 = vmatmul.mubr.bf16.gmra.mrb[0].mxu0 %v3179
      %v5973 = vpop.f32.mrb[0].mxu0
      %v5974 = vadd.f32 0.0, %v5973
      %v5975 = vpop.f32.mrb[0].mxu0
      %v5976 = vpop.f32.mrb[0].mxu0
      %v5977 = vadd.f32 0.0, %v5976
      %v5978 = vpop.f32.mrb[0].mxu0
      %5979 = vmatprep.mubr.bf16.mxu0 0
      %5980 = vmatmul.mubr.bf16.gmra.mrb[0].mxu0 %v3182
      %v5981 = vpop.f32.mrb[0].mxu0
      %v5982 = vadd.f32 0.0, %v5981
      %v5983 = vpop.f32.mrb[0].mxu0
      %v5984 = vpop.f32.mrb[0].mxu0
      %v5985 = vadd.f32 0.0, %v5984
      %v5986 = vpop.f32.mrb[0].mxu0
      %5987 = vmatprep.mubr.bf16.mxu0 0
      %5988 = vmatmul.mubr.bf16.gmra.mrb[0].mxu0 %v3185
      %v5989 = vpop.f32.mrb[0].mxu0
      %v5990 = vadd.f32 0.0, %v5989
      %v5991 = vpop.f32.mrb[0].mxu0
      %v5992 = vpop.f32.mrb[0].mxu0
      %v5993 = vadd.f32 0.0, %v5992
      %v5994 = vpop.f32.mrb[0].mxu0
      %5995 = vmatprep.mubr.bf16.mxu0 0
      %5996 = vmatmul.mubr.bf16.gmra.mrb[0].mxu0 %v3188
      %v5997 = vpop.f32.mrb[0].mxu0
      %v5998 = vadd.f32 0.0, %v5997
      %v5999 = vpop.f32.mrb[0].mxu0
      %v6000 = vpop.f32.mrb[0].mxu0
      %v6001 = vadd.f32 0.0, %v6000
      %v6002 = vpop.f32.mrb[0].mxu0
      %6003 = vmatprep.mubr.bf16.mxu0 0
      %6004 = vmatmul.mubr.bf16.gmra.mrb[0].mxu0 %v3191
      %v6005 = vpop.f32.mrb[0].mxu0
      %v6006 = vadd.f32 0.0, %v6005
      %v6007 = vpop.f32.mrb[0].mxu0
      %v6008 = vpop.f32.mrb[0].mxu0
      %v6009 = vadd.f32 0.0, %v6008
      %v6010 = vpop.f32.mrb[0].mxu0
      %6011 = vmatprep.mubr.bf16.mxu0 0
      %6012 = vmatmul.mubr.bf16.gmra.mrb[0].mxu0 %v3194
      %v6013 = vpop.f32.mrb[0].mxu0
      %v6014 = vadd.f32 0.0, %v6013
      %v6015 = vpop.f32.mrb[0].mxu0
      %v6016 = vpop.f32.mrb[0].mxu0
      %v6017 = vadd.f32 0.0, %v6016
      %v6018 = vpop.f32.mrb[0].mxu0
      %6019 = vmatprep.mubr.bf16.mxu0 0
      %6020 = vmatmul.mubr.bf16.gmra.mrb[0].mxu0 %v3197
      %v6021 = vpop.f32.mrb[0].mxu0
      %v6022 = vadd.f32 0.0, %v6021
      %v6023 = vpop.f32.mrb[0].mxu0
      %v6024 = vpop.f32.mrb[0].mxu0
      %v6025 = vadd.f32 0.0, %v6024
      %v6026 = vpop.f32.mrb[0].mxu0
      %6027 = vmatprep.mubr.bf16.mxu0 0
      %6028 = vmatmul.mubr.bf16.gmra.mrb[0].mxu0 %v3200
      %v6029 = vpop.f32.mrb[0].mxu0
      %v6030 = vadd.f32 0.0, %v6029
      %v6031 = vpop.f32.mrb[0].mxu0
      %v6032 = vpop.f32.mrb[0].mxu0
      %v6033 = vadd.f32 0.0, %v6032
      %v6034 = vpop.f32.mrb[0].mxu0
      %6035 = vmatprep.mubr.bf16.mxu0 0
      %6036 = vmatmul.mubr.bf16.gmra.mrb[0].mxu0 %v3203
      %v6037 = vpop.f32.mrb[0].mxu0
      %v6038 = vadd.f32 0.0, %v6037
      %v6039 = vpop.f32.mrb[0].mxu0
      %v6040 = vpop.f32.mrb[0].mxu0
      %v6041 = vadd.f32 0.0, %v6040
      %v6042 = vpop.f32.mrb[0].mxu0
      %6043 = vmatprep.mubr.bf16.mxu0 0
      %6044 = vmatmul.mubr.bf16.gmra.mrb[0].mxu0 %v3206
      %v6045 = vpop.f32.mrb[0].mxu0
      %v6046 = vadd.f32 0.0, %v6045
      %v6047 = vpop.f32.mrb[0].mxu0
      %v6048 = vpop.f32.mrb[0].mxu0
      %v6049 = vadd.f32 0.0, %v6048
      %v6050 = vpop.f32.mrb[0].mxu0
      %6051 = vmatprep.mubr.bf16.mxu0 0
      %6052 = vmatmul.mubr.bf16.gmra.mrb[0].mxu0 %v3209
      %v6053 = vpop.f32.mrb[0].mxu0
      %v6054 = vadd.f32 0.0, %v6053
      %v6055 = vpop.f32.mrb[0].mxu0
      %v6056 = vpop.f32.mrb[0].mxu0
      %v6057 = vadd.f32 0.0, %v6056
      %v6058 = vpop.f32.mrb[0].mxu0
      %6059 = vmatprep.mubr.bf16.mxu0 0
      %6060 = vmatmul.mubr.bf16.gmra.mrb[0].mxu0 %v4561
      %v6061 = vpop.f32.mrb[0].mxu0
      %v6062 = vadd.f32 0.0, %v6061
      %v6063 = vpop.f32.mrb[0].mxu0
      %v6064 = vpop.f32.mrb[0].mxu0
      %v6065 = vadd.f32 0.0, %v6064
      %v6066 = vpop.f32.mrb[0].mxu0
      %6067 = vmatprep.mubr.bf16.mxu0 0
      %6068 = vmatmul.mubr.bf16.gmra.mrb[0].mxu0 %v5913
      %v6069 = vpop.f32.mrb[0].mxu0
      %v6070 = vadd.f32 0.0, %v6069
      %v6071 = vpop.f32.mrb[0].mxu0
      %v6072 = vpop.f32.mrb[0].mxu0
      %v6073 = vadd.f32 0.0, %v6072
      %v6074 = vpop.f32.mrb[0].mxu0
      %6075 = vdwg.mxu0
      %v6076 = vadd.f32 %v5871, %v5950
      %v6077 = vadd.f32 %v5872, %v5953
      %v6078 = vadd.f32 %v5873, %v5958
      %v6079 = vadd.f32 %v5874, %v5961
      %v6080 = vadd.f32 %v5875, %v5966
      %v6081 = vadd.f32 %v5876, %v5969
      %v6082 = vadd.f32 %v5877, %v5974
      %v6083 = vadd.f32 %v5878, %v5977
      %v6084 = vadd.f32 %v5879, %v5982
      %v6085 = vadd.f32 %v5880, %v5985
      %v6086 = vadd.f32 %v5881, %v5990
      %v6087 = vadd.f32 %v5882, %v5993
      %v6088 = vadd.f32 %v5883, %v5998
      %v6089 = vadd.f32 %v5884, %v6001
      %v6090 = vadd.f32 %v5885, %v6006
      %v6091 = vadd.f32 %v5886, %v6009
      %v6092 = vadd.f32 %v5887, %v6014
      %v6093 = vadd.f32 %v5888, %v6017
      %v6094 = vadd.f32 %v5889, %v6022
      %v6095 = vadd.f32 %v5890, %v6025
      %v6096 = vadd.f32 %v5891, %v6030
      %v6097 = vadd.f32 %v5892, %v6033
      %v6098 = vadd.f32 %v5893, %v6038
      %v6099 = vadd.f32 %v5894, %v6041
      %v6100 = vadd.f32 %v5895, %v6046
      %v6101 = vadd.f32 %v5896, %v6049
      %v6102 = vadd.f32 %v5897, %v6054
      %v6103 = vadd.f32 %v5898, %v6057
      %v6104 = vadd.f32 %v5899, %v6062
      %v6105 = vadd.f32 %v5900, %v6065
      %v6106 = vadd.f32 %v5901, %v6070
      %v6107 = vadd.f32 %v5902, %v6073
      %v6108 = vld [vmem:[%s4] sm:$0x1]
      %v6110 = vlaneseq
      %v6111 = vshrl.u32 %v6110, 7
      %v6112 = vsub.s32 0, %v6111
      %v6113 = vrot.slane %v6108, %v6112
      %v6115 = vadd.f32 %v6076, %v6113
      %v6116 = vadd.f32 %v6077, %v6113
      %v6117 = vadd.f32 %v6078, %v6113
      %v6118 = vadd.f32 %v6079, %v6113
      %v6119 = vadd.f32 %v6080, %v6113
      %v6120 = vadd.f32 %v6081, %v6113
      %v6121 = vadd.f32 %v6082, %v6113
      %v6122 = vadd.f32 %v6083, %v6113
      %v6123 = vadd.f32 %v6084, %v6113
      %v6124 = vadd.f32 %v6085, %v6113
      %v6125 = vadd.f32 %v6086, %v6113
      %v6126 = vadd.f32 %v6087, %v6113
      %v6127 = vadd.f32 %v6088, %v6113
      %v6128 = vadd.f32 %v6089, %v6113
      %v6129 = vadd.f32 %v6090, %v6113
      %v6130 = vadd.f32 %v6091, %v6113
      %v6131 = vadd.f32 %v6092, %v6113
      %v6132 = vadd.f32 %v6093, %v6113
      %v6133 = vadd.f32 %v6094, %v6113
      %v6134 = vadd.f32 %v6095, %v6113
      %v6135 = vadd.f32 %v6096, %v6113
      %v6136 = vadd.f32 %v6097, %v6113
      %v6137 = vadd.f32 %v6098, %v6113
      %v6138 = vadd.f32 %v6099, %v6113
      %v6139 = vadd.f32 %v6100, %v6113
      %v6140 = vadd.f32 %v6101, %v6113
      %v6141 = vadd.f32 %v6102, %v6113
      %v6142 = vadd.f32 %v6103, %v6113
      %v6143 = vadd.f32 %v6104, %v6113
      %v6144 = vadd.f32 %v6105, %v6113
      %v6145 = vadd.f32 %v6106, %v6113
      %v6146 = vadd.f32 %v6107, %v6113
      %v6147 = vmax.f32 %v6115, 0.0
      %v6148 = vmax.f32 %v6116, 0.0
      %v6149 = vmax.f32 %v6117, 0.0
      %v6150 = vmax.f32 %v6118, 0.0
      %v6151 = vmax.f32 %v6119, 0.0
      %v6152 = vmax.f32 %v6120, 0.0
      %v6153 = vmax.f32 %v6121, 0.0
      %v6154 = vmax.f32 %v6122, 0.0
      %v6155 = vmax.f32 %v6123, 0.0
      %v6156 = vmax.f32 %v6124, 0.0
      %v6157 = vmax.f32 %v6125, 0.0
      %v6158 = vmax.f32 %v6126, 0.0
      %v6159 = vmax.f32 %v6127, 0.0
      %v6160 = vmax.f32 %v6128, 0.0
      %v6161 = vmax.f32 %v6129, 0.0
      %v6162 = vmax.f32 %v6130, 0.0
      %v6163 = vmax.f32 %v6131, 0.0
      %v6164 = vmax.f32 %v6132, 0.0
      %v6165 = vmax.f32 %v6133, 0.0
      %v6166 = vmax.f32 %v6134, 0.0
      %v6167 = vmax.f32 %v6135, 0.0
      %v6168 = vmax.f32 %v6136, 0.0
      %v6169 = vmax.f32 %v6137, 0.0
      %v6170 = vmax.f32 %v6138, 0.0
      %v6171 = vmax.f32 %v6139, 0.0
      %v6172 = vmax.f32 %v6140, 0.0
      %v6173 = vmax.f32 %v6141, 0.0
      %v6174 = vmax.f32 %v6142, 0.0
      %v6175 = vmax.f32 %v6143, 0.0
      %v6176 = vmax.f32 %v6144, 0.0
      %v6177 = vmax.f32 %v6145, 0.0
      %v6178 = vmax.f32 %v6146, 0.0
      %v6179 = vpack.c.bf16 %v6148, %v6147
      %v6180 = vpack.c.bf16 %v6150, %v6149
      %v6181 = vpack.c.bf16 %v6152, %v6151
      %v6182 = vpack.c.bf16 %v6154, %v6153
      %v6183 = vpack.c.bf16 %v6156, %v6155
      %v6184 = vpack.c.bf16 %v6158, %v6157
      %v6185 = vpack.c.bf16 %v6160, %v6159
      %v6186 = vpack.c.bf16 %v6162, %v6161
      %v6187 = vpack.c.bf16 %v6164, %v6163
      %v6188 = vpack.c.bf16 %v6166, %v6165
      %v6189 = vpack.c.bf16 %v6168, %v6167
      %v6190 = vpack.c.bf16 %v6170, %v6169
      %v6191 = vpack.c.bf16 %v6172, %v6171
      %v6192 = vpack.c.bf16 %v6174, %v6173
      %v6193 = vpack.c.bf16 %v6176, %v6175
      %v6194 = vpack.c.bf16 %v6178, %v6177
      %v6195 = vld [vmem:[%s5] sm:$0xf]
      %v6196 = vld [vmem:[%s5 + $0x4] sm:$0xf]
      %v6197 = vld [vmem:[%s5 + $0x8] sm:$0xf]
      %v6198 = vld [vmem:[%s5 + $0xc] sm:$0xf]
      %v6199 = vld [vmem:[%s5 + $0x10] sm:$0xf]
      %v6200 = vld [vmem:[%s5 + $0x14] sm:$0xf]
      %v6201 = vld [vmem:[%s5 + $0x18] sm:$0xf]
      %v6202 = vld [vmem:[%s5 + $0x1c] sm:$0xf]
      %v6203 = vld [vmem:[%s6] sm:$0x1]
      %v6205 = vlaneseq
      %v6206 = vshrl.u32 %v6205, 7
      %v6207 = vsub.s32 0, %v6206
      %v6208 = vrot.slane %v6203, %v6207
      %v6218 = vunpack.c.l.b16 %v6195
      %v6219 = vunpack.c.l.b16 %v6196
      %v6220 = vunpack.c.l.b16 %v6197
      %v6221 = vunpack.c.l.b16 %v6198
      %v6222 = vunpack.c.l.b16 %v6199
      %v6223 = vunpack.c.l.b16 %v6200
      %v6224 = vunpack.c.l.b16 %v6201
      %v6225 = vunpack.c.l.b16 %v6202
      %v6226 = vpack.c.b16 %v6219, %v6218
      %v6227 = vpack.c.b16 %v6221, %v6220
      %v6228 = vpack.c.b16 %v6223, %v6222
      %v6229 = vpack.c.b16 %v6225, %v6224
      %v6235 = vsel %vm948, %v6179, 0
      %v6238 = vsel %vm948, %v6180, 0
      %v6241 = vsel %vm948, %v6181, 0
      %v6244 = vsel %vm948, %v6182, 0
      %v6247 = vsel %vm948, %v6183, 0
      %v6250 = vsel %vm948, %v6184, 0
      %v6253 = vsel %vm948, %v6185, 0
      %v6256 = vsel %vm948, %v6186, 0
      %v6259 = vsel %vm948, %v6187, 0
      %v6262 = vsel %vm948, %v6188, 0
      %v6265 = vsel %vm948, %v6189, 0
      %v6268 = vsel %vm948, %v6190, 0
      %v6271 = vsel %vm948, %v6191, 0
      %v6274 = vsel %vm948, %v6192, 0
      %v6277 = vsel %vm948, %v6193, 0
      %v6280 = vsel %vm948, %v6194, 0
      %6282 = vmatprep.subr.bf16.mxu0 0
      %6283 = vmatpush1.bf16.msra.mxu0 %v6226
      %6284 = vmatprep.subr.bf16.mxu0 0
      %6285 = vmatpush1.bf16.msra.mxu0 %v6227
      %6286 = vmatprep.subr.bf16.mxu0 0
      %6287 = vmatpush1.bf16.msra.mxu0 %v6228
      %6288 = vmatprep.subr.bf16.mxu0 0
      %6289 = vmatpush1.bf16.msra.mxu0 %v6229
      %6290 = vmatprep.subr.bf16.mxu0 0
      %6291 = vmatpush1.bf16.msra.mxu0 0
      %6292 = vmatprep.subr.bf16.mxu0 0
      %6293 = vmatpush1.bf16.msra.mxu0 0
      %6294 = vmatprep.subr.bf16.mxu0 0
      %6295 = vmatpush1.bf16.msra.mxu0 0
      %6296 = vmatprep.subr.bf16.mxu0 0
      %6297 = vmatpush1.bf16.msra.mxu0 0
      %6298 = vmatprep.subr.bf16.mxu0 0
      %6299 = vmatpush1.bf16.msra.mxu0 0
      %6300 = vmatprep.subr.bf16.mxu0 0
      %6301 = vmatpush1.bf16.msra.mxu0 0
      %6302 = vmatprep.subr.bf16.mxu0 0
      %6303 = vmatpush1.bf16.msra.mxu0 0
      %6304 = vmatprep.subr.bf16.mxu0 0
      %6305 = vmatpush1.bf16.msra.mxu0 0
      %6306 = vmatprep.subr.bf16.mxu0 0
      %6307 = vmatpush1.bf16.msra.mxu0 0
      %6308 = vmatprep.subr.bf16.mxu0 0
      %6309 = vmatpush1.bf16.msra.mxu0 0
      %6310 = vmatprep.subr.bf16.mxu0 0
      %6311 = vmatpush1.bf16.msra.mxu0 0
      %6312 = vmatprep.subr.bf16.mxu0 0
      %6313 = vmatpush1.bf16.msra.mxu0 0
      %6314 = vmatprep.mubr.bf16.mxu0 0
      %6315 = vmatmul.mubr.bf16.gmra.mrb[0].mxu0 %v6235
      %v6316 = vpop.f32.mrb[0].mxu0
      %v6317 = vadd.f32 %v6208, %v6316
      %v6318 = vpop.f32.mrb[0].mxu0
      %v6319 = vpop.f32.mrb[0].mxu0
      %v6320 = vadd.f32 %v6208, %v6319
      %v6321 = vpop.f32.mrb[0].mxu0
      %6322 = vmatprep.mubr.bf16.mxu0 0
      %6323 = vmatmul.mubr.bf16.gmra.mrb[0].mxu0 %v6238
      %v6324 = vpop.f32.mrb[0].mxu0
      %v6325 = vadd.f32 %v6208, %v6324
      %v6326 = vpop.f32.mrb[0].mxu0
      %v6327 = vpop.f32.mrb[0].mxu0
      %v6328 = vadd.f32 %v6208, %v6327
      %v6329 = vpop.f32.mrb[0].mxu0
      %6330 = vmatprep.mubr.bf16.mxu0 0
      %6331 = vmatmul.mubr.bf16.gmra.mrb[0].mxu0 %v6241
      %v6332 = vpop.f32.mrb[0].mxu0
      %v6333 = vadd.f32 %v6208, %v6332
      %v6334 = vpop.f32.mrb[0].mxu0
      %v6335 = vpop.f32.mrb[0].mxu0
      %v6336 = vadd.f32 %v6208, %v6335
      %v6337 = vpop.f32.mrb[0].mxu0
      %6338 = vmatprep.mubr.bf16.mxu0 0
      %6339 = vmatmul.mubr.bf16.gmra.mrb[0].mxu0 %v6244
      %v6340 = vpop.f32.mrb[0].mxu0
      %v6341 = vadd.f32 %v6208, %v6340
      %v6342 = vpop.f32.mrb[0].mxu0
      %v6343 = vpop.f32.mrb[0].mxu0
      %v6344 = vadd.f32 %v6208, %v6343
      %v6345 = vpop.f32.mrb[0].mxu0
      %6346 = vmatprep.mubr.bf16.mxu0 0
      %6347 = vmatmul.mubr.bf16.gmra.mrb[0].mxu0 %v6247
      %v6348 = vpop.f32.mrb[0].mxu0
      %v6349 = vadd.f32 %v6208, %v6348
      %v6350 = vpop.f32.mrb[0].mxu0
      %v6351 = vpop.f32.mrb[0].mxu0
      %v6352 = vadd.f32 %v6208, %v6351
      %v6353 = vpop.f32.mrb[0].mxu0
      %6354 = vmatprep.mubr.bf16.mxu0 0
      %6355 = vmatmul.mubr.bf16.gmra.mrb[0].mxu0 %v6250
      %v6356 = vpop.f32.mrb[0].mxu0
      %v6357 = vadd.f32 %v6208, %v6356
      %v6358 = vpop.f32.mrb[0].mxu0
      %v6359 = vpop.f32.mrb[0].mxu0
      %v6360 = vadd.f32 %v6208, %v6359
      %v6361 = vpop.f32.mrb[0].mxu0
      %6362 = vmatprep.mubr.bf16.mxu0 0
      %6363 = vmatmul.mubr.bf16.gmra.mrb[0].mxu0 %v6253
      %v6364 = vpop.f32.mrb[0].mxu0
      %v6365 = vadd.f32 %v6208, %v6364
      %v6366 = vpop.f32.mrb[0].mxu0
      %v6367 = vpop.f32.mrb[0].mxu0
      %v6368 = vadd.f32 %v6208, %v6367
      %v6369 = vpop.f32.mrb[0].mxu0
      %6370 = vmatprep.mubr.bf16.mxu0 0
      %6371 = vmatmul.mubr.bf16.gmra.mrb[0].mxu0 %v6256
      %v6372 = vpop.f32.mrb[0].mxu0
      %v6373 = vadd.f32 %v6208, %v6372
      %v6374 = vpop.f32.mrb[0].mxu0
      %v6375 = vpop.f32.mrb[0].mxu0
      %v6376 = vadd.f32 %v6208, %v6375
      %v6377 = vpop.f32.mrb[0].mxu0
      %6378 = vmatprep.mubr.bf16.mxu0 0
      %6379 = vmatmul.mubr.bf16.gmra.mrb[0].mxu0 %v6259
      %v6380 = vpop.f32.mrb[0].mxu0
      %v6381 = vadd.f32 %v6208, %v6380
      %v6382 = vpop.f32.mrb[0].mxu0
      %v6383 = vpop.f32.mrb[0].mxu0
      %v6384 = vadd.f32 %v6208, %v6383
      %v6385 = vpop.f32.mrb[0].mxu0
      %6386 = vmatprep.mubr.bf16.mxu0 0
      %6387 = vmatmul.mubr.bf16.gmra.mrb[0].mxu0 %v6262
      %v6388 = vpop.f32.mrb[0].mxu0
      %v6389 = vadd.f32 %v6208, %v6388
      %v6390 = vpop.f32.mrb[0].mxu0
      %v6391 = vpop.f32.mrb[0].mxu0
      %v6392 = vadd.f32 %v6208, %v6391
      %v6393 = vpop.f32.mrb[0].mxu0
      %6394 = vmatprep.mubr.bf16.mxu0 0
      %6395 = vmatmul.mubr.bf16.gmra.mrb[0].mxu0 %v6265
      %v6396 = vpop.f32.mrb[0].mxu0
      %v6397 = vadd.f32 %v6208, %v6396
      %v6398 = vpop.f32.mrb[0].mxu0
      %v6399 = vpop.f32.mrb[0].mxu0
      %v6400 = vadd.f32 %v6208, %v6399
      %v6401 = vpop.f32.mrb[0].mxu0
      %6402 = vmatprep.mubr.bf16.mxu0 0
      %6403 = vmatmul.mubr.bf16.gmra.mrb[0].mxu0 %v6268
      %v6404 = vpop.f32.mrb[0].mxu0
      %v6405 = vadd.f32 %v6208, %v6404
      %v6406 = vpop.f32.mrb[0].mxu0
      %v6407 = vpop.f32.mrb[0].mxu0
      %v6408 = vadd.f32 %v6208, %v6407
      %v6409 = vpop.f32.mrb[0].mxu0
      %6410 = vmatprep.mubr.bf16.mxu0 0
      %6411 = vmatmul.mubr.bf16.gmra.mrb[0].mxu0 %v6271
      %v6412 = vpop.f32.mrb[0].mxu0
      %v6413 = vadd.f32 %v6208, %v6412
      %v6414 = vpop.f32.mrb[0].mxu0
      %v6415 = vpop.f32.mrb[0].mxu0
      %v6416 = vadd.f32 %v6208, %v6415
      %v6417 = vpop.f32.mrb[0].mxu0
      %6418 = vmatprep.mubr.bf16.mxu0 0
      %6419 = vmatmul.mubr.bf16.gmra.mrb[0].mxu0 %v6274
      %v6420 = vpop.f32.mrb[0].mxu0
      %v6421 = vadd.f32 %v6208, %v6420
      %v6422 = vpop.f32.mrb[0].mxu0
      %v6423 = vpop.f32.mrb[0].mxu0
      %v6424 = vadd.f32 %v6208, %v6423
      %v6425 = vpop.f32.mrb[0].mxu0
      %6426 = vmatprep.mubr.bf16.mxu0 0
      %6427 = vmatmul.mubr.bf16.gmra.mrb[0].mxu0 %v6277
      %v6428 = vpop.f32.mrb[0].mxu0
      %v6429 = vadd.f32 %v6208, %v6428
      %v6430 = vpop.f32.mrb[0].mxu0
      %v6431 = vpop.f32.mrb[0].mxu0
      %v6432 = vadd.f32 %v6208, %v6431
      %v6433 = vpop.f32.mrb[0].mxu0
      %6434 = vmatprep.mubr.bf16.mxu0 0
      %6435 = vmatmul.mubr.bf16.gmra.mrb[0].mxu0 %v6280
      %v6436 = vpop.f32.mrb[0].mxu0
      %v6437 = vadd.f32 %v6208, %v6436
      %v6438 = vpop.f32.mrb[0].mxu0
      %v6439 = vpop.f32.mrb[0].mxu0
      %v6440 = vadd.f32 %v6208, %v6439
      %v6441 = vpop.f32.mrb[0].mxu0
      %6442 = vdwg.mxu0
      %vm6443 = vcmask 39936
      %6444 = vst.msk [vmem:[%s348] sm:$0xff] %vm6443, %v6317
      %6445 = vst.msk [vmem:[%s348 + $0x8] sm:$0xff] %vm6443, %v6320
      %6446 = vst.msk [vmem:[%s348 + $0x10] sm:$0xff] %vm6443, %v6325
      %6447 = vst.msk [vmem:[%s348 + $0x18] sm:$0xff] %vm6443, %v6328
      %6448 = vst.msk [vmem:[%s348 + $0x20] sm:$0xff] %vm6443, %v6333
      %6449 = vst.msk [vmem:[%s348 + $0x28] sm:$0xff] %vm6443, %v6336
      %6450 = vst.msk [vmem:[%s348 + $0x30] sm:$0xff] %vm6443, %v6341
      %6451 = vst.msk [vmem:[%s348 + $0x38] sm:$0xff] %vm6443, %v6344
      %6452 = vst.msk [vmem:[%s348 + $0x40] sm:$0xff] %vm6443, %v6349
      %6453 = vst.msk [vmem:[%s348 + $0x48] sm:$0xff] %vm6443, %v6352
      %6454 = vst.msk [vmem:[%s348 + $0x50] sm:$0xff] %vm6443, %v6357
      %6455 = vst.msk [vmem:[%s348 + $0x58] sm:$0xff] %vm6443, %v6360
      %6456 = vst.msk [vmem:[%s348 + $0x60] sm:$0xff] %vm6443, %v6365
      %6457 = vst.msk [vmem:[%s348 + $0x68] sm:$0xff] %vm6443, %v6368
      %6458 = vst.msk [vmem:[%s348 + $0x70] sm:$0xff] %vm6443, %v6373
      %6459 = vst.msk [vmem:[%s348 + $0x78] sm:$0xff] %vm6443, %v6376
      %6460 = vst.msk [vmem:[%s348 + $0x80] sm:$0xff] %vm6443, %v6381
      %6461 = vst.msk [vmem:[%s348 + $0x88] sm:$0xff] %vm6443, %v6384
      %6462 = vst.msk [vmem:[%s348 + $0x90] sm:$0xff] %vm6443, %v6389
      %6463 = vst.msk [vmem:[%s348 + $0x98] sm:$0xff] %vm6443, %v6392
      %6464 = vst.msk [vmem:[%s348 + $0xa0] sm:$0xff] %vm6443, %v6397
      %6465 = vst.msk [vmem:[%s348 + $0xa8] sm:$0xff] %vm6443, %v6400
      %6466 = vst.msk [vmem:[%s348 + $0xb0] sm:$0xff] %vm6443, %v6405
      %6467 = vst.msk [vmem:[%s348 + $0xb8] sm:$0xff] %vm6443, %v6408
      %6468 = vst.msk [vmem:[%s348 + $0xc0] sm:$0xff] %vm6443, %v6413
      %6469 = vst.msk [vmem:[%s348 + $0xc8] sm:$0xff] %vm6443, %v6416
      %6470 = vst.msk [vmem:[%s348 + $0xd0] sm:$0xff] %vm6443, %v6421
      %6471 = vst.msk [vmem:[%s348 + $0xd8] sm:$0xff] %vm6443, %v6424
      %6472 = vst.msk [vmem:[%s348 + $0xe0] sm:$0xff] %vm6443, %v6429
      %6473 = vst.msk [vmem:[%s348 + $0xe8] sm:$0xff] %vm6443, %v6432
      %6474 = vst.msk [vmem:[%s348 + $0xf0] sm:$0xff] %vm6443, %v6437
      %6475 = vst.msk [vmem:[%s348 + $0xf8] sm:$0xff] %vm6443, %v6440
      %p6476 = scmp.lt.s32.totalorder %s22, 1
      %s6477 = scalar_select %p6476, %s22, 1
      %p6478 = scmp.lt.s32.totalorder %s23, 0
      %s6479 = scalar_select %p6478, %s23, 0
      %s6480 = smul.addr %s6479, 32
      %s6481 = smul.addr %s6477, 32
      %s6482 = sadd.s32 %s6480, %s6481
      %s6483 = smul.addr %s6482, 8
      %s6484 = scalar_lea.vmem %s7, %s6483
      // Predicated region
      $region49: #{easpp_decoder5_forward.9} parent=47 // pred_check
        %p6485 = pneg %p211
      $region50: #{easpp_decoder5_forward.9} parent=47 // pred_check_branch
        %6487 = sbr.rel (%p6485) target = $region52
      $region51: #{easpp_decoder5_forward.9} parent=47 // pred_region
        _
      $region52: #{easpp_decoder5_forward.9} parent=47 // pred_fallthru
        _
    $region48: #{easpp_decoder5_forward.9} parent=5 // pred_fallthru
      _
    %p6488 = scmp.le.s32.totalorder 2, %s13
    // Predicated region
    $region53: #{easpp_decoder5_forward.9} parent=5 // pred_check
      %p6489 = pneg %p6488
    $region54: #{easpp_decoder5_forward.9} parent=5 // pred_check_branch
      %6491 = sbr.rel (%p6489) target = $region56
    $region55: #{easpp_decoder5_forward.9} parent=5 // pred_region
      %s6492 = ssub.s32 %s13, 2
      // Predicated region
      $region57: #{easpp_decoder5_forward.9} parent=55 // pred_check
        %p6493 = pneg %p217
      $region58: #{easpp_decoder5_forward.9} parent=55 // pred_check_branch
        %6495 = sbr.rel (%p6493) target = $region60
      $region59: #{easpp_decoder5_forward.9} parent=55 // pred_region
        %p6496 = scmp.lt.s32.totalorder %s24, 1
        %s6497 = scalar_select %p6496, %s24, 1
        %p6498 = scmp.lt.s32.totalorder %s25, 0
        %s6499 = scalar_select %p6498, %s25, 0
        %s6500 = smul.addr %s6499, 32
        %s6501 = smul.addr %s6497, 32
        %s6502 = sadd.s32 %s6500, %s6501
        %s6503 = smul.addr %s6502, 8
        %s6504 = scalar_lea.vmem %s7, %s6503
      $region60: #{easpp_decoder5_forward.9} parent=55 // pred_fallthru
        _
    $region56: #{easpp_decoder5_forward.9} parent=5 // pred_fallthru
      _
  $region6: #{easpp_decoder5_forward.9} parent=0 // loop_footer
    %s17 = sadd.s32 1, %s13
  $region7: #{easpp_decoder5_forward.9} parent=0 // loop_footer_branch
    %12 = sbr.rel target = $region3
  $region8: #{easpp_decoder5_forward.9} parent=0 // loop_exit
    _

</llo_original>
